<compile_context>
chip_gen: v7x
topology: tpu7x:2x2x1
jax: 0.10.0
libtpu: 0.0.40
codegen_flags: <defaults>
</compile_context>

<pallas_src>
import jax
import jax.numpy as jnp
from jax import lax
from jax.experimental import pallas as pl
from jax.experimental.pallas import tpu as pltpu


# ------------------------------ Conv stack kernel ------------------------------

def _conv_kernel(x_ref, *refs):
    """One phrase (B rows) through Conv1d(K)->AvgPool1d(3)->ReLU x4, channel-last.

    Each Conv1d is one im2col matmul; AvgPool1d(3) is a pooling-matrix matmul.
    Output is written time-major: (T_out, 1, B, C_last)."""
    out_ref = refs[-1]
    prm = refs[:-1]                       # (w_flat, bias, pool-matrix) triples
    n_layers = len(prm) // 3
    nb = x_ref.shape[1]
    # TODO(synk): nn.Dropout(p) before the first conv is an inference-mode identity; omitted.
    ys = []
    for b in range(nb):
        y = x_ref[0, b].astype(jnp.float32)                       # (T_in, C_in)
        for i in range(n_layers):
            w_ref, b_ref, p_ref = prm[3 * i], prm[3 * i + 1], prm[3 * i + 2]
            t_conv = p_ref.shape[1]
            cin = y.shape[1]
            k = w_ref.shape[0] // cin
            # im2col: lane-concat of the K shifted time windows -> single deep matmul.
            cols = jnp.concatenate([y[kk:kk + t_conv, :] for kk in range(k)], axis=1)
            acc = jnp.dot(cols, w_ref[...], preferred_element_type=jnp.float32)
            acc = acc + b_ref[...]                                 # (1, C_out) broadcast
            pooled = jnp.dot(p_ref[...], acc, preferred_element_type=jnp.float32)
            y = jnp.maximum(pooled, 0.0)                           # pool then ReLU (as in module)
        ys.append(y)                                               # (T_out, C_last)
    stacked = jnp.stack(ys, axis=1)                                # (T_out, B, C_last)
    out_ref[...] = stacked.reshape(out_ref.shape).astype(out_ref.dtype)


def _pool_matrix(t_conv):
    """(t_conv//3, t_conv) matrix implementing AvgPool1d(kernel=3, stride=3)."""
    t_pool = t_conv // 3
    rows = jnp.arange(t_pool, dtype=jnp.int32)[:, None]
    cols = jnp.arange(t_conv, dtype=jnp.int32)[None, :]
    sel = (cols >= 3 * rows) & (cols < 3 * rows + 3)
    return jnp.where(sel, 1.0 / 3.0, 0.0).astype(jnp.float32)


def conv_forward(x, conv_params):
    """x: (2, B, T, C_in) channel-last ([current; next] on axis 0).

    Returns time-major features (T_out, 2, B, C_last)."""
    n_phrase, b, t0, c0 = x.shape
    pool_mats = []
    t = t0
    for (w, _b) in conv_params:
        t_conv = t - w.shape[0] + 1
        assert t_conv >= 3, "sequence too short for the conv stack"
        pool_mats.append(_pool_matrix(t_conv))
        t = t_conv // 3
    t_out = t
    c_out = conv_params[-1][0].shape[-1]

    inputs = [x]
    in_specs = [pl.BlockSpec((1, b, t0, c0), lambda p: (p, 0, 0, 0))]
    for (w, bb), pm in zip(conv_params, pool_mats):
        w_flat = w.reshape(-1, w.shape[-1])                        # (K*Cin, Cout)
        inputs += [w_flat, bb, pm]
        in_specs += [pl.BlockSpec(w_flat.shape, lambda p: (0, 0)),
                     pl.BlockSpec(bb.shape, lambda p: (0, 0)),
                     pl.BlockSpec(pm.shape, lambda p: (0, 0))]

    return pl.pallas_call(
        _conv_kernel,
        grid=(n_phrase,),
        in_specs=in_specs,
        out_specs=pl.BlockSpec((t_out, 1, b, c_out), lambda p: (0, p, 0, 0)),
        out_shape=jax.ShapeDtypeStruct((t_out, n_phrase, b, c_out), jnp.float32),
        compiler_params=pltpu.CompilerParams(dimension_semantics=("parallel",)),
    )(*inputs)


# --------------------------- Fused GRU + FC head kernel --------------------------

def _make_gru_fc_kernel(num_layers, n_time, batch, hidden):
    two_b = 2 * batch
    h3 = 3 * hidden

    def kernel(*refs):
        n_in = 2 + 4 * num_layers + 6
        in_refs, out_ref = refs[:n_in], refs[n_in]
        gi_sc, seq_sc = refs[n_in + 1], refs[n_in + 2]
        x_ref, len_ref = in_refs[0], in_refs[1]
        gru_refs = in_refs[2:2 + 4 * num_layers]
        w1a_ref, w1b_ref, w1c_ref, b1_ref, w2_ref, b2_ref = in_refs[2 + 4 * num_layers:]

        h_last = jnp.zeros((two_b, hidden), jnp.float32)
        for layer in range(num_layers):
            wih_ref, whh_ref, bih_ref, bhh_ref = gru_refs[4 * layer:4 * layer + 4]

            # Whole-sequence input projection (one matmul per layer), hoisted off the
            # serial recurrence and staged in VMEM scratch.
            if layer == 0:
                xin = x_ref[...].astype(jnp.float32).reshape(n_time * two_b, -1)
            else:
                xin = seq_sc[...].reshape(n_time * two_b, hidden)
            gi_all = (jnp.dot(xin, wih_ref[...], preferred_element_type=jnp.float32)
                      + bih_ref[...])                               # (n_time*2B, 3H)
            gi_sc[...] = gi_all.reshape(n_time, two_b, h3)

            whh = whh_ref[...]                                      # (H, 3H) fused r|z|n
            bhh = bhh_ref[...]                                      # (1, 3H)

            def step(t, h, whh=whh, bhh=bhh):
                gi = gi_sc[t]                                       # (2B, 3H)
                # Single recurrent MXU push per step (fused gates), then static slices.
                gh = jnp.dot(h, whh, preferred_element_type=jnp.float32) + bhh
                r = jax.nn.sigmoid(gi[:, 0:hidden] + gh[:, 0:hidden])
                z = jax.nn.sigmoid(gi[:, hidden:2 * hidden] + gh[:, hidden:2 * hidden])
                n = jnp.tanh(gi[:, 2 * hidden:h3] + r * gh[:, 2 * hidden:h3])
                h_new = (1.0 - z) * n + z * h
                seq_sc[t] = h_new                                   # next layer's input
                return h_new

            h_last = lax.fori_loop(0, n_time, step,
                                   jnp.zeros((two_b, hidden), jnp.float32),
                                   unroll=True)

        h_cur = h_last[0:batch, :]
        h_nxt = h_last[batch:two_b, :]

        # fc[0]: Linear(2H+2, H) with its weight pre-split -> no in-kernel concat.
        lv = len_ref[...].astype(jnp.float32)                       # (B, 2)
        w1c = w1c_ref[...]                                          # (2, H)
        len_term = lv[:, 0:1] * w1c[0:1, :]
        for j in range(1, w1c.shape[0]):
            len_term = len_term + lv[:, j:j + 1] * w1c[j:j + 1, :]

        z1 = (jnp.dot(h_cur, w1a_ref[...], preferred_element_type=jnp.float32)
              + jnp.dot(h_nxt, w1b_ref[...], preferred_element_type=jnp.float32)
              + len_term + b1_ref[...])
        a1 = jnp.maximum(z1, 0.0)
        # TODO(synk): nn.Dropout between the two Linears is an inference-mode identity; omitted.
        z2 = jnp.dot(a1, w2_ref[...], preferred_element_type=jnp.float32) + b2_ref[...]
        out_ref[...] = jnp.maximum(z2, 0.0)

    return kernel


def gru_fc_forward(feats, lengths, gru_params, fc_params):
    """feats: (T', 2, B, F) time-major conv features (phrase axis = [current, next])."""
    n_time, n_phrase, batch, _ = feats.shape
    two_b = n_phrase * batch
    hidden = gru_params[0][1].shape[-1]
    (w1, b1), (w2, b2) = fc_params
    out_size = w2.shape[-1]
    w1a, w1b, w1c = w1[:hidden], w1[hidden:2 * hidden], w1[2 * hidden:]

    inputs = [feats, lengths]
    for (w_ih, w_hh, b_ih, b_hh) in gru_params:
        fin = w_ih.shape[1]
        inputs += [jnp.transpose(w_ih, (1, 0, 2)).reshape(fin, 3 * hidden),   # (Fin, 3H)
                   jnp.transpose(w_hh, (1, 0, 2)).reshape(hidden, 3 * hidden),  # (H, 3H)
                   b_ih.reshape(1, 3 * hidden),
                   b_hh.reshape(1, 3 * hidden)]
    inputs += [w1a, w1b, w1c, b1, w2, b2]

    vmem = pl.BlockSpec(memory_space=pltpu.MemorySpace.VMEM)
    return pl.pallas_call(
        _make_gru_fc_kernel(len(gru_params), n_time, batch, hidden),
        in_specs=[vmem] * len(inputs),
        out_specs=vmem,
        out_shape=jax.ShapeDtypeStruct((batch, out_size), jnp.float32),
        scratch_shapes=[pltpu.VMEM((n_time, two_b, 3 * hidden), jnp.float32),  # gi scratch
                        pltpu.VMEM((n_time, two_b, hidden), jnp.float32)],     # layer output seq
    )(*inputs)


# --------------------------------- Model forward ---------------------------------

def silence_predictor_forward(current_phrase, next_phrase, lengths,
                              conv_params, gru_params, fc_params):
    # PyTorch permutes to channel-first for Conv1d; our conv kernel is channel-last,
    # so the two permutes cancel.  Stack the phrases (shared conv/GRU weights) and let the
    # conv kernel emit time-major features so no transpose sits between the two kernels.
    x = jnp.stack([current_phrase, next_phrase], axis=0)           # (2, B, T, C)
    feats = conv_forward(x, conv_params)                           # (T', 2, B, 128) time-major
    return gru_fc_forward(feats, lengths, gru_params, fc_params)


# ------------------------------------ Params -------------------------------------

def init_params(key, feature_size, output_size, hidden_size, num_layers):
    conv_cfg = [(feature_size, 16, 9), (16, 32, 7), (32, 64, 5), (64, 128, 3)]
    total_keys = 2 * len(conv_cfg) + 4 * num_layers + 4
    keys = iter(jax.random.split(key, total_keys))

    conv_params = []
    for cin, cout, k in conv_cfg:
        s = (6.0 / (cin * k)) ** 0.5
        w = jax.random.uniform(next(keys), (k, cin, cout), jnp.float32, -s, s)
        b = jax.random.uniform(next(keys), (1, cout), jnp.float32, -s, s)
        conv_params.append((w, b))

    gru_params = []
    for layer in range(num_layers):
        fin = 128 if layer == 0 else hidden_size
        s = 1.0 / float(hidden_size) ** 0.5
        w_ih = jax.random.uniform(next(keys), (3, fin, hidden_size), jnp.float32, -s, s)
        w_hh = jax.random.uniform(next(keys), (3, hidden_size, hidden_size), jnp.float32, -s, s)
        b_ih = jax.random.uniform(next(keys), (3, 1, hidden_size), jnp.float32, -s, s)
        b_hh = jax.random.uniform(next(keys), (3, 1, hidden_size), jnp.float32, -s, s)
        gru_params.append((w_ih, w_hh, b_ih, b_hh))

    d1 = 2 * hidden_size + 2
    s1 = 1.0 / float(d1) ** 0.5
    w1 = jax.random.uniform(next(keys), (d1, hidden_size), jnp.float32, -s1, s1)
    b1 = jax.random.uniform(next(keys), (1, hidden_size), jnp.float32, -s1, s1)
    s2 = 1.0 / float(hidden_size) ** 0.5
    w2 = jax.random.uniform(next(keys), (hidden_size, output_size), jnp.float32, -s2, s2)
    b2 = jax.random.uniform(next(keys), (1, output_size), jnp.float32, -s2, s2)
    fc_params = [(w1, b1), (w2, b2)]
    return conv_params, gru_params, fc_params


# ------------------------------ Pure-JAX reference --------------------------------

def _forward_ref(cur, nxt, lengths, conv_params, gru_params, fc_params):
    def conv_stack(x_btc):
        y = jnp.transpose(x_btc, (0, 2, 1))                        # (B, C, T)
        for (w, b) in conv_params:
            w_oik = jnp.transpose(w, (2, 1, 0))                    # (C_out, C_in, K)
            y = jax.lax.conv_general_dilated(y, w_oik, (1,), 'VALID',
                                             dimension_numbers=('NCH', 'OIH', 'NCH'))
            y = y + b.reshape(1, -1, 1)
            y = jax.lax.reduce_window(y, 0.0, jax.lax.add,
                                      (1, 1, 3), (1, 1, 3), 'VALID') / 3.0
            y = jnp.maximum(y, 0.0)
        return jnp.transpose(y, (0, 2, 1))                         # (B, T', C)

    def gru_encode(x_btf):
        seq = jnp.transpose(x_btf, (1, 0, 2))                      # (T, B, F)
        for (w_ih, w_hh, b_ih, b_hh) in gru_params:
            hdim = w_hh.shape[-1]

            def step(h, x_t, w_ih=w_ih, w_hh=w_hh, b_ih=b_ih, b_hh=b_hh):
                r = jax.nn.sigmoid(x_t @ w_ih[0] + b_ih[0] + h @ w_hh[0] + b_hh[0])
                z = jax.nn.sigmoid(x_t @ w_ih[1] + b_ih[1] + h @ w_hh[1] + b_hh[1])
                n = jnp.tanh(x_t @ w_ih[2] + b_ih[2] + r * (h @ w_hh[2] + b_hh[2]))
                h2 = (1.0 - z) * n + z * h
                return h2, h2

            h0 = jnp.zeros((seq.shape[1], hdim), jnp.float32)
            _, seq = jax.lax.scan(step, h0, seq)
        return seq[-1]                                             # (B, H) last step, top layer

    hc = gru_encode(conv_stack(cur))
    hn = gru_encode(conv_stack(nxt))
    h = jnp.concatenate([hc, hn, lengths], axis=-1)
    (w1, b1), (w2, b2) = fc_params
    h = jnp.maximum(h @ w1 + b1, 0.0)
    h = jnp.maximum(h @ w2 + b2, 0.0)
    return h


# -------------------------------------- Main --------------------------------------

if __name__ == "__main__":
    B, T0, F = 2, 300, 8        # batch, raw sequence length, feature_size
    H, L, OUT = 32, 2, 4        # hidden_size, num_layers, output_size

    key = jax.random.PRNGKey(0)
    kc, kn, kl, kp = jax.random.split(key, 4)
    current_phrase = jax.random.normal(kc, (B, T0, F), jnp.float32)
    next_phrase = jax.random.normal(kn, (B, T0, F), jnp.float32)
    lengths = jax.random.uniform(kl, (B, 2), jnp.float32)

    conv_params, gru_params, fc_params = init_params(kp, F, OUT, H, L)

    fwd = jax.jit(silence_predictor_forward)
    out = fwd(current_phrase, next_phrase, lengths, conv_params, gru_params, fc_params)
    out = jax.block_until_ready(out)

    ref = jax.block_until_ready(
        _forward_ref(current_phrase, next_phrase, lengths,
                     conv_params, gru_params, fc_params))

    assert out.shape == (B, OUT), out.shape
    if not jnp.allclose(out, ref, atol=2e-3, rtol=2e-3):
        raise AssertionError(f"mismatch vs reference:\n{out}\nvs\n{ref}")

    print("KERNEL_OK")
</pallas_src>

<mosaic_0001>
module attributes {stable_mosaic.version = 11 : i64} {
  func.func @_conv_kernel(%arg0: i32, %arg1: memref<1x2x300x8xf32, #tpu.memory_space<vmem>>, %arg2: memref<72x16xf32, #tpu.memory_space<vmem>>, %arg3: memref<1x16xf32, #tpu.memory_space<vmem>>, %arg4: memref<97x292xf32, #tpu.memory_space<vmem>>, %arg5: memref<112x32xf32, #tpu.memory_space<vmem>>, %arg6: memref<1x32xf32, #tpu.memory_space<vmem>>, %arg7: memref<30x91xf32, #tpu.memory_space<vmem>>, %arg8: memref<160x64xf32, #tpu.memory_space<vmem>>, %arg9: memref<1x64xf32, #tpu.memory_space<vmem>>, %arg10: memref<8x26xf32, #tpu.memory_space<vmem>>, %arg11: memref<192x128xf32, #tpu.memory_space<vmem>>, %arg12: memref<1x128xf32, #tpu.memory_space<vmem>>, %arg13: memref<2x6xf32, #tpu.memory_space<vmem>>, %arg14: memref<2x1x2x128xf32, #tpu.memory_space<vmem>>) attributes {dimension_semantics = [#tpu.dimension_semantics<parallel>], iteration_bounds = array<i64: 2>, scalar_prefetch = 0 : i64, scratch_operands = 0 : i64, tpu.core_type = #tpu.core_type<tc>, window_params = [{transform_indices = @transform_0, window_bounds = array<i64: 1, 2, 300, 8>}, {pipeline_mode = #tpu.pipeline_mode<synchronous>, transform_indices = @transform_1, window_bounds = array<i64: 72, 16>}, {pipeline_mode = #tpu.pipeline_mode<synchronous>, transform_indices = @transform_2, window_bounds = array<i64: 1, 16>}, {pipeline_mode = #tpu.pipeline_mode<synchronous>, transform_indices = @transform_3, window_bounds = array<i64: 97, 292>}, {pipeline_mode = #tpu.pipeline_mode<synchronous>, transform_indices = @transform_4, window_bounds = array<i64: 112, 32>}, {pipeline_mode = #tpu.pipeline_mode<synchronous>, transform_indices = @transform_5, window_bounds = array<i64: 1, 32>}, {pipeline_mode = #tpu.pipeline_mode<synchronous>, transform_indices = @transform_6, window_bounds = array<i64: 30, 91>}, {pipeline_mode = #tpu.pipeline_mode<synchronous>, transform_indices = @transform_7, window_bounds = array<i64: 160, 64>}, {pipeline_mode = #tpu.pipeline_mode<synchronous>, transform_indices = @transform_8, window_bounds = array<i64: 1, 64>}, {pipeline_mode = #tpu.pipeline_mode<synchronous>, transform_indices = @transform_9, window_bounds = array<i64: 8, 26>}, {pipeline_mode = #tpu.pipeline_mode<synchronous>, transform_indices = @transform_10, window_bounds = array<i64: 192, 128>}, {pipeline_mode = #tpu.pipeline_mode<synchronous>, transform_indices = @transform_11, window_bounds = array<i64: 1, 128>}, {pipeline_mode = #tpu.pipeline_mode<synchronous>, transform_indices = @transform_12, window_bounds = array<i64: 2, 6>}, {transform_indices = @transform_13, window_bounds = array<i64: 2, 1, 2, 128>}]} {
    %c0 = arith.constant 0 : index
    %c0_0 = arith.constant 0 : index
    %c0_1 = arith.constant 0 : index
    %c0_2 = arith.constant 0 : index
    %0 = vector.load %arg1[%c0, %c0_0, %c0_1, %c0_2] : memref<1x2x300x8xf32, #tpu.memory_space<vmem>>, vector<1x1x300x8xf32>
    %1 = vector.shape_cast %0 : vector<1x1x300x8xf32> to vector<300x8xf32>
    %2 = vector.extract_strided_slice %1 {offsets = [0, 0], sizes = [292, 8], strides = [1, 1]} : vector<300x8xf32> to vector<292x8xf32>
    %3 = vector.extract_strided_slice %1 {offsets = [1, 0], sizes = [292, 8], strides = [1, 1]} : vector<300x8xf32> to vector<292x8xf32>
    %4 = vector.extract_strided_slice %1 {offsets = [2, 0], sizes = [292, 8], strides = [1, 1]} : vector<300x8xf32> to vector<292x8xf32>
    %5 = vector.extract_strided_slice %1 {offsets = [3, 0], sizes = [292, 8], strides = [1, 1]} : vector<300x8xf32> to vector<292x8xf32>
    %6 = vector.extract_strided_slice %1 {offsets = [4, 0], sizes = [292, 8], strides = [1, 1]} : vector<300x8xf32> to vector<292x8xf32>
    %7 = vector.extract_strided_slice %1 {offsets = [5, 0], sizes = [292, 8], strides = [1, 1]} : vector<300x8xf32> to vector<292x8xf32>
    %8 = vector.extract_strided_slice %1 {offsets = [6, 0], sizes = [292, 8], strides = [1, 1]} : vector<300x8xf32> to vector<292x8xf32>
    %9 = vector.extract_strided_slice %1 {offsets = [7, 0], sizes = [292, 8], strides = [1, 1]} : vector<300x8xf32> to vector<292x8xf32>
    %10 = vector.extract_strided_slice %1 {offsets = [8, 0], sizes = [292, 8], strides = [1, 1]} : vector<300x8xf32> to vector<292x8xf32>
    %11 = tpu.concatenate %2, %3, %4, %5, %6, %7, %8, %9, %10 in 1 : vector<292x8xf32>, vector<292x8xf32>, vector<292x8xf32>, vector<292x8xf32>, vector<292x8xf32>, vector<292x8xf32>, vector<292x8xf32>, vector<292x8xf32>, vector<292x8xf32> -> vector<292x72xf32>
    %c0_3 = arith.constant 0 : index
    %c0_4 = arith.constant 0 : index
    %12 = vector.load %arg2[%c0_3, %c0_4] : memref<72x16xf32, #tpu.memory_space<vmem>>, vector<72x16xf32>
    %cst = arith.constant dense<0.000000e+00> : vector<292x16xf32>
    %13 = tpu.matmul %11, %12, %cst {dimension_numbers = #tpu.dot_dimension_numbers<[1], [0], [0], [1], [0, 0, 1, 1], [], []>} : vector<292x72xf32>, vector<72x16xf32>, vector<292x16xf32> -> vector<292x16xf32>
    %c0_5 = arith.constant 0 : index
    %c0_6 = arith.constant 0 : index
    %14 = vector.load %arg3[%c0_5, %c0_6] : memref<1x16xf32, #tpu.memory_space<vmem>>, vector<1x16xf32>
    %15 = vector.broadcast %14 : vector<1x16xf32> to vector<292x16xf32>
    %16 = arith.addf %13, %15 : vector<292x16xf32>
    %c0_7 = arith.constant 0 : index
    %c0_8 = arith.constant 0 : index
    %17 = vector.load %arg4[%c0_7, %c0_8] : memref<97x292xf32, #tpu.memory_space<vmem>>, vector<97x292xf32>
    %cst_9 = arith.constant dense<0.000000e+00> : vector<97x16xf32>
    %18 = tpu.matmul %17, %16, %cst_9 {dimension_numbers = #tpu.dot_dimension_numbers<[1], [0], [0], [1], [0, 0, 1, 1], [], []>} : vector<97x292xf32>, vector<292x16xf32>, vector<97x16xf32> -> vector<97x16xf32>
    %cst_10 = arith.constant 0.000000e+00 : f32
    %19 = vector.broadcast %cst_10 : f32 to vector<97x16xf32>
    %20 = arith.maximumf %18, %19 : vector<97x16xf32>
    %21 = vector.extract_strided_slice %20 {offsets = [0, 0], sizes = [91, 16], strides = [1, 1]} : vector<97x16xf32> to vector<91x16xf32>
    %22 = vector.extract_strided_slice %20 {offsets = [1, 0], sizes = [91, 16], strides = [1, 1]} : vector<97x16xf32> to vector<91x16xf32>
    %23 = vector.extract_strided_slice %20 {offsets = [2, 0], sizes = [91, 16], strides = [1, 1]} : vector<97x16xf32> to vector<91x16xf32>
    %24 = vector.extract_strided_slice %20 {offsets = [3, 0], sizes = [91, 16], strides = [1, 1]} : vector<97x16xf32> to vector<91x16xf32>
    %25 = vector.extract_strided_slice %20 {offsets = [4, 0], sizes = [91, 16], strides = [1, 1]} : vector<97x16xf32> to vector<91x16xf32>
    %26 = vector.extract_strided_slice %20 {offsets = [5, 0], sizes = [91, 16], strides = [1, 1]} : vector<97x16xf32> to vector<91x16xf32>
    %27 = vector.extract_strided_slice %20 {offsets = [6, 0], sizes = [91, 16], strides = [1, 1]} : vector<97x16xf32> to vector<91x16xf32>
    %28 = tpu.concatenate %21, %22, %23, %24, %25, %26, %27 in 1 : vector<91x16xf32>, vector<91x16xf32>, vector<91x16xf32>, vector<91x16xf32>, vector<91x16xf32>, vector<91x16xf32>, vector<91x16xf32> -> vector<91x112xf32>
    %c0_11 = arith.constant 0 : index
    %c0_12 = arith.constant 0 : index
    %29 = vector.load %arg5[%c0_11, %c0_12] : memref<112x32xf32, #tpu.memory_space<vmem>>, vector<112x32xf32>
    %cst_13 = arith.constant dense<0.000000e+00> : vector<91x32xf32>
    %30 = tpu.matmul %28, %29, %cst_13 {dimension_numbers = #tpu.dot_dimension_numbers<[1], [0], [0], [1], [0, 0, 1, 1], [], []>} : vector<91x112xf32>, vector<112x32xf32>, vector<91x32xf32> -> vector<91x32xf32>
    %c0_14 = arith.constant 0 : index
    %c0_15 = arith.constant 0 : index
    %31 = vector.load %arg6[%c0_14, %c0_15] : memref<1x32xf32, #tpu.memory_space<vmem>>, vector<1x32xf32>
    %32 = vector.broadcast %31 : vector<1x32xf32> to vector<91x32xf32>
    %33 = arith.addf %30, %32 : vector<91x32xf32>
    %c0_16 = arith.constant 0 : index
    %c0_17 = arith.constant 0 : index
    %34 = vector.load %arg7[%c0_16, %c0_17] : memref<30x91xf32, #tpu.memory_space<vmem>>, vector<30x91xf32>
    %cst_18 = arith.constant dense<0.000000e+00> : vector<30x32xf32>
    %35 = tpu.matmul %34, %33, %cst_18 {dimension_numbers = #tpu.dot_dimension_numbers<[1], [0], [0], [1], [0, 0, 1, 1], [], []>} : vector<30x91xf32>, vector<91x32xf32>, vector<30x32xf32> -> vector<30x32xf32>
    %cst_19 = arith.constant 0.000000e+00 : f32
    %36 = vector.broadcast %cst_19 : f32 to vector<30x32xf32>
    %37 = arith.maximumf %35, %36 : vector<30x32xf32>
    %38 = vector.extract_strided_slice %37 {offsets = [0, 0], sizes = [26, 32], strides = [1, 1]} : vector<30x32xf32> to vector<26x32xf32>
    %39 = vector.extract_strided_slice %37 {offsets = [1, 0], sizes = [26, 32], strides = [1, 1]} : vector<30x32xf32> to vector<26x32xf32>
    %40 = vector.extract_strided_slice %37 {offsets = [2, 0], sizes = [26, 32], strides = [1, 1]} : vector<30x32xf32> to vector<26x32xf32>
    %41 = vector.extract_strided_slice %37 {offsets = [3, 0], sizes = [26, 32], strides = [1, 1]} : vector<30x32xf32> to vector<26x32xf32>
    %42 = vector.extract_strided_slice %37 {offsets = [4, 0], sizes = [26, 32], strides = [1, 1]} : vector<30x32xf32> to vector<26x32xf32>
    %43 = tpu.concatenate %38, %39, %40, %41, %42 in 1 : vector<26x32xf32>, vector<26x32xf32>, vector<26x32xf32>, vector<26x32xf32>, vector<26x32xf32> -> vector<26x160xf32>
    %c0_20 = arith.constant 0 : index
    %c0_21 = arith.constant 0 : index
    %44 = vector.load %arg8[%c0_20, %c0_21] : memref<160x64xf32, #tpu.memory_space<vmem>>, vector<160x64xf32>
    %cst_22 = arith.constant dense<0.000000e+00> : vector<26x64xf32>
    %45 = tpu.matmul %43, %44, %cst_22 {dimension_numbers = #tpu.dot_dimension_numbers<[1], [0], [0], [1], [0, 0, 1, 1], [], []>} : vector<26x160xf32>, vector<160x64xf32>, vector<26x64xf32> -> vector<26x64xf32>
    %c0_23 = arith.constant 0 : index
    %c0_24 = arith.constant 0 : index
    %46 = vector.load %arg9[%c0_23, %c0_24] : memref<1x64xf32, #tpu.memory_space<vmem>>, vector<1x64xf32>
    %47 = vector.broadcast %46 : vector<1x64xf32> to vector<26x64xf32>
    %48 = arith.addf %45, %47 : vector<26x64xf32>
    %c0_25 = arith.constant 0 : index
    %c0_26 = arith.constant 0 : index
    %49 = vector.load %arg10[%c0_25, %c0_26] : memref<8x26xf32, #tpu.memory_space<vmem>>, vector<8x26xf32>
    %cst_27 = arith.constant dense<0.000000e+00> : vector<8x64xf32>
    %50 = tpu.matmul %49, %48, %cst_27 {dimension_numbers = #tpu.dot_dimension_numbers<[1], [0], [0], [1], [0, 0, 1, 1], [], []>} : vector<8x26xf32>, vector<26x64xf32>, vector<8x64xf32> -> vector<8x64xf32>
    %cst_28 = arith.constant 0.000000e+00 : f32
    %51 = vector.broadcast %cst_28 : f32 to vector<8x64xf32>
    %52 = arith.maximumf %50, %51 : vector<8x64xf32>
    %53 = vector.extract_strided_slice %52 {offsets = [0, 0], sizes = [6, 64], strides = [1, 1]} : vector<8x64xf32> to vector<6x64xf32>
    %54 = vector.extract_strided_slice %52 {offsets = [1, 0], sizes = [6, 64], strides = [1, 1]} : vector<8x64xf32> to vector<6x64xf32>
    %55 = vector.extract_strided_slice %52 {offsets = [2, 0], sizes = [6, 64], strides = [1, 1]} : vector<8x64xf32> to vector<6x64xf32>
    %56 = tpu.concatenate %53, %54, %55 in 1 : vector<6x64xf32>, vector<6x64xf32>, vector<6x64xf32> -> vector<6x192xf32>
    %c0_29 = arith.constant 0 : index
    %c0_30 = arith.constant 0 : index
    %57 = vector.load %arg11[%c0_29, %c0_30] : memref<192x128xf32, #tpu.memory_space<vmem>>, vector<192x128xf32>
    %cst_31 = arith.constant dense<0.000000e+00> : vector<6x128xf32>
    %58 = tpu.matmul %56, %57, %cst_31 {dimension_numbers = #tpu.dot_dimension_numbers<[1], [0], [0], [1], [0, 0, 1, 1], [], []>} : vector<6x192xf32>, vector<192x128xf32>, vector<6x128xf32> -> vector<6x128xf32>
    %c0_32 = arith.constant 0 : index
    %c0_33 = arith.constant 0 : index
    %59 = vector.load %arg12[%c0_32, %c0_33] : memref<1x128xf32, #tpu.memory_space<vmem>>, vector<1x128xf32>
    %60 = vector.broadcast %59 : vector<1x128xf32> to vector<6x128xf32>
    %61 = arith.addf %58, %60 : vector<6x128xf32>
    %c0_34 = arith.constant 0 : index
    %c0_35 = arith.constant 0 : index
    %62 = vector.load %arg13[%c0_34, %c0_35] : memref<2x6xf32, #tpu.memory_space<vmem>>, vector<2x6xf32>
    %cst_36 = arith.constant dense<0.000000e+00> : vector<2x128xf32>
    %63 = tpu.matmul %62, %61, %cst_36 {dimension_numbers = #tpu.dot_dimension_numbers<[1], [0], [0], [1], [0, 0, 1, 1], [], []>} : vector<2x6xf32>, vector<6x128xf32>, vector<2x128xf32> -> vector<2x128xf32>
    %cst_37 = arith.constant 0.000000e+00 : f32
    %64 = vector.broadcast %cst_37 : f32 to vector<2x128xf32>
    %65 = arith.maximumf %63, %64 : vector<2x128xf32>
    %c0_38 = arith.constant 0 : index
    %c1 = arith.constant 1 : index
    %c0_39 = arith.constant 0 : index
    %c0_40 = arith.constant 0 : index
    %66 = vector.load %arg1[%c0_38, %c1, %c0_39, %c0_40] : memref<1x2x300x8xf32, #tpu.memory_space<vmem>>, vector<1x1x300x8xf32>
    %67 = vector.shape_cast %66 : vector<1x1x300x8xf32> to vector<300x8xf32>
    %68 = vector.extract_strided_slice %67 {offsets = [0, 0], sizes = [292, 8], strides = [1, 1]} : vector<300x8xf32> to vector<292x8xf32>
    %69 = vector.extract_strided_slice %67 {offsets = [1, 0], sizes = [292, 8], strides = [1, 1]} : vector<300x8xf32> to vector<292x8xf32>
    %70 = vector.extract_strided_slice %67 {offsets = [2, 0], sizes = [292, 8], strides = [1, 1]} : vector<300x8xf32> to vector<292x8xf32>
    %71 = vector.extract_strided_slice %67 {offsets = [3, 0], sizes = [292, 8], strides = [1, 1]} : vector<300x8xf32> to vector<292x8xf32>
    %72 = vector.extract_strided_slice %67 {offsets = [4, 0], sizes = [292, 8], strides = [1, 1]} : vector<300x8xf32> to vector<292x8xf32>
    %73 = vector.extract_strided_slice %67 {offsets = [5, 0], sizes = [292, 8], strides = [1, 1]} : vector<300x8xf32> to vector<292x8xf32>
    %74 = vector.extract_strided_slice %67 {offsets = [6, 0], sizes = [292, 8], strides = [1, 1]} : vector<300x8xf32> to vector<292x8xf32>
    %75 = vector.extract_strided_slice %67 {offsets = [7, 0], sizes = [292, 8], strides = [1, 1]} : vector<300x8xf32> to vector<292x8xf32>
    %76 = vector.extract_strided_slice %67 {offsets = [8, 0], sizes = [292, 8], strides = [1, 1]} : vector<300x8xf32> to vector<292x8xf32>
    %77 = tpu.concatenate %68, %69, %70, %71, %72, %73, %74, %75, %76 in 1 : vector<292x8xf32>, vector<292x8xf32>, vector<292x8xf32>, vector<292x8xf32>, vector<292x8xf32>, vector<292x8xf32>, vector<292x8xf32>, vector<292x8xf32>, vector<292x8xf32> -> vector<292x72xf32>
    %c0_41 = arith.constant 0 : index
    %c0_42 = arith.constant 0 : index
    %78 = vector.load %arg2[%c0_41, %c0_42] : memref<72x16xf32, #tpu.memory_space<vmem>>, vector<72x16xf32>
    %cst_43 = arith.constant dense<0.000000e+00> : vector<292x16xf32>
    %79 = tpu.matmul %77, %78, %cst_43 {dimension_numbers = #tpu.dot_dimension_numbers<[1], [0], [0], [1], [0, 0, 1, 1], [], []>} : vector<292x72xf32>, vector<72x16xf32>, vector<292x16xf32> -> vector<292x16xf32>
    %c0_44 = arith.constant 0 : index
    %c0_45 = arith.constant 0 : index
    %80 = vector.load %arg3[%c0_44, %c0_45] : memref<1x16xf32, #tpu.memory_space<vmem>>, vector<1x16xf32>
    %81 = vector.broadcast %80 : vector<1x16xf32> to vector<292x16xf32>
    %82 = arith.addf %79, %81 : vector<292x16xf32>
    %c0_46 = arith.constant 0 : index
    %c0_47 = arith.constant 0 : index
    %83 = vector.load %arg4[%c0_46, %c0_47] : memref<97x292xf32, #tpu.memory_space<vmem>>, vector<97x292xf32>
    %cst_48 = arith.constant dense<0.000000e+00> : vector<97x16xf32>
    %84 = tpu.matmul %83, %82, %cst_48 {dimension_numbers = #tpu.dot_dimension_numbers<[1], [0], [0], [1], [0, 0, 1, 1], [], []>} : vector<97x292xf32>, vector<292x16xf32>, vector<97x16xf32> -> vector<97x16xf32>
    %cst_49 = arith.constant 0.000000e+00 : f32
    %85 = vector.broadcast %cst_49 : f32 to vector<97x16xf32>
    %86 = arith.maximumf %84, %85 : vector<97x16xf32>
    %87 = vector.extract_strided_slice %86 {offsets = [0, 0], sizes = [91, 16], strides = [1, 1]} : vector<97x16xf32> to vector<91x16xf32>
    %88 = vector.extract_strided_slice %86 {offsets = [1, 0], sizes = [91, 16], strides = [1, 1]} : vector<97x16xf32> to vector<91x16xf32>
    %89 = vector.extract_strided_slice %86 {offsets = [2, 0], sizes = [91, 16], strides = [1, 1]} : vector<97x16xf32> to vector<91x16xf32>
    %90 = vector.extract_strided_slice %86 {offsets = [3, 0], sizes = [91, 16], strides = [1, 1]} : vector<97x16xf32> to vector<91x16xf32>
    %91 = vector.extract_strided_slice %86 {offsets = [4, 0], sizes = [91, 16], strides = [1, 1]} : vector<97x16xf32> to vector<91x16xf32>
    %92 = vector.extract_strided_slice %86 {offsets = [5, 0], sizes = [91, 16], strides = [1, 1]} : vector<97x16xf32> to vector<91x16xf32>
    %93 = vector.extract_strided_slice %86 {offsets = [6, 0], sizes = [91, 16], strides = [1, 1]} : vector<97x16xf32> to vector<91x16xf32>
    %94 = tpu.concatenate %87, %88, %89, %90, %91, %92, %93 in 1 : vector<91x16xf32>, vector<91x16xf32>, vector<91x16xf32>, vector<91x16xf32>, vector<91x16xf32>, vector<91x16xf32>, vector<91x16xf32> -> vector<91x112xf32>
    %c0_50 = arith.constant 0 : index
    %c0_51 = arith.constant 0 : index
    %95 = vector.load %arg5[%c0_50, %c0_51] : memref<112x32xf32, #tpu.memory_space<vmem>>, vector<112x32xf32>
    %cst_52 = arith.constant dense<0.000000e+00> : vector<91x32xf32>
    %96 = tpu.matmul %94, %95, %cst_52 {dimension_numbers = #tpu.dot_dimension_numbers<[1], [0], [0], [1], [0, 0, 1, 1], [], []>} : vector<91x112xf32>, vector<112x32xf32>, vector<91x32xf32> -> vector<91x32xf32>
    %c0_53 = arith.constant 0 : index
    %c0_54 = arith.constant 0 : index
    %97 = vector.load %arg6[%c0_53, %c0_54] : memref<1x32xf32, #tpu.memory_space<vmem>>, vector<1x32xf32>
    %98 = vector.broadcast %97 : vector<1x32xf32> to vector<91x32xf32>
    %99 = arith.addf %96, %98 : vector<91x32xf32>
    %c0_55 = arith.constant 0 : index
    %c0_56 = arith.constant 0 : index
    %100 = vector.load %arg7[%c0_55, %c0_56] : memref<30x91xf32, #tpu.memory_space<vmem>>, vector<30x91xf32>
    %cst_57 = arith.constant dense<0.000000e+00> : vector<30x32xf32>
    %101 = tpu.matmul %100, %99, %cst_57 {dimension_numbers = #tpu.dot_dimension_numbers<[1], [0], [0], [1], [0, 0, 1, 1], [], []>} : vector<30x91xf32>, vector<91x32xf32>, vector<30x32xf32> -> vector<30x32xf32>
    %cst_58 = arith.constant 0.000000e+00 : f32
    %102 = vector.broadcast %cst_58 : f32 to vector<30x32xf32>
    %103 = arith.maximumf %101, %102 : vector<30x32xf32>
    %104 = vector.extract_strided_slice %103 {offsets = [0, 0], sizes = [26, 32], strides = [1, 1]} : vector<30x32xf32> to vector<26x32xf32>
    %105 = vector.extract_strided_slice %103 {offsets = [1, 0], sizes = [26, 32], strides = [1, 1]} : vector<30x32xf32> to vector<26x32xf32>
    %106 = vector.extract_strided_slice %103 {offsets = [2, 0], sizes = [26, 32], strides = [1, 1]} : vector<30x32xf32> to vector<26x32xf32>
    %107 = vector.extract_strided_slice %103 {offsets = [3, 0], sizes = [26, 32], strides = [1, 1]} : vector<30x32xf32> to vector<26x32xf32>
    %108 = vector.extract_strided_slice %103 {offsets = [4, 0], sizes = [26, 32], strides = [1, 1]} : vector<30x32xf32> to vector<26x32xf32>
    %109 = tpu.concatenate %104, %105, %106, %107, %108 in 1 : vector<26x32xf32>, vector<26x32xf32>, vector<26x32xf32>, vector<26x32xf32>, vector<26x32xf32> -> vector<26x160xf32>
    %c0_59 = arith.constant 0 : index
    %c0_60 = arith.constant 0 : index
    %110 = vector.load %arg8[%c0_59, %c0_60] : memref<160x64xf32, #tpu.memory_space<vmem>>, vector<160x64xf32>
    %cst_61 = arith.constant dense<0.000000e+00> : vector<26x64xf32>
    %111 = tpu.matmul %109, %110, %cst_61 {dimension_numbers = #tpu.dot_dimension_numbers<[1], [0], [0], [1], [0, 0, 1, 1], [], []>} : vector<26x160xf32>, vector<160x64xf32>, vector<26x64xf32> -> vector<26x64xf32>
    %c0_62 = arith.constant 0 : index
    %c0_63 = arith.constant 0 : index
    %112 = vector.load %arg9[%c0_62, %c0_63] : memref<1x64xf32, #tpu.memory_space<vmem>>, vector<1x64xf32>
    %113 = vector.broadcast %112 : vector<1x64xf32> to vector<26x64xf32>
    %114 = arith.addf %111, %113 : vector<26x64xf32>
    %c0_64 = arith.constant 0 : index
    %c0_65 = arith.constant 0 : index
    %115 = vector.load %arg10[%c0_64, %c0_65] : memref<8x26xf32, #tpu.memory_space<vmem>>, vector<8x26xf32>
    %cst_66 = arith.constant dense<0.000000e+00> : vector<8x64xf32>
    %116 = tpu.matmul %115, %114, %cst_66 {dimension_numbers = #tpu.dot_dimension_numbers<[1], [0], [0], [1], [0, 0, 1, 1], [], []>} : vector<8x26xf32>, vector<26x64xf32>, vector<8x64xf32> -> vector<8x64xf32>
    %cst_67 = arith.constant 0.000000e+00 : f32
    %117 = vector.broadcast %cst_67 : f32 to vector<8x64xf32>
    %118 = arith.maximumf %116, %117 : vector<8x64xf32>
    %119 = vector.extract_strided_slice %118 {offsets = [0, 0], sizes = [6, 64], strides = [1, 1]} : vector<8x64xf32> to vector<6x64xf32>
    %120 = vector.extract_strided_slice %118 {offsets = [1, 0], sizes = [6, 64], strides = [1, 1]} : vector<8x64xf32> to vector<6x64xf32>
    %121 = vector.extract_strided_slice %118 {offsets = [2, 0], sizes = [6, 64], strides = [1, 1]} : vector<8x64xf32> to vector<6x64xf32>
    %122 = tpu.concatenate %119, %120, %121 in 1 : vector<6x64xf32>, vector<6x64xf32>, vector<6x64xf32> -> vector<6x192xf32>
    %c0_68 = arith.constant 0 : index
    %c0_69 = arith.constant 0 : index
    %123 = vector.load %arg11[%c0_68, %c0_69] : memref<192x128xf32, #tpu.memory_space<vmem>>, vector<192x128xf32>
    %cst_70 = arith.constant dense<0.000000e+00> : vector<6x128xf32>
    %124 = tpu.matmul %122, %123, %cst_70 {dimension_numbers = #tpu.dot_dimension_numbers<[1], [0], [0], [1], [0, 0, 1, 1], [], []>} : vector<6x192xf32>, vector<192x128xf32>, vector<6x128xf32> -> vector<6x128xf32>
    %c0_71 = arith.constant 0 : index
    %c0_72 = arith.constant 0 : index
    %125 = vector.load %arg12[%c0_71, %c0_72] : memref<1x128xf32, #tpu.memory_space<vmem>>, vector<1x128xf32>
    %126 = vector.broadcast %125 : vector<1x128xf32> to vector<6x128xf32>
    %127 = arith.addf %124, %126 : vector<6x128xf32>
    %c0_73 = arith.constant 0 : index
    %c0_74 = arith.constant 0 : index
    %128 = vector.load %arg13[%c0_73, %c0_74] : memref<2x6xf32, #tpu.memory_space<vmem>>, vector<2x6xf32>
    %cst_75 = arith.constant dense<0.000000e+00> : vector<2x128xf32>
    %129 = tpu.matmul %128, %127, %cst_75 {dimension_numbers = #tpu.dot_dimension_numbers<[1], [0], [0], [1], [0, 0, 1, 1], [], []>} : vector<2x6xf32>, vector<6x128xf32>, vector<2x128xf32> -> vector<2x128xf32>
    %cst_76 = arith.constant 0.000000e+00 : f32
    %130 = vector.broadcast %cst_76 : f32 to vector<2x128xf32>
    %131 = arith.maximumf %129, %130 : vector<2x128xf32>
    %132 = vector.shape_cast %65 : vector<2x128xf32> to vector<2x1x128xf32>
    %133 = vector.shape_cast %131 : vector<2x128xf32> to vector<2x1x128xf32>
    %134 = tpu.concatenate %132, %133 in 1 : vector<2x1x128xf32>, vector<2x1x128xf32> -> vector<2x2x128xf32>
    %135 = vector.shape_cast %134 : vector<2x2x128xf32> to vector<2x1x2x128xf32>
    %c0_77 = arith.constant 0 : index
    %c0_78 = arith.constant 0 : index
    %c0_79 = arith.constant 0 : index
    %c0_80 = arith.constant 0 : index
    %136 = vector.load %arg14[%c0_77, %c0_78, %c0_79, %c0_80] : memref<2x1x2x128xf32, #tpu.memory_space<vmem>>, vector<2x1x2x128xf32>
    tpu.vector_store %arg14[%c0_77, %c0_78, %c0_79, %c0_80], %135 {strides = array<i32>} : memref<2x1x2x128xf32, #tpu.memory_space<vmem>>, vector<2x1x2x128xf32>,
    return
  }
  func.func @transform_0(%arg0: i32) -> (i32, i32, i32, i32) {
    %c0_i32 = arith.constant 0 : i32
    %c0_i32_0 = arith.constant 0 : i32
    %c0_i32_1 = arith.constant 0 : i32
    %c0_i32_2 = arith.constant 0 : i32
    return %arg0, %c0_i32, %c0_i32_0, %c0_i32_1 : i32, i32, i32, i32
  }
  func.func @transform_1(%arg0: i32) -> (i32, i32) {
    %c0_i32 = arith.constant 0 : i32
    %c0_i32_0 = arith.constant 0 : i32
    %c0_i32_1 = arith.constant 0 : i32
    return %c0_i32, %c0_i32_0 : i32, i32
  }
  func.func @transform_2(%arg0: i32) -> (i32, i32) {
    %c0_i32 = arith.constant 0 : i32
    %c0_i32_0 = arith.constant 0 : i32
    %c0_i32_1 = arith.constant 0 : i32
    return %c0_i32, %c0_i32_0 : i32, i32
  }
  func.func @transform_3(%arg0: i32) -> (i32, i32) {
    %c0_i32 = arith.constant 0 : i32
    %c0_i32_0 = arith.constant 0 : i32
    %c0_i32_1 = arith.constant 0 : i32
    return %c0_i32, %c0_i32_0 : i32, i32
  }
  func.func @transform_4(%arg0: i32) -> (i32, i32) {
    %c0_i32 = arith.constant 0 : i32
    %c0_i32_0 = arith.constant 0 : i32
    %c0_i32_1 = arith.constant 0 : i32
    return %c0_i32, %c0_i32_0 : i32, i32
  }
  func.func @transform_5(%arg0: i32) -> (i32, i32) {
    %c0_i32 = arith.constant 0 : i32
    %c0_i32_0 = arith.constant 0 : i32
    %c0_i32_1 = arith.constant 0 : i32
    return %c0_i32, %c0_i32_0 : i32, i32
  }
  func.func @transform_6(%arg0: i32) -> (i32, i32) {
    %c0_i32 = arith.constant 0 : i32
    %c0_i32_0 = arith.constant 0 : i32
    %c0_i32_1 = arith.constant 0 : i32
    return %c0_i32, %c0_i32_0 : i32, i32
  }
  func.func @transform_7(%arg0: i32) -> (i32, i32) {
    %c0_i32 = arith.constant 0 : i32
    %c0_i32_0 = arith.constant 0 : i32
    %c0_i32_1 = arith.constant 0 : i32
    return %c0_i32, %c0_i32_0 : i32, i32
  }
  func.func @transform_8(%arg0: i32) -> (i32, i32) {
    %c0_i32 = arith.constant 0 : i32
    %c0_i32_0 = arith.constant 0 : i32
    %c0_i32_1 = arith.constant 0 : i32
    return %c0_i32, %c0_i32_0 : i32, i32
  }
  func.func @transform_9(%arg0: i32) -> (i32, i32) {
    %c0_i32 = arith.constant 0 : i32
    %c0_i32_0 = arith.constant 0 : i32
    %c0_i32_1 = arith.constant 0 : i32
    return %c0_i32, %c0_i32_0 : i32, i32
  }
  func.func @transform_10(%arg0: i32) -> (i32, i32) {
    %c0_i32 = arith.constant 0 : i32
    %c0_i32_0 = arith.constant 0 : i32
    %c0_i32_1 = arith.constant 0 : i32
    return %c0_i32, %c0_i32_0 : i32, i32
  }
  func.func @transform_11(%arg0: i32) -> (i32, i32) {
    %c0_i32 = arith.constant 0 : i32
    %c0_i32_0 = arith.constant 0 : i32
    %c0_i32_1 = arith.constant 0 : i32
    return %c0_i32, %c0_i32_0 : i32, i32
  }
  func.func @transform_12(%arg0: i32) -> (i32, i32) {
    %c0_i32 = arith.constant 0 : i32
    %c0_i32_0 = arith.constant 0 : i32
    %c0_i32_1 = arith.constant 0 : i32
    return %c0_i32, %c0_i32_0 : i32, i32
  }
  func.func @transform_13(%arg0: i32) -> (i32, i32, i32, i32) {
    %c0_i32 = arith.constant 0 : i32
    %c0_i32_0 = arith.constant 0 : i32
    %c0_i32_1 = arith.constant 0 : i32
    %c0_i32_2 = arith.constant 0 : i32
    return %c0_i32, %arg0, %c0_i32_0, %c0_i32_1 : i32, i32, i32, i32
  }
}

module attributes {stable_mosaic.version = 11 : i64} {
  func.func @kernel(%arg0: memref<2x2x2x128xf32, #tpu.memory_space<vmem>>, %arg1: memref<2x2xf32, #tpu.memory_space<vmem>>, %arg2: memref<128x96xf32, #tpu.memory_space<vmem>>, %arg3: memref<32x96xf32, #tpu.memory_space<vmem>>, %arg4: memref<1x96xf32, #tpu.memory_space<vmem>>, %arg5: memref<1x96xf32, #tpu.memory_space<vmem>>, %arg6: memref<32x96xf32, #tpu.memory_space<vmem>>, %arg7: memref<32x96xf32, #tpu.memory_space<vmem>>, %arg8: memref<1x96xf32, #tpu.memory_space<vmem>>, %arg9: memref<1x96xf32, #tpu.memory_space<vmem>>, %arg10: memref<32x32xf32, #tpu.memory_space<vmem>>, %arg11: memref<32x32xf32, #tpu.memory_space<vmem>>, %arg12: memref<2x32xf32, #tpu.memory_space<vmem>>, %arg13: memref<1x32xf32, #tpu.memory_space<vmem>>, %arg14: memref<32x4xf32, #tpu.memory_space<vmem>>, %arg15: memref<1x4xf32, #tpu.memory_space<vmem>>, %arg16: memref<2x4xf32, #tpu.memory_space<vmem>>, %arg17: memref<2x4x96xf32, #tpu.memory_space<vmem>>, %arg18: memref<2x4x32xf32, #tpu.memory_space<vmem>>) attributes {dimension_semantics = [], scalar_prefetch = 0 : i64, scratch_operands = 2 : i64, tpu.core_type = #tpu.core_type<tc>} {
    %c0 = arith.constant 0 : index
    %c0_0 = arith.constant 0 : index
    %c0_1 = arith.constant 0 : index
    %c0_2 = arith.constant 0 : index
    %0 = vector.load %arg0[%c0, %c0_0, %c0_1, %c0_2] : memref<2x2x2x128xf32, #tpu.memory_space<vmem>>, vector<2x2x2x128xf32>
    %1 = vector.shape_cast %0 : vector<2x2x2x128xf32> to vector<8x128xf32>
    %c0_3 = arith.constant 0 : index
    %c0_4 = arith.constant 0 : index
    %2 = vector.load %arg2[%c0_3, %c0_4] : memref<128x96xf32, #tpu.memory_space<vmem>>, vector<128x96xf32>
    %cst = arith.constant dense<0.000000e+00> : vector<8x96xf32>
    %3 = tpu.matmul %1, %2, %cst {dimension_numbers = #tpu.dot_dimension_numbers<[1], [0], [0], [1], [0, 0, 1, 1], [], []>} : vector<8x128xf32>, vector<128x96xf32>, vector<8x96xf32> -> vector<8x96xf32>
    %c0_5 = arith.constant 0 : index
    %c0_6 = arith.constant 0 : index
    %4 = vector.load %arg4[%c0_5, %c0_6] : memref<1x96xf32, #tpu.memory_space<vmem>>, vector<1x96xf32>
    %5 = vector.broadcast %4 : vector<1x96xf32> to vector<8x96xf32>
    %6 = arith.addf %3, %5 : vector<8x96xf32>
    %7 = vector.shape_cast %6 : vector<8x96xf32> to vector<2x4x96xf32>
    %c0_7 = arith.constant 0 : index
    %c0_8 = arith.constant 0 : index
    %c0_9 = arith.constant 0 : index
    %8 = vector.load %arg17[%c0_7, %c0_8, %c0_9] : memref<2x4x96xf32, #tpu.memory_space<vmem>>, vector<2x4x96xf32>
    tpu.vector_store %arg17[%c0_7, %c0_8, %c0_9], %7 {strides = array<i32>} : memref<2x4x96xf32, #tpu.memory_space<vmem>>, vector<2x4x96xf32>,
    %c0_10 = arith.constant 0 : index
    %c0_11 = arith.constant 0 : index
    %9 = vector.load %arg3[%c0_10, %c0_11] : memref<32x96xf32, #tpu.memory_space<vmem>>, vector<32x96xf32>
    %c0_12 = arith.constant 0 : index
    %c0_13 = arith.constant 0 : index
    %10 = vector.load %arg5[%c0_12, %c0_13] : memref<1x96xf32, #tpu.memory_space<vmem>>, vector<1x96xf32>
    %cst_14 = arith.constant 0.000000e+00 : f32
    %11 = vector.broadcast %cst_14 : f32 to vector<4x32xf32>
    %c0_i32 = arith.constant 0 : i32
    %12 = arith.index_cast %c0_i32 : i32 to index
    %c0_15 = arith.constant 0 : index
    %c0_16 = arith.constant 0 : index
    %13 = vector.load %arg17[%12, %c0_15, %c0_16] : memref<2x4x96xf32, #tpu.memory_space<vmem>>, vector<1x4x96xf32>
    %14 = vector.shape_cast %13 : vector<1x4x96xf32> to vector<4x96xf32>
    %cst_17 = arith.constant dense<0.000000e+00> : vector<4x96xf32>
    %15 = tpu.matmul %11, %9, %cst_17 {dimension_numbers = #tpu.dot_dimension_numbers<[1], [0], [0], [1], [0, 0, 1, 1], [], []>} : vector<4x32xf32>, vector<32x96xf32>, vector<4x96xf32> -> vector<4x96xf32>
    %16 = vector.broadcast %10 : vector<1x96xf32> to vector<4x96xf32>
    %17 = arith.addf %15, %16 : vector<4x96xf32>
    %18 = vector.extract_strided_slice %14 {offsets = [0, 0], sizes = [4, 32], strides = [1, 1]} : vector<4x96xf32> to vector<4x32xf32>
    %19 = vector.extract_strided_slice %17 {offsets = [0, 0], sizes = [4, 32], strides = [1, 1]} : vector<4x96xf32> to vector<4x32xf32>
    %20 = arith.addf %18, %19 : vector<4x32xf32>
    %21 = arith.negf %20 : vector<4x32xf32>
    %22 = math.exp %21 : vector<4x32xf32>
    %cst_18 = arith.constant 1.000000e+00 : f32
    %23 = vector.broadcast %cst_18 : f32 to vector<4x32xf32>
    %24 = arith.addf %23, %22 : vector<4x32xf32>
    %25 = arith.divf %23, %24 : vector<4x32xf32>
    %26 = vector.extract_strided_slice %14 {offsets = [0, 32], sizes = [4, 32], strides = [1, 1]} : vector<4x96xf32> to vector<4x32xf32>
    %27 = vector.extract_strided_slice %17 {offsets = [0, 32], sizes = [4, 32], strides = [1, 1]} : vector<4x96xf32> to vector<4x32xf32>
    %28 = arith.addf %26, %27 : vector<4x32xf32>
    %29 = arith.negf %28 : vector<4x32xf32>
    %30 = math.exp %29 : vector<4x32xf32>
    %cst_19 = arith.constant 1.000000e+00 : f32
    %31 = vector.broadcast %cst_19 : f32 to vector<4x32xf32>
    %32 = arith.addf %31, %30 : vector<4x32xf32>
    %33 = arith.divf %31, %32 : vector<4x32xf32>
    %34 = vector.extract_strided_slice %14 {offsets = [0, 64], sizes = [4, 32], strides = [1, 1]} : vector<4x96xf32> to vector<4x32xf32>
    %35 = vector.extract_strided_slice %17 {offsets = [0, 64], sizes = [4, 32], strides = [1, 1]} : vector<4x96xf32> to vector<4x32xf32>
    %36 = arith.mulf %25, %35 : vector<4x32xf32>
    %37 = arith.addf %34, %36 : vector<4x32xf32>
    %38 = math.tanh %37 : vector<4x32xf32>
    %cst_20 = arith.constant 1.000000e+00 : f32
    %39 = vector.broadcast %cst_20 : f32 to vector<4x32xf32>
    %40 = arith.subf %39, %33 : vector<4x32xf32>
    %41 = arith.mulf %40, %38 : vector<4x32xf32>
    %42 = arith.mulf %33, %11 : vector<4x32xf32>
    %43 = arith.addf %41, %42 : vector<4x32xf32>
    %44 = arith.index_cast %c0_i32 : i32 to index
    %c0_21 = arith.constant 0 : index
    %c0_22 = arith.constant 0 : index
    %45 = vector.load %arg18[%44, %c0_21, %c0_22] : memref<2x4x32xf32, #tpu.memory_space<vmem>>, vector<1x4x32xf32>
    %46 = vector.shape_cast %45 : vector<1x4x32xf32> to vector<4x32xf32>
    %47 = vector.shape_cast %43 : vector<4x32xf32> to vector<1x4x32xf32>
    tpu.vector_store %arg18[%44, %c0_21, %c0_22], %47 {strides = array<i32>} : memref<2x4x32xf32, #tpu.memory_space<vmem>>, vector<1x4x32xf32>,
    %c1_i32 = arith.constant 1 : i32
    %48 = arith.index_cast %c1_i32 : i32 to index
    %c0_23 = arith.constant 0 : index
    %c0_24 = arith.constant 0 : index
    %49 = vector.load %arg17[%48, %c0_23, %c0_24] : memref<2x4x96xf32, #tpu.memory_space<vmem>>, vector<1x4x96xf32>
    %50 = vector.shape_cast %49 : vector<1x4x96xf32> to vector<4x96xf32>
    %cst_25 = arith.constant dense<0.000000e+00> : vector<4x96xf32>
    %51 = tpu.matmul %43, %9, %cst_25 {dimension_numbers = #tpu.dot_dimension_numbers<[1], [0], [0], [1], [0, 0, 1, 1], [], []>} : vector<4x32xf32>, vector<32x96xf32>, vector<4x96xf32> -> vector<4x96xf32>
    %52 = vector.broadcast %10 : vector<1x96xf32> to vector<4x96xf32>
    %53 = arith.addf %51, %52 : vector<4x96xf32>
    %54 = vector.extract_strided_slice %50 {offsets = [0, 0], sizes = [4, 32], strides = [1, 1]} : vector<4x96xf32> to vector<4x32xf32>
    %55 = vector.extract_strided_slice %53 {offsets = [0, 0], sizes = [4, 32], strides = [1, 1]} : vector<4x96xf32> to vector<4x32xf32>
    %56 = arith.addf %54, %55 : vector<4x32xf32>
    %57 = arith.negf %56 : vector<4x32xf32>
    %58 = math.exp %57 : vector<4x32xf32>
    %cst_26 = arith.constant 1.000000e+00 : f32
    %59 = vector.broadcast %cst_26 : f32 to vector<4x32xf32>
    %60 = arith.addf %59, %58 : vector<4x32xf32>
    %61 = arith.divf %59, %60 : vector<4x32xf32>
    %62 = vector.extract_strided_slice %50 {offsets = [0, 32], sizes = [4, 32], strides = [1, 1]} : vector<4x96xf32> to vector<4x32xf32>
    %63 = vector.extract_strided_slice %53 {offsets = [0, 32], sizes = [4, 32], strides = [1, 1]} : vector<4x96xf32> to vector<4x32xf32>
    %64 = arith.addf %62, %63 : vector<4x32xf32>
    %65 = arith.negf %64 : vector<4x32xf32>
    %66 = math.exp %65 : vector<4x32xf32>
    %cst_27 = arith.constant 1.000000e+00 : f32
    %67 = vector.broadcast %cst_27 : f32 to vector<4x32xf32>
    %68 = arith.addf %67, %66 : vector<4x32xf32>
    %69 = arith.divf %67, %68 : vector<4x32xf32>
    %70 = vector.extract_strided_slice %50 {offsets = [0, 64], sizes = [4, 32], strides = [1, 1]} : vector<4x96xf32> to vector<4x32xf32>
    %71 = vector.extract_strided_slice %53 {offsets = [0, 64], sizes = [4, 32], strides = [1, 1]} : vector<4x96xf32> to vector<4x32xf32>
    %72 = arith.mulf %61, %71 : vector<4x32xf32>
    %73 = arith.addf %70, %72 : vector<4x32xf32>
    %74 = math.tanh %73 : vector<4x32xf32>
    %cst_28 = arith.constant 1.000000e+00 : f32
    %75 = vector.broadcast %cst_28 : f32 to vector<4x32xf32>
    %76 = arith.subf %75, %69 : vector<4x32xf32>
    %77 = arith.mulf %76, %74 : vector<4x32xf32>
    %78 = arith.mulf %69, %43 : vector<4x32xf32>
    %79 = arith.addf %77, %78 : vector<4x32xf32>
    %80 = arith.index_cast %c1_i32 : i32 to index
    %c0_29 = arith.constant 0 : index
    %c0_30 = arith.constant 0 : index
    %81 = vector.load %arg18[%80, %c0_29, %c0_30] : memref<2x4x32xf32, #tpu.memory_space<vmem>>, vector<1x4x32xf32>
    %82 = vector.shape_cast %81 : vector<1x4x32xf32> to vector<4x32xf32>
    %83 = vector.shape_cast %79 : vector<4x32xf32> to vector<1x4x32xf32>
    tpu.vector_store %arg18[%80, %c0_29, %c0_30], %83 {strides = array<i32>} : memref<2x4x32xf32, #tpu.memory_space<vmem>>, vector<1x4x32xf32>,
    %c2_i32 = arith.constant 2 : i32
    %c0_31 = arith.constant 0 : index
    %c0_32 = arith.constant 0 : index
    %c0_33 = arith.constant 0 : index
    %84 = vector.load %arg18[%c0_31, %c0_32, %c0_33] : memref<2x4x32xf32, #tpu.memory_space<vmem>>, vector<2x4x32xf32>
    %85 = vector.shape_cast %84 : vector<2x4x32xf32> to vector<8x32xf32>
    %c0_34 = arith.constant 0 : index
    %c0_35 = arith.constant 0 : index
    %86 = vector.load %arg6[%c0_34, %c0_35] : memref<32x96xf32, #tpu.memory_space<vmem>>, vector<32x96xf32>
    %cst_36 = arith.constant dense<0.000000e+00> : vector<8x96xf32>
    %87 = tpu.matmul %85, %86, %cst_36 {dimension_numbers = #tpu.dot_dimension_numbers<[1], [0], [0], [1], [0, 0, 1, 1], [], []>} : vector<8x32xf32>, vector<32x96xf32>, vector<8x96xf32> -> vector<8x96xf32>
    %c0_37 = arith.constant 0 : index
    %c0_38 = arith.constant 0 : index
    %88 = vector.load %arg8[%c0_37, %c0_38] : memref<1x96xf32, #tpu.memory_space<vmem>>, vector<1x96xf32>
    %89 = vector.broadcast %88 : vector<1x96xf32> to vector<8x96xf32>
    %90 = arith.addf %87, %89 : vector<8x96xf32>
    %91 = vector.shape_cast %90 : vector<8x96xf32> to vector<2x4x96xf32>
    %c0_39 = arith.constant 0 : index
    %c0_40 = arith.constant 0 : index
    %c0_41 = arith.constant 0 : index
    %92 = vector.load %arg17[%c0_39, %c0_40, %c0_41] : memref<2x4x96xf32, #tpu.memory_space<vmem>>, vector<2x4x96xf32>
    tpu.vector_store %arg17[%c0_39, %c0_40, %c0_41], %91 {strides = array<i32>} : memref<2x4x96xf32, #tpu.memory_space<vmem>>, vector<2x4x96xf32>,
    %c0_42 = arith.constant 0 : index
    %c0_43 = arith.constant 0 : index
    %93 = vector.load %arg7[%c0_42, %c0_43] : memref<32x96xf32, #tpu.memory_space<vmem>>, vector<32x96xf32>
    %c0_44 = arith.constant 0 : index
    %c0_45 = arith.constant 0 : index
    %94 = vector.load %arg9[%c0_44, %c0_45] : memref<1x96xf32, #tpu.memory_space<vmem>>, vector<1x96xf32>
    %cst_46 = arith.constant 0.000000e+00 : f32
    %95 = vector.broadcast %cst_46 : f32 to vector<4x32xf32>
    %c0_i32_47 = arith.constant 0 : i32
    %96 = arith.index_cast %c0_i32_47 : i32 to index
    %c0_48 = arith.constant 0 : index
    %c0_49 = arith.constant 0 : index
    %97 = vector.load %arg17[%96, %c0_48, %c0_49] : memref<2x4x96xf32, #tpu.memory_space<vmem>>, vector<1x4x96xf32>
    %98 = vector.shape_cast %97 : vector<1x4x96xf32> to vector<4x96xf32>
    %cst_50 = arith.constant dense<0.000000e+00> : vector<4x96xf32>
    %99 = tpu.matmul %95, %93, %cst_50 {dimension_numbers = #tpu.dot_dimension_numbers<[1], [0], [0], [1], [0, 0, 1, 1], [], []>} : vector<4x32xf32>, vector<32x96xf32>, vector<4x96xf32> -> vector<4x96xf32>
    %100 = vector.broadcast %94 : vector<1x96xf32> to vector<4x96xf32>
    %101 = arith.addf %99, %100 : vector<4x96xf32>
    %102 = vector.extract_strided_slice %98 {offsets = [0, 0], sizes = [4, 32], strides = [1, 1]} : vector<4x96xf32> to vector<4x32xf32>
    %103 = vector.extract_strided_slice %101 {offsets = [0, 0], sizes = [4, 32], strides = [1, 1]} : vector<4x96xf32> to vector<4x32xf32>
    %104 = arith.addf %102, %103 : vector<4x32xf32>
    %105 = arith.negf %104 : vector<4x32xf32>
    %106 = math.exp %105 : vector<4x32xf32>
    %cst_51 = arith.constant 1.000000e+00 : f32
    %107 = vector.broadcast %cst_51 : f32 to vector<4x32xf32>
    %108 = arith.addf %107, %106 : vector<4x32xf32>
    %109 = arith.divf %107, %108 : vector<4x32xf32>
    %110 = vector.extract_strided_slice %98 {offsets = [0, 32], sizes = [4, 32], strides = [1, 1]} : vector<4x96xf32> to vector<4x32xf32>
    %111 = vector.extract_strided_slice %101 {offsets = [0, 32], sizes = [4, 32], strides = [1, 1]} : vector<4x96xf32> to vector<4x32xf32>
    %112 = arith.addf %110, %111 : vector<4x32xf32>
    %113 = arith.negf %112 : vector<4x32xf32>
    %114 = math.exp %113 : vector<4x32xf32>
    %cst_52 = arith.constant 1.000000e+00 : f32
    %115 = vector.broadcast %cst_52 : f32 to vector<4x32xf32>
    %116 = arith.addf %115, %114 : vector<4x32xf32>
    %117 = arith.divf %115, %116 : vector<4x32xf32>
    %118 = vector.extract_strided_slice %98 {offsets = [0, 64], sizes = [4, 32], strides = [1, 1]} : vector<4x96xf32> to vector<4x32xf32>
    %119 = vector.extract_strided_slice %101 {offsets = [0, 64], sizes = [4, 32], strides = [1, 1]} : vector<4x96xf32> to vector<4x32xf32>
    %120 = arith.mulf %109, %119 : vector<4x32xf32>
    %121 = arith.addf %118, %120 : vector<4x32xf32>
    %122 = math.tanh %121 : vector<4x32xf32>
    %cst_53 = arith.constant 1.000000e+00 : f32
    %123 = vector.broadcast %cst_53 : f32 to vector<4x32xf32>
    %124 = arith.subf %123, %117 : vector<4x32xf32>
    %125 = arith.mulf %124, %122 : vector<4x32xf32>
    %126 = arith.mulf %117, %95 : vector<4x32xf32>
    %127 = arith.addf %125, %126 : vector<4x32xf32>
    %128 = arith.index_cast %c0_i32_47 : i32 to index
    %c0_54 = arith.constant 0 : index
    %c0_55 = arith.constant 0 : index
    %129 = vector.load %arg18[%128, %c0_54, %c0_55] : memref<2x4x32xf32, #tpu.memory_space<vmem>>, vector<1x4x32xf32>
    %130 = vector.shape_cast %129 : vector<1x4x32xf32> to vector<4x32xf32>
    %131 = vector.shape_cast %127 : vector<4x32xf32> to vector<1x4x32xf32>
    tpu.vector_store %arg18[%128, %c0_54, %c0_55], %131 {strides = array<i32>} : memref<2x4x32xf32, #tpu.memory_space<vmem>>, vector<1x4x32xf32>,
    %c1_i32_56 = arith.constant 1 : i32
    %132 = arith.index_cast %c1_i32_56 : i32 to index
    %c0_57 = arith.constant 0 : index
    %c0_58 = arith.constant 0 : index
    %133 = vector.load %arg17[%132, %c0_57, %c0_58] : memref<2x4x96xf32, #tpu.memory_space<vmem>>, vector<1x4x96xf32>
    %134 = vector.shape_cast %133 : vector<1x4x96xf32> to vector<4x96xf32>
    %cst_59 = arith.constant dense<0.000000e+00> : vector<4x96xf32>
    %135 = tpu.matmul %127, %93, %cst_59 {dimension_numbers = #tpu.dot_dimension_numbers<[1], [0], [0], [1], [0, 0, 1, 1], [], []>} : vector<4x32xf32>, vector<32x96xf32>, vector<4x96xf32> -> vector<4x96xf32>
    %136 = vector.broadcast %94 : vector<1x96xf32> to vector<4x96xf32>
    %137 = arith.addf %135, %136 : vector<4x96xf32>
    %138 = vector.extract_strided_slice %134 {offsets = [0, 0], sizes = [4, 32], strides = [1, 1]} : vector<4x96xf32> to vector<4x32xf32>
    %139 = vector.extract_strided_slice %137 {offsets = [0, 0], sizes = [4, 32], strides = [1, 1]} : vector<4x96xf32> to vector<4x32xf32>
    %140 = arith.addf %138, %139 : vector<4x32xf32>
    %141 = arith.negf %140 : vector<4x32xf32>
    %142 = math.exp %141 : vector<4x32xf32>
    %cst_60 = arith.constant 1.000000e+00 : f32
    %143 = vector.broadcast %cst_60 : f32 to vector<4x32xf32>
    %144 = arith.addf %143, %142 : vector<4x32xf32>
    %145 = arith.divf %143, %144 : vector<4x32xf32>
    %146 = vector.extract_strided_slice %134 {offsets = [0, 32], sizes = [4, 32], strides = [1, 1]} : vector<4x96xf32> to vector<4x32xf32>
    %147 = vector.extract_strided_slice %137 {offsets = [0, 32], sizes = [4, 32], strides = [1, 1]} : vector<4x96xf32> to vector<4x32xf32>
    %148 = arith.addf %146, %147 : vector<4x32xf32>
    %149 = arith.negf %148 : vector<4x32xf32>
    %150 = math.exp %149 : vector<4x32xf32>
    %cst_61 = arith.constant 1.000000e+00 : f32
    %151 = vector.broadcast %cst_61 : f32 to vector<4x32xf32>
    %152 = arith.addf %151, %150 : vector<4x32xf32>
    %153 = arith.divf %151, %152 : vector<4x32xf32>
    %154 = vector.extract_strided_slice %134 {offsets = [0, 64], sizes = [4, 32], strides = [1, 1]} : vector<4x96xf32> to vector<4x32xf32>
    %155 = vector.extract_strided_slice %137 {offsets = [0, 64], sizes = [4, 32], strides = [1, 1]} : vector<4x96xf32> to vector<4x32xf32>
    %156 = arith.mulf %145, %155 : vector<4x32xf32>
    %157 = arith.addf %154, %156 : vector<4x32xf32>
    %158 = math.tanh %157 : vector<4x32xf32>
    %cst_62 = arith.constant 1.000000e+00 : f32
    %159 = vector.broadcast %cst_62 : f32 to vector<4x32xf32>
    %160 = arith.subf %159, %153 : vector<4x32xf32>
    %161 = arith.mulf %160, %158 : vector<4x32xf32>
    %162 = arith.mulf %153, %127 : vector<4x32xf32>
    %163 = arith.addf %161, %162 : vector<4x32xf32>
    %164 = arith.index_cast %c1_i32_56 : i32 to index
    %c0_63 = arith.constant 0 : index
    %c0_64 = arith.constant 0 : index
    %165 = vector.load %arg18[%164, %c0_63, %c0_64] : memref<2x4x32xf32, #tpu.memory_space<vmem>>, vector<1x4x32xf32>
    %166 = vector.shape_cast %165 : vector<1x4x32xf32> to vector<4x32xf32>
    %167 = vector.shape_cast %163 : vector<4x32xf32> to vector<1x4x32xf32>
    tpu.vector_store %arg18[%164, %c0_63, %c0_64], %167 {strides = array<i32>} : memref<2x4x32xf32, #tpu.memory_space<vmem>>, vector<1x4x32xf32>,
    %c2_i32_65 = arith.constant 2 : i32
    %168 = vector.extract_strided_slice %163 {offsets = [0, 0], sizes = [2, 32], strides = [1, 1]} : vector<4x32xf32> to vector<2x32xf32>
    %169 = vector.extract_strided_slice %163 {offsets = [2, 0], sizes = [2, 32], strides = [1, 1]} : vector<4x32xf32> to vector<2x32xf32>
    %c0_66 = arith.constant 0 : index
    %c0_67 = arith.constant 0 : index
    %170 = vector.load %arg1[%c0_66, %c0_67] : memref<2x2xf32, #tpu.memory_space<vmem>>, vector<2x2xf32>
    %c0_68 = arith.constant 0 : index
    %c0_69 = arith.constant 0 : index
    %171 = vector.load %arg12[%c0_68, %c0_69] : memref<2x32xf32, #tpu.memory_space<vmem>>, vector<2x32xf32>
    %172 = vector.extract_strided_slice %170 {offsets = [0, 0], sizes = [2, 1], strides = [1, 1]} : vector<2x2xf32> to vector<2x1xf32>
    %173 = vector.extract_strided_slice %171 {offsets = [0, 0], sizes = [1, 32], strides = [1, 1]} : vector<2x32xf32> to vector<1x32xf32>
    %174 = vector.broadcast %172 : vector<2x1xf32> to vector<2x32xf32>
    %175 = vector.broadcast %173 : vector<1x32xf32> to vector<2x32xf32>
    %176 = arith.mulf %174, %175 : vector<2x32xf32>
    %177 = vector.extract_strided_slice %170 {offsets = [0, 1], sizes = [2, 1], strides = [1, 1]} : vector<2x2xf32> to vector<2x1xf32>
    %178 = vector.extract_strided_slice %171 {offsets = [1, 0], sizes = [1, 32], strides = [1, 1]} : vector<2x32xf32> to vector<1x32xf32>
    %179 = vector.broadcast %177 : vector<2x1xf32> to vector<2x32xf32>
    %180 = vector.broadcast %178 : vector<1x32xf32> to vector<2x32xf32>
    %181 = arith.mulf %179, %180 : vector<2x32xf32>
    %182 = arith.addf %176, %181 : vector<2x32xf32>
    %c0_70 = arith.constant 0 : index
    %c0_71 = arith.constant 0 : index
    %183 = vector.load %arg10[%c0_70, %c0_71] : memref<32x32xf32, #tpu.memory_space<vmem>>, vector<32x32xf32>
    %cst_72 = arith.constant dense<0.000000e+00> : vector<2x32xf32>
    %184 = tpu.matmul %168, %183, %cst_72 {dimension_numbers = #tpu.dot_dimension_numbers<[1], [0], [0], [1], [0, 0, 1, 1], [], []>} : vector<2x32xf32>, vector<32x32xf32>, vector<2x32xf32> -> vector<2x32xf32>
    %c0_73 = arith.constant 0 : index
    %c0_74 = arith.constant 0 : index
    %185 = vector.load %arg11[%c0_73, %c0_74] : memref<32x32xf32, #tpu.memory_space<vmem>>, vector<32x32xf32>
    %cst_75 = arith.constant dense<0.000000e+00> : vector<2x32xf32>
    %186 = tpu.matmul %169, %185, %cst_75 {dimension_numbers = #tpu.dot_dimension_numbers<[1], [0], [0], [1], [0, 0, 1, 1], [], []>} : vector<2x32xf32>, vector<32x32xf32>, vector<2x32xf32> -> vector<2x32xf32>
    %187 = arith.addf %184, %186 : vector<2x32xf32>
    %188 = arith.addf %187, %182 : vector<2x32xf32>
    %c0_76 = arith.constant 0 : index
    %c0_77 = arith.constant 0 : index
    %189 = vector.load %arg13[%c0_76, %c0_77] : memref<1x32xf32, #tpu.memory_space<vmem>>, vector<1x32xf32>
    %190 = vector.broadcast %189 : vector<1x32xf32> to vector<2x32xf32>
    %191 = arith.addf %188, %190 : vector<2x32xf32>
    %cst_78 = arith.constant 0.000000e+00 : f32
    %192 = vector.broadcast %cst_78 : f32 to vector<2x32xf32>
    %193 = arith.maximumf %191, %192 : vector<2x32xf32>
    %c0_79 = arith.constant 0 : index
    %c0_80 = arith.constant 0 : index
    %194 = vector.load %arg14[%c0_79, %c0_80] : memref<32x4xf32, #tpu.memory_space<vmem>>, vector<32x4xf32>
    %cst_81 = arith.constant dense<0.000000e+00> : vector<2x4xf32>
    %195 = tpu.matmul %193, %194, %cst_81 {dimension_numbers = #tpu.dot_dimension_numbers<[1], [0], [0], [1], [0, 0, 1, 1], [], []>} : vector<2x32xf32>, vector<32x4xf32>, vector<2x4xf32> -> vector<2x4xf32>
    %c0_82 = arith.constant 0 : index
    %c0_83 = arith.constant 0 : index
    %196 = vector.load %arg15[%c0_82, %c0_83] : memref<1x4xf32, #tpu.memory_space<vmem>>, vector<1x4xf32>
    %197 = vector.broadcast %196 : vector<1x4xf32> to vector<2x4xf32>
    %198 = arith.addf %195, %197 : vector<2x4xf32>
    %cst_84 = arith.constant 0.000000e+00 : f32
    %199 = vector.broadcast %cst_84 : f32 to vector<2x4xf32>
    %200 = arith.maximumf %198, %199 : vector<2x4xf32>
    %c0_85 = arith.constant 0 : index
    %c0_86 = arith.constant 0 : index
    %201 = vector.load %arg16[%c0_85, %c0_86] : memref<2x4xf32, #tpu.memory_space<vmem>>, vector<2x4xf32>
    tpu.vector_store %arg16[%c0_85, %c0_86], %200 {strides = array<i32>} : memref<2x4xf32, #tpu.memory_space<vmem>>, vector<2x4xf32>,
    return
  }
}

</mosaic_0001>

<llo_original>
// kernel: silence_predictor_forward.3
$region0: #{silence_predictor_forward.3}
  #allocation0 [shape = 'u32[]', space=smem, size = 0x4, offset = 0x4, fixed_abs, tag = 'smem constant byte address 0x4 - core index']
  #allocation1 [shape = 'u32[144,128]{1,0:T(1,128)}', space=vmem, size = 0x12000, scoped, tag = 'internal scratch']
  #allocation2 [shape = 'f32[2,4,96]{2,1,0:T(4,128)}', space=vmem, size = 0x1000, scoped, tag = 'scratch operand']
  #allocation3 [shape = 'f32[2,4,32]{2,1,0:T(4,128)}', space=vmem, size = 0x1000, scoped, tag = 'scratch operand']
  %s0 = inlined_call_operand.vmem [shape: f32[2,2,2,128], index: 0, kind: input, shape index: {}]
  %s1 = inlined_call_operand.vmem [shape: f32[2,2], index: 1, kind: input, shape index: {}]
  %s2 = inlined_call_operand.vmem [shape: f32[128,96], index: 2, kind: input, shape index: {}]
  %s3 = inlined_call_operand.vmem [shape: f32[32,96], index: 3, kind: input, shape index: {}]
  %s4 = inlined_call_operand.vmem [shape: f32[1,96], index: 4, kind: input, shape index: {}]
  %s5 = inlined_call_operand.vmem [shape: f32[1,96], index: 5, kind: input, shape index: {}]
  %s6 = inlined_call_operand.vmem [shape: f32[32,96], index: 6, kind: input, shape index: {}]
  %s7 = inlined_call_operand.vmem [shape: f32[32,96], index: 7, kind: input, shape index: {}]
  %s8 = inlined_call_operand.vmem [shape: f32[1,96], index: 8, kind: input, shape index: {}]
  %s9 = inlined_call_operand.vmem [shape: f32[1,96], index: 9, kind: input, shape index: {}]
  %s10 = inlined_call_operand.vmem [shape: f32[32,32], index: 10, kind: input, shape index: {}]
  %s11 = inlined_call_operand.vmem [shape: f32[32,32], index: 11, kind: input, shape index: {}]
  %s12 = inlined_call_operand.vmem [shape: f32[2,32], index: 12, kind: input, shape index: {}]
  %s13 = inlined_call_operand.vmem [shape: f32[1,32], index: 13, kind: input, shape index: {}]
  %s14 = inlined_call_operand.vmem [shape: f32[32,4], index: 14, kind: input, shape index: {}]
  %s15 = inlined_call_operand.vmem [shape: f32[1,4], index: 15, kind: input, shape index: {}]
  %s16 = inlined_call_operand.hbm [shape: f32[2,4], index: 16, kind: output, shape index: {}]
  %s17 = sld [smem:[#allocation0]]
  $region74: #{silence_predictor_forward.3} parent=0
    _
  %s19 = ssub.s32 1, %s17
  %s20 = scalar_select 0, %s19, %s17
  $region1: #{silence_predictor_forward.3} parent=0
    #allocation4 [shape = 'u8[1024]{0}', space=vmem, size = 0x400, scoped, tag = 'output window, operand 0, single buffered']
    #allocation5 [shape = 's32[1]{0}', space=sflag, size = 0x4, scoped, tag = 'scoped memory for silence_predictor_forward.3']
    %21 = vsyncpa [#allocation5], 0
    // Predicated region
    $region2: #{silence_predictor_forward.3} parent=1 // pred_check
      _
    $region3: #{silence_predictor_forward.3} parent=1 // pred_check_branch
      %23 = sbr.rel (0) target = $region5
    $region4: #{silence_predictor_forward.3} parent=1 // pred_region
      _
    $region5: #{silence_predictor_forward.3} parent=1 // pred_fallthru
      _
    // Predicated region
    $region6: #{silence_predictor_forward.3} parent=1 // pred_check
      _
    $region7: #{silence_predictor_forward.3} parent=1 // pred_check_branch
      %25 = sbr.rel (0) target = $region9
    $region8: #{silence_predictor_forward.3} parent=1 // pred_region
      _
    $region9: #{silence_predictor_forward.3} parent=1 // pred_fallthru
      _
    // Predicated region
    $region10: #{silence_predictor_forward.3} parent=1 // pred_check
      _
    $region11: #{silence_predictor_forward.3} parent=1 // pred_check_branch
      %27 = sbr.rel (0) target = $region13
    $region12: #{silence_predictor_forward.3} parent=1 // pred_region
      _
    $region13: #{silence_predictor_forward.3} parent=1 // pred_fallthru
      _
    // Predicated region
    $region14: #{silence_predictor_forward.3} parent=1 // pred_check
      _
    $region15: #{silence_predictor_forward.3} parent=1 // pred_check_branch
      %29 = sbr.rel (0) target = $region17
    $region16: #{silence_predictor_forward.3} parent=1 // pred_region
      _
    $region17: #{silence_predictor_forward.3} parent=1 // pred_fallthru
      _
    // Predicated region
    $region18: #{silence_predictor_forward.3} parent=1 // pred_check
      _
    $region19: #{silence_predictor_forward.3} parent=1 // pred_check_branch
      %31 = sbr.rel (0) target = $region21
    $region20: #{silence_predictor_forward.3} parent=1 // pred_region
      _
    $region21: #{silence_predictor_forward.3} parent=1 // pred_fallthru
      _
    // Predicated region
    $region22: #{silence_predictor_forward.3} parent=1 // pred_check
      _
    $region23: #{silence_predictor_forward.3} parent=1 // pred_check_branch
      %33 = sbr.rel (0) target = $region25
    $region24: #{silence_predictor_forward.3} parent=1 // pred_region
      _
    $region25: #{silence_predictor_forward.3} parent=1 // pred_fallthru
      _
    // Predicated region
    $region26: #{silence_predictor_forward.3} parent=1 // pred_check
      _
    $region27: #{silence_predictor_forward.3} parent=1 // pred_check_branch
      %35 = sbr.rel (0) target = $region29
    $region28: #{silence_predictor_forward.3} parent=1 // pred_region
      _
    $region29: #{silence_predictor_forward.3} parent=1 // pred_fallthru
      _
    // Predicated region
    $region30: #{silence_predictor_forward.3} parent=1 // pred_check
      _
    $region31: #{silence_predictor_forward.3} parent=1 // pred_check_branch
      %37 = sbr.rel (0) target = $region33
    $region32: #{silence_predictor_forward.3} parent=1 // pred_region
      _
    $region33: #{silence_predictor_forward.3} parent=1 // pred_fallthru
      _
    // Predicated region
    $region34: #{silence_predictor_forward.3} parent=1 // pred_check
      _
    $region35: #{silence_predictor_forward.3} parent=1 // pred_check_branch
      %39 = sbr.rel (0) target = $region37
    $region36: #{silence_predictor_forward.3} parent=1 // pred_region
      _
    $region37: #{silence_predictor_forward.3} parent=1 // pred_fallthru
      _
    // Predicated region
    $region38: #{silence_predictor_forward.3} parent=1 // pred_check
      _
    $region39: #{silence_predictor_forward.3} parent=1 // pred_check_branch
      %41 = sbr.rel (0) target = $region41
    $region40: #{silence_predictor_forward.3} parent=1 // pred_region
      _
    $region41: #{silence_predictor_forward.3} parent=1 // pred_fallthru
      _
    // Predicated region
    $region42: #{silence_predictor_forward.3} parent=1 // pred_check
      _
    $region43: #{silence_predictor_forward.3} parent=1 // pred_check_branch
      %43 = sbr.rel (0) target = $region45
    $region44: #{silence_predictor_forward.3} parent=1 // pred_region
      _
    $region45: #{silence_predictor_forward.3} parent=1 // pred_fallthru
      _
    // Predicated region
    $region46: #{silence_predictor_forward.3} parent=1 // pred_check
      _
    $region47: #{silence_predictor_forward.3} parent=1 // pred_check_branch
      %45 = sbr.rel (0) target = $region49
    $region48: #{silence_predictor_forward.3} parent=1 // pred_region
      _
    $region49: #{silence_predictor_forward.3} parent=1 // pred_fallthru
      _
    // Predicated region
    $region50: #{silence_predictor_forward.3} parent=1 // pred_check
      _
    $region51: #{silence_predictor_forward.3} parent=1 // pred_check_branch
      %47 = sbr.rel (0) target = $region53
    $region52: #{silence_predictor_forward.3} parent=1 // pred_region
      _
    $region53: #{silence_predictor_forward.3} parent=1 // pred_fallthru
      _
    // Predicated region
    $region54: #{silence_predictor_forward.3} parent=1 // pred_check
      _
    $region55: #{silence_predictor_forward.3} parent=1 // pred_check_branch
      %49 = sbr.rel (0) target = $region57
    $region56: #{silence_predictor_forward.3} parent=1 // pred_region
      _
    $region57: #{silence_predictor_forward.3} parent=1 // pred_fallthru
      _
    // Predicated region
    $region58: #{silence_predictor_forward.3} parent=1 // pred_check
      _
    $region59: #{silence_predictor_forward.3} parent=1 // pred_check_branch
      %51 = sbr.rel (0) target = $region61
    $region60: #{silence_predictor_forward.3} parent=1 // pred_region
      _
    $region61: #{silence_predictor_forward.3} parent=1 // pred_fallthru
      _
    // Predicated region
    $region62: #{silence_predictor_forward.3} parent=1 // pred_check
      _
    $region63: #{silence_predictor_forward.3} parent=1 // pred_check_branch
      %53 = sbr.rel (0) target = $region65
    $region64: #{silence_predictor_forward.3} parent=1 // pred_region
      _
    $region65: #{silence_predictor_forward.3} parent=1 // pred_fallthru
      _
    %v54 = vld [vmem:[%s0] sm:$0x3]
    %v55 = vld [vmem:[%s0 + $0x2] sm:$0x3]
    %v56 = vld [vmem:[%s0 + $0x4] sm:$0x3]
    %v57 = vld [vmem:[%s0 + $0x6] sm:$0x3]
    %v58 = vld [vmem:[%s2] sm:$0xff]
    %v59 = vld [vmem:[%s2 + $0x8] sm:$0xff]
    %v60 = vld [vmem:[%s2 + $0x10] sm:$0xff]
    %v61 = vld [vmem:[%s2 + $0x18] sm:$0xff]
    %v62 = vld [vmem:[%s2 + $0x20] sm:$0xff]
    %v63 = vld [vmem:[%s2 + $0x28] sm:$0xff]
    %v64 = vld [vmem:[%s2 + $0x30] sm:$0xff]
    %v65 = vld [vmem:[%s2 + $0x38] sm:$0xff]
    %v66 = vld [vmem:[%s2 + $0x40] sm:$0xff]
    %v67 = vld [vmem:[%s2 + $0x48] sm:$0xff]
    %v68 = vld [vmem:[%s2 + $0x50] sm:$0xff]
    %v69 = vld [vmem:[%s2 + $0x58] sm:$0xff]
    %v70 = vld [vmem:[%s2 + $0x60] sm:$0xff]
    %v71 = vld [vmem:[%s2 + $0x68] sm:$0xff]
    %v72 = vld [vmem:[%s2 + $0x70] sm:$0xff]
    %v73 = vld [vmem:[%s2 + $0x78] sm:$0xff]
    %v74 = vld [vmem:[%s4] sm:$0x1]
    %v76 = vlaneseq
    %v77 = vshrl.u32 %v76, 7
    %v78 = vsub.s32 0, %v77
    %v79 = vrot.slane %v74, %v78
    %v85 = vcombine.low %v54, %v55
    %v86 = vcombine.low %v56, %v57
    %v88 = vunpack.c.l.s4 1983009808
    %v89 = vunpack.c.0.s8 %v88
    %v90 = vlaneseq
    %v91 = vshrl.u32 %v90, 7
    %v92 = vsub.s32 %v89, %v91
    %v93 = vrot.slane %v85, %v92
    %v95 = vunpack.c.l.s4 1983009808
    %v96 = vunpack.c.0.s8 %v95
    %v97 = vlaneseq
    %v98 = vshrl.u32 %v97, 7
    %v99 = vsub.s32 %v96, %v98
    %v100 = vrot.slane %v86, %v99
    %v101 = vcombine.low %v93, %v100
    %103 = vmatprep.subr.mxu0 0.0
    %104 = vmatpush1.msra.mxu0 %v58
    %105 = vmatprep.subr.mxu0 0.0
    %106 = vmatpush1.msra.mxu0 %v59
    %107 = vmatprep.subr.mxu0 0.0
    %108 = vmatpush1.msra.mxu0 %v60
    %109 = vmatprep.subr.mxu0 0.0
    %110 = vmatpush1.msra.mxu0 %v61
    %111 = vmatprep.subr.mxu0 0.0
    %112 = vmatpush1.msra.mxu0 %v62
    %113 = vmatprep.subr.mxu0 0.0
    %114 = vmatpush1.msra.mxu0 %v63
    %115 = vmatprep.subr.mxu0 0.0
    %116 = vmatpush1.msra.mxu0 %v64
    %117 = vmatprep.subr.mxu0 0.0
    %118 = vmatpush1.msra.mxu0 %v65
    %119 = vmatprep.subr.mxu0 0.0
    %120 = vmatpush1.msra.mxu0 %v66
    %121 = vmatprep.subr.mxu0 0.0
    %122 = vmatpush1.msra.mxu0 %v67
    %123 = vmatprep.subr.mxu0 0.0
    %124 = vmatpush1.msra.mxu0 %v68
    %125 = vmatprep.subr.mxu0 0.0
    %126 = vmatpush1.msra.mxu0 %v69
    %127 = vmatprep.subr.mxu0 0.0
    %128 = vmatpush1.msra.mxu0 %v70
    %129 = vmatprep.subr.mxu0 0.0
    %130 = vmatpush1.msra.mxu0 %v71
    %131 = vmatprep.subr.mxu0 0.0
    %132 = vmatpush1.msra.mxu0 %v72
    %133 = vmatprep.subr.mxu0 0.0
    %134 = vmatpush1.msra.mxu0 %v73
    %135 = vmatprep.subr.mxu0 0.0
    %136 = vmatpush1.msra.mxu0 0.0
    %137 = vmatprep.subr.mxu0 0.0
    %138 = vmatpush1.msra.mxu0 0.0
    %139 = vmatprep.subr.mxu0 0.0
    %140 = vmatpush1.msra.mxu0 0.0
    %141 = vmatprep.subr.mxu0 0.0
    %142 = vmatpush1.msra.mxu0 0.0
    %143 = vmatprep.subr.mxu0 0.0
    %144 = vmatpush1.msra.mxu0 0.0
    %145 = vmatprep.subr.mxu0 0.0
    %146 = vmatpush1.msra.mxu0 0.0
    %147 = vmatprep.subr.mxu0 0.0
    %148 = vmatpush1.msra.mxu0 0.0
    %149 = vmatprep.subr.mxu0 0.0
    %150 = vmatpush1.msra.mxu0 0.0
    %151 = vmatprep.subr.mxu0 0.0
    %152 = vmatpush1.msra.mxu0 0.0
    %153 = vmatprep.subr.mxu0 0.0
    %154 = vmatpush1.msra.mxu0 0.0
    %155 = vmatprep.subr.mxu0 0.0
    %156 = vmatpush1.msra.mxu0 0.0
    %157 = vmatprep.subr.mxu0 0.0
    %158 = vmatpush1.msra.mxu0 0.0
    %159 = vmatprep.subr.mxu0 0.0
    %160 = vmatpush1.msra.mxu0 0.0
    %161 = vmatprep.subr.mxu0 0.0
    %162 = vmatpush1.msra.mxu0 0.0
    %163 = vmatprep.subr.mxu0 0.0
    %164 = vmatpush1.msra.mxu0 0.0
    %165 = vmatprep.subr.mxu0 0.0
    %166 = vmatpush1.msra.mxu0 0.0
    %167 = vmatprep.mubr.f32.mxu0 0.0
    %168 = vmatmul.mubr.f32.gmra.mrb[0].mxu0 %v101
    %v169 = vpop.f32.mrb[0].mxu0
    %v170 = vadd.f32 %v79, %v169
    %v171 = vpop.f32.mrb[0].mxu0
    %172 = vdwg.mxu0
    %v174 = vcombine.high %v170, %v170
    %vm176 = vcmask 781312
    %177 = vst.msk [vmem:[#allocation2] sm:$0xf] %vm176, %v170
    %178 = vst.msk [vmem:[#allocation2 + $0x4] sm:$0xf] %vm176, %v174
    %v179 = vld [vmem:[%s3] sm:$0xff]
    %v180 = vld [vmem:[%s3 + $0x8] sm:$0xff]
    %v181 = vld [vmem:[%s3 + $0x10] sm:$0xff]
    %v182 = vld [vmem:[%s3 + $0x18] sm:$0xff]
    %v183 = vld [vmem:[%s5] sm:$0x1]
    %v184 = vld [vmem:[#allocation2] sm:$0xf]
    %v186 = vlaneseq
    %v187 = vshrl.u32 %v186, 7
    %v188 = vsub.s32 0, %v187
    %v189 = vrot.slane %v183, %v188
    %vm191 = vcmask 261120
    %v193 = vsel %vm191, 0.0, 0
    %195 = vmatprep.subr.mxu0 0.0
    %196 = vmatpush1.msra.mxu0 %v179
    %197 = vmatprep.subr.mxu0 0.0
    %198 = vmatpush1.msra.mxu0 %v180
    %199 = vmatprep.subr.mxu0 0.0
    %200 = vmatpush1.msra.mxu0 %v181
    %201 = vmatprep.subr.mxu0 0.0
    %202 = vmatpush1.msra.mxu0 %v182
    %203 = vmatprep.subr.mxu0 0.0
    %204 = vmatpush1.msra.mxu0 0.0
    %205 = vmatprep.subr.mxu0 0.0
    %206 = vmatpush1.msra.mxu0 0.0
    %207 = vmatprep.subr.mxu0 0.0
    %208 = vmatpush1.msra.mxu0 0.0
    %209 = vmatprep.subr.mxu0 0.0
    %210 = vmatpush1.msra.mxu0 0.0
    %211 = vmatprep.subr.mxu0 0.0
    %212 = vmatpush1.msra.mxu0 0.0
    %213 = vmatprep.subr.mxu0 0.0
    %214 = vmatpush1.msra.mxu0 0.0
    %215 = vmatprep.subr.mxu0 0.0
    %216 = vmatpush1.msra.mxu0 0.0
    %217 = vmatprep.subr.mxu0 0.0
    %218 = vmatpush1.msra.mxu0 0.0
    %219 = vmatprep.subr.mxu0 0.0
    %220 = vmatpush1.msra.mxu0 0.0
    %221 = vmatprep.subr.mxu0 0.0
    %222 = vmatpush1.msra.mxu0 0.0
    %223 = vmatprep.subr.mxu0 0.0
    %224 = vmatpush1.msra.mxu0 0.0
    %225 = vmatprep.subr.mxu0 0.0
    %226 = vmatpush1.msra.mxu0 0.0
    %227 = vmatprep.subr.mxu0 0.0
    %228 = vmatpush1.msra.mxu0 0.0
    %229 = vmatprep.subr.mxu0 0.0
    %230 = vmatpush1.msra.mxu0 0.0
    %231 = vmatprep.subr.mxu0 0.0
    %232 = vmatpush1.msra.mxu0 0.0
    %233 = vmatprep.subr.mxu0 0.0
    %234 = vmatpush1.msra.mxu0 0.0
    %235 = vmatprep.subr.mxu0 0.0
    %236 = vmatpush1.msra.mxu0 0.0
    %237 = vmatprep.subr.mxu0 0.0
    %238 = vmatpush1.msra.mxu0 0.0
    %239 = vmatprep.subr.mxu0 0.0
    %240 = vmatpush1.msra.mxu0 0.0
    %241 = vmatprep.subr.mxu0 0.0
    %242 = vmatpush1.msra.mxu0 0.0
    %243 = vmatprep.subr.mxu0 0.0
    %244 = vmatpush1.msra.mxu0 0.0
    %245 = vmatprep.subr.mxu0 0.0
    %246 = vmatpush1.msra.mxu0 0.0
    %247 = vmatprep.subr.mxu0 0.0
    %248 = vmatpush1.msra.mxu0 0.0
    %249 = vmatprep.subr.mxu0 0.0
    %250 = vmatpush1.msra.mxu0 0.0
    %251 = vmatprep.subr.mxu0 0.0
    %252 = vmatpush1.msra.mxu0 0.0
    %253 = vmatprep.subr.mxu0 0.0
    %254 = vmatpush1.msra.mxu0 0.0
    %255 = vmatprep.subr.mxu0 0.0
    %256 = vmatpush1.msra.mxu0 0.0
    %257 = vmatprep.subr.mxu0 0.0
    %258 = vmatpush1.msra.mxu0 0.0
    %259 = vmatprep.mubr.f32.mxu0 0.0
    %260 = vmatmul.mubr.f32.gmra.mrb[0].mxu0 %v193
    %v261 = vpop.f32.mrb[0].mxu0
    %v262 = vadd.f32 %v189, %v261
    %v263 = vpop.f32.mrb[0].mxu0
    %264 = vdwg.mxu0
    %v265 = vadd.f32 %v184, %v262
    %v266 = vxor.u32 %v265, 2147483648
    %v267 = vmul.f32 %v266, 1.442695
    %v268 = vpow.pop %v267
    %v269 = vadd.f32 %v268, 1.0
    %v270 = vrcp.pop %v269
    %v271 = vmul.f32 1.0, %v270
    %273 = vrot.lane.b32.xlu0 %v262, 64
    %v274 = vpop.permute.xlu0 %273
    %v276 = vmul.f32 %v271, %v274
    %278 = vrot.lane.b32.xlu0 %v276, 64
    %v279 = vpop.permute.xlu0 %278
    %v281 = vadd.f32 %v184, %v279
    %v282 = vtanh.pop %v281
    %v283 = vsub.f32 1.0, %v271
    %285 = vrot.lane.b32.xlu0 %v282, 96
    %v286 = vpop.permute.xlu0 %285
    %v288 = vmul.f32 %v283, %v286
    %v289 = vmul.f32 %v271, 0.0
    %v290 = vadd.f32 %v288, %v289
    %292 = vrot.lane.b32.xlu0 %v290, 96
    %v293 = vpop.permute.xlu0 %292
    %vm295 = vcmask 257024
    %296 = vst.msk [vmem:[#allocation3] sm:$0xf] %vm295, %v293
    %s297 = scalar_lea.vmem [#allocation2], 4
    %v298 = vld [vmem:[%s297] sm:$0xf]
    %v299 = vsel %vm191, %v293, 0
    %301 = vmatprep.subr.mxu0 0.0
    %302 = vmatpush1.msra.mxu0 %v179
    %303 = vmatprep.subr.mxu0 0.0
    %304 = vmatpush1.msra.mxu0 %v180
    %305 = vmatprep.subr.mxu0 0.0
    %306 = vmatpush1.msra.mxu0 %v181
    %307 = vmatprep.subr.mxu0 0.0
    %308 = vmatpush1.msra.mxu0 %v182
    %309 = vmatprep.subr.mxu0 0.0
    %310 = vmatpush1.msra.mxu0 0.0
    %311 = vmatprep.subr.mxu0 0.0
    %312 = vmatpush1.msra.mxu0 0.0
    %313 = vmatprep.subr.mxu0 0.0
    %314 = vmatpush1.msra.mxu0 0.0
    %315 = vmatprep.subr.mxu0 0.0
    %316 = vmatpush1.msra.mxu0 0.0
    %317 = vmatprep.subr.mxu0 0.0
    %318 = vmatpush1.msra.mxu0 0.0
    %319 = vmatprep.subr.mxu0 0.0
    %320 = vmatpush1.msra.mxu0 0.0
    %321 = vmatprep.subr.mxu0 0.0
    %322 = vmatpush1.msra.mxu0 0.0
    %323 = vmatprep.subr.mxu0 0.0
    %324 = vmatpush1.msra.mxu0 0.0
    %325 = vmatprep.subr.mxu0 0.0
    %326 = vmatpush1.msra.mxu0 0.0
    %327 = vmatprep.subr.mxu0 0.0
    %328 = vmatpush1.msra.mxu0 0.0
    %329 = vmatprep.subr.mxu0 0.0
    %330 = vmatpush1.msra.mxu0 0.0
    %331 = vmatprep.subr.mxu0 0.0
    %332 = vmatpush1.msra.mxu0 0.0
    %333 = vmatprep.subr.mxu0 0.0
    %334 = vmatpush1.msra.mxu0 0.0
    %335 = vmatprep.subr.mxu0 0.0
    %336 = vmatpush1.msra.mxu0 0.0
    %337 = vmatprep.subr.mxu0 0.0
    %338 = vmatpush1.msra.mxu0 0.0
    %339 = vmatprep.subr.mxu0 0.0
    %340 = vmatpush1.msra.mxu0 0.0
    %341 = vmatprep.subr.mxu0 0.0
    %342 = vmatpush1.msra.mxu0 0.0
    %343 = vmatprep.subr.mxu0 0.0
    %344 = vmatpush1.msra.mxu0 0.0
    %345 = vmatprep.subr.mxu0 0.0
    %346 = vmatpush1.msra.mxu0 0.0
    %347 = vmatprep.subr.mxu0 0.0
    %348 = vmatpush1.msra.mxu0 0.0
    %349 = vmatprep.subr.mxu0 0.0
    %350 = vmatpush1.msra.mxu0 0.0
    %351 = vmatprep.subr.mxu0 0.0
    %352 = vmatpush1.msra.mxu0 0.0
    %353 = vmatprep.subr.mxu0 0.0
    %354 = vmatpush1.msra.mxu0 0.0
    %355 = vmatprep.subr.mxu0 0.0
    %356 = vmatpush1.msra.mxu0 0.0
    %357 = vmatprep.subr.mxu0 0.0
    %358 = vmatpush1.msra.mxu0 0.0
    %359 = vmatprep.subr.mxu0 0.0
    %360 = vmatpush1.msra.mxu0 0.0
    %361 = vmatprep.subr.mxu0 0.0
    %362 = vmatpush1.msra.mxu0 0.0
    %363 = vmatprep.subr.mxu0 0.0
    %364 = vmatpush1.msra.mxu0 0.0
    %365 = vmatprep.mubr.f32.mxu0 0.0
    %366 = vmatmul.mubr.f32.gmra.mrb[0].mxu0 %v299
    %v367 = vpop.f32.mrb[0].mxu0
    %v368 = vadd.f32 %v189, %v367
    %v369 = vpop.f32.mrb[0].mxu0
    %370 = vdwg.mxu0
    %v371 = vadd.f32 %v298, %v368
    %v372 = vxor.u32 %v371, 2147483648
    %v373 = vmul.f32 %v372, 1.442695
    %v374 = vpow.pop %v373
    %v375 = vadd.f32 %v374, 1.0
    %v376 = vrcp.pop %v375
    %v377 = vmul.f32 1.0, %v376
    %379 = vrot.lane.b32.xlu0 %v368, 64
    %v380 = vpop.permute.xlu0 %379
    %v382 = vmul.f32 %v377, %v380
    %384 = vrot.lane.b32.xlu0 %v382, 64
    %v385 = vpop.permute.xlu0 %384
    %v387 = vadd.f32 %v298, %v385
    %v388 = vtanh.pop %v387
    %v389 = vsub.f32 1.0, %v377
    %391 = vrot.lane.b32.xlu0 %v388, 96
    %v392 = vpop.permute.xlu0 %391
    %v394 = vmul.f32 %v389, %v392
    %v395 = vmul.f32 %v377, %v290
    %v396 = vadd.f32 %v394, %v395
    %398 = vrot.lane.b32.xlu0 %v396, 96
    %v399 = vpop.permute.xlu0 %398
    %s401 = scalar_lea.vmem [#allocation3], 4
    %402 = vst.msk [vmem:[%s401] sm:$0xf] %vm295, %v399
    %v403 = vld [vmem:[#allocation3] sm:$0xf]
    %v404 = vld [vmem:[#allocation3 + $0x4] sm:$0xf]
    %v405 = vld [vmem:[%s6] sm:$0xff]
    %v406 = vld [vmem:[%s6 + $0x8] sm:$0xff]
    %v407 = vld [vmem:[%s6 + $0x10] sm:$0xff]
    %v408 = vld [vmem:[%s6 + $0x18] sm:$0xff]
    %v409 = vld [vmem:[%s8] sm:$0x1]
    %v411 = vlaneseq
    %v412 = vshrl.u32 %v411, 7
    %v413 = vsub.s32 0, %v412
    %v414 = vrot.slane %v409, %v413
    %v418 = vcombine.low %v403, %v404
    %v419 = vsel %vm191, %v418, 0
    %421 = vmatprep.subr.mxu0 0.0
    %422 = vmatpush1.msra.mxu0 %v405
    %423 = vmatprep.subr.mxu0 0.0
    %424 = vmatpush1.msra.mxu0 %v406
    %425 = vmatprep.subr.mxu0 0.0
    %426 = vmatpush1.msra.mxu0 %v407
    %427 = vmatprep.subr.mxu0 0.0
    %428 = vmatpush1.msra.mxu0 %v408
    %429 = vmatprep.subr.mxu0 0.0
    %430 = vmatpush1.msra.mxu0 0.0
    %431 = vmatprep.subr.mxu0 0.0
    %432 = vmatpush1.msra.mxu0 0.0
    %433 = vmatprep.subr.mxu0 0.0
    %434 = vmatpush1.msra.mxu0 0.0
    %435 = vmatprep.subr.mxu0 0.0
    %436 = vmatpush1.msra.mxu0 0.0
    %437 = vmatprep.subr.mxu0 0.0
    %438 = vmatpush1.msra.mxu0 0.0
    %439 = vmatprep.subr.mxu0 0.0
    %440 = vmatpush1.msra.mxu0 0.0
    %441 = vmatprep.subr.mxu0 0.0
    %442 = vmatpush1.msra.mxu0 0.0
    %443 = vmatprep.subr.mxu0 0.0
    %444 = vmatpush1.msra.mxu0 0.0
    %445 = vmatprep.subr.mxu0 0.0
    %446 = vmatpush1.msra.mxu0 0.0
    %447 = vmatprep.subr.mxu0 0.0
    %448 = vmatpush1.msra.mxu0 0.0
    %449 = vmatprep.subr.mxu0 0.0
    %450 = vmatpush1.msra.mxu0 0.0
    %451 = vmatprep.subr.mxu0 0.0
    %452 = vmatpush1.msra.mxu0 0.0
    %453 = vmatprep.subr.mxu0 0.0
    %454 = vmatpush1.msra.mxu0 0.0
    %455 = vmatprep.subr.mxu0 0.0
    %456 = vmatpush1.msra.mxu0 0.0
    %457 = vmatprep.subr.mxu0 0.0
    %458 = vmatpush1.msra.mxu0 0.0
    %459 = vmatprep.subr.mxu0 0.0
    %460 = vmatpush1.msra.mxu0 0.0
    %461 = vmatprep.subr.mxu0 0.0
    %462 = vmatpush1.msra.mxu0 0.0
    %463 = vmatprep.subr.mxu0 0.0
    %464 = vmatpush1.msra.mxu0 0.0
    %465 = vmatprep.subr.mxu0 0.0
    %466 = vmatpush1.msra.mxu0 0.0
    %467 = vmatprep.subr.mxu0 0.0
    %468 = vmatpush1.msra.mxu0 0.0
    %469 = vmatprep.subr.mxu0 0.0
    %470 = vmatpush1.msra.mxu0 0.0
    %471 = vmatprep.subr.mxu0 0.0
    %472 = vmatpush1.msra.mxu0 0.0
    %473 = vmatprep.subr.mxu0 0.0
    %474 = vmatpush1.msra.mxu0 0.0
    %475 = vmatprep.subr.mxu0 0.0
    %476 = vmatpush1.msra.mxu0 0.0
    %477 = vmatprep.subr.mxu0 0.0
    %478 = vmatpush1.msra.mxu0 0.0
    %479 = vmatprep.subr.mxu0 0.0
    %480 = vmatpush1.msra.mxu0 0.0
    %481 = vmatprep.subr.mxu0 0.0
    %482 = vmatpush1.msra.mxu0 0.0
    %483 = vmatprep.subr.mxu0 0.0
    %484 = vmatpush1.msra.mxu0 0.0
    %485 = vmatprep.mubr.f32.mxu0 0.0
    %486 = vmatmul.mubr.f32.gmra.mrb[0].mxu0 %v419
    %v487 = vpop.f32.mrb[0].mxu0
    %v488 = vadd.f32 %v414, %v487
    %v489 = vpop.f32.mrb[0].mxu0
    %490 = vdwg.mxu0
    %v492 = vcombine.high %v488, %v488
    %494 = vst.msk [vmem:[#allocation2] sm:$0xf] %vm176, %v488
    %495 = vst.msk [vmem:[#allocation2 + $0x4] sm:$0xf] %vm176, %v492
    %v496 = vld [vmem:[%s7] sm:$0xff]
    %v497 = vld [vmem:[%s7 + $0x8] sm:$0xff]
    %v498 = vld [vmem:[%s7 + $0x10] sm:$0xff]
    %v499 = vld [vmem:[%s7 + $0x18] sm:$0xff]
    %v500 = vld [vmem:[%s9] sm:$0x1]
    %v501 = vld [vmem:[#allocation2] sm:$0xf]
    %v503 = vlaneseq
    %v504 = vshrl.u32 %v503, 7
    %v505 = vsub.s32 0, %v504
    %v506 = vrot.slane %v500, %v505
    %508 = vmatprep.subr.mxu0 0.0
    %509 = vmatpush1.msra.mxu0 %v496
    %510 = vmatprep.subr.mxu0 0.0
    %511 = vmatpush1.msra.mxu0 %v497
    %512 = vmatprep.subr.mxu0 0.0
    %513 = vmatpush1.msra.mxu0 %v498
    %514 = vmatprep.subr.mxu0 0.0
    %515 = vmatpush1.msra.mxu0 %v499
    %516 = vmatprep.subr.mxu0 0.0
    %517 = vmatpush1.msra.mxu0 0.0
    %518 = vmatprep.subr.mxu0 0.0
    %519 = vmatpush1.msra.mxu0 0.0
    %520 = vmatprep.subr.mxu0 0.0
    %521 = vmatpush1.msra.mxu0 0.0
    %522 = vmatprep.subr.mxu0 0.0
    %523 = vmatpush1.msra.mxu0 0.0
    %524 = vmatprep.subr.mxu0 0.0
    %525 = vmatpush1.msra.mxu0 0.0
    %526 = vmatprep.subr.mxu0 0.0
    %527 = vmatpush1.msra.mxu0 0.0
    %528 = vmatprep.subr.mxu0 0.0
    %529 = vmatpush1.msra.mxu0 0.0
    %530 = vmatprep.subr.mxu0 0.0
    %531 = vmatpush1.msra.mxu0 0.0
    %532 = vmatprep.subr.mxu0 0.0
    %533 = vmatpush1.msra.mxu0 0.0
    %534 = vmatprep.subr.mxu0 0.0
    %535 = vmatpush1.msra.mxu0 0.0
    %536 = vmatprep.subr.mxu0 0.0
    %537 = vmatpush1.msra.mxu0 0.0
    %538 = vmatprep.subr.mxu0 0.0
    %539 = vmatpush1.msra.mxu0 0.0
    %540 = vmatprep.subr.mxu0 0.0
    %541 = vmatpush1.msra.mxu0 0.0
    %542 = vmatprep.subr.mxu0 0.0
    %543 = vmatpush1.msra.mxu0 0.0
    %544 = vmatprep.subr.mxu0 0.0
    %545 = vmatpush1.msra.mxu0 0.0
    %546 = vmatprep.subr.mxu0 0.0
    %547 = vmatpush1.msra.mxu0 0.0
    %548 = vmatprep.subr.mxu0 0.0
    %549 = vmatpush1.msra.mxu0 0.0
    %550 = vmatprep.subr.mxu0 0.0
    %551 = vmatpush1.msra.mxu0 0.0
    %552 = vmatprep.subr.mxu0 0.0
    %553 = vmatpush1.msra.mxu0 0.0
    %554 = vmatprep.subr.mxu0 0.0
    %555 = vmatpush1.msra.mxu0 0.0
    %556 = vmatprep.subr.mxu0 0.0
    %557 = vmatpush1.msra.mxu0 0.0
    %558 = vmatprep.subr.mxu0 0.0
    %559 = vmatpush1.msra.mxu0 0.0
    %560 = vmatprep.subr.mxu0 0.0
    %561 = vmatpush1.msra.mxu0 0.0
    %562 = vmatprep.subr.mxu0 0.0
    %563 = vmatpush1.msra.mxu0 0.0
    %564 = vmatprep.subr.mxu0 0.0
    %565 = vmatpush1.msra.mxu0 0.0
    %566 = vmatprep.subr.mxu0 0.0
    %567 = vmatpush1.msra.mxu0 0.0
    %568 = vmatprep.subr.mxu0 0.0
    %569 = vmatpush1.msra.mxu0 0.0
    %570 = vmatprep.subr.mxu0 0.0
    %571 = vmatpush1.msra.mxu0 0.0
    %572 = vmatprep.mubr.f32.mxu0 0.0
    %573 = vmatmul.mubr.f32.gmra.mrb[0].mxu0 %v193
    %v574 = vpop.f32.mrb[0].mxu0
    %v575 = vadd.f32 %v506, %v574
    %v576 = vpop.f32.mrb[0].mxu0
    %577 = vdwg.mxu0
    %v578 = vadd.f32 %v501, %v575
    %v579 = vxor.u32 %v578, 2147483648
    %v580 = vmul.f32 %v579, 1.442695
    %v581 = vpow.pop %v580
    %v582 = vadd.f32 %v581, 1.0
    %v583 = vrcp.pop %v582
    %v584 = vmul.f32 1.0, %v583
    %586 = vrot.lane.b32.xlu0 %v575, 64
    %v587 = vpop.permute.xlu0 %586
    %v589 = vmul.f32 %v584, %v587
    %591 = vrot.lane.b32.xlu0 %v589, 64
    %v592 = vpop.permute.xlu0 %591
    %v594 = vadd.f32 %v501, %v592
    %v595 = vtanh.pop %v594
    %v596 = vsub.f32 1.0, %v584
    %598 = vrot.lane.b32.xlu0 %v595, 96
    %v599 = vpop.permute.xlu0 %598
    %v601 = vmul.f32 %v596, %v599
    %v602 = vmul.f32 %v584, 0.0
    %v603 = vadd.f32 %v601, %v602
    %605 = vrot.lane.b32.xlu0 %v603, 96
    %v606 = vpop.permute.xlu0 %605
    %608 = vst.msk [vmem:[#allocation3] sm:$0xf] %vm295, %v606
    %v609 = vld [vmem:[%s297] sm:$0xf]
    %v610 = vsel %vm191, %v606, 0
    %612 = vmatprep.subr.mxu0 0.0
    %613 = vmatpush1.msra.mxu0 %v496
    %614 = vmatprep.subr.mxu0 0.0
    %615 = vmatpush1.msra.mxu0 %v497
    %616 = vmatprep.subr.mxu0 0.0
    %617 = vmatpush1.msra.mxu0 %v498
    %618 = vmatprep.subr.mxu0 0.0
    %619 = vmatpush1.msra.mxu0 %v499
    %620 = vmatprep.subr.mxu0 0.0
    %621 = vmatpush1.msra.mxu0 0.0
    %622 = vmatprep.subr.mxu0 0.0
    %623 = vmatpush1.msra.mxu0 0.0
    %624 = vmatprep.subr.mxu0 0.0
    %625 = vmatpush1.msra.mxu0 0.0
    %626 = vmatprep.subr.mxu0 0.0
    %627 = vmatpush1.msra.mxu0 0.0
    %628 = vmatprep.subr.mxu0 0.0
    %629 = vmatpush1.msra.mxu0 0.0
    %630 = vmatprep.subr.mxu0 0.0
    %631 = vmatpush1.msra.mxu0 0.0
    %632 = vmatprep.subr.mxu0 0.0
    %633 = vmatpush1.msra.mxu0 0.0
    %634 = vmatprep.subr.mxu0 0.0
    %635 = vmatpush1.msra.mxu0 0.0
    %636 = vmatprep.subr.mxu0 0.0
    %637 = vmatpush1.msra.mxu0 0.0
    %638 = vmatprep.subr.mxu0 0.0
    %639 = vmatpush1.msra.mxu0 0.0
    %640 = vmatprep.subr.mxu0 0.0
    %641 = vmatpush1.msra.mxu0 0.0
    %642 = vmatprep.subr.mxu0 0.0
    %643 = vmatpush1.msra.mxu0 0.0
    %644 = vmatprep.subr.mxu0 0.0
    %645 = vmatpush1.msra.mxu0 0.0
    %646 = vmatprep.subr.mxu0 0.0
    %647 = vmatpush1.msra.mxu0 0.0
    %648 = vmatprep.subr.mxu0 0.0
    %649 = vmatpush1.msra.mxu0 0.0
    %650 = vmatprep.subr.mxu0 0.0
    %651 = vmatpush1.msra.mxu0 0.0
    %652 = vmatprep.subr.mxu0 0.0
    %653 = vmatpush1.msra.mxu0 0.0
    %654 = vmatprep.subr.mxu0 0.0
    %655 = vmatpush1.msra.mxu0 0.0
    %656 = vmatprep.subr.mxu0 0.0
    %657 = vmatpush1.msra.mxu0 0.0
    %658 = vmatprep.subr.mxu0 0.0
    %659 = vmatpush1.msra.mxu0 0.0
    %660 = vmatprep.subr.mxu0 0.0
    %661 = vmatpush1.msra.mxu0 0.0
    %662 = vmatprep.subr.mxu0 0.0
    %663 = vmatpush1.msra.mxu0 0.0
    %664 = vmatprep.subr.mxu0 0.0
    %665 = vmatpush1.msra.mxu0 0.0
    %666 = vmatprep.subr.mxu0 0.0
    %667 = vmatpush1.msra.mxu0 0.0
    %668 = vmatprep.subr.mxu0 0.0
    %669 = vmatpush1.msra.mxu0 0.0
    %670 = vmatprep.subr.mxu0 0.0
    %671 = vmatpush1.msra.mxu0 0.0
    %672 = vmatprep.subr.mxu0 0.0
    %673 = vmatpush1.msra.mxu0 0.0
    %674 = vmatprep.subr.mxu0 0.0
    %675 = vmatpush1.msra.mxu0 0.0
    %676 = vmatprep.mubr.f32.mxu0 0.0
    %677 = vmatmul.mubr.f32.gmra.mrb[0].mxu0 %v610
    %v678 = vpop.f32.mrb[0].mxu0
    %v679 = vadd.f32 %v506, %v678
    %v680 = vpop.f32.mrb[0].mxu0
    %681 = vdwg.mxu0
    %v682 = vadd.f32 %v609, %v679
    %v683 = vxor.u32 %v682, 2147483648
    %v684 = vmul.f32 %v683, 1.442695
    %v685 = vpow.pop %v684
    %v686 = vadd.f32 %v685, 1.0
    %v687 = vrcp.pop %v686
    %v688 = vmul.f32 1.0, %v687
    %690 = vrot.lane.b32.xlu0 %v679, 64
    %v691 = vpop.permute.xlu0 %690
    %v693 = vmul.f32 %v688, %v691
    %695 = vrot.lane.b32.xlu0 %v693, 64
    %v696 = vpop.permute.xlu0 %695
    %v698 = vadd.f32 %v609, %v696
    %v699 = vtanh.pop %v698
    %v700 = vsub.f32 1.0, %v688
    %702 = vrot.lane.b32.xlu0 %v699, 96
    %v703 = vpop.permute.xlu0 %702
    %v705 = vmul.f32 %v700, %v703
    %v706 = vmul.f32 %v688, %v603
    %v707 = vadd.f32 %v705, %v706
    %709 = vrot.lane.b32.xlu0 %v707, 96
    %v710 = vpop.permute.xlu0 %709
    %712 = vst.msk [vmem:[%s401] sm:$0xf] %vm295, %v710
    %v713 = vld [vmem:[%s1] sm:$0x3]
    %v714 = vld [vmem:[%s12] sm:$0x3]
    %716 = vset.pattern.permute.xlu0 0
    %717 = vperm.xlu0 %716, %v713
    %v718 = vpop.permute.xlu0 %717
    %v720 = vlaneseq
    %v721 = vshrl.u32 %v720, 7
    %v722 = vsub.s32 0, %v721
    %v723 = vrot.slane %v714, %v722
    %v724 = vmul.f32 %v718, %v723
    %725 = vset.pattern.permute.xlu0 1
    %726 = vperm.xlu0 %725, %v713
    %v727 = vpop.permute.xlu0 %726
    %v729 = vlaneseq
    %v730 = vshrl.u32 %v729, 7
    %v731 = vsub.s32 1, %v730
    %v732 = vrot.slane %v714, %v731
    %v733 = vmul.f32 %v727, %v732
    %v734 = vadd.f32 %v724, %v733
    %v735 = vld [vmem:[%s10] sm:$0xff]
    %v736 = vld [vmem:[%s10 + $0x8] sm:$0xff]
    %v737 = vld [vmem:[%s10 + $0x10] sm:$0xff]
    %v738 = vld [vmem:[%s10 + $0x18] sm:$0xff]
    %v739 = vld [vmem:[%s11] sm:$0xff]
    %v740 = vld [vmem:[%s11 + $0x8] sm:$0xff]
    %v741 = vld [vmem:[%s11 + $0x10] sm:$0xff]
    %v742 = vld [vmem:[%s11 + $0x18] sm:$0xff]
    %v743 = vrot.slane %v707, 2
    %744 = vrot.lane.b32.xlu0 %v743, 96
    %v745 = vpop.permute.xlu0 %744
    %v746 = vsel %vm191, %v745, 0
    %748 = vmatprep.subr.mxu0 0.0
    %749 = vmatpush1.msra.mxu0 %v739
    %750 = vmatprep.subr.mxu0 0.0
    %751 = vmatpush1.msra.mxu0 %v740
    %752 = vmatprep.subr.mxu0 0.0
    %753 = vmatpush1.msra.mxu0 %v741
    %754 = vmatprep.subr.mxu0 0.0
    %755 = vmatpush1.msra.mxu0 %v742
    %756 = vmatprep.subr.mxu0 0.0
    %757 = vmatpush1.msra.mxu0 0.0
    %758 = vmatprep.subr.mxu0 0.0
    %759 = vmatpush1.msra.mxu0 0.0
    %760 = vmatprep.subr.mxu0 0.0
    %761 = vmatpush1.msra.mxu0 0.0
    %762 = vmatprep.subr.mxu0 0.0
    %763 = vmatpush1.msra.mxu0 0.0
    %764 = vmatprep.subr.mxu0 0.0
    %765 = vmatpush1.msra.mxu0 0.0
    %766 = vmatprep.subr.mxu0 0.0
    %767 = vmatpush1.msra.mxu0 0.0
    %768 = vmatprep.subr.mxu0 0.0
    %769 = vmatpush1.msra.mxu0 0.0
    %770 = vmatprep.subr.mxu0 0.0
    %771 = vmatpush1.msra.mxu0 0.0
    %772 = vmatprep.subr.mxu0 0.0
    %773 = vmatpush1.msra.mxu0 0.0
    %774 = vmatprep.subr.mxu0 0.0
    %775 = vmatpush1.msra.mxu0 0.0
    %776 = vmatprep.subr.mxu0 0.0
    %777 = vmatpush1.msra.mxu0 0.0
    %778 = vmatprep.subr.mxu0 0.0
    %779 = vmatpush1.msra.mxu0 0.0
    %780 = vmatprep.subr.mxu0 0.0
    %781 = vmatpush1.msra.mxu0 0.0
    %782 = vmatprep.subr.mxu0 0.0
    %783 = vmatpush1.msra.mxu0 0.0
    %784 = vmatprep.subr.mxu0 0.0
    %785 = vmatpush1.msra.mxu0 0.0
    %786 = vmatprep.subr.mxu0 0.0
    %787 = vmatpush1.msra.mxu0 0.0
    %788 = vmatprep.subr.mxu0 0.0
    %789 = vmatpush1.msra.mxu0 0.0
    %790 = vmatprep.subr.mxu0 0.0
    %791 = vmatpush1.msra.mxu0 0.0
    %792 = vmatprep.subr.mxu0 0.0
    %793 = vmatpush1.msra.mxu0 0.0
    %794 = vmatprep.subr.mxu0 0.0
    %795 = vmatpush1.msra.mxu0 0.0
    %796 = vmatprep.subr.mxu0 0.0
    %797 = vmatpush1.msra.mxu0 0.0
    %798 = vmatprep.subr.mxu0 0.0
    %799 = vmatpush1.msra.mxu0 0.0
    %800 = vmatprep.subr.mxu0 0.0
    %801 = vmatpush1.msra.mxu0 0.0
    %802 = vmatprep.subr.mxu0 0.0
    %803 = vmatpush1.msra.mxu0 0.0
    %804 = vmatprep.subr.mxu0 0.0
    %805 = vmatpush1.msra.mxu0 0.0
    %806 = vmatprep.subr.mxu0 0.0
    %807 = vmatpush1.msra.mxu0 0.0
    %808 = vmatprep.subr.mxu0 0.0
    %809 = vmatpush1.msra.mxu0 0.0
    %810 = vmatprep.subr.mxu0 0.0
    %811 = vmatpush1.msra.mxu0 0.0
    %812 = vmatprep.mubr.f32.mxu0 0.0
    %813 = vmatmul.mubr.f32.gmra.mrb[0].mxu0 %v746
    %v814 = vpop.f32.mrb[0].mxu0
    %v815 = vadd.f32 0.0, %v814
    %v816 = vpop.f32.mrb[0].mxu0
    %817 = vdwg.mxu0
    %v818 = vsel %vm191, %v710, 0
    %820 = vmatprep.subr.mxu0 0.0
    %821 = vmatpush1.msra.mxu0 %v735
    %822 = vmatprep.subr.mxu0 0.0
    %823 = vmatpush1.msra.mxu0 %v736
    %824 = vmatprep.subr.mxu0 0.0
    %825 = vmatpush1.msra.mxu0 %v737
    %826 = vmatprep.subr.mxu0 0.0
    %827 = vmatpush1.msra.mxu0 %v738
    %828 = vmatprep.subr.mxu0 0.0
    %829 = vmatpush1.msra.mxu0 0.0
    %830 = vmatprep.subr.mxu0 0.0
    %831 = vmatpush1.msra.mxu0 0.0
    %832 = vmatprep.subr.mxu0 0.0
    %833 = vmatpush1.msra.mxu0 0.0
    %834 = vmatprep.subr.mxu0 0.0
    %835 = vmatpush1.msra.mxu0 0.0
    %836 = vmatprep.subr.mxu0 0.0
    %837 = vmatpush1.msra.mxu0 0.0
    %838 = vmatprep.subr.mxu0 0.0
    %839 = vmatpush1.msra.mxu0 0.0
    %840 = vmatprep.subr.mxu0 0.0
    %841 = vmatpush1.msra.mxu0 0.0
    %842 = vmatprep.subr.mxu0 0.0
    %843 = vmatpush1.msra.mxu0 0.0
    %844 = vmatprep.subr.mxu0 0.0
    %845 = vmatpush1.msra.mxu0 0.0
    %846 = vmatprep.subr.mxu0 0.0
    %847 = vmatpush1.msra.mxu0 0.0
    %848 = vmatprep.subr.mxu0 0.0
    %849 = vmatpush1.msra.mxu0 0.0
    %850 = vmatprep.subr.mxu0 0.0
    %851 = vmatpush1.msra.mxu0 0.0
    %852 = vmatprep.subr.mxu0 0.0
    %853 = vmatpush1.msra.mxu0 0.0
    %854 = vmatprep.subr.mxu0 0.0
    %855 = vmatpush1.msra.mxu0 0.0
    %856 = vmatprep.subr.mxu0 0.0
    %857 = vmatpush1.msra.mxu0 0.0
    %858 = vmatprep.subr.mxu0 0.0
    %859 = vmatpush1.msra.mxu0 0.0
    %860 = vmatprep.subr.mxu0 0.0
    %861 = vmatpush1.msra.mxu0 0.0
    %862 = vmatprep.subr.mxu0 0.0
    %863 = vmatpush1.msra.mxu0 0.0
    %864 = vmatprep.subr.mxu0 0.0
    %865 = vmatpush1.msra.mxu0 0.0
    %866 = vmatprep.subr.mxu0 0.0
    %867 = vmatpush1.msra.mxu0 0.0
    %868 = vmatprep.subr.mxu0 0.0
    %869 = vmatpush1.msra.mxu0 0.0
    %870 = vmatprep.subr.mxu0 0.0
    %871 = vmatpush1.msra.mxu0 0.0
    %872 = vmatprep.subr.mxu0 0.0
    %873 = vmatpush1.msra.mxu0 0.0
    %874 = vmatprep.subr.mxu0 0.0
    %875 = vmatpush1.msra.mxu0 0.0
    %876 = vmatprep.subr.mxu0 0.0
    %877 = vmatpush1.msra.mxu0 0.0
    %878 = vmatprep.subr.mxu0 0.0
    %879 = vmatpush1.msra.mxu0 0.0
    %880 = vmatprep.subr.mxu0 0.0
    %881 = vmatpush1.msra.mxu0 0.0
    %882 = vmatprep.subr.mxu0 0.0
    %883 = vmatpush1.msra.mxu0 0.0
    %884 = vmatprep.mubr.f32.mxu0 0.0
    %885 = vmatmul.mubr.f32.gmra.mrb[0].mxu0 %v818
    %v886 = vpop.f32.mrb[0].mxu0
    %v887 = vadd.f32 %v815, %v886
    %v888 = vpop.f32.mrb[0].mxu0
    %889 = vdwg.mxu0
    %v890 = vadd.f32 %v887, %v734
    %v891 = vld [vmem:[%s13] sm:$0x1]
    %v893 = vlaneseq
    %v894 = vshrl.u32 %v893, 7
    %v895 = vsub.s32 0, %v894
    %v896 = vrot.slane %v891, %v895
    %v898 = vadd.f32 %v890, %v896
    %v899 = vmax.f32 %v898, 0.0
    %v900 = vld [vmem:[%s14] sm:$0xff]
    %v901 = vld [vmem:[%s14 + $0x8] sm:$0xff]
    %v902 = vld [vmem:[%s14 + $0x10] sm:$0xff]
    %v903 = vld [vmem:[%s14 + $0x18] sm:$0xff]
    %v904 = vld [vmem:[%s15] sm:$0x1]
    %v906 = vlaneseq
    %v907 = vshrl.u32 %v906, 7
    %v908 = vsub.s32 0, %v907
    %v909 = vrot.slane %v904, %v908
    %v912 = vsel %vm191, %v899, 0
    %914 = vmatprep.subr.mxu0 0.0
    %915 = vmatpush1.msra.mxu0 %v900
    %916 = vmatprep.subr.mxu0 0.0
    %917 = vmatpush1.msra.mxu0 %v901
    %918 = vmatprep.subr.mxu0 0.0
    %919 = vmatpush1.msra.mxu0 %v902
    %920 = vmatprep.subr.mxu0 0.0
    %921 = vmatpush1.msra.mxu0 %v903
    %922 = vmatprep.subr.mxu0 0.0
    %923 = vmatpush1.msra.mxu0 0.0
    %924 = vmatprep.subr.mxu0 0.0
    %925 = vmatpush1.msra.mxu0 0.0
    %926 = vmatprep.subr.mxu0 0.0
    %927 = vmatpush1.msra.mxu0 0.0
    %928 = vmatprep.subr.mxu0 0.0
    %929 = vmatpush1.msra.mxu0 0.0
    %930 = vmatprep.subr.mxu0 0.0
    %931 = vmatpush1.msra.mxu0 0.0
    %932 = vmatprep.subr.mxu0 0.0
    %933 = vmatpush1.msra.mxu0 0.0
    %934 = vmatprep.subr.mxu0 0.0
    %935 = vmatpush1.msra.mxu0 0.0
    %936 = vmatprep.subr.mxu0 0.0
    %937 = vmatpush1.msra.mxu0 0.0
    %938 = vmatprep.subr.mxu0 0.0
    %939 = vmatpush1.msra.mxu0 0.0
    %940 = vmatprep.subr.mxu0 0.0
    %941 = vmatpush1.msra.mxu0 0.0
    %942 = vmatprep.subr.mxu0 0.0
    %943 = vmatpush1.msra.mxu0 0.0
    %944 = vmatprep.subr.mxu0 0.0
    %945 = vmatpush1.msra.mxu0 0.0
    %946 = vmatprep.subr.mxu0 0.0
    %947 = vmatpush1.msra.mxu0 0.0
    %948 = vmatprep.subr.mxu0 0.0
    %949 = vmatpush1.msra.mxu0 0.0
    %950 = vmatprep.subr.mxu0 0.0
    %951 = vmatpush1.msra.mxu0 0.0
    %952 = vmatprep.subr.mxu0 0.0
    %953 = vmatpush1.msra.mxu0 0.0
    %954 = vmatprep.subr.mxu0 0.0
    %955 = vmatpush1.msra.mxu0 0.0
    %956 = vmatprep.subr.mxu0 0.0
    %957 = vmatpush1.msra.mxu0 0.0
    %958 = vmatprep.subr.mxu0 0.0
    %959 = vmatpush1.msra.mxu0 0.0
    %960 = vmatprep.subr.mxu0 0.0
    %961 = vmatpush1.msra.mxu0 0.0
    %962 = vmatprep.subr.mxu0 0.0
    %963 = vmatpush1.msra.mxu0 0.0
    %964 = vmatprep.subr.mxu0 0.0
    %965 = vmatpush1.msra.mxu0 0.0
    %966 = vmatprep.subr.mxu0 0.0
    %967 = vmatpush1.msra.mxu0 0.0
    %968 = vmatprep.subr.mxu0 0.0
    %969 = vmatpush1.msra.mxu0 0.0
    %970 = vmatprep.subr.mxu0 0.0
    %971 = vmatpush1.msra.mxu0 0.0
    %972 = vmatprep.subr.mxu0 0.0
    %973 = vmatpush1.msra.mxu0 0.0
    %974 = vmatprep.subr.mxu0 0.0
    %975 = vmatpush1.msra.mxu0 0.0
    %976 = vmatprep.subr.mxu0 0.0
    %977 = vmatpush1.msra.mxu0 0.0
    %978 = vmatprep.mubr.f32.mxu0 0.0
    %979 = vmatmul.mubr.f32.gmra.mrb[0].mxu0 %v912
    %v980 = vpop.f32.mrb[0].mxu0
    %v981 = vadd.f32 %v909, %v980
    %v982 = vpop.f32.mrb[0].mxu0
    %983 = vdwg.mxu0
    %v984 = vmax.f32 %v981, 0.0
    %vm985 = vcmask 25600
    %986 = vst.msk [vmem:[#allocation4] sm:$0x3] %vm985, %v984
    // Predicated region
    $region66: #{silence_predictor_forward.3} parent=1 // pred_check
      _
    $region67: #{silence_predictor_forward.3} parent=1 // pred_check_branch
      %988 = sbr.rel (0) target = $region69
    $region68: #{silence_predictor_forward.3} parent=1 // pred_region
      %s990 = ssub.s32 32, 32
      %991 = vsyncadd [#allocation5], %s990
      %s993 = sshll.u32 [#allocation4], 4
      %s994 = int_to_ptr.vmem [resolvable:$true] %s993
      %996 = dma.vmem_to_hbm [thread:$0]  %s994, 32, %s16, [#allocation5]
    $region69: #{silence_predictor_forward.3} parent=1 // pred_fallthru
      _
    // Predicated region
    $region70: #{silence_predictor_forward.3} parent=1 // pred_check
      _
    $region71: #{silence_predictor_forward.3} parent=1 // pred_check_branch
      %998 = sbr.rel (0) target = $region73
    $region72: #{silence_predictor_forward.3} parent=1 // pred_region
      %999 = dma.done [#allocation5], 32
    $region73: #{silence_predictor_forward.3} parent=1 // pred_fallthru
      _
    %1000 = vsyncpa [#allocation5], 1

// kernel: silence_predictor_forward.2
$region0: #{silence_predictor_forward.2}
  #allocation0 [shape = 'u32[]', space=smem, size = 0x4, offset = 0x4, fixed_abs, tag = 'smem constant byte address 0x4 - core index']
  #allocation1 [shape = 'u32[144,128]{1,0:T(1,128)}', space=vmem, size = 0x12000, scoped, tag = 'internal scratch']
  %s0 = inlined_call_operand.vmem [shape: f32[2,2,300,8], index: 0, kind: input, shape index: {}]
  %s1 = inlined_call_operand.vmem [shape: f32[72,16], index: 1, kind: input, shape index: {}]
  %s2 = inlined_call_operand.vmem [shape: f32[1,16], index: 2, kind: input, shape index: {}]
  %s3 = inlined_call_operand.vmem [shape: f32[97,292], index: 3, kind: input, shape index: {}]
  %s4 = inlined_call_operand.vmem [shape: f32[112,32], index: 4, kind: input, shape index: {}]
  %s5 = inlined_call_operand.vmem [shape: f32[1,32], index: 5, kind: input, shape index: {}]
  %s6 = inlined_call_operand.vmem [shape: f32[30,91], index: 6, kind: input, shape index: {}]
  %s7 = inlined_call_operand.vmem [shape: f32[160,64], index: 7, kind: input, shape index: {}]
  %s8 = inlined_call_operand.vmem [shape: f32[1,64], index: 8, kind: input, shape index: {}]
  %s9 = inlined_call_operand.vmem [shape: f32[8,26], index: 9, kind: input, shape index: {}]
  %s10 = inlined_call_operand.vmem [shape: f32[192,128], index: 10, kind: input, shape index: {}]
  %s11 = inlined_call_operand.vmem [shape: f32[1,128], index: 11, kind: input, shape index: {}]
  %s12 = inlined_call_operand.vmem [shape: f32[2,6], index: 12, kind: input, shape index: {}]
  %s13 = inlined_call_operand.vmem [shape: f32[2,2,2,128], index: 13, kind: output, shape index: {}]
  %s14 = sld [smem:[#allocation0]]
  $region115: #{silence_predictor_forward.2} parent=0
    _
  %s16 = ssub.s32 1, %s14
  %s17 = scalar_select 0, %s16, %s14
  $region1: #{silence_predictor_forward.2} parent=0
    #allocation2 [shape = 'u8[4096]{0}', space=vmem, size = 0x1000, scoped, tag = 'output window, operand 0']
    loop: start=0, step=1, limit=4
    $region2: #{silence_predictor_forward.2} parent=1 // loop_pre_header
      _
    $region3: #{silence_predictor_forward.2} parent=1 // loop_header
      %s19 = sphi 0, %s23
      %p20 = scmp.ge.s32.totalorder %s19, 4
      %s29 = sphi 0, %s31
      %s32 = sphi 0, %s29
      %s33 = sphi 0, %s32
      %s49 = sphi 0, %s33
      %s53 = sphi 0, %s53
      %s55 = sphi 0, %s53
      %s56 = sphi 0, %s55
      %s70 = sphi 0, %s56
      %s74 = sphi 0, %s74
      %s76 = sphi 0, %s74
      %s77 = sphi 0, %s76
      %s91 = sphi 0, %s77
      %s95 = sphi 0, %s95
      %s97 = sphi 0, %s95
      %s98 = sphi 0, %s97
      %s112 = sphi 0, %s98
      %s116 = sphi 0, %s116
      %s118 = sphi 0, %s116
      %s119 = sphi 0, %s118
      %s133 = sphi 0, %s119
      %s137 = sphi 0, %s137
      %s139 = sphi 0, %s137
      %s140 = sphi 0, %s139
      %s154 = sphi 0, %s140
      %s158 = sphi 0, %s158
      %s160 = sphi 0, %s158
      %s161 = sphi 0, %s160
      %s175 = sphi 0, %s161
      %s179 = sphi 0, %s179
      %s181 = sphi 0, %s179
      %s182 = sphi 0, %s181
      %s196 = sphi 0, %s182
      %s200 = sphi 0, %s200
      %s202 = sphi 0, %s200
      %s203 = sphi 0, %s202
      %s217 = sphi 0, %s203
      %s221 = sphi 0, %s221
      %s223 = sphi 0, %s221
      %s224 = sphi 0, %s223
      %s238 = sphi 0, %s224
      %s242 = sphi 0, %s242
      %s244 = sphi 0, %s242
      %s245 = sphi 0, %s244
      %s259 = sphi 0, %s245
      %s263 = sphi 0, %s263
      %s265 = sphi 0, %s263
      %s266 = sphi 0, %s265
      %s280 = sphi 0, %s266
      %s284 = sphi 0, %s284
      %s286 = sphi 0, %s284
      %s287 = sphi 0, %s286
      %s301 = sphi 0, %s287
      %s307 = sphi 0, %s309
      %s310 = sphi 0, %s307
      %s311 = sphi 0, %s310
      %s327 = sphi 0, %s311
    $region4: #{silence_predictor_forward.2} parent=1 // loop_header_branch
      %22 = sbr.rel (%p20) target = $region8
    $region5: #{silence_predictor_forward.2} parent=1 // loop_body
      %s24 = ssub.s32 %s19, 1
      %s25 = ssub.s32 %s19, 2
      %s26 = sadd.s32 %s19, 1
      %s27 = ssub.s32 %s19, %s26
      %p28 = scmp.eq.s32.totalorder %s27, 0
      %s30 = sadd.s32 %s29, 1
      %s31 = scalar_select %p28, %s29, %s30
      %p34 = pneg %p28
      %p35 = scmp.eq.s32.totalorder %s19, 1
      %p36 = por %p34, %p35
      %p37 = scmp.ne.s32.totalorder %s29, %s32
      %p38 = scmp.eq.s32.totalorder %s19, 0
      %p39 = por %p37, %p38
      %p40 = scmp.ne.s32.totalorder %s29, %s32
      %p41 = scmp.eq.s32.totalorder %s24, 1
      %p42 = por %p40, %p41
      %p43 = scmp.ne.s32.totalorder %s32, %s33
      %p44 = scmp.eq.s32.totalorder %s24, 0
      %p45 = por %p43, %p44
      %p46 = scmp.ne.s32.totalorder %s32, %s33
      %p47 = scmp.eq.s32.totalorder %s25, 1
      %p48 = por %p46, %p47
      %p50 = scmp.ne.s32.totalorder %s33, %s49
      %p51 = scmp.eq.s32.totalorder %s25, 0
      %p52 = por %p50, %p51
      %s54 = sadd.s32 %s53, 1
      %p57 = scmp.eq.s32.totalorder %s19, 1
      %p58 = scmp.ne.s32.totalorder %s53, %s55
      %p59 = scmp.eq.s32.totalorder %s19, 0
      %p60 = por %p58, %p59
      %p61 = scmp.ne.s32.totalorder %s53, %s55
      %p62 = scmp.eq.s32.totalorder %s24, 1
      %p63 = por %p61, %p62
      %p64 = scmp.ne.s32.totalorder %s55, %s56
      %p65 = scmp.eq.s32.totalorder %s24, 0
      %p66 = por %p64, %p65
      %p67 = scmp.ne.s32.totalorder %s55, %s56
      %p68 = scmp.eq.s32.totalorder %s25, 1
      %p69 = por %p67, %p68
      %p71 = scmp.ne.s32.totalorder %s56, %s70
      %p72 = scmp.eq.s32.totalorder %s25, 0
      %p73 = por %p71, %p72
      %s75 = sadd.s32 %s74, 1
      %p78 = scmp.eq.s32.totalorder %s19, 1
      %p79 = scmp.ne.s32.totalorder %s74, %s76
      %p80 = scmp.eq.s32.totalorder %s19, 0
      %p81 = por %p79, %p80
      %p82 = scmp.ne.s32.totalorder %s74, %s76
      %p83 = scmp.eq.s32.totalorder %s24, 1
      %p84 = por %p82, %p83
      %p85 = scmp.ne.s32.totalorder %s76, %s77
      %p86 = scmp.eq.s32.totalorder %s24, 0
      %p87 = por %p85, %p86
      %p88 = scmp.ne.s32.totalorder %s76, %s77
      %p89 = scmp.eq.s32.totalorder %s25, 1
      %p90 = por %p88, %p89
      %p92 = scmp.ne.s32.totalorder %s77, %s91
      %p93 = scmp.eq.s32.totalorder %s25, 0
      %p94 = por %p92, %p93
      %s96 = sadd.s32 %s95, 1
      %p99 = scmp.eq.s32.totalorder %s19, 1
      %p100 = scmp.ne.s32.totalorder %s95, %s97
      %p101 = scmp.eq.s32.totalorder %s19, 0
      %p102 = por %p100, %p101
      %p103 = scmp.ne.s32.totalorder %s95, %s97
      %p104 = scmp.eq.s32.totalorder %s24, 1
      %p105 = por %p103, %p104
      %p106 = scmp.ne.s32.totalorder %s97, %s98
      %p107 = scmp.eq.s32.totalorder %s24, 0
      %p108 = por %p106, %p107
      %p109 = scmp.ne.s32.totalorder %s97, %s98
      %p110 = scmp.eq.s32.totalorder %s25, 1
      %p111 = por %p109, %p110
      %p113 = scmp.ne.s32.totalorder %s98, %s112
      %p114 = scmp.eq.s32.totalorder %s25, 0
      %p115 = por %p113, %p114
      %s117 = sadd.s32 %s116, 1
      %p120 = scmp.eq.s32.totalorder %s19, 1
      %p121 = scmp.ne.s32.totalorder %s116, %s118
      %p122 = scmp.eq.s32.totalorder %s19, 0
      %p123 = por %p121, %p122
      %p124 = scmp.ne.s32.totalorder %s116, %s118
      %p125 = scmp.eq.s32.totalorder %s24, 1
      %p126 = por %p124, %p125
      %p127 = scmp.ne.s32.totalorder %s118, %s119
      %p128 = scmp.eq.s32.totalorder %s24, 0
      %p129 = por %p127, %p128
      %p130 = scmp.ne.s32.totalorder %s118, %s119
      %p131 = scmp.eq.s32.totalorder %s25, 1
      %p132 = por %p130, %p131
      %p134 = scmp.ne.s32.totalorder %s119, %s133
      %p135 = scmp.eq.s32.totalorder %s25, 0
      %p136 = por %p134, %p135
      %s138 = sadd.s32 %s137, 1
      %p141 = scmp.eq.s32.totalorder %s19, 1
      %p142 = scmp.ne.s32.totalorder %s137, %s139
      %p143 = scmp.eq.s32.totalorder %s19, 0
      %p144 = por %p142, %p143
      %p145 = scmp.ne.s32.totalorder %s137, %s139
      %p146 = scmp.eq.s32.totalorder %s24, 1
      %p147 = por %p145, %p146
      %p148 = scmp.ne.s32.totalorder %s139, %s140
      %p149 = scmp.eq.s32.totalorder %s24, 0
      %p150 = por %p148, %p149
      %p151 = scmp.ne.s32.totalorder %s139, %s140
      %p152 = scmp.eq.s32.totalorder %s25, 1
      %p153 = por %p151, %p152
      %p155 = scmp.ne.s32.totalorder %s140, %s154
      %p156 = scmp.eq.s32.totalorder %s25, 0
      %p157 = por %p155, %p156
      %s159 = sadd.s32 %s158, 1
      %p162 = scmp.eq.s32.totalorder %s19, 1
      %p163 = scmp.ne.s32.totalorder %s158, %s160
      %p164 = scmp.eq.s32.totalorder %s19, 0
      %p165 = por %p163, %p164
      %p166 = scmp.ne.s32.totalorder %s158, %s160
      %p167 = scmp.eq.s32.totalorder %s24, 1
      %p168 = por %p166, %p167
      %p169 = scmp.ne.s32.totalorder %s160, %s161
      %p170 = scmp.eq.s32.totalorder %s24, 0
      %p171 = por %p169, %p170
      %p172 = scmp.ne.s32.totalorder %s160, %s161
      %p173 = scmp.eq.s32.totalorder %s25, 1
      %p174 = por %p172, %p173
      %p176 = scmp.ne.s32.totalorder %s161, %s175
      %p177 = scmp.eq.s32.totalorder %s25, 0
      %p178 = por %p176, %p177
      %s180 = sadd.s32 %s179, 1
      %p183 = scmp.eq.s32.totalorder %s19, 1
      %p184 = scmp.ne.s32.totalorder %s179, %s181
      %p185 = scmp.eq.s32.totalorder %s19, 0
      %p186 = por %p184, %p185
      %p187 = scmp.ne.s32.totalorder %s179, %s181
      %p188 = scmp.eq.s32.totalorder %s24, 1
      %p189 = por %p187, %p188
      %p190 = scmp.ne.s32.totalorder %s181, %s182
      %p191 = scmp.eq.s32.totalorder %s24, 0
      %p192 = por %p190, %p191
      %p193 = scmp.ne.s32.totalorder %s181, %s182
      %p194 = scmp.eq.s32.totalorder %s25, 1
      %p195 = por %p193, %p194
      %p197 = scmp.ne.s32.totalorder %s182, %s196
      %p198 = scmp.eq.s32.totalorder %s25, 0
      %p199 = por %p197, %p198
      %s201 = sadd.s32 %s200, 1
      %p204 = scmp.eq.s32.totalorder %s19, 1
      %p205 = scmp.ne.s32.totalorder %s200, %s202
      %p206 = scmp.eq.s32.totalorder %s19, 0
      %p207 = por %p205, %p206
      %p208 = scmp.ne.s32.totalorder %s200, %s202
      %p209 = scmp.eq.s32.totalorder %s24, 1
      %p210 = por %p208, %p209
      %p211 = scmp.ne.s32.totalorder %s202, %s203
      %p212 = scmp.eq.s32.totalorder %s24, 0
      %p213 = por %p211, %p212
      %p214 = scmp.ne.s32.totalorder %s202, %s203
      %p215 = scmp.eq.s32.totalorder %s25, 1
      %p216 = por %p214, %p215
      %p218 = scmp.ne.s32.totalorder %s203, %s217
      %p219 = scmp.eq.s32.totalorder %s25, 0
      %p220 = por %p218, %p219
      %s222 = sadd.s32 %s221, 1
      %p225 = scmp.eq.s32.totalorder %s19, 1
      %p226 = scmp.ne.s32.totalorder %s221, %s223
      %p227 = scmp.eq.s32.totalorder %s19, 0
      %p228 = por %p226, %p227
      %p229 = scmp.ne.s32.totalorder %s221, %s223
      %p230 = scmp.eq.s32.totalorder %s24, 1
      %p231 = por %p229, %p230
      %p232 = scmp.ne.s32.totalorder %s223, %s224
      %p233 = scmp.eq.s32.totalorder %s24, 0
      %p234 = por %p232, %p233
      %p235 = scmp.ne.s32.totalorder %s223, %s224
      %p236 = scmp.eq.s32.totalorder %s25, 1
      %p237 = por %p235, %p236
      %p239 = scmp.ne.s32.totalorder %s224, %s238
      %p240 = scmp.eq.s32.totalorder %s25, 0
      %p241 = por %p239, %p240
      %s243 = sadd.s32 %s242, 1
      %p246 = scmp.eq.s32.totalorder %s19, 1
      %p247 = scmp.ne.s32.totalorder %s242, %s244
      %p248 = scmp.eq.s32.totalorder %s19, 0
      %p249 = por %p247, %p248
      %p250 = scmp.ne.s32.totalorder %s242, %s244
      %p251 = scmp.eq.s32.totalorder %s24, 1
      %p252 = por %p250, %p251
      %p253 = scmp.ne.s32.totalorder %s244, %s245
      %p254 = scmp.eq.s32.totalorder %s24, 0
      %p255 = por %p253, %p254
      %p256 = scmp.ne.s32.totalorder %s244, %s245
      %p257 = scmp.eq.s32.totalorder %s25, 1
      %p258 = por %p256, %p257
      %p260 = scmp.ne.s32.totalorder %s245, %s259
      %p261 = scmp.eq.s32.totalorder %s25, 0
      %p262 = por %p260, %p261
      %s264 = sadd.s32 %s263, 1
      %p267 = scmp.eq.s32.totalorder %s19, 1
      %p268 = scmp.ne.s32.totalorder %s263, %s265
      %p269 = scmp.eq.s32.totalorder %s19, 0
      %p270 = por %p268, %p269
      %p271 = scmp.ne.s32.totalorder %s263, %s265
      %p272 = scmp.eq.s32.totalorder %s24, 1
      %p273 = por %p271, %p272
      %p274 = scmp.ne.s32.totalorder %s265, %s266
      %p275 = scmp.eq.s32.totalorder %s24, 0
      %p276 = por %p274, %p275
      %p277 = scmp.ne.s32.totalorder %s265, %s266
      %p278 = scmp.eq.s32.totalorder %s25, 1
      %p279 = por %p277, %p278
      %p281 = scmp.ne.s32.totalorder %s266, %s280
      %p282 = scmp.eq.s32.totalorder %s25, 0
      %p283 = por %p281, %p282
      %s285 = sadd.s32 %s284, 1
      %p288 = scmp.eq.s32.totalorder %s19, 1
      %p289 = scmp.ne.s32.totalorder %s284, %s286
      %p290 = scmp.eq.s32.totalorder %s19, 0
      %p291 = por %p289, %p290
      %p292 = scmp.ne.s32.totalorder %s284, %s286
      %p293 = scmp.eq.s32.totalorder %s24, 1
      %p294 = por %p292, %p293
      %p295 = scmp.ne.s32.totalorder %s286, %s287
      %p296 = scmp.eq.s32.totalorder %s24, 0
      %p297 = por %p295, %p296
      %p298 = scmp.ne.s32.totalorder %s286, %s287
      %p299 = scmp.eq.s32.totalorder %s25, 1
      %p300 = por %p298, %p299
      %p302 = scmp.ne.s32.totalorder %s287, %s301
      %p303 = scmp.eq.s32.totalorder %s25, 0
      %p304 = por %p302, %p303
      %s305 = ssub.s32 %s19, %s26
      %p306 = scmp.eq.s32.totalorder %s305, 0
      %s308 = sadd.s32 %s307, 1
      %s309 = scalar_select %p306, %s307, %s308
      %p312 = pneg %p306
      %p313 = scmp.eq.s32.totalorder %s19, 1
      %p314 = por %p312, %p313
      %p315 = scmp.ne.s32.totalorder %s307, %s310
      %p316 = scmp.eq.s32.totalorder %s19, 0
      %p317 = por %p315, %p316
      %p318 = scmp.ne.s32.totalorder %s307, %s310
      %p319 = scmp.eq.s32.totalorder %s24, 1
      %p320 = por %p318, %p319
      %p321 = scmp.ne.s32.totalorder %s310, %s311
      %p322 = scmp.eq.s32.totalorder %s24, 0
      %p323 = por %p321, %p322
      %p324 = scmp.ne.s32.totalorder %s310, %s311
      %p325 = scmp.eq.s32.totalorder %s25, 1
      %p326 = por %p324, %p325
      %p328 = scmp.ne.s32.totalorder %s311, %s327
      %p329 = scmp.eq.s32.totalorder %s25, 0
      %p330 = por %p328, %p329
      %p331 = scmp.le.s32.totalorder 1, %s19
      %p332 = scmp.lt.s32.totalorder %s19, 3
      %p333 = pnand %p331, %p332
      %p334 = pneg %p333
      // Predicated region
      $region9: #{silence_predictor_forward.2} parent=5 // pred_check
        _
      $region10: #{silence_predictor_forward.2} parent=5 // pred_check_branch
        %336 = sbr.rel (%p333) target = $region12
      $region11: #{silence_predictor_forward.2} parent=5 // pred_region
        %s337 = ssub.s32 %s19, 1
        // Predicated region
        $region13: #{silence_predictor_forward.2} parent=11 // pred_check
          %p338 = pneg %p66
        $region14: #{silence_predictor_forward.2} parent=11 // pred_check_branch
          %340 = sbr.rel (%p338) target = $region16
        $region15: #{silence_predictor_forward.2} parent=11 // pred_region
          _
        $region16: #{silence_predictor_forward.2} parent=11 // pred_fallthru
          _
        // Predicated region
        $region17: #{silence_predictor_forward.2} parent=11 // pred_check
          %p341 = pneg %p87
        $region18: #{silence_predictor_forward.2} parent=11 // pred_check_branch
          %343 = sbr.rel (%p341) target = $region20
        $region19: #{silence_predictor_forward.2} parent=11 // pred_region
          _
        $region20: #{silence_predictor_forward.2} parent=11 // pred_fallthru
          _
        // Predicated region
        $region21: #{silence_predictor_forward.2} parent=11 // pred_check
          %p344 = pneg %p108
        $region22: #{silence_predictor_forward.2} parent=11 // pred_check_branch
          %346 = sbr.rel (%p344) target = $region24
        $region23: #{silence_predictor_forward.2} parent=11 // pred_region
          _
        $region24: #{silence_predictor_forward.2} parent=11 // pred_fallthru
          _
        // Predicated region
        $region25: #{silence_predictor_forward.2} parent=11 // pred_check
          %p347 = pneg %p129
        $region26: #{silence_predictor_forward.2} parent=11 // pred_check_branch
          %349 = sbr.rel (%p347) target = $region28
        $region27: #{silence_predictor_forward.2} parent=11 // pred_region
          _
        $region28: #{silence_predictor_forward.2} parent=11 // pred_fallthru
          _
        // Predicated region
        $region29: #{silence_predictor_forward.2} parent=11 // pred_check
          %p350 = pneg %p150
        $region30: #{silence_predictor_forward.2} parent=11 // pred_check_branch
          %352 = sbr.rel (%p350) target = $region32
        $region31: #{silence_predictor_forward.2} parent=11 // pred_region
          _
        $region32: #{silence_predictor_forward.2} parent=11 // pred_fallthru
          _
        // Predicated region
        $region33: #{silence_predictor_forward.2} parent=11 // pred_check
          %p353 = pneg %p171
        $region34: #{silence_predictor_forward.2} parent=11 // pred_check_branch
          %355 = sbr.rel (%p353) target = $region36
        $region35: #{silence_predictor_forward.2} parent=11 // pred_region
          _
        $region36: #{silence_predictor_forward.2} parent=11 // pred_fallthru
          _
        // Predicated region
        $region37: #{silence_predictor_forward.2} parent=11 // pred_check
          %p356 = pneg %p192
        $region38: #{silence_predictor_forward.2} parent=11 // pred_check_branch
          %358 = sbr.rel (%p356) target = $region40
        $region39: #{silence_predictor_forward.2} parent=11 // pred_region
          _
        $region40: #{silence_predictor_forward.2} parent=11 // pred_fallthru
          _
        // Predicated region
        $region41: #{silence_predictor_forward.2} parent=11 // pred_check
          %p359 = pneg %p213
        $region42: #{silence_predictor_forward.2} parent=11 // pred_check_branch
          %361 = sbr.rel (%p359) target = $region44
        $region43: #{silence_predictor_forward.2} parent=11 // pred_region
          _
        $region44: #{silence_predictor_forward.2} parent=11 // pred_fallthru
          _
        // Predicated region
        $region45: #{silence_predictor_forward.2} parent=11 // pred_check
          %p362 = pneg %p234
        $region46: #{silence_predictor_forward.2} parent=11 // pred_check_branch
          %364 = sbr.rel (%p362) target = $region48
        $region47: #{silence_predictor_forward.2} parent=11 // pred_region
          _
        $region48: #{silence_predictor_forward.2} parent=11 // pred_fallthru
          _
        // Predicated region
        $region49: #{silence_predictor_forward.2} parent=11 // pred_check
          %p365 = pneg %p255
        $region50: #{silence_predictor_forward.2} parent=11 // pred_check_branch
          %367 = sbr.rel (%p365) target = $region52
        $region51: #{silence_predictor_forward.2} parent=11 // pred_region
          _
        $region52: #{silence_predictor_forward.2} parent=11 // pred_fallthru
          _
        // Predicated region
        $region53: #{silence_predictor_forward.2} parent=11 // pred_check
          %p368 = pneg %p276
        $region54: #{silence_predictor_forward.2} parent=11 // pred_check_branch
          %370 = sbr.rel (%p368) target = $region56
        $region55: #{silence_predictor_forward.2} parent=11 // pred_region
          _
        $region56: #{silence_predictor_forward.2} parent=11 // pred_fallthru
          _
        // Predicated region
        $region57: #{silence_predictor_forward.2} parent=11 // pred_check
          %p371 = pneg %p297
        $region58: #{silence_predictor_forward.2} parent=11 // pred_check_branch
          %373 = sbr.rel (%p371) target = $region60
        $region59: #{silence_predictor_forward.2} parent=11 // pred_region
          _
        $region60: #{silence_predictor_forward.2} parent=11 // pred_fallthru
          _
      $region12: #{silence_predictor_forward.2} parent=5 // pred_fallthru
        _
      %p374 = scmp.lt.s32.totalorder %s19, 2
      // Predicated region
      $region61: #{silence_predictor_forward.2} parent=5 // pred_check
        %p375 = pneg %p374
      $region62: #{silence_predictor_forward.2} parent=5 // pred_check_branch
        %377 = sbr.rel (%p375) target = $region64
      $region63: #{silence_predictor_forward.2} parent=5 // pred_region
        // Predicated region
        $region65: #{silence_predictor_forward.2} parent=63 // pred_check
          %p378 = pneg %p39
        $region66: #{silence_predictor_forward.2} parent=63 // pred_check_branch
          %380 = sbr.rel (%p378) target = $region68
        $region67: #{silence_predictor_forward.2} parent=63 // pred_region
          %p381 = scmp.lt.s32.totalorder %s19, 1
          %s382 = scalar_select %p381, %s19, 1
          %s383 = smul.addr %s382, 76
          %s384 = smul.addr %s383, 8
          %s385 = scalar_lea.vmem %s0, %s384
        $region68: #{silence_predictor_forward.2} parent=63 // pred_fallthru
          _
      $region64: #{silence_predictor_forward.2} parent=5 // pred_fallthru
        _
      %p386 = scmp.le.s32.totalorder 1, %s19
      %p387 = scmp.lt.s32.totalorder %s19, 3
      %p388 = pnand %p386, %p387
      %p389 = pneg %p388
      // Predicated region
      $region69: #{silence_predictor_forward.2} parent=5 // pred_check
        _
      $region70: #{silence_predictor_forward.2} parent=5 // pred_check_branch
        %391 = sbr.rel (%p388) target = $region72
      $region71: #{silence_predictor_forward.2} parent=5 // pred_region
        %s392 = ssub.s32 %s19, 1
        %p393 = scmp.lt.s32.totalorder %s24, 1
        %s394 = scalar_select %p393, %s24, 1
        %s395 = smul.addr %s394, 76
        %s396 = smul.addr %s395, 8
        %s397 = scalar_lea.vmem %s0, %s396
        %p398 = pneg %p45
        %p399 = pneg %p42
        %p400 = pneg %p66
        %p401 = pneg %p63
        %p402 = pneg %p87
        %p403 = pneg %p84
        %p404 = pneg %p108
        %p405 = pneg %p105
        %p406 = pneg %p129
        %p407 = pneg %p126
        %p408 = pneg %p150
        %p409 = pneg %p147
        %p410 = pneg %p171
        %p411 = pneg %p168
        %p412 = pneg %p192
        %p413 = pneg %p189
        %p414 = pneg %p213
        %p415 = pneg %p210
        %p416 = pneg %p234
        %p417 = pneg %p231
        %p418 = pneg %p255
        %p419 = pneg %p252
        %p420 = pneg %p276
        %p421 = pneg %p273
        %p422 = pneg %p297
        %p423 = pneg %p294
        %p424 = pneg %p323
        %p425 = pneg %p320
        %s426 = sand.u32 %s310, 1
        %s427 = sand.u32 %s310, 1
        %s428 = smul.addr %s427, 4
        %s429 = scalar_lea.vmem [#allocation2], %s428
        %p430 = scmp.lt.s32.totalorder %s24, 1
        %s431 = scalar_select %p430, %s24, 1
        %s432 = smul.addr %s431, 76
        %s433 = smul.addr %s432, 8
        %s434 = scalar_lea.vmem %s0, %s433
        %v435 = vld [vmem:[%s434] sm:$0xff]
        %v436 = vld [vmem:[%s434 + $0x8] sm:$0xff]
        %v437 = vld [vmem:[%s434 + $0x10] sm:$0xff]
        %v438 = vld [vmem:[%s434 + $0x18] sm:$0xff]
        %v439 = vld [vmem:[%s434 + $0x20] sm:$0xff]
        %v440 = vld [vmem:[%s434 + $0x28] sm:$0xff]
        %v441 = vld [vmem:[%s434 + $0x30] sm:$0xff]
        %v442 = vld [vmem:[%s434 + $0x38] sm:$0xff]
        %v443 = vld [vmem:[%s434 + $0x40] sm:$0xff]
        %v444 = vld [vmem:[%s434 + $0x48] sm:$0xff]
        %v445 = vld [vmem:[%s434 + $0x50] sm:$0xff]
        %v446 = vld [vmem:[%s434 + $0x58] sm:$0xff]
        %v447 = vld [vmem:[%s434 + $0x60] sm:$0xff]
        %v448 = vld [vmem:[%s434 + $0x68] sm:$0xff]
        %v449 = vld [vmem:[%s434 + $0x70] sm:$0xff]
        %v450 = vld [vmem:[%s434 + $0x78] sm:$0xff]
        %v451 = vld [vmem:[%s434 + $0x80] sm:$0xff]
        %v452 = vld [vmem:[%s434 + $0x88] sm:$0xff]
        %v453 = vld [vmem:[%s434 + $0x90] sm:$0xff]
        %v454 = vld [vmem:[%s434 + $0x98] sm:$0xff]
        %v455 = vld [vmem:[%s434 + $0xa0] sm:$0xff]
        %v456 = vld [vmem:[%s434 + $0xa8] sm:$0xff]
        %v457 = vld [vmem:[%s434 + $0xb0] sm:$0xff]
        %v458 = vld [vmem:[%s434 + $0xb8] sm:$0xff]
        %v459 = vld [vmem:[%s434 + $0xc0] sm:$0xff]
        %v460 = vld [vmem:[%s434 + $0xc8] sm:$0xff]
        %v461 = vld [vmem:[%s434 + $0xd0] sm:$0xff]
        %v462 = vld [vmem:[%s434 + $0xd8] sm:$0xff]
        %v463 = vld [vmem:[%s434 + $0xe0] sm:$0xff]
        %v464 = vld [vmem:[%s434 + $0xe8] sm:$0xff]
        %v465 = vld [vmem:[%s434 + $0xf0] sm:$0xff]
        %v466 = vld [vmem:[%s434 + $0xf8] sm:$0xff]
        %v467 = vld [vmem:[%s434 + $0x100] sm:$0xff]
        %v468 = vld [vmem:[%s434 + $0x108] sm:$0xff]
        %v469 = vld [vmem:[%s434 + $0x110] sm:$0xff]
        %v470 = vld [vmem:[%s434 + $0x118] sm:$0xff]
        %v471 = vld [vmem:[%s434 + $0x120] sm:$0xff]
        %v472 = vld [vmem:[%s434 + $0x128] sm:$0xf]
        %vm510 = vcmask 1046528
        %v511 = vrot.slane %v435, 1
        %v512 = vrot.slane %v436, 1
        %v513 = vsel %vm510, %v511, %v512
        %v514 = vrot.slane %v437, 1
        %v515 = vsel %vm510, %v512, %v514
        %v516 = vrot.slane %v438, 1
        %v517 = vsel %vm510, %v514, %v516
        %v518 = vrot.slane %v439, 1
        %v519 = vsel %vm510, %v516, %v518
        %v520 = vrot.slane %v440, 1
        %v521 = vsel %vm510, %v518, %v520
        %v522 = vrot.slane %v441, 1
        %v523 = vsel %vm510, %v520, %v522
        %v524 = vrot.slane %v442, 1
        %v525 = vsel %vm510, %v522, %v524
        %v526 = vrot.slane %v443, 1
        %v527 = vsel %vm510, %v524, %v526
        %v528 = vrot.slane %v444, 1
        %v529 = vsel %vm510, %v526, %v528
        %v530 = vrot.slane %v445, 1
        %v531 = vsel %vm510, %v528, %v530
        %v532 = vrot.slane %v446, 1
        %v533 = vsel %vm510, %v530, %v532
        %v534 = vrot.slane %v447, 1
        %v535 = vsel %vm510, %v532, %v534
        %v536 = vrot.slane %v448, 1
        %v537 = vsel %vm510, %v534, %v536
        %v538 = vrot.slane %v449, 1
        %v539 = vsel %vm510, %v536, %v538
        %v540 = vrot.slane %v450, 1
        %v541 = vsel %vm510, %v538, %v540
        %v542 = vrot.slane %v451, 1
        %v543 = vsel %vm510, %v540, %v542
        %v544 = vrot.slane %v452, 1
        %v545 = vsel %vm510, %v542, %v544
        %v546 = vrot.slane %v453, 1
        %v547 = vsel %vm510, %v544, %v546
        %v548 = vrot.slane %v454, 1
        %v549 = vsel %vm510, %v546, %v548
        %v550 = vrot.slane %v455, 1
        %v551 = vsel %vm510, %v548, %v550
        %v552 = vrot.slane %v456, 1
        %v553 = vsel %vm510, %v550, %v552
        %v554 = vrot.slane %v457, 1
        %v555 = vsel %vm510, %v552, %v554
        %v556 = vrot.slane %v458, 1
        %v557 = vsel %vm510, %v554, %v556
        %v558 = vrot.slane %v459, 1
        %v559 = vsel %vm510, %v556, %v558
        %v560 = vrot.slane %v460, 1
        %v561 = vsel %vm510, %v558, %v560
        %v562 = vrot.slane %v461, 1
        %v563 = vsel %vm510, %v560, %v562
        %v564 = vrot.slane %v462, 1
        %v565 = vsel %vm510, %v562, %v564
        %v566 = vrot.slane %v463, 1
        %v567 = vsel %vm510, %v564, %v566
        %v568 = vrot.slane %v464, 1
        %v569 = vsel %vm510, %v566, %v568
        %v570 = vrot.slane %v465, 1
        %v571 = vsel %vm510, %v568, %v570
        %v572 = vrot.slane %v466, 1
        %v573 = vsel %vm510, %v570, %v572
        %v574 = vrot.slane %v467, 1
        %v575 = vsel %vm510, %v572, %v574
        %v576 = vrot.slane %v468, 1
        %v577 = vsel %vm510, %v574, %v576
        %v578 = vrot.slane %v469, 1
        %v579 = vsel %vm510, %v576, %v578
        %v580 = vrot.slane %v470, 1
        %v581 = vsel %vm510, %v578, %v580
        %v582 = vrot.slane %v471, 1
        %v583 = vsel %vm510, %v580, %v582
        %584 = vrot.lane.b32.xlu0 %v513, 8
        %v585 = vpop.permute.xlu0 %584
        %586 = vrot.lane.b32.xlu0 %v515, 8
        %v587 = vpop.permute.xlu0 %586
        %588 = vrot.lane.b32.xlu0 %v517, 8
        %v589 = vpop.permute.xlu0 %588
        %590 = vrot.lane.b32.xlu0 %v519, 8
        %v591 = vpop.permute.xlu0 %590
        %592 = vrot.lane.b32.xlu0 %v521, 8
        %v593 = vpop.permute.xlu0 %592
        %594 = vrot.lane.b32.xlu0 %v523, 8
        %v595 = vpop.permute.xlu0 %594
        %596 = vrot.lane.b32.xlu0 %v525, 8
        %v597 = vpop.permute.xlu0 %596
        %598 = vrot.lane.b32.xlu0 %v527, 8
        %v599 = vpop.permute.xlu0 %598
        %600 = vrot.lane.b32.xlu0 %v529, 8
        %v601 = vpop.permute.xlu0 %600
        %602 = vrot.lane.b32.xlu0 %v531, 8
        %v603 = vpop.permute.xlu0 %602
        %604 = vrot.lane.b32.xlu0 %v533, 8
        %v605 = vpop.permute.xlu0 %604
        %606 = vrot.lane.b32.xlu0 %v535, 8
        %v607 = vpop.permute.xlu0 %606
        %608 = vrot.lane.b32.xlu0 %v537, 8
        %v609 = vpop.permute.xlu0 %608
        %610 = vrot.lane.b32.xlu0 %v539, 8
        %v611 = vpop.permute.xlu0 %610
        %612 = vrot.lane.b32.xlu0 %v541, 8
        %v613 = vpop.permute.xlu0 %612
        %614 = vrot.lane.b32.xlu0 %v543, 8
        %v615 = vpop.permute.xlu0 %614
        %616 = vrot.lane.b32.xlu0 %v545, 8
        %v617 = vpop.permute.xlu0 %616
        %618 = vrot.lane.b32.xlu0 %v547, 8
        %v619 = vpop.permute.xlu0 %618
        %620 = vrot.lane.b32.xlu0 %v549, 8
        %v621 = vpop.permute.xlu0 %620
        %622 = vrot.lane.b32.xlu0 %v551, 8
        %v623 = vpop.permute.xlu0 %622
        %624 = vrot.lane.b32.xlu0 %v553, 8
        %v625 = vpop.permute.xlu0 %624
        %626 = vrot.lane.b32.xlu0 %v555, 8
        %v627 = vpop.permute.xlu0 %626
        %628 = vrot.lane.b32.xlu0 %v557, 8
        %v629 = vpop.permute.xlu0 %628
        %630 = vrot.lane.b32.xlu0 %v559, 8
        %v631 = vpop.permute.xlu0 %630
        %632 = vrot.lane.b32.xlu0 %v561, 8
        %v633 = vpop.permute.xlu0 %632
        %634 = vrot.lane.b32.xlu0 %v563, 8
        %v635 = vpop.permute.xlu0 %634
        %636 = vrot.lane.b32.xlu0 %v565, 8
        %v637 = vpop.permute.xlu0 %636
        %638 = vrot.lane.b32.xlu0 %v567, 8
        %v639 = vpop.permute.xlu0 %638
        %640 = vrot.lane.b32.xlu0 %v569, 8
        %v641 = vpop.permute.xlu0 %640
        %642 = vrot.lane.b32.xlu0 %v571, 8
        %v643 = vpop.permute.xlu0 %642
        %644 = vrot.lane.b32.xlu0 %v573, 8
        %v645 = vpop.permute.xlu0 %644
        %646 = vrot.lane.b32.xlu0 %v575, 8
        %v647 = vpop.permute.xlu0 %646
        %648 = vrot.lane.b32.xlu0 %v577, 8
        %v649 = vpop.permute.xlu0 %648
        %650 = vrot.lane.b32.xlu0 %v579, 8
        %v651 = vpop.permute.xlu0 %650
        %652 = vrot.lane.b32.xlu0 %v581, 8
        %v653 = vpop.permute.xlu0 %652
        %654 = vrot.lane.b32.xlu0 %v583, 8
        %v655 = vpop.permute.xlu0 %654
        %656 = vrot.lane.b32.xlu0 %v582, 8
        %v657 = vpop.permute.xlu0 %656
        %vm695 = vcmask 1045504
        %v696 = vrot.slane %v435, 2
        %v697 = vrot.slane %v436, 2
        %v698 = vsel %vm695, %v696, %v697
        %v699 = vrot.slane %v437, 2
        %v700 = vsel %vm695, %v697, %v699
        %v701 = vrot.slane %v438, 2
        %v702 = vsel %vm695, %v699, %v701
        %v703 = vrot.slane %v439, 2
        %v704 = vsel %vm695, %v701, %v703
        %v705 = vrot.slane %v440, 2
        %v706 = vsel %vm695, %v703, %v705
        %v707 = vrot.slane %v441, 2
        %v708 = vsel %vm695, %v705, %v707
        %v709 = vrot.slane %v442, 2
        %v710 = vsel %vm695, %v707, %v709
        %v711 = vrot.slane %v443, 2
        %v712 = vsel %vm695, %v709, %v711
        %v713 = vrot.slane %v444, 2
        %v714 = vsel %vm695, %v711, %v713
        %v715 = vrot.slane %v445, 2
        %v716 = vsel %vm695, %v713, %v715
        %v717 = vrot.slane %v446, 2
        %v718 = vsel %vm695, %v715, %v717
        %v719 = vrot.slane %v447, 2
        %v720 = vsel %vm695, %v717, %v719
        %v721 = vrot.slane %v448, 2
        %v722 = vsel %vm695, %v719, %v721
        %v723 = vrot.slane %v449, 2
        %v724 = vsel %vm695, %v721, %v723
        %v725 = vrot.slane %v450, 2
        %v726 = vsel %vm695, %v723, %v725
        %v727 = vrot.slane %v451, 2
        %v728 = vsel %vm695, %v725, %v727
        %v729 = vrot.slane %v452, 2
        %v730 = vsel %vm695, %v727, %v729
        %v731 = vrot.slane %v453, 2
        %v732 = vsel %vm695, %v729, %v731
        %v733 = vrot.slane %v454, 2
        %v734 = vsel %vm695, %v731, %v733
        %v735 = vrot.slane %v455, 2
        %v736 = vsel %vm695, %v733, %v735
        %v737 = vrot.slane %v456, 2
        %v738 = vsel %vm695, %v735, %v737
        %v739 = vrot.slane %v457, 2
        %v740 = vsel %vm695, %v737, %v739
        %v741 = vrot.slane %v458, 2
        %v742 = vsel %vm695, %v739, %v741
        %v743 = vrot.slane %v459, 2
        %v744 = vsel %vm695, %v741, %v743
        %v745 = vrot.slane %v460, 2
        %v746 = vsel %vm695, %v743, %v745
        %v747 = vrot.slane %v461, 2
        %v748 = vsel %vm695, %v745, %v747
        %v749 = vrot.slane %v462, 2
        %v750 = vsel %vm695, %v747, %v749
        %v751 = vrot.slane %v463, 2
        %v752 = vsel %vm695, %v749, %v751
        %v753 = vrot.slane %v464, 2
        %v754 = vsel %vm695, %v751, %v753
        %v755 = vrot.slane %v465, 2
        %v756 = vsel %vm695, %v753, %v755
        %v757 = vrot.slane %v466, 2
        %v758 = vsel %vm695, %v755, %v757
        %v759 = vrot.slane %v467, 2
        %v760 = vsel %vm695, %v757, %v759
        %v761 = vrot.slane %v468, 2
        %v762 = vsel %vm695, %v759, %v761
        %v763 = vrot.slane %v469, 2
        %v764 = vsel %vm695, %v761, %v763
        %v765 = vrot.slane %v470, 2
        %v766 = vsel %vm695, %v763, %v765
        %v767 = vrot.slane %v471, 2
        %v768 = vsel %vm695, %v765, %v767
        %769 = vrot.lane.b32.xlu0 %v698, 16
        %v770 = vpop.permute.xlu0 %769
        %771 = vrot.lane.b32.xlu0 %v700, 16
        %v772 = vpop.permute.xlu0 %771
        %773 = vrot.lane.b32.xlu0 %v702, 16
        %v774 = vpop.permute.xlu0 %773
        %775 = vrot.lane.b32.xlu0 %v704, 16
        %v776 = vpop.permute.xlu0 %775
        %777 = vrot.lane.b32.xlu0 %v706, 16
        %v778 = vpop.permute.xlu0 %777
        %779 = vrot.lane.b32.xlu0 %v708, 16
        %v780 = vpop.permute.xlu0 %779
        %781 = vrot.lane.b32.xlu0 %v710, 16
        %v782 = vpop.permute.xlu0 %781
        %783 = vrot.lane.b32.xlu0 %v712, 16
        %v784 = vpop.permute.xlu0 %783
        %785 = vrot.lane.b32.xlu0 %v714, 16
        %v786 = vpop.permute.xlu0 %785
        %787 = vrot.lane.b32.xlu0 %v716, 16
        %v788 = vpop.permute.xlu0 %787
        %789 = vrot.lane.b32.xlu0 %v718, 16
        %v790 = vpop.permute.xlu0 %789
        %791 = vrot.lane.b32.xlu0 %v720, 16
        %v792 = vpop.permute.xlu0 %791
        %793 = vrot.lane.b32.xlu0 %v722, 16
        %v794 = vpop.permute.xlu0 %793
        %795 = vrot.lane.b32.xlu0 %v724, 16
        %v796 = vpop.permute.xlu0 %795
        %797 = vrot.lane.b32.xlu0 %v726, 16
        %v798 = vpop.permute.xlu0 %797
        %799 = vrot.lane.b32.xlu0 %v728, 16
        %v800 = vpop.permute.xlu0 %799
        %801 = vrot.lane.b32.xlu0 %v730, 16
        %v802 = vpop.permute.xlu0 %801
        %803 = vrot.lane.b32.xlu0 %v732, 16
        %v804 = vpop.permute.xlu0 %803
        %805 = vrot.lane.b32.xlu0 %v734, 16
        %v806 = vpop.permute.xlu0 %805
        %807 = vrot.lane.b32.xlu0 %v736, 16
        %v808 = vpop.permute.xlu0 %807
        %809 = vrot.lane.b32.xlu0 %v738, 16
        %v810 = vpop.permute.xlu0 %809
        %811 = vrot.lane.b32.xlu0 %v740, 16
        %v812 = vpop.permute.xlu0 %811
        %813 = vrot.lane.b32.xlu0 %v742, 16
        %v814 = vpop.permute.xlu0 %813
        %815 = vrot.lane.b32.xlu0 %v744, 16
        %v816 = vpop.permute.xlu0 %815
        %817 = vrot.lane.b32.xlu0 %v746, 16
        %v818 = vpop.permute.xlu0 %817
        %819 = vrot.lane.b32.xlu0 %v748, 16
        %v820 = vpop.permute.xlu0 %819
        %821 = vrot.lane.b32.xlu0 %v750, 16
        %v822 = vpop.permute.xlu0 %821
        %823 = vrot.lane.b32.xlu0 %v752, 16
        %v824 = vpop.permute.xlu0 %823
        %825 = vrot.lane.b32.xlu0 %v754, 16
        %v826 = vpop.permute.xlu0 %825
        %827 = vrot.lane.b32.xlu0 %v756, 16
        %v828 = vpop.permute.xlu0 %827
        %829 = vrot.lane.b32.xlu0 %v758, 16
        %v830 = vpop.permute.xlu0 %829
        %831 = vrot.lane.b32.xlu0 %v760, 16
        %v832 = vpop.permute.xlu0 %831
        %833 = vrot.lane.b32.xlu0 %v762, 16
        %v834 = vpop.permute.xlu0 %833
        %835 = vrot.lane.b32.xlu0 %v764, 16
        %v836 = vpop.permute.xlu0 %835
        %837 = vrot.lane.b32.xlu0 %v766, 16
        %v838 = vpop.permute.xlu0 %837
        %839 = vrot.lane.b32.xlu0 %v768, 16
        %v840 = vpop.permute.xlu0 %839
        %841 = vrot.lane.b32.xlu0 %v767, 16
        %v842 = vpop.permute.xlu0 %841
        %vm880 = vcmask 1044480
        %v881 = vrot.slane %v435, 3
        %v882 = vrot.slane %v436, 3
        %v883 = vsel %vm880, %v881, %v882
        %v884 = vrot.slane %v437, 3
        %v885 = vsel %vm880, %v882, %v884
        %v886 = vrot.slane %v438, 3
        %v887 = vsel %vm880, %v884, %v886
        %v888 = vrot.slane %v439, 3
        %v889 = vsel %vm880, %v886, %v888
        %v890 = vrot.slane %v440, 3
        %v891 = vsel %vm880, %v888, %v890
        %v892 = vrot.slane %v441, 3
        %v893 = vsel %vm880, %v890, %v892
        %v894 = vrot.slane %v442, 3
        %v895 = vsel %vm880, %v892, %v894
        %v896 = vrot.slane %v443, 3
        %v897 = vsel %vm880, %v894, %v896
        %v898 = vrot.slane %v444, 3
        %v899 = vsel %vm880, %v896, %v898
        %v900 = vrot.slane %v445, 3
        %v901 = vsel %vm880, %v898, %v900
        %v902 = vrot.slane %v446, 3
        %v903 = vsel %vm880, %v900, %v902
        %v904 = vrot.slane %v447, 3
        %v905 = vsel %vm880, %v902, %v904
        %v906 = vrot.slane %v448, 3
        %v907 = vsel %vm880, %v904, %v906
        %v908 = vrot.slane %v449, 3
        %v909 = vsel %vm880, %v906, %v908
        %v910 = vrot.slane %v450, 3
        %v911 = vsel %vm880, %v908, %v910
        %v912 = vrot.slane %v451, 3
        %v913 = vsel %vm880, %v910, %v912
        %v914 = vrot.slane %v452, 3
        %v915 = vsel %vm880, %v912, %v914
        %v916 = vrot.slane %v453, 3
        %v917 = vsel %vm880, %v914, %v916
        %v918 = vrot.slane %v454, 3
        %v919 = vsel %vm880, %v916, %v918
        %v920 = vrot.slane %v455, 3
        %v921 = vsel %vm880, %v918, %v920
        %v922 = vrot.slane %v456, 3
        %v923 = vsel %vm880, %v920, %v922
        %v924 = vrot.slane %v457, 3
        %v925 = vsel %vm880, %v922, %v924
        %v926 = vrot.slane %v458, 3
        %v927 = vsel %vm880, %v924, %v926
        %v928 = vrot.slane %v459, 3
        %v929 = vsel %vm880, %v926, %v928
        %v930 = vrot.slane %v460, 3
        %v931 = vsel %vm880, %v928, %v930
        %v932 = vrot.slane %v461, 3
        %v933 = vsel %vm880, %v930, %v932
        %v934 = vrot.slane %v462, 3
        %v935 = vsel %vm880, %v932, %v934
        %v936 = vrot.slane %v463, 3
        %v937 = vsel %vm880, %v934, %v936
        %v938 = vrot.slane %v464, 3
        %v939 = vsel %vm880, %v936, %v938
        %v940 = vrot.slane %v465, 3
        %v941 = vsel %vm880, %v938, %v940
        %v942 = vrot.slane %v466, 3
        %v943 = vsel %vm880, %v940, %v942
        %v944 = vrot.slane %v467, 3
        %v945 = vsel %vm880, %v942, %v944
        %v946 = vrot.slane %v468, 3
        %v947 = vsel %vm880, %v944, %v946
        %v948 = vrot.slane %v469, 3
        %v949 = vsel %vm880, %v946, %v948
        %v950 = vrot.slane %v470, 3
        %v951 = vsel %vm880, %v948, %v950
        %v952 = vrot.slane %v471, 3
        %v953 = vsel %vm880, %v950, %v952
        %954 = vrot.lane.b32.xlu0 %v883, 24
        %v955 = vpop.permute.xlu0 %954
        %956 = vrot.lane.b32.xlu0 %v885, 24
        %v957 = vpop.permute.xlu0 %956
        %958 = vrot.lane.b32.xlu0 %v887, 24
        %v959 = vpop.permute.xlu0 %958
        %960 = vrot.lane.b32.xlu0 %v889, 24
        %v961 = vpop.permute.xlu0 %960
        %962 = vrot.lane.b32.xlu0 %v891, 24
        %v963 = vpop.permute.xlu0 %962
        %964 = vrot.lane.b32.xlu0 %v893, 24
        %v965 = vpop.permute.xlu0 %964
        %966 = vrot.lane.b32.xlu0 %v895, 24
        %v967 = vpop.permute.xlu0 %966
        %968 = vrot.lane.b32.xlu0 %v897, 24
        %v969 = vpop.permute.xlu0 %968
        %970 = vrot.lane.b32.xlu0 %v899, 24
        %v971 = vpop.permute.xlu0 %970
        %972 = vrot.lane.b32.xlu0 %v901, 24
        %v973 = vpop.permute.xlu0 %972
        %974 = vrot.lane.b32.xlu0 %v903, 24
        %v975 = vpop.permute.xlu0 %974
        %976 = vrot.lane.b32.xlu0 %v905, 24
        %v977 = vpop.permute.xlu0 %976
        %978 = vrot.lane.b32.xlu0 %v907, 24
        %v979 = vpop.permute.xlu0 %978
        %980 = vrot.lane.b32.xlu0 %v909, 24
        %v981 = vpop.permute.xlu0 %980
        %982 = vrot.lane.b32.xlu0 %v911, 24
        %v983 = vpop.permute.xlu0 %982
        %984 = vrot.lane.b32.xlu0 %v913, 24
        %v985 = vpop.permute.xlu0 %984
        %986 = vrot.lane.b32.xlu0 %v915, 24
        %v987 = vpop.permute.xlu0 %986
        %988 = vrot.lane.b32.xlu0 %v917, 24
        %v989 = vpop.permute.xlu0 %988
        %990 = vrot.lane.b32.xlu0 %v919, 24
        %v991 = vpop.permute.xlu0 %990
        %992 = vrot.lane.b32.xlu0 %v921, 24
        %v993 = vpop.permute.xlu0 %992
        %994 = vrot.lane.b32.xlu0 %v923, 24
        %v995 = vpop.permute.xlu0 %994
        %996 = vrot.lane.b32.xlu0 %v925, 24
        %v997 = vpop.permute.xlu0 %996
        %998 = vrot.lane.b32.xlu0 %v927, 24
        %v999 = vpop.permute.xlu0 %998
        %1000 = vrot.lane.b32.xlu0 %v929, 24
        %v1001 = vpop.permute.xlu0 %1000
        %1002 = vrot.lane.b32.xlu0 %v931, 24
        %v1003 = vpop.permute.xlu0 %1002
        %1004 = vrot.lane.b32.xlu0 %v933, 24
        %v1005 = vpop.permute.xlu0 %1004
        %1006 = vrot.lane.b32.xlu0 %v935, 24
        %v1007 = vpop.permute.xlu0 %1006
        %1008 = vrot.lane.b32.xlu0 %v937, 24
        %v1009 = vpop.permute.xlu0 %1008
        %1010 = vrot.lane.b32.xlu0 %v939, 24
        %v1011 = vpop.permute.xlu0 %1010
        %1012 = vrot.lane.b32.xlu0 %v941, 24
        %v1013 = vpop.permute.xlu0 %1012
        %1014 = vrot.lane.b32.xlu0 %v943, 24
        %v1015 = vpop.permute.xlu0 %1014
        %1016 = vrot.lane.b32.xlu0 %v945, 24
        %v1017 = vpop.permute.xlu0 %1016
        %1018 = vrot.lane.b32.xlu0 %v947, 24
        %v1019 = vpop.permute.xlu0 %1018
        %1020 = vrot.lane.b32.xlu0 %v949, 24
        %v1021 = vpop.permute.xlu0 %1020
        %1022 = vrot.lane.b32.xlu0 %v951, 24
        %v1023 = vpop.permute.xlu0 %1022
        %1024 = vrot.lane.b32.xlu0 %v953, 24
        %v1025 = vpop.permute.xlu0 %1024
        %1026 = vrot.lane.b32.xlu0 %v952, 24
        %v1027 = vpop.permute.xlu0 %1026
        %vm1065 = vcmask 1043456
        %v1066 = vrot.slane %v435, 4
        %v1067 = vrot.slane %v436, 4
        %v1068 = vsel %vm1065, %v1066, %v1067
        %v1069 = vrot.slane %v437, 4
        %v1070 = vsel %vm1065, %v1067, %v1069
        %v1071 = vrot.slane %v438, 4
        %v1072 = vsel %vm1065, %v1069, %v1071
        %v1073 = vrot.slane %v439, 4
        %v1074 = vsel %vm1065, %v1071, %v1073
        %v1075 = vrot.slane %v440, 4
        %v1076 = vsel %vm1065, %v1073, %v1075
        %v1077 = vrot.slane %v441, 4
        %v1078 = vsel %vm1065, %v1075, %v1077
        %v1079 = vrot.slane %v442, 4
        %v1080 = vsel %vm1065, %v1077, %v1079
        %v1081 = vrot.slane %v443, 4
        %v1082 = vsel %vm1065, %v1079, %v1081
        %v1083 = vrot.slane %v444, 4
        %v1084 = vsel %vm1065, %v1081, %v1083
        %v1085 = vrot.slane %v445, 4
        %v1086 = vsel %vm1065, %v1083, %v1085
        %v1087 = vrot.slane %v446, 4
        %v1088 = vsel %vm1065, %v1085, %v1087
        %v1089 = vrot.slane %v447, 4
        %v1090 = vsel %vm1065, %v1087, %v1089
        %v1091 = vrot.slane %v448, 4
        %v1092 = vsel %vm1065, %v1089, %v1091
        %v1093 = vrot.slane %v449, 4
        %v1094 = vsel %vm1065, %v1091, %v1093
        %v1095 = vrot.slane %v450, 4
        %v1096 = vsel %vm1065, %v1093, %v1095
        %v1097 = vrot.slane %v451, 4
        %v1098 = vsel %vm1065, %v1095, %v1097
        %v1099 = vrot.slane %v452, 4
        %v1100 = vsel %vm1065, %v1097, %v1099
        %v1101 = vrot.slane %v453, 4
        %v1102 = vsel %vm1065, %v1099, %v1101
        %v1103 = vrot.slane %v454, 4
        %v1104 = vsel %vm1065, %v1101, %v1103
        %v1105 = vrot.slane %v455, 4
        %v1106 = vsel %vm1065, %v1103, %v1105
        %v1107 = vrot.slane %v456, 4
        %v1108 = vsel %vm1065, %v1105, %v1107
        %v1109 = vrot.slane %v457, 4
        %v1110 = vsel %vm1065, %v1107, %v1109
        %v1111 = vrot.slane %v458, 4
        %v1112 = vsel %vm1065, %v1109, %v1111
        %v1113 = vrot.slane %v459, 4
        %v1114 = vsel %vm1065, %v1111, %v1113
        %v1115 = vrot.slane %v460, 4
        %v1116 = vsel %vm1065, %v1113, %v1115
        %v1117 = vrot.slane %v461, 4
        %v1118 = vsel %vm1065, %v1115, %v1117
        %v1119 = vrot.slane %v462, 4
        %v1120 = vsel %vm1065, %v1117, %v1119
        %v1121 = vrot.slane %v463, 4
        %v1122 = vsel %vm1065, %v1119, %v1121
        %v1123 = vrot.slane %v464, 4
        %v1124 = vsel %vm1065, %v1121, %v1123
        %v1125 = vrot.slane %v465, 4
        %v1126 = vsel %vm1065, %v1123, %v1125
        %v1127 = vrot.slane %v466, 4
        %v1128 = vsel %vm1065, %v1125, %v1127
        %v1129 = vrot.slane %v467, 4
        %v1130 = vsel %vm1065, %v1127, %v1129
        %v1131 = vrot.slane %v468, 4
        %v1132 = vsel %vm1065, %v1129, %v1131
        %v1133 = vrot.slane %v469, 4
        %v1134 = vsel %vm1065, %v1131, %v1133
        %v1135 = vrot.slane %v470, 4
        %v1136 = vsel %vm1065, %v1133, %v1135
        %v1137 = vrot.slane %v471, 4
        %v1138 = vsel %vm1065, %v1135, %v1137
        %1139 = vrot.lane.b32.xlu0 %v1068, 32
        %v1140 = vpop.permute.xlu0 %1139
        %1141 = vrot.lane.b32.xlu0 %v1070, 32
        %v1142 = vpop.permute.xlu0 %1141
        %1143 = vrot.lane.b32.xlu0 %v1072, 32
        %v1144 = vpop.permute.xlu0 %1143
        %1145 = vrot.lane.b32.xlu0 %v1074, 32
        %v1146 = vpop.permute.xlu0 %1145
        %1147 = vrot.lane.b32.xlu0 %v1076, 32
        %v1148 = vpop.permute.xlu0 %1147
        %1149 = vrot.lane.b32.xlu0 %v1078, 32
        %v1150 = vpop.permute.xlu0 %1149
        %1151 = vrot.lane.b32.xlu0 %v1080, 32
        %v1152 = vpop.permute.xlu0 %1151
        %1153 = vrot.lane.b32.xlu0 %v1082, 32
        %v1154 = vpop.permute.xlu0 %1153
        %1155 = vrot.lane.b32.xlu0 %v1084, 32
        %v1156 = vpop.permute.xlu0 %1155
        %1157 = vrot.lane.b32.xlu0 %v1086, 32
        %v1158 = vpop.permute.xlu0 %1157
        %1159 = vrot.lane.b32.xlu0 %v1088, 32
        %v1160 = vpop.permute.xlu0 %1159
        %1161 = vrot.lane.b32.xlu0 %v1090, 32
        %v1162 = vpop.permute.xlu0 %1161
        %1163 = vrot.lane.b32.xlu0 %v1092, 32
        %v1164 = vpop.permute.xlu0 %1163
        %1165 = vrot.lane.b32.xlu0 %v1094, 32
        %v1166 = vpop.permute.xlu0 %1165
        %1167 = vrot.lane.b32.xlu0 %v1096, 32
        %v1168 = vpop.permute.xlu0 %1167
        %1169 = vrot.lane.b32.xlu0 %v1098, 32
        %v1170 = vpop.permute.xlu0 %1169
        %1171 = vrot.lane.b32.xlu0 %v1100, 32
        %v1172 = vpop.permute.xlu0 %1171
        %1173 = vrot.lane.b32.xlu0 %v1102, 32
        %v1174 = vpop.permute.xlu0 %1173
        %1175 = vrot.lane.b32.xlu0 %v1104, 32
        %v1176 = vpop.permute.xlu0 %1175
        %1177 = vrot.lane.b32.xlu0 %v1106, 32
        %v1178 = vpop.permute.xlu0 %1177
        %1179 = vrot.lane.b32.xlu0 %v1108, 32
        %v1180 = vpop.permute.xlu0 %1179
        %1181 = vrot.lane.b32.xlu0 %v1110, 32
        %v1182 = vpop.permute.xlu0 %1181
        %1183 = vrot.lane.b32.xlu0 %v1112, 32
        %v1184 = vpop.permute.xlu0 %1183
        %1185 = vrot.lane.b32.xlu0 %v1114, 32
        %v1186 = vpop.permute.xlu0 %1185
        %1187 = vrot.lane.b32.xlu0 %v1116, 32
        %v1188 = vpop.permute.xlu0 %1187
        %1189 = vrot.lane.b32.xlu0 %v1118, 32
        %v1190 = vpop.permute.xlu0 %1189
        %1191 = vrot.lane.b32.xlu0 %v1120, 32
        %v1192 = vpop.permute.xlu0 %1191
        %1193 = vrot.lane.b32.xlu0 %v1122, 32
        %v1194 = vpop.permute.xlu0 %1193
        %1195 = vrot.lane.b32.xlu0 %v1124, 32
        %v1196 = vpop.permute.xlu0 %1195
        %1197 = vrot.lane.b32.xlu0 %v1126, 32
        %v1198 = vpop.permute.xlu0 %1197
        %1199 = vrot.lane.b32.xlu0 %v1128, 32
        %v1200 = vpop.permute.xlu0 %1199
        %1201 = vrot.lane.b32.xlu0 %v1130, 32
        %v1202 = vpop.permute.xlu0 %1201
        %1203 = vrot.lane.b32.xlu0 %v1132, 32
        %v1204 = vpop.permute.xlu0 %1203
        %1205 = vrot.lane.b32.xlu0 %v1134, 32
        %v1206 = vpop.permute.xlu0 %1205
        %1207 = vrot.lane.b32.xlu0 %v1136, 32
        %v1208 = vpop.permute.xlu0 %1207
        %1209 = vrot.lane.b32.xlu0 %v1138, 32
        %v1210 = vpop.permute.xlu0 %1209
        %1211 = vrot.lane.b32.xlu0 %v1137, 32
        %v1212 = vpop.permute.xlu0 %1211
        %vm1251 = vcmask 1042432
        %v1252 = vrot.slane %v435, 5
        %v1253 = vrot.slane %v436, 5
        %v1254 = vsel %vm1251, %v1252, %v1253
        %v1255 = vrot.slane %v437, 5
        %v1256 = vsel %vm1251, %v1253, %v1255
        %v1257 = vrot.slane %v438, 5
        %v1258 = vsel %vm1251, %v1255, %v1257
        %v1259 = vrot.slane %v439, 5
        %v1260 = vsel %vm1251, %v1257, %v1259
        %v1261 = vrot.slane %v440, 5
        %v1262 = vsel %vm1251, %v1259, %v1261
        %v1263 = vrot.slane %v441, 5
        %v1264 = vsel %vm1251, %v1261, %v1263
        %v1265 = vrot.slane %v442, 5
        %v1266 = vsel %vm1251, %v1263, %v1265
        %v1267 = vrot.slane %v443, 5
        %v1268 = vsel %vm1251, %v1265, %v1267
        %v1269 = vrot.slane %v444, 5
        %v1270 = vsel %vm1251, %v1267, %v1269
        %v1271 = vrot.slane %v445, 5
        %v1272 = vsel %vm1251, %v1269, %v1271
        %v1273 = vrot.slane %v446, 5
        %v1274 = vsel %vm1251, %v1271, %v1273
        %v1275 = vrot.slane %v447, 5
        %v1276 = vsel %vm1251, %v1273, %v1275
        %v1277 = vrot.slane %v448, 5
        %v1278 = vsel %vm1251, %v1275, %v1277
        %v1279 = vrot.slane %v449, 5
        %v1280 = vsel %vm1251, %v1277, %v1279
        %v1281 = vrot.slane %v450, 5
        %v1282 = vsel %vm1251, %v1279, %v1281
        %v1283 = vrot.slane %v451, 5
        %v1284 = vsel %vm1251, %v1281, %v1283
        %v1285 = vrot.slane %v452, 5
        %v1286 = vsel %vm1251, %v1283, %v1285
        %v1287 = vrot.slane %v453, 5
        %v1288 = vsel %vm1251, %v1285, %v1287
        %v1289 = vrot.slane %v454, 5
        %v1290 = vsel %vm1251, %v1287, %v1289
        %v1291 = vrot.slane %v455, 5
        %v1292 = vsel %vm1251, %v1289, %v1291
        %v1293 = vrot.slane %v456, 5
        %v1294 = vsel %vm1251, %v1291, %v1293
        %v1295 = vrot.slane %v457, 5
        %v1296 = vsel %vm1251, %v1293, %v1295
        %v1297 = vrot.slane %v458, 5
        %v1298 = vsel %vm1251, %v1295, %v1297
        %v1299 = vrot.slane %v459, 5
        %v1300 = vsel %vm1251, %v1297, %v1299
        %v1301 = vrot.slane %v460, 5
        %v1302 = vsel %vm1251, %v1299, %v1301
        %v1303 = vrot.slane %v461, 5
        %v1304 = vsel %vm1251, %v1301, %v1303
        %v1305 = vrot.slane %v462, 5
        %v1306 = vsel %vm1251, %v1303, %v1305
        %v1307 = vrot.slane %v463, 5
        %v1308 = vsel %vm1251, %v1305, %v1307
        %v1309 = vrot.slane %v464, 5
        %v1310 = vsel %vm1251, %v1307, %v1309
        %v1311 = vrot.slane %v465, 5
        %v1312 = vsel %vm1251, %v1309, %v1311
        %v1313 = vrot.slane %v466, 5
        %v1314 = vsel %vm1251, %v1311, %v1313
        %v1315 = vrot.slane %v467, 5
        %v1316 = vsel %vm1251, %v1313, %v1315
        %v1317 = vrot.slane %v468, 5
        %v1318 = vsel %vm1251, %v1315, %v1317
        %v1319 = vrot.slane %v469, 5
        %v1320 = vsel %vm1251, %v1317, %v1319
        %v1321 = vrot.slane %v470, 5
        %v1322 = vsel %vm1251, %v1319, %v1321
        %v1323 = vrot.slane %v471, 5
        %v1324 = vsel %vm1251, %v1321, %v1323
        %v1325 = vrot.slane %v472, 5
        %v1326 = vsel %vm1251, %v1323, %v1325
        %1327 = vrot.lane.b32.xlu0 %v1254, 40
        %v1328 = vpop.permute.xlu0 %1327
        %1329 = vrot.lane.b32.xlu0 %v1256, 40
        %v1330 = vpop.permute.xlu0 %1329
        %1331 = vrot.lane.b32.xlu0 %v1258, 40
        %v1332 = vpop.permute.xlu0 %1331
        %1333 = vrot.lane.b32.xlu0 %v1260, 40
        %v1334 = vpop.permute.xlu0 %1333
        %1335 = vrot.lane.b32.xlu0 %v1262, 40
        %v1336 = vpop.permute.xlu0 %1335
        %1337 = vrot.lane.b32.xlu0 %v1264, 40
        %v1338 = vpop.permute.xlu0 %1337
        %1339 = vrot.lane.b32.xlu0 %v1266, 40
        %v1340 = vpop.permute.xlu0 %1339
        %1341 = vrot.lane.b32.xlu0 %v1268, 40
        %v1342 = vpop.permute.xlu0 %1341
        %1343 = vrot.lane.b32.xlu0 %v1270, 40
        %v1344 = vpop.permute.xlu0 %1343
        %1345 = vrot.lane.b32.xlu0 %v1272, 40
        %v1346 = vpop.permute.xlu0 %1345
        %1347 = vrot.lane.b32.xlu0 %v1274, 40
        %v1348 = vpop.permute.xlu0 %1347
        %1349 = vrot.lane.b32.xlu0 %v1276, 40
        %v1350 = vpop.permute.xlu0 %1349
        %1351 = vrot.lane.b32.xlu0 %v1278, 40
        %v1352 = vpop.permute.xlu0 %1351
        %1353 = vrot.lane.b32.xlu0 %v1280, 40
        %v1354 = vpop.permute.xlu0 %1353
        %1355 = vrot.lane.b32.xlu0 %v1282, 40
        %v1356 = vpop.permute.xlu0 %1355
        %1357 = vrot.lane.b32.xlu0 %v1284, 40
        %v1358 = vpop.permute.xlu0 %1357
        %1359 = vrot.lane.b32.xlu0 %v1286, 40
        %v1360 = vpop.permute.xlu0 %1359
        %1361 = vrot.lane.b32.xlu0 %v1288, 40
        %v1362 = vpop.permute.xlu0 %1361
        %1363 = vrot.lane.b32.xlu0 %v1290, 40
        %v1364 = vpop.permute.xlu0 %1363
        %1365 = vrot.lane.b32.xlu0 %v1292, 40
        %v1366 = vpop.permute.xlu0 %1365
        %1367 = vrot.lane.b32.xlu0 %v1294, 40
        %v1368 = vpop.permute.xlu0 %1367
        %1369 = vrot.lane.b32.xlu0 %v1296, 40
        %v1370 = vpop.permute.xlu0 %1369
        %1371 = vrot.lane.b32.xlu0 %v1298, 40
        %v1372 = vpop.permute.xlu0 %1371
        %1373 = vrot.lane.b32.xlu0 %v1300, 40
        %v1374 = vpop.permute.xlu0 %1373
        %1375 = vrot.lane.b32.xlu0 %v1302, 40
        %v1376 = vpop.permute.xlu0 %1375
        %1377 = vrot.lane.b32.xlu0 %v1304, 40
        %v1378 = vpop.permute.xlu0 %1377
        %1379 = vrot.lane.b32.xlu0 %v1306, 40
        %v1380 = vpop.permute.xlu0 %1379
        %1381 = vrot.lane.b32.xlu0 %v1308, 40
        %v1382 = vpop.permute.xlu0 %1381
        %1383 = vrot.lane.b32.xlu0 %v1310, 40
        %v1384 = vpop.permute.xlu0 %1383
        %1385 = vrot.lane.b32.xlu0 %v1312, 40
        %v1386 = vpop.permute.xlu0 %1385
        %1387 = vrot.lane.b32.xlu0 %v1314, 40
        %v1388 = vpop.permute.xlu0 %1387
        %1389 = vrot.lane.b32.xlu0 %v1316, 40
        %v1390 = vpop.permute.xlu0 %1389
        %1391 = vrot.lane.b32.xlu0 %v1318, 40
        %v1392 = vpop.permute.xlu0 %1391
        %1393 = vrot.lane.b32.xlu0 %v1320, 40
        %v1394 = vpop.permute.xlu0 %1393
        %1395 = vrot.lane.b32.xlu0 %v1322, 40
        %v1396 = vpop.permute.xlu0 %1395
        %1397 = vrot.lane.b32.xlu0 %v1324, 40
        %v1398 = vpop.permute.xlu0 %1397
        %1399 = vrot.lane.b32.xlu0 %v1326, 40
        %v1400 = vpop.permute.xlu0 %1399
        %vm1438 = vcmask 1041408
        %v1439 = vrot.slane %v435, 6
        %v1440 = vrot.slane %v436, 6
        %v1441 = vsel %vm1438, %v1439, %v1440
        %v1442 = vrot.slane %v437, 6
        %v1443 = vsel %vm1438, %v1440, %v1442
        %v1444 = vrot.slane %v438, 6
        %v1445 = vsel %vm1438, %v1442, %v1444
        %v1446 = vrot.slane %v439, 6
        %v1447 = vsel %vm1438, %v1444, %v1446
        %v1448 = vrot.slane %v440, 6
        %v1449 = vsel %vm1438, %v1446, %v1448
        %v1450 = vrot.slane %v441, 6
        %v1451 = vsel %vm1438, %v1448, %v1450
        %v1452 = vrot.slane %v442, 6
        %v1453 = vsel %vm1438, %v1450, %v1452
        %v1454 = vrot.slane %v443, 6
        %v1455 = vsel %vm1438, %v1452, %v1454
        %v1456 = vrot.slane %v444, 6
        %v1457 = vsel %vm1438, %v1454, %v1456
        %v1458 = vrot.slane %v445, 6
        %v1459 = vsel %vm1438, %v1456, %v1458
        %v1460 = vrot.slane %v446, 6
        %v1461 = vsel %vm1438, %v1458, %v1460
        %v1462 = vrot.slane %v447, 6
        %v1463 = vsel %vm1438, %v1460, %v1462
        %v1464 = vrot.slane %v448, 6
        %v1465 = vsel %vm1438, %v1462, %v1464
        %v1466 = vrot.slane %v449, 6
        %v1467 = vsel %vm1438, %v1464, %v1466
        %v1468 = vrot.slane %v450, 6
        %v1469 = vsel %vm1438, %v1466, %v1468
        %v1470 = vrot.slane %v451, 6
        %v1471 = vsel %vm1438, %v1468, %v1470
        %v1472 = vrot.slane %v452, 6
        %v1473 = vsel %vm1438, %v1470, %v1472
        %v1474 = vrot.slane %v453, 6
        %v1475 = vsel %vm1438, %v1472, %v1474
        %v1476 = vrot.slane %v454, 6
        %v1477 = vsel %vm1438, %v1474, %v1476
        %v1478 = vrot.slane %v455, 6
        %v1479 = vsel %vm1438, %v1476, %v1478
        %v1480 = vrot.slane %v456, 6
        %v1481 = vsel %vm1438, %v1478, %v1480
        %v1482 = vrot.slane %v457, 6
        %v1483 = vsel %vm1438, %v1480, %v1482
        %v1484 = vrot.slane %v458, 6
        %v1485 = vsel %vm1438, %v1482, %v1484
        %v1486 = vrot.slane %v459, 6
        %v1487 = vsel %vm1438, %v1484, %v1486
        %v1488 = vrot.slane %v460, 6
        %v1489 = vsel %vm1438, %v1486, %v1488
        %v1490 = vrot.slane %v461, 6
        %v1491 = vsel %vm1438, %v1488, %v1490
        %v1492 = vrot.slane %v462, 6
        %v1493 = vsel %vm1438, %v1490, %v1492
        %v1494 = vrot.slane %v463, 6
        %v1495 = vsel %vm1438, %v1492, %v1494
        %v1496 = vrot.slane %v464, 6
        %v1497 = vsel %vm1438, %v1494, %v1496
        %v1498 = vrot.slane %v465, 6
        %v1499 = vsel %vm1438, %v1496, %v1498
        %v1500 = vrot.slane %v466, 6
        %v1501 = vsel %vm1438, %v1498, %v1500
        %v1502 = vrot.slane %v467, 6
        %v1503 = vsel %vm1438, %v1500, %v1502
        %v1504 = vrot.slane %v468, 6
        %v1505 = vsel %vm1438, %v1502, %v1504
        %v1506 = vrot.slane %v469, 6
        %v1507 = vsel %vm1438, %v1504, %v1506
        %v1508 = vrot.slane %v470, 6
        %v1509 = vsel %vm1438, %v1506, %v1508
        %v1510 = vrot.slane %v471, 6
        %v1511 = vsel %vm1438, %v1508, %v1510
        %v1512 = vrot.slane %v472, 6
        %v1513 = vsel %vm1438, %v1510, %v1512
        %1514 = vrot.lane.b32.xlu0 %v1441, 48
        %v1515 = vpop.permute.xlu0 %1514
        %1516 = vrot.lane.b32.xlu0 %v1443, 48
        %v1517 = vpop.permute.xlu0 %1516
        %1518 = vrot.lane.b32.xlu0 %v1445, 48
        %v1519 = vpop.permute.xlu0 %1518
        %1520 = vrot.lane.b32.xlu0 %v1447, 48
        %v1521 = vpop.permute.xlu0 %1520
        %1522 = vrot.lane.b32.xlu0 %v1449, 48
        %v1523 = vpop.permute.xlu0 %1522
        %1524 = vrot.lane.b32.xlu0 %v1451, 48
        %v1525 = vpop.permute.xlu0 %1524
        %1526 = vrot.lane.b32.xlu0 %v1453, 48
        %v1527 = vpop.permute.xlu0 %1526
        %1528 = vrot.lane.b32.xlu0 %v1455, 48
        %v1529 = vpop.permute.xlu0 %1528
        %1530 = vrot.lane.b32.xlu0 %v1457, 48
        %v1531 = vpop.permute.xlu0 %1530
        %1532 = vrot.lane.b32.xlu0 %v1459, 48
        %v1533 = vpop.permute.xlu0 %1532
        %1534 = vrot.lane.b32.xlu0 %v1461, 48
        %v1535 = vpop.permute.xlu0 %1534
        %1536 = vrot.lane.b32.xlu0 %v1463, 48
        %v1537 = vpop.permute.xlu0 %1536
        %1538 = vrot.lane.b32.xlu0 %v1465, 48
        %v1539 = vpop.permute.xlu0 %1538
        %1540 = vrot.lane.b32.xlu0 %v1467, 48
        %v1541 = vpop.permute.xlu0 %1540
        %1542 = vrot.lane.b32.xlu0 %v1469, 48
        %v1543 = vpop.permute.xlu0 %1542
        %1544 = vrot.lane.b32.xlu0 %v1471, 48
        %v1545 = vpop.permute.xlu0 %1544
        %1546 = vrot.lane.b32.xlu0 %v1473, 48
        %v1547 = vpop.permute.xlu0 %1546
        %1548 = vrot.lane.b32.xlu0 %v1475, 48
        %v1549 = vpop.permute.xlu0 %1548
        %1550 = vrot.lane.b32.xlu0 %v1477, 48
        %v1551 = vpop.permute.xlu0 %1550
        %1552 = vrot.lane.b32.xlu0 %v1479, 48
        %v1553 = vpop.permute.xlu0 %1552
        %1554 = vrot.lane.b32.xlu0 %v1481, 48
        %v1555 = vpop.permute.xlu0 %1554
        %1556 = vrot.lane.b32.xlu0 %v1483, 48
        %v1557 = vpop.permute.xlu0 %1556
        %1558 = vrot.lane.b32.xlu0 %v1485, 48
        %v1559 = vpop.permute.xlu0 %1558
        %1560 = vrot.lane.b32.xlu0 %v1487, 48
        %v1561 = vpop.permute.xlu0 %1560
        %1562 = vrot.lane.b32.xlu0 %v1489, 48
        %v1563 = vpop.permute.xlu0 %1562
        %1564 = vrot.lane.b32.xlu0 %v1491, 48
        %v1565 = vpop.permute.xlu0 %1564
        %1566 = vrot.lane.b32.xlu0 %v1493, 48
        %v1567 = vpop.permute.xlu0 %1566
        %1568 = vrot.lane.b32.xlu0 %v1495, 48
        %v1569 = vpop.permute.xlu0 %1568
        %1570 = vrot.lane.b32.xlu0 %v1497, 48
        %v1571 = vpop.permute.xlu0 %1570
        %1572 = vrot.lane.b32.xlu0 %v1499, 48
        %v1573 = vpop.permute.xlu0 %1572
        %1574 = vrot.lane.b32.xlu0 %v1501, 48
        %v1575 = vpop.permute.xlu0 %1574
        %1576 = vrot.lane.b32.xlu0 %v1503, 48
        %v1577 = vpop.permute.xlu0 %1576
        %1578 = vrot.lane.b32.xlu0 %v1505, 48
        %v1579 = vpop.permute.xlu0 %1578
        %1580 = vrot.lane.b32.xlu0 %v1507, 48
        %v1581 = vpop.permute.xlu0 %1580
        %1582 = vrot.lane.b32.xlu0 %v1509, 48
        %v1583 = vpop.permute.xlu0 %1582
        %1584 = vrot.lane.b32.xlu0 %v1511, 48
        %v1585 = vpop.permute.xlu0 %1584
        %1586 = vrot.lane.b32.xlu0 %v1513, 48
        %v1587 = vpop.permute.xlu0 %1586
        %vm1625 = vcmask 1040384
        %v1626 = vrot.slane %v435, 7
        %v1627 = vrot.slane %v436, 7
        %v1628 = vsel %vm1625, %v1626, %v1627
        %v1629 = vrot.slane %v437, 7
        %v1630 = vsel %vm1625, %v1627, %v1629
        %v1631 = vrot.slane %v438, 7
        %v1632 = vsel %vm1625, %v1629, %v1631
        %v1633 = vrot.slane %v439, 7
        %v1634 = vsel %vm1625, %v1631, %v1633
        %v1635 = vrot.slane %v440, 7
        %v1636 = vsel %vm1625, %v1633, %v1635
        %v1637 = vrot.slane %v441, 7
        %v1638 = vsel %vm1625, %v1635, %v1637
        %v1639 = vrot.slane %v442, 7
        %v1640 = vsel %vm1625, %v1637, %v1639
        %v1641 = vrot.slane %v443, 7
        %v1642 = vsel %vm1625, %v1639, %v1641
        %v1643 = vrot.slane %v444, 7
        %v1644 = vsel %vm1625, %v1641, %v1643
        %v1645 = vrot.slane %v445, 7
        %v1646 = vsel %vm1625, %v1643, %v1645
        %v1647 = vrot.slane %v446, 7
        %v1648 = vsel %vm1625, %v1645, %v1647
        %v1649 = vrot.slane %v447, 7
        %v1650 = vsel %vm1625, %v1647, %v1649
        %v1651 = vrot.slane %v448, 7
        %v1652 = vsel %vm1625, %v1649, %v1651
        %v1653 = vrot.slane %v449, 7
        %v1654 = vsel %vm1625, %v1651, %v1653
        %v1655 = vrot.slane %v450, 7
        %v1656 = vsel %vm1625, %v1653, %v1655
        %v1657 = vrot.slane %v451, 7
        %v1658 = vsel %vm1625, %v1655, %v1657
        %v1659 = vrot.slane %v452, 7
        %v1660 = vsel %vm1625, %v1657, %v1659
        %v1661 = vrot.slane %v453, 7
        %v1662 = vsel %vm1625, %v1659, %v1661
        %v1663 = vrot.slane %v454, 7
        %v1664 = vsel %vm1625, %v1661, %v1663
        %v1665 = vrot.slane %v455, 7
        %v1666 = vsel %vm1625, %v1663, %v1665
        %v1667 = vrot.slane %v456, 7
        %v1668 = vsel %vm1625, %v1665, %v1667
        %v1669 = vrot.slane %v457, 7
        %v1670 = vsel %vm1625, %v1667, %v1669
        %v1671 = vrot.slane %v458, 7
        %v1672 = vsel %vm1625, %v1669, %v1671
        %v1673 = vrot.slane %v459, 7
        %v1674 = vsel %vm1625, %v1671, %v1673
        %v1675 = vrot.slane %v460, 7
        %v1676 = vsel %vm1625, %v1673, %v1675
        %v1677 = vrot.slane %v461, 7
        %v1678 = vsel %vm1625, %v1675, %v1677
        %v1679 = vrot.slane %v462, 7
        %v1680 = vsel %vm1625, %v1677, %v1679
        %v1681 = vrot.slane %v463, 7
        %v1682 = vsel %vm1625, %v1679, %v1681
        %v1683 = vrot.slane %v464, 7
        %v1684 = vsel %vm1625, %v1681, %v1683
        %v1685 = vrot.slane %v465, 7
        %v1686 = vsel %vm1625, %v1683, %v1685
        %v1687 = vrot.slane %v466, 7
        %v1688 = vsel %vm1625, %v1685, %v1687
        %v1689 = vrot.slane %v467, 7
        %v1690 = vsel %vm1625, %v1687, %v1689
        %v1691 = vrot.slane %v468, 7
        %v1692 = vsel %vm1625, %v1689, %v1691
        %v1693 = vrot.slane %v469, 7
        %v1694 = vsel %vm1625, %v1691, %v1693
        %v1695 = vrot.slane %v470, 7
        %v1696 = vsel %vm1625, %v1693, %v1695
        %v1697 = vrot.slane %v471, 7
        %v1698 = vsel %vm1625, %v1695, %v1697
        %v1699 = vrot.slane %v472, 7
        %v1700 = vsel %vm1625, %v1697, %v1699
        %1701 = vrot.lane.b32.xlu0 %v1628, 56
        %v1702 = vpop.permute.xlu0 %1701
        %1703 = vrot.lane.b32.xlu0 %v1630, 56
        %v1704 = vpop.permute.xlu0 %1703
        %1705 = vrot.lane.b32.xlu0 %v1632, 56
        %v1706 = vpop.permute.xlu0 %1705
        %1707 = vrot.lane.b32.xlu0 %v1634, 56
        %v1708 = vpop.permute.xlu0 %1707
        %1709 = vrot.lane.b32.xlu0 %v1636, 56
        %v1710 = vpop.permute.xlu0 %1709
        %1711 = vrot.lane.b32.xlu0 %v1638, 56
        %v1712 = vpop.permute.xlu0 %1711
        %1713 = vrot.lane.b32.xlu0 %v1640, 56
        %v1714 = vpop.permute.xlu0 %1713
        %1715 = vrot.lane.b32.xlu0 %v1642, 56
        %v1716 = vpop.permute.xlu0 %1715
        %1717 = vrot.lane.b32.xlu0 %v1644, 56
        %v1718 = vpop.permute.xlu0 %1717
        %1719 = vrot.lane.b32.xlu0 %v1646, 56
        %v1720 = vpop.permute.xlu0 %1719
        %1721 = vrot.lane.b32.xlu0 %v1648, 56
        %v1722 = vpop.permute.xlu0 %1721
        %1723 = vrot.lane.b32.xlu0 %v1650, 56
        %v1724 = vpop.permute.xlu0 %1723
        %1725 = vrot.lane.b32.xlu0 %v1652, 56
        %v1726 = vpop.permute.xlu0 %1725
        %1727 = vrot.lane.b32.xlu0 %v1654, 56
        %v1728 = vpop.permute.xlu0 %1727
        %1729 = vrot.lane.b32.xlu0 %v1656, 56
        %v1730 = vpop.permute.xlu0 %1729
        %1731 = vrot.lane.b32.xlu0 %v1658, 56
        %v1732 = vpop.permute.xlu0 %1731
        %1733 = vrot.lane.b32.xlu0 %v1660, 56
        %v1734 = vpop.permute.xlu0 %1733
        %1735 = vrot.lane.b32.xlu0 %v1662, 56
        %v1736 = vpop.permute.xlu0 %1735
        %1737 = vrot.lane.b32.xlu0 %v1664, 56
        %v1738 = vpop.permute.xlu0 %1737
        %1739 = vrot.lane.b32.xlu0 %v1666, 56
        %v1740 = vpop.permute.xlu0 %1739
        %1741 = vrot.lane.b32.xlu0 %v1668, 56
        %v1742 = vpop.permute.xlu0 %1741
        %1743 = vrot.lane.b32.xlu0 %v1670, 56
        %v1744 = vpop.permute.xlu0 %1743
        %1745 = vrot.lane.b32.xlu0 %v1672, 56
        %v1746 = vpop.permute.xlu0 %1745
        %1747 = vrot.lane.b32.xlu0 %v1674, 56
        %v1748 = vpop.permute.xlu0 %1747
        %1749 = vrot.lane.b32.xlu0 %v1676, 56
        %v1750 = vpop.permute.xlu0 %1749
        %1751 = vrot.lane.b32.xlu0 %v1678, 56
        %v1752 = vpop.permute.xlu0 %1751
        %1753 = vrot.lane.b32.xlu0 %v1680, 56
        %v1754 = vpop.permute.xlu0 %1753
        %1755 = vrot.lane.b32.xlu0 %v1682, 56
        %v1756 = vpop.permute.xlu0 %1755
        %1757 = vrot.lane.b32.xlu0 %v1684, 56
        %v1758 = vpop.permute.xlu0 %1757
        %1759 = vrot.lane.b32.xlu0 %v1686, 56
        %v1760 = vpop.permute.xlu0 %1759
        %1761 = vrot.lane.b32.xlu0 %v1688, 56
        %v1762 = vpop.permute.xlu0 %1761
        %1763 = vrot.lane.b32.xlu0 %v1690, 56
        %v1764 = vpop.permute.xlu0 %1763
        %1765 = vrot.lane.b32.xlu0 %v1692, 56
        %v1766 = vpop.permute.xlu0 %1765
        %1767 = vrot.lane.b32.xlu0 %v1694, 56
        %v1768 = vpop.permute.xlu0 %1767
        %1769 = vrot.lane.b32.xlu0 %v1696, 56
        %v1770 = vpop.permute.xlu0 %1769
        %1771 = vrot.lane.b32.xlu0 %v1698, 56
        %v1772 = vpop.permute.xlu0 %1771
        %1773 = vrot.lane.b32.xlu0 %v1700, 56
        %v1774 = vpop.permute.xlu0 %1773
        %1812 = vrot.lane.b32.xlu0 %v436, 64
        %v1813 = vpop.permute.xlu0 %1812
        %1814 = vrot.lane.b32.xlu0 %v437, 64
        %v1815 = vpop.permute.xlu0 %1814
        %1816 = vrot.lane.b32.xlu0 %v438, 64
        %v1817 = vpop.permute.xlu0 %1816
        %1818 = vrot.lane.b32.xlu0 %v439, 64
        %v1819 = vpop.permute.xlu0 %1818
        %1820 = vrot.lane.b32.xlu0 %v440, 64
        %v1821 = vpop.permute.xlu0 %1820
        %1822 = vrot.lane.b32.xlu0 %v441, 64
        %v1823 = vpop.permute.xlu0 %1822
        %1824 = vrot.lane.b32.xlu0 %v442, 64
        %v1825 = vpop.permute.xlu0 %1824
        %1826 = vrot.lane.b32.xlu0 %v443, 64
        %v1827 = vpop.permute.xlu0 %1826
        %1828 = vrot.lane.b32.xlu0 %v444, 64
        %v1829 = vpop.permute.xlu0 %1828
        %1830 = vrot.lane.b32.xlu0 %v445, 64
        %v1831 = vpop.permute.xlu0 %1830
        %1832 = vrot.lane.b32.xlu0 %v446, 64
        %v1833 = vpop.permute.xlu0 %1832
        %1834 = vrot.lane.b32.xlu0 %v447, 64
        %v1835 = vpop.permute.xlu0 %1834
        %1836 = vrot.lane.b32.xlu0 %v448, 64
        %v1837 = vpop.permute.xlu0 %1836
        %1838 = vrot.lane.b32.xlu0 %v449, 64
        %v1839 = vpop.permute.xlu0 %1838
        %1840 = vrot.lane.b32.xlu0 %v450, 64
        %v1841 = vpop.permute.xlu0 %1840
        %1842 = vrot.lane.b32.xlu0 %v451, 64
        %v1843 = vpop.permute.xlu0 %1842
        %1844 = vrot.lane.b32.xlu0 %v452, 64
        %v1845 = vpop.permute.xlu0 %1844
        %1846 = vrot.lane.b32.xlu0 %v453, 64
        %v1847 = vpop.permute.xlu0 %1846
        %1848 = vrot.lane.b32.xlu0 %v454, 64
        %v1849 = vpop.permute.xlu0 %1848
        %1850 = vrot.lane.b32.xlu0 %v455, 64
        %v1851 = vpop.permute.xlu0 %1850
        %1852 = vrot.lane.b32.xlu0 %v456, 64
        %v1853 = vpop.permute.xlu0 %1852
        %1854 = vrot.lane.b32.xlu0 %v457, 64
        %v1855 = vpop.permute.xlu0 %1854
        %1856 = vrot.lane.b32.xlu0 %v458, 64
        %v1857 = vpop.permute.xlu0 %1856
        %1858 = vrot.lane.b32.xlu0 %v459, 64
        %v1859 = vpop.permute.xlu0 %1858
        %1860 = vrot.lane.b32.xlu0 %v460, 64
        %v1861 = vpop.permute.xlu0 %1860
        %1862 = vrot.lane.b32.xlu0 %v461, 64
        %v1863 = vpop.permute.xlu0 %1862
        %1864 = vrot.lane.b32.xlu0 %v462, 64
        %v1865 = vpop.permute.xlu0 %1864
        %1866 = vrot.lane.b32.xlu0 %v463, 64
        %v1867 = vpop.permute.xlu0 %1866
        %1868 = vrot.lane.b32.xlu0 %v464, 64
        %v1869 = vpop.permute.xlu0 %1868
        %1870 = vrot.lane.b32.xlu0 %v465, 64
        %v1871 = vpop.permute.xlu0 %1870
        %1872 = vrot.lane.b32.xlu0 %v466, 64
        %v1873 = vpop.permute.xlu0 %1872
        %1874 = vrot.lane.b32.xlu0 %v467, 64
        %v1875 = vpop.permute.xlu0 %1874
        %1876 = vrot.lane.b32.xlu0 %v468, 64
        %v1877 = vpop.permute.xlu0 %1876
        %1878 = vrot.lane.b32.xlu0 %v469, 64
        %v1879 = vpop.permute.xlu0 %1878
        %1880 = vrot.lane.b32.xlu0 %v470, 64
        %v1881 = vpop.permute.xlu0 %1880
        %1882 = vrot.lane.b32.xlu0 %v471, 64
        %v1883 = vpop.permute.xlu0 %1882
        %1884 = vrot.lane.b32.xlu0 %v472, 64
        %v1885 = vpop.permute.xlu0 %1884
        %vm1923 = vcmask 64512
        %v1924 = vsel %vm1923, %v435, %v585
        %v1925 = vsel %vm1923, %v436, %v587
        %v1926 = vsel %vm1923, %v437, %v589
        %v1927 = vsel %vm1923, %v438, %v591
        %v1928 = vsel %vm1923, %v439, %v593
        %v1929 = vsel %vm1923, %v440, %v595
        %v1930 = vsel %vm1923, %v441, %v597
        %v1931 = vsel %vm1923, %v442, %v599
        %v1932 = vsel %vm1923, %v443, %v601
        %v1933 = vsel %vm1923, %v444, %v603
        %v1934 = vsel %vm1923, %v445, %v605
        %v1935 = vsel %vm1923, %v446, %v607
        %v1936 = vsel %vm1923, %v447, %v609
        %v1937 = vsel %vm1923, %v448, %v611
        %v1938 = vsel %vm1923, %v449, %v613
        %v1939 = vsel %vm1923, %v450, %v615
        %v1940 = vsel %vm1923, %v451, %v617
        %v1941 = vsel %vm1923, %v452, %v619
        %v1942 = vsel %vm1923, %v453, %v621
        %v1943 = vsel %vm1923, %v454, %v623
        %v1944 = vsel %vm1923, %v455, %v625
        %v1945 = vsel %vm1923, %v456, %v627
        %v1946 = vsel %vm1923, %v457, %v629
        %v1947 = vsel %vm1923, %v458, %v631
        %v1948 = vsel %vm1923, %v459, %v633
        %v1949 = vsel %vm1923, %v460, %v635
        %v1950 = vsel %vm1923, %v461, %v637
        %v1951 = vsel %vm1923, %v462, %v639
        %v1952 = vsel %vm1923, %v463, %v641
        %v1953 = vsel %vm1923, %v464, %v643
        %v1954 = vsel %vm1923, %v465, %v645
        %v1955 = vsel %vm1923, %v466, %v647
        %v1956 = vsel %vm1923, %v467, %v649
        %v1957 = vsel %vm1923, %v468, %v651
        %v1958 = vsel %vm1923, %v469, %v653
        %v1959 = vsel %vm1923, %v470, %v655
        %v1960 = vsel %vm1923, %v471, %v657
        %vm1961 = vcmask 130048
        %v1962 = vsel %vm1961, %v1924, %v770
        %v1963 = vsel %vm1961, %v1925, %v772
        %v1964 = vsel %vm1961, %v1926, %v774
        %v1965 = vsel %vm1961, %v1927, %v776
        %v1966 = vsel %vm1961, %v1928, %v778
        %v1967 = vsel %vm1961, %v1929, %v780
        %v1968 = vsel %vm1961, %v1930, %v782
        %v1969 = vsel %vm1961, %v1931, %v784
        %v1970 = vsel %vm1961, %v1932, %v786
        %v1971 = vsel %vm1961, %v1933, %v788
        %v1972 = vsel %vm1961, %v1934, %v790
        %v1973 = vsel %vm1961, %v1935, %v792
        %v1974 = vsel %vm1961, %v1936, %v794
        %v1975 = vsel %vm1961, %v1937, %v796
        %v1976 = vsel %vm1961, %v1938, %v798
        %v1977 = vsel %vm1961, %v1939, %v800
        %v1978 = vsel %vm1961, %v1940, %v802
        %v1979 = vsel %vm1961, %v1941, %v804
        %v1980 = vsel %vm1961, %v1942, %v806
        %v1981 = vsel %vm1961, %v1943, %v808
        %v1982 = vsel %vm1961, %v1944, %v810
        %v1983 = vsel %vm1961, %v1945, %v812
        %v1984 = vsel %vm1961, %v1946, %v814
        %v1985 = vsel %vm1961, %v1947, %v816
        %v1986 = vsel %vm1961, %v1948, %v818
        %v1987 = vsel %vm1961, %v1949, %v820
        %v1988 = vsel %vm1961, %v1950, %v822
        %v1989 = vsel %vm1961, %v1951, %v824
        %v1990 = vsel %vm1961, %v1952, %v826
        %v1991 = vsel %vm1961, %v1953, %v828
        %v1992 = vsel %vm1961, %v1954, %v830
        %v1993 = vsel %vm1961, %v1955, %v832
        %v1994 = vsel %vm1961, %v1956, %v834
        %v1995 = vsel %vm1961, %v1957, %v836
        %v1996 = vsel %vm1961, %v1958, %v838
        %v1997 = vsel %vm1961, %v1959, %v840
        %v1998 = vsel %vm1961, %v1960, %v842
        %vm1999 = vcmask 195584
        %v2000 = vsel %vm1999, %v1962, %v955
        %v2001 = vsel %vm1999, %v1963, %v957
        %v2002 = vsel %vm1999, %v1964, %v959
        %v2003 = vsel %vm1999, %v1965, %v961
        %v2004 = vsel %vm1999, %v1966, %v963
        %v2005 = vsel %vm1999, %v1967, %v965
        %v2006 = vsel %vm1999, %v1968, %v967
        %v2007 = vsel %vm1999, %v1969, %v969
        %v2008 = vsel %vm1999, %v1970, %v971
        %v2009 = vsel %vm1999, %v1971, %v973
        %v2010 = vsel %vm1999, %v1972, %v975
        %v2011 = vsel %vm1999, %v1973, %v977
        %v2012 = vsel %vm1999, %v1974, %v979
        %v2013 = vsel %vm1999, %v1975, %v981
        %v2014 = vsel %vm1999, %v1976, %v983
        %v2015 = vsel %vm1999, %v1977, %v985
        %v2016 = vsel %vm1999, %v1978, %v987
        %v2017 = vsel %vm1999, %v1979, %v989
        %v2018 = vsel %vm1999, %v1980, %v991
        %v2019 = vsel %vm1999, %v1981, %v993
        %v2020 = vsel %vm1999, %v1982, %v995
        %v2021 = vsel %vm1999, %v1983, %v997
        %v2022 = vsel %vm1999, %v1984, %v999
        %v2023 = vsel %vm1999, %v1985, %v1001
        %v2024 = vsel %vm1999, %v1986, %v1003
        %v2025 = vsel %vm1999, %v1987, %v1005
        %v2026 = vsel %vm1999, %v1988, %v1007
        %v2027 = vsel %vm1999, %v1989, %v1009
        %v2028 = vsel %vm1999, %v1990, %v1011
        %v2029 = vsel %vm1999, %v1991, %v1013
        %v2030 = vsel %vm1999, %v1992, %v1015
        %v2031 = vsel %vm1999, %v1993, %v1017
        %v2032 = vsel %vm1999, %v1994, %v1019
        %v2033 = vsel %vm1999, %v1995, %v1021
        %v2034 = vsel %vm1999, %v1996, %v1023
        %v2035 = vsel %vm1999, %v1997, %v1025
        %v2036 = vsel %vm1999, %v1998, %v1027
        %vm2037 = vcmask 261120
        %v2038 = vsel %vm2037, %v2000, %v1140
        %v2039 = vsel %vm2037, %v2001, %v1142
        %v2040 = vsel %vm2037, %v2002, %v1144
        %v2041 = vsel %vm2037, %v2003, %v1146
        %v2042 = vsel %vm2037, %v2004, %v1148
        %v2043 = vsel %vm2037, %v2005, %v1150
        %v2044 = vsel %vm2037, %v2006, %v1152
        %v2045 = vsel %vm2037, %v2007, %v1154
        %v2046 = vsel %vm2037, %v2008, %v1156
        %v2047 = vsel %vm2037, %v2009, %v1158
        %v2048 = vsel %vm2037, %v2010, %v1160
        %v2049 = vsel %vm2037, %v2011, %v1162
        %v2050 = vsel %vm2037, %v2012, %v1164
        %v2051 = vsel %vm2037, %v2013, %v1166
        %v2052 = vsel %vm2037, %v2014, %v1168
        %v2053 = vsel %vm2037, %v2015, %v1170
        %v2054 = vsel %vm2037, %v2016, %v1172
        %v2055 = vsel %vm2037, %v2017, %v1174
        %v2056 = vsel %vm2037, %v2018, %v1176
        %v2057 = vsel %vm2037, %v2019, %v1178
        %v2058 = vsel %vm2037, %v2020, %v1180
        %v2059 = vsel %vm2037, %v2021, %v1182
        %v2060 = vsel %vm2037, %v2022, %v1184
        %v2061 = vsel %vm2037, %v2023, %v1186
        %v2062 = vsel %vm2037, %v2024, %v1188
        %v2063 = vsel %vm2037, %v2025, %v1190
        %v2064 = vsel %vm2037, %v2026, %v1192
        %v2065 = vsel %vm2037, %v2027, %v1194
        %v2066 = vsel %vm2037, %v2028, %v1196
        %v2067 = vsel %vm2037, %v2029, %v1198
        %v2068 = vsel %vm2037, %v2030, %v1200
        %v2069 = vsel %vm2037, %v2031, %v1202
        %v2070 = vsel %vm2037, %v2032, %v1204
        %v2071 = vsel %vm2037, %v2033, %v1206
        %v2072 = vsel %vm2037, %v2034, %v1208
        %v2073 = vsel %vm2037, %v2035, %v1210
        %v2074 = vsel %vm2037, %v2036, %v1212
        %vm2075 = vcmask 326656
        %v2076 = vsel %vm2075, %v2038, %v1328
        %v2077 = vsel %vm2075, %v2039, %v1330
        %v2078 = vsel %vm2075, %v2040, %v1332
        %v2079 = vsel %vm2075, %v2041, %v1334
        %v2080 = vsel %vm2075, %v2042, %v1336
        %v2081 = vsel %vm2075, %v2043, %v1338
        %v2082 = vsel %vm2075, %v2044, %v1340
        %v2083 = vsel %vm2075, %v2045, %v1342
        %v2084 = vsel %vm2075, %v2046, %v1344
        %v2085 = vsel %vm2075, %v2047, %v1346
        %v2086 = vsel %vm2075, %v2048, %v1348
        %v2087 = vsel %vm2075, %v2049, %v1350
        %v2088 = vsel %vm2075, %v2050, %v1352
        %v2089 = vsel %vm2075, %v2051, %v1354
        %v2090 = vsel %vm2075, %v2052, %v1356
        %v2091 = vsel %vm2075, %v2053, %v1358
        %v2092 = vsel %vm2075, %v2054, %v1360
        %v2093 = vsel %vm2075, %v2055, %v1362
        %v2094 = vsel %vm2075, %v2056, %v1364
        %v2095 = vsel %vm2075, %v2057, %v1366
        %v2096 = vsel %vm2075, %v2058, %v1368
        %v2097 = vsel %vm2075, %v2059, %v1370
        %v2098 = vsel %vm2075, %v2060, %v1372
        %v2099 = vsel %vm2075, %v2061, %v1374
        %v2100 = vsel %vm2075, %v2062, %v1376
        %v2101 = vsel %vm2075, %v2063, %v1378
        %v2102 = vsel %vm2075, %v2064, %v1380
        %v2103 = vsel %vm2075, %v2065, %v1382
        %v2104 = vsel %vm2075, %v2066, %v1384
        %v2105 = vsel %vm2075, %v2067, %v1386
        %v2106 = vsel %vm2075, %v2068, %v1388
        %v2107 = vsel %vm2075, %v2069, %v1390
        %v2108 = vsel %vm2075, %v2070, %v1392
        %v2109 = vsel %vm2075, %v2071, %v1394
        %v2110 = vsel %vm2075, %v2072, %v1396
        %v2111 = vsel %vm2075, %v2073, %v1398
        %v2112 = vsel %vm2075, %v2074, %v1400
        %vm2113 = vcmask 392192
        %v2114 = vsel %vm2113, %v2076, %v1515
        %v2115 = vsel %vm2113, %v2077, %v1517
        %v2116 = vsel %vm2113, %v2078, %v1519
        %v2117 = vsel %vm2113, %v2079, %v1521
        %v2118 = vsel %vm2113, %v2080, %v1523
        %v2119 = vsel %vm2113, %v2081, %v1525
        %v2120 = vsel %vm2113, %v2082, %v1527
        %v2121 = vsel %vm2113, %v2083, %v1529
        %v2122 = vsel %vm2113, %v2084, %v1531
        %v2123 = vsel %vm2113, %v2085, %v1533
        %v2124 = vsel %vm2113, %v2086, %v1535
        %v2125 = vsel %vm2113, %v2087, %v1537
        %v2126 = vsel %vm2113, %v2088, %v1539
        %v2127 = vsel %vm2113, %v2089, %v1541
        %v2128 = vsel %vm2113, %v2090, %v1543
        %v2129 = vsel %vm2113, %v2091, %v1545
        %v2130 = vsel %vm2113, %v2092, %v1547
        %v2131 = vsel %vm2113, %v2093, %v1549
        %v2132 = vsel %vm2113, %v2094, %v1551
        %v2133 = vsel %vm2113, %v2095, %v1553
        %v2134 = vsel %vm2113, %v2096, %v1555
        %v2135 = vsel %vm2113, %v2097, %v1557
        %v2136 = vsel %vm2113, %v2098, %v1559
        %v2137 = vsel %vm2113, %v2099, %v1561
        %v2138 = vsel %vm2113, %v2100, %v1563
        %v2139 = vsel %vm2113, %v2101, %v1565
        %v2140 = vsel %vm2113, %v2102, %v1567
        %v2141 = vsel %vm2113, %v2103, %v1569
        %v2142 = vsel %vm2113, %v2104, %v1571
        %v2143 = vsel %vm2113, %v2105, %v1573
        %v2144 = vsel %vm2113, %v2106, %v1575
        %v2145 = vsel %vm2113, %v2107, %v1577
        %v2146 = vsel %vm2113, %v2108, %v1579
        %v2147 = vsel %vm2113, %v2109, %v1581
        %v2148 = vsel %vm2113, %v2110, %v1583
        %v2149 = vsel %vm2113, %v2111, %v1585
        %v2150 = vsel %vm2113, %v2112, %v1587
        %vm2151 = vcmask 457728
        %v2152 = vsel %vm2151, %v2114, %v1702
        %v2153 = vsel %vm2151, %v2115, %v1704
        %v2154 = vsel %vm2151, %v2116, %v1706
        %v2155 = vsel %vm2151, %v2117, %v1708
        %v2156 = vsel %vm2151, %v2118, %v1710
        %v2157 = vsel %vm2151, %v2119, %v1712
        %v2158 = vsel %vm2151, %v2120, %v1714
        %v2159 = vsel %vm2151, %v2121, %v1716
        %v2160 = vsel %vm2151, %v2122, %v1718
        %v2161 = vsel %vm2151, %v2123, %v1720
        %v2162 = vsel %vm2151, %v2124, %v1722
        %v2163 = vsel %vm2151, %v2125, %v1724
        %v2164 = vsel %vm2151, %v2126, %v1726
        %v2165 = vsel %vm2151, %v2127, %v1728
        %v2166 = vsel %vm2151, %v2128, %v1730
        %v2167 = vsel %vm2151, %v2129, %v1732
        %v2168 = vsel %vm2151, %v2130, %v1734
        %v2169 = vsel %vm2151, %v2131, %v1736
        %v2170 = vsel %vm2151, %v2132, %v1738
        %v2171 = vsel %vm2151, %v2133, %v1740
        %v2172 = vsel %vm2151, %v2134, %v1742
        %v2173 = vsel %vm2151, %v2135, %v1744
        %v2174 = vsel %vm2151, %v2136, %v1746
        %v2175 = vsel %vm2151, %v2137, %v1748
        %v2176 = vsel %vm2151, %v2138, %v1750
        %v2177 = vsel %vm2151, %v2139, %v1752
        %v2178 = vsel %vm2151, %v2140, %v1754
        %v2179 = vsel %vm2151, %v2141, %v1756
        %v2180 = vsel %vm2151, %v2142, %v1758
        %v2181 = vsel %vm2151, %v2143, %v1760
        %v2182 = vsel %vm2151, %v2144, %v1762
        %v2183 = vsel %vm2151, %v2145, %v1764
        %v2184 = vsel %vm2151, %v2146, %v1766
        %v2185 = vsel %vm2151, %v2147, %v1768
        %v2186 = vsel %vm2151, %v2148, %v1770
        %v2187 = vsel %vm2151, %v2149, %v1772
        %v2188 = vsel %vm2151, %v2150, %v1774
        %vm2189 = vcmask 523264
        %v2190 = vsel %vm2189, %v2152, %v1813
        %v2191 = vsel %vm2189, %v2153, %v1815
        %v2192 = vsel %vm2189, %v2154, %v1817
        %v2193 = vsel %vm2189, %v2155, %v1819
        %v2194 = vsel %vm2189, %v2156, %v1821
        %v2195 = vsel %vm2189, %v2157, %v1823
        %v2196 = vsel %vm2189, %v2158, %v1825
        %v2197 = vsel %vm2189, %v2159, %v1827
        %v2198 = vsel %vm2189, %v2160, %v1829
        %v2199 = vsel %vm2189, %v2161, %v1831
        %v2200 = vsel %vm2189, %v2162, %v1833
        %v2201 = vsel %vm2189, %v2163, %v1835
        %v2202 = vsel %vm2189, %v2164, %v1837
        %v2203 = vsel %vm2189, %v2165, %v1839
        %v2204 = vsel %vm2189, %v2166, %v1841
        %v2205 = vsel %vm2189, %v2167, %v1843
        %v2206 = vsel %vm2189, %v2168, %v1845
        %v2207 = vsel %vm2189, %v2169, %v1847
        %v2208 = vsel %vm2189, %v2170, %v1849
        %v2209 = vsel %vm2189, %v2171, %v1851
        %v2210 = vsel %vm2189, %v2172, %v1853
        %v2211 = vsel %vm2189, %v2173, %v1855
        %v2212 = vsel %vm2189, %v2174, %v1857
        %v2213 = vsel %vm2189, %v2175, %v1859
        %v2214 = vsel %vm2189, %v2176, %v1861
        %v2215 = vsel %vm2189, %v2177, %v1863
        %v2216 = vsel %vm2189, %v2178, %v1865
        %v2217 = vsel %vm2189, %v2179, %v1867
        %v2218 = vsel %vm2189, %v2180, %v1869
        %v2219 = vsel %vm2189, %v2181, %v1871
        %v2220 = vsel %vm2189, %v2182, %v1873
        %v2221 = vsel %vm2189, %v2183, %v1875
        %v2222 = vsel %vm2189, %v2184, %v1877
        %v2223 = vsel %vm2189, %v2185, %v1879
        %v2224 = vsel %vm2189, %v2186, %v1881
        %v2225 = vsel %vm2189, %v2187, %v1883
        %v2226 = vsel %vm2189, %v2188, %v1885
        %v2227 = vld [vmem:[%s1] sm:$0xff]
        %v2228 = vld [vmem:[%s1 + $0x8] sm:$0xff]
        %v2229 = vld [vmem:[%s1 + $0x10] sm:$0xff]
        %v2230 = vld [vmem:[%s1 + $0x18] sm:$0xff]
        %v2231 = vld [vmem:[%s1 + $0x20] sm:$0xff]
        %v2232 = vld [vmem:[%s1 + $0x28] sm:$0xff]
        %v2233 = vld [vmem:[%s1 + $0x30] sm:$0xff]
        %v2234 = vld [vmem:[%s1 + $0x38] sm:$0xff]
        %v2235 = vld [vmem:[%s1 + $0x40] sm:$0xff]
        %v2236 = vld [vmem:[%s2] sm:$0x1]
        %v2238 = vlaneseq
        %v2239 = vshrl.u32 %v2238, 7
        %v2240 = vsub.s32 0, %v2239
        %v2241 = vrot.slane %v2236, %v2240
        %vm2243 = vcmask 588800
        %v2245 = vsel %vm2243, %v2190, 0
        %v2248 = vsel %vm2243, %v2191, 0
        %v2251 = vsel %vm2243, %v2192, 0
        %v2254 = vsel %vm2243, %v2193, 0
        %v2257 = vsel %vm2243, %v2194, 0
        %v2260 = vsel %vm2243, %v2195, 0
        %v2263 = vsel %vm2243, %v2196, 0
        %v2266 = vsel %vm2243, %v2197, 0
        %v2269 = vsel %vm2243, %v2198, 0
        %v2272 = vsel %vm2243, %v2199, 0
        %v2275 = vsel %vm2243, %v2200, 0
        %v2278 = vsel %vm2243, %v2201, 0
        %v2281 = vsel %vm2243, %v2202, 0
        %v2284 = vsel %vm2243, %v2203, 0
        %v2287 = vsel %vm2243, %v2204, 0
        %v2290 = vsel %vm2243, %v2205, 0
        %v2293 = vsel %vm2243, %v2206, 0
        %v2296 = vsel %vm2243, %v2207, 0
        %v2299 = vsel %vm2243, %v2208, 0
        %v2302 = vsel %vm2243, %v2209, 0
        %v2305 = vsel %vm2243, %v2210, 0
        %v2308 = vsel %vm2243, %v2211, 0
        %v2311 = vsel %vm2243, %v2212, 0
        %v2314 = vsel %vm2243, %v2213, 0
        %v2317 = vsel %vm2243, %v2214, 0
        %v2320 = vsel %vm2243, %v2215, 0
        %v2323 = vsel %vm2243, %v2216, 0
        %v2326 = vsel %vm2243, %v2217, 0
        %v2329 = vsel %vm2243, %v2218, 0
        %v2332 = vsel %vm2243, %v2219, 0
        %v2335 = vsel %vm2243, %v2220, 0
        %v2338 = vsel %vm2243, %v2221, 0
        %v2341 = vsel %vm2243, %v2222, 0
        %v2344 = vsel %vm2243, %v2223, 0
        %v2347 = vsel %vm2243, %v2224, 0
        %v2350 = vsel %vm2243, %v2225, 0
        %v2353 = vsel %vm2243, %v2226, 0
        %2355 = vmatprep.subr.mxu0 0.0
        %2356 = vmatpush1.msra.mxu0 %v2227
        %2357 = vmatprep.subr.mxu0 0.0
        %2358 = vmatpush1.msra.mxu0 %v2228
        %2359 = vmatprep.subr.mxu0 0.0
        %2360 = vmatpush1.msra.mxu0 %v2229
        %2361 = vmatprep.subr.mxu0 0.0
        %2362 = vmatpush1.msra.mxu0 %v2230
        %2363 = vmatprep.subr.mxu0 0.0
        %2364 = vmatpush1.msra.mxu0 %v2231
        %2365 = vmatprep.subr.mxu0 0.0
        %2366 = vmatpush1.msra.mxu0 %v2232
        %2367 = vmatprep.subr.mxu0 0.0
        %2368 = vmatpush1.msra.mxu0 %v2233
        %2369 = vmatprep.subr.mxu0 0.0
        %2370 = vmatpush1.msra.mxu0 %v2234
        %2371 = vmatprep.subr.mxu0 0.0
        %2372 = vmatpush1.msra.mxu0 %v2235
        %2373 = vmatprep.subr.mxu0 0.0
        %2374 = vmatpush1.msra.mxu0 0.0
        %2375 = vmatprep.subr.mxu0 0.0
        %2376 = vmatpush1.msra.mxu0 0.0
        %2377 = vmatprep.subr.mxu0 0.0
        %2378 = vmatpush1.msra.mxu0 0.0
        %2379 = vmatprep.subr.mxu0 0.0
        %2380 = vmatpush1.msra.mxu0 0.0
        %2381 = vmatprep.subr.mxu0 0.0
        %2382 = vmatpush1.msra.mxu0 0.0
        %2383 = vmatprep.subr.mxu0 0.0
        %2384 = vmatpush1.msra.mxu0 0.0
        %2385 = vmatprep.subr.mxu0 0.0
        %2386 = vmatpush1.msra.mxu0 0.0
        %2387 = vmatprep.subr.mxu0 0.0
        %2388 = vmatpush1.msra.mxu0 0.0
        %2389 = vmatprep.subr.mxu0 0.0
        %2390 = vmatpush1.msra.mxu0 0.0
        %2391 = vmatprep.subr.mxu0 0.0
        %2392 = vmatpush1.msra.mxu0 0.0
        %2393 = vmatprep.subr.mxu0 0.0
        %2394 = vmatpush1.msra.mxu0 0.0
        %2395 = vmatprep.subr.mxu0 0.0
        %2396 = vmatpush1.msra.mxu0 0.0
        %2397 = vmatprep.subr.mxu0 0.0
        %2398 = vmatpush1.msra.mxu0 0.0
        %2399 = vmatprep.subr.mxu0 0.0
        %2400 = vmatpush1.msra.mxu0 0.0
        %2401 = vmatprep.subr.mxu0 0.0
        %2402 = vmatpush1.msra.mxu0 0.0
        %2403 = vmatprep.subr.mxu0 0.0
        %2404 = vmatpush1.msra.mxu0 0.0
        %2405 = vmatprep.subr.mxu0 0.0
        %2406 = vmatpush1.msra.mxu0 0.0
        %2407 = vmatprep.subr.mxu0 0.0
        %2408 = vmatpush1.msra.mxu0 0.0
        %2409 = vmatprep.subr.mxu0 0.0
        %2410 = vmatpush1.msra.mxu0 0.0
        %2411 = vmatprep.subr.mxu0 0.0
        %2412 = vmatpush1.msra.mxu0 0.0
        %2413 = vmatprep.subr.mxu0 0.0
        %2414 = vmatpush1.msra.mxu0 0.0
        %2415 = vmatprep.subr.mxu0 0.0
        %2416 = vmatpush1.msra.mxu0 0.0
        %2417 = vmatprep.subr.mxu0 0.0
        %2418 = vmatpush1.msra.mxu0 0.0
        %2419 = vmatprep.mubr.f32.mxu0 0.0
        %2420 = vmatmul.mubr.f32.gmra.mrb[0].mxu0 %v2245
        %v2421 = vpop.f32.mrb[0].mxu0
        %v2422 = vadd.f32 %v2241, %v2421
        %v2423 = vpop.f32.mrb[0].mxu0
        %2424 = vmatprep.mubr.f32.mxu0 0.0
        %2425 = vmatmul.mubr.f32.gmra.mrb[0].mxu0 %v2248
        %v2426 = vpop.f32.mrb[0].mxu0
        %v2427 = vadd.f32 %v2241, %v2426
        %v2428 = vpop.f32.mrb[0].mxu0
        %2429 = vmatprep.mubr.f32.mxu0 0.0
        %2430 = vmatmul.mubr.f32.gmra.mrb[0].mxu0 %v2251
        %v2431 = vpop.f32.mrb[0].mxu0
        %v2432 = vadd.f32 %v2241, %v2431
        %v2433 = vpop.f32.mrb[0].mxu0
        %2434 = vmatprep.mubr.f32.mxu0 0.0
        %2435 = vmatmul.mubr.f32.gmra.mrb[0].mxu0 %v2254
        %v2436 = vpop.f32.mrb[0].mxu0
        %v2437 = vadd.f32 %v2241, %v2436
        %v2438 = vpop.f32.mrb[0].mxu0
        %2439 = vmatprep.mubr.f32.mxu0 0.0
        %2440 = vmatmul.mubr.f32.gmra.mrb[0].mxu0 %v2257
        %v2441 = vpop.f32.mrb[0].mxu0
        %v2442 = vadd.f32 %v2241, %v2441
        %v2443 = vpop.f32.mrb[0].mxu0
        %2444 = vmatprep.mubr.f32.mxu0 0.0
        %2445 = vmatmul.mubr.f32.gmra.mrb[0].mxu0 %v2260
        %v2446 = vpop.f32.mrb[0].mxu0
        %v2447 = vadd.f32 %v2241, %v2446
        %v2448 = vpop.f32.mrb[0].mxu0
        %2449 = vmatprep.mubr.f32.mxu0 0.0
        %2450 = vmatmul.mubr.f32.gmra.mrb[0].mxu0 %v2263
        %v2451 = vpop.f32.mrb[0].mxu0
        %v2452 = vadd.f32 %v2241, %v2451
        %v2453 = vpop.f32.mrb[0].mxu0
        %2454 = vmatprep.mubr.f32.mxu0 0.0
        %2455 = vmatmul.mubr.f32.gmra.mrb[0].mxu0 %v2266
        %v2456 = vpop.f32.mrb[0].mxu0
        %v2457 = vadd.f32 %v2241, %v2456
        %v2458 = vpop.f32.mrb[0].mxu0
        %2459 = vmatprep.mubr.f32.mxu0 0.0
        %2460 = vmatmul.mubr.f32.gmra.mrb[0].mxu0 %v2269
        %v2461 = vpop.f32.mrb[0].mxu0
        %v2462 = vadd.f32 %v2241, %v2461
        %v2463 = vpop.f32.mrb[0].mxu0
        %2464 = vmatprep.mubr.f32.mxu0 0.0
        %2465 = vmatmul.mubr.f32.gmra.mrb[0].mxu0 %v2272
        %v2466 = vpop.f32.mrb[0].mxu0
        %v2467 = vadd.f32 %v2241, %v2466
        %v2468 = vpop.f32.mrb[0].mxu0
        %2469 = vmatprep.mubr.f32.mxu0 0.0
        %2470 = vmatmul.mubr.f32.gmra.mrb[0].mxu0 %v2275
        %v2471 = vpop.f32.mrb[0].mxu0
        %v2472 = vadd.f32 %v2241, %v2471
        %v2473 = vpop.f32.mrb[0].mxu0
        %2474 = vmatprep.mubr.f32.mxu0 0.0
        %2475 = vmatmul.mubr.f32.gmra.mrb[0].mxu0 %v2278
        %v2476 = vpop.f32.mrb[0].mxu0
        %v2477 = vadd.f32 %v2241, %v2476
        %v2478 = vpop.f32.mrb[0].mxu0
        %2479 = vmatprep.mubr.f32.mxu0 0.0
        %2480 = vmatmul.mubr.f32.gmra.mrb[0].mxu0 %v2281
        %v2481 = vpop.f32.mrb[0].mxu0
        %v2482 = vadd.f32 %v2241, %v2481
        %v2483 = vpop.f32.mrb[0].mxu0
        %2484 = vmatprep.mubr.f32.mxu0 0.0
        %2485 = vmatmul.mubr.f32.gmra.mrb[0].mxu0 %v2284
        %v2486 = vpop.f32.mrb[0].mxu0
        %v2487 = vadd.f32 %v2241, %v2486
        %v2488 = vpop.f32.mrb[0].mxu0
        %2489 = vmatprep.mubr.f32.mxu0 0.0
        %2490 = vmatmul.mubr.f32.gmra.mrb[0].mxu0 %v2287
        %v2491 = vpop.f32.mrb[0].mxu0
        %v2492 = vadd.f32 %v2241, %v2491
        %v2493 = vpop.f32.mrb[0].mxu0
        %2494 = vmatprep.mubr.f32.mxu0 0.0
        %2495 = vmatmul.mubr.f32.gmra.mrb[0].mxu0 %v2290
        %v2496 = vpop.f32.mrb[0].mxu0
        %v2497 = vadd.f32 %v2241, %v2496
        %v2498 = vpop.f32.mrb[0].mxu0
        %2499 = vmatprep.mubr.f32.mxu0 0.0
        %2500 = vmatmul.mubr.f32.gmra.mrb[0].mxu0 %v2293
        %v2501 = vpop.f32.mrb[0].mxu0
        %v2502 = vadd.f32 %v2241, %v2501
        %v2503 = vpop.f32.mrb[0].mxu0
        %2504 = vmatprep.mubr.f32.mxu0 0.0
        %2505 = vmatmul.mubr.f32.gmra.mrb[0].mxu0 %v2296
        %v2506 = vpop.f32.mrb[0].mxu0
        %v2507 = vadd.f32 %v2241, %v2506
        %v2508 = vpop.f32.mrb[0].mxu0
        %2509 = vmatprep.mubr.f32.mxu0 0.0
        %2510 = vmatmul.mubr.f32.gmra.mrb[0].mxu0 %v2299
        %v2511 = vpop.f32.mrb[0].mxu0
        %v2512 = vadd.f32 %v2241, %v2511
        %v2513 = vpop.f32.mrb[0].mxu0
        %2514 = vmatprep.mubr.f32.mxu0 0.0
        %2515 = vmatmul.mubr.f32.gmra.mrb[0].mxu0 %v2302
        %v2516 = vpop.f32.mrb[0].mxu0
        %v2517 = vadd.f32 %v2241, %v2516
        %v2518 = vpop.f32.mrb[0].mxu0
        %2519 = vmatprep.mubr.f32.mxu0 0.0
        %2520 = vmatmul.mubr.f32.gmra.mrb[0].mxu0 %v2305
        %v2521 = vpop.f32.mrb[0].mxu0
        %v2522 = vadd.f32 %v2241, %v2521
        %v2523 = vpop.f32.mrb[0].mxu0
        %2524 = vmatprep.mubr.f32.mxu0 0.0
        %2525 = vmatmul.mubr.f32.gmra.mrb[0].mxu0 %v2308
        %v2526 = vpop.f32.mrb[0].mxu0
        %v2527 = vadd.f32 %v2241, %v2526
        %v2528 = vpop.f32.mrb[0].mxu0
        %2529 = vmatprep.mubr.f32.mxu0 0.0
        %2530 = vmatmul.mubr.f32.gmra.mrb[0].mxu0 %v2311
        %v2531 = vpop.f32.mrb[0].mxu0
        %v2532 = vadd.f32 %v2241, %v2531
        %v2533 = vpop.f32.mrb[0].mxu0
        %2534 = vmatprep.mubr.f32.mxu0 0.0
        %2535 = vmatmul.mubr.f32.gmra.mrb[0].mxu0 %v2314
        %v2536 = vpop.f32.mrb[0].mxu0
        %v2537 = vadd.f32 %v2241, %v2536
        %v2538 = vpop.f32.mrb[0].mxu0
        %2539 = vmatprep.mubr.f32.mxu0 0.0
        %2540 = vmatmul.mubr.f32.gmra.mrb[0].mxu0 %v2317
        %v2541 = vpop.f32.mrb[0].mxu0
        %v2542 = vadd.f32 %v2241, %v2541
        %v2543 = vpop.f32.mrb[0].mxu0
        %2544 = vmatprep.mubr.f32.mxu0 0.0
        %2545 = vmatmul.mubr.f32.gmra.mrb[0].mxu0 %v2320
        %v2546 = vpop.f32.mrb[0].mxu0
        %v2547 = vadd.f32 %v2241, %v2546
        %v2548 = vpop.f32.mrb[0].mxu0
        %2549 = vmatprep.mubr.f32.mxu0 0.0
        %2550 = vmatmul.mubr.f32.gmra.mrb[0].mxu0 %v2323
        %v2551 = vpop.f32.mrb[0].mxu0
        %v2552 = vadd.f32 %v2241, %v2551
        %v2553 = vpop.f32.mrb[0].mxu0
        %2554 = vmatprep.mubr.f32.mxu0 0.0
        %2555 = vmatmul.mubr.f32.gmra.mrb[0].mxu0 %v2326
        %v2556 = vpop.f32.mrb[0].mxu0
        %v2557 = vadd.f32 %v2241, %v2556
        %v2558 = vpop.f32.mrb[0].mxu0
        %2559 = vmatprep.mubr.f32.mxu0 0.0
        %2560 = vmatmul.mubr.f32.gmra.mrb[0].mxu0 %v2329
        %v2561 = vpop.f32.mrb[0].mxu0
        %v2562 = vadd.f32 %v2241, %v2561
        %v2563 = vpop.f32.mrb[0].mxu0
        %2564 = vmatprep.mubr.f32.mxu0 0.0
        %2565 = vmatmul.mubr.f32.gmra.mrb[0].mxu0 %v2332
        %v2566 = vpop.f32.mrb[0].mxu0
        %v2567 = vadd.f32 %v2241, %v2566
        %v2568 = vpop.f32.mrb[0].mxu0
        %2569 = vmatprep.mubr.f32.mxu0 0.0
        %2570 = vmatmul.mubr.f32.gmra.mrb[0].mxu0 %v2335
        %v2571 = vpop.f32.mrb[0].mxu0
        %v2572 = vadd.f32 %v2241, %v2571
        %v2573 = vpop.f32.mrb[0].mxu0
        %2574 = vmatprep.mubr.f32.mxu0 0.0
        %2575 = vmatmul.mubr.f32.gmra.mrb[0].mxu0 %v2338
        %v2576 = vpop.f32.mrb[0].mxu0
        %v2577 = vadd.f32 %v2241, %v2576
        %v2578 = vpop.f32.mrb[0].mxu0
        %2579 = vmatprep.mubr.f32.mxu0 0.0
        %2580 = vmatmul.mubr.f32.gmra.mrb[0].mxu0 %v2341
        %v2581 = vpop.f32.mrb[0].mxu0
        %v2582 = vadd.f32 %v2241, %v2581
        %v2583 = vpop.f32.mrb[0].mxu0
        %2584 = vmatprep.mubr.f32.mxu0 0.0
        %2585 = vmatmul.mubr.f32.gmra.mrb[0].mxu0 %v2344
        %v2586 = vpop.f32.mrb[0].mxu0
        %v2587 = vadd.f32 %v2241, %v2586
        %v2588 = vpop.f32.mrb[0].mxu0
        %2589 = vmatprep.mubr.f32.mxu0 0.0
        %2590 = vmatmul.mubr.f32.gmra.mrb[0].mxu0 %v2347
        %v2591 = vpop.f32.mrb[0].mxu0
        %v2592 = vadd.f32 %v2241, %v2591
        %v2593 = vpop.f32.mrb[0].mxu0
        %2594 = vmatprep.mubr.f32.mxu0 0.0
        %2595 = vmatmul.mubr.f32.gmra.mrb[0].mxu0 %v2350
        %v2596 = vpop.f32.mrb[0].mxu0
        %v2597 = vadd.f32 %v2241, %v2596
        %v2598 = vpop.f32.mrb[0].mxu0
        %2599 = vmatprep.mubr.f32.mxu0 0.0
        %2600 = vmatmul.mubr.f32.gmra.mrb[0].mxu0 %v2353
        %v2601 = vpop.f32.mrb[0].mxu0
        %v2602 = vadd.f32 %v2241, %v2601
        %v2603 = vpop.f32.mrb[0].mxu0
        %2604 = vdwg.mxu0
        %v2605 = vld [vmem:[%s3] sm:$0xff]
        %v2606 = vld [vmem:[%s3 + $0x8] sm:$0xff]
        %v2607 = vld [vmem:[%s3 + $0x10] sm:$0xff]
        %v2608 = vld [vmem:[%s3 + $0x18] sm:$0xff]
        %v2609 = vld [vmem:[%s3 + $0x20] sm:$0xff]
        %v2610 = vld [vmem:[%s3 + $0x28] sm:$0xff]
        %v2611 = vld [vmem:[%s3 + $0x30] sm:$0xff]
        %v2612 = vld [vmem:[%s3 + $0x38] sm:$0xff]
        %v2613 = vld [vmem:[%s3 + $0x40] sm:$0xff]
        %v2614 = vld [vmem:[%s3 + $0x48] sm:$0xff]
        %v2615 = vld [vmem:[%s3 + $0x50] sm:$0xff]
        %v2616 = vld [vmem:[%s3 + $0x58] sm:$0xff]
        %v2617 = vld [vmem:[%s3 + $0x60] sm:$0xff]
        %v2618 = vld [vmem:[%s3 + $0x68] sm:$0xff]
        %v2619 = vld [vmem:[%s3 + $0x70] sm:$0xff]
        %v2620 = vld [vmem:[%s3 + $0x78] sm:$0xff]
        %v2621 = vld [vmem:[%s3 + $0x80] sm:$0xff]
        %v2622 = vld [vmem:[%s3 + $0x88] sm:$0xff]
        %v2623 = vld [vmem:[%s3 + $0x90] sm:$0xff]
        %v2624 = vld [vmem:[%s3 + $0x98] sm:$0xff]
        %v2625 = vld [vmem:[%s3 + $0xa0] sm:$0xff]
        %v2626 = vld [vmem:[%s3 + $0xa8] sm:$0xff]
        %v2627 = vld [vmem:[%s3 + $0xb0] sm:$0xff]
        %v2628 = vld [vmem:[%s3 + $0xb8] sm:$0xff]
        %v2629 = vld [vmem:[%s3 + $0xc0] sm:$0xff]
        %v2630 = vld [vmem:[%s3 + $0xc8] sm:$0xff]
        %v2631 = vld [vmem:[%s3 + $0xd0] sm:$0xff]
        %v2632 = vld [vmem:[%s3 + $0xd8] sm:$0xff]
        %v2633 = vld [vmem:[%s3 + $0xe0] sm:$0xff]
        %v2634 = vld [vmem:[%s3 + $0xe8] sm:$0xff]
        %v2635 = vld [vmem:[%s3 + $0xf0] sm:$0xff]
        %v2636 = vld [vmem:[%s3 + $0xf8] sm:$0xff]
        %v2637 = vld [vmem:[%s3 + $0x100] sm:$0xff]
        %v2638 = vld [vmem:[%s3 + $0x108] sm:$0xff]
        %v2639 = vld [vmem:[%s3 + $0x110] sm:$0xff]
        %v2640 = vld [vmem:[%s3 + $0x118] sm:$0xff]
        %v2641 = vld [vmem:[%s3 + $0x120] sm:$0x1]
        %v2642 = vld [vmem:[%s3 + $0x128] sm:$0x1]
        %v2643 = vld [vmem:[%s3 + $0x130] sm:$0x1]
        %vm2644 = vcmask 293888
        %v2646 = vsel %vm2644, %v2607, 0
        %v2649 = vsel %vm2644, %v2610, 0
        %v2652 = vsel %vm2644, %v2613, 0
        %v2655 = vsel %vm2644, %v2616, 0
        %v2658 = vsel %vm2644, %v2619, 0
        %v2661 = vsel %vm2644, %v2622, 0
        %v2664 = vsel %vm2644, %v2625, 0
        %v2667 = vsel %vm2644, %v2628, 0
        %v2670 = vsel %vm2644, %v2631, 0
        %v2673 = vsel %vm2644, %v2634, 0
        %v2676 = vsel %vm2644, %v2637, 0
        %v2679 = vsel %vm2644, %v2640, 0
        %v2682 = vsel %vm2644, %v2643, 0
        %v2685 = vsel %vm1065, %v2602, 0
        %2687 = vmatprep.subr.mxu0 0.0
        %2688 = vmatpush1.msra.mxu0 %v2422
        %2689 = vmatprep.subr.mxu0 0.0
        %2690 = vmatpush1.msra.mxu0 %v2427
        %2691 = vmatprep.subr.mxu0 0.0
        %2692 = vmatpush1.msra.mxu0 %v2432
        %2693 = vmatprep.subr.mxu0 0.0
        %2694 = vmatpush1.msra.mxu0 %v2437
        %2695 = vmatprep.subr.mxu0 0.0
        %2696 = vmatpush1.msra.mxu0 %v2442
        %2697 = vmatprep.subr.mxu0 0.0
        %2698 = vmatpush1.msra.mxu0 %v2447
        %2699 = vmatprep.subr.mxu0 0.0
        %2700 = vmatpush1.msra.mxu0 %v2452
        %2701 = vmatprep.subr.mxu0 0.0
        %2702 = vmatpush1.msra.mxu0 %v2457
        %2703 = vmatprep.subr.mxu0 0.0
        %2704 = vmatpush1.msra.mxu0 %v2462
        %2705 = vmatprep.subr.mxu0 0.0
        %2706 = vmatpush1.msra.mxu0 %v2467
        %2707 = vmatprep.subr.mxu0 0.0
        %2708 = vmatpush1.msra.mxu0 %v2472
        %2709 = vmatprep.subr.mxu0 0.0
        %2710 = vmatpush1.msra.mxu0 %v2477
        %2711 = vmatprep.subr.mxu0 0.0
        %2712 = vmatpush1.msra.mxu0 %v2482
        %2713 = vmatprep.subr.mxu0 0.0
        %2714 = vmatpush1.msra.mxu0 %v2487
        %2715 = vmatprep.subr.mxu0 0.0
        %2716 = vmatpush1.msra.mxu0 %v2492
        %2717 = vmatprep.subr.mxu0 0.0
        %2718 = vmatpush1.msra.mxu0 %v2497
        %2719 = vmatprep.subr.mxu0 0.0
        %2720 = vmatpush1.msra.mxu0 %v2502
        %2721 = vmatprep.subr.mxu0 0.0
        %2722 = vmatpush1.msra.mxu0 %v2507
        %2723 = vmatprep.subr.mxu0 0.0
        %2724 = vmatpush1.msra.mxu0 %v2512
        %2725 = vmatprep.subr.mxu0 0.0
        %2726 = vmatpush1.msra.mxu0 %v2517
        %2727 = vmatprep.subr.mxu0 0.0
        %2728 = vmatpush1.msra.mxu0 %v2522
        %2729 = vmatprep.subr.mxu0 0.0
        %2730 = vmatpush1.msra.mxu0 %v2527
        %2731 = vmatprep.subr.mxu0 0.0
        %2732 = vmatpush1.msra.mxu0 %v2532
        %2733 = vmatprep.subr.mxu0 0.0
        %2734 = vmatpush1.msra.mxu0 %v2537
        %2735 = vmatprep.subr.mxu0 0.0
        %2736 = vmatpush1.msra.mxu0 %v2542
        %2737 = vmatprep.subr.mxu0 0.0
        %2738 = vmatpush1.msra.mxu0 %v2547
        %2739 = vmatprep.subr.mxu0 0.0
        %2740 = vmatpush1.msra.mxu0 %v2552
        %2741 = vmatprep.subr.mxu0 0.0
        %2742 = vmatpush1.msra.mxu0 %v2557
        %2743 = vmatprep.subr.mxu0 0.0
        %2744 = vmatpush1.msra.mxu0 %v2562
        %2745 = vmatprep.subr.mxu0 0.0
        %2746 = vmatpush1.msra.mxu0 %v2567
        %2747 = vmatprep.subr.mxu0 0.0
        %2748 = vmatpush1.msra.mxu0 %v2572
        %2749 = vmatprep.subr.mxu0 0.0
        %2750 = vmatpush1.msra.mxu0 %v2577
        %2751 = vmatprep.mubr.f32.mxu0 %v2606
        %2752 = vmatmul.mubr.f32.gmra.mrb[0].mxu0 %v2605
        %v2753 = vpop.f32.mrb[0].mxu0
        %v2754 = vadd.f32 0.0, %v2753
        %v2755 = vpop.f32.mrb[0].mxu0
        %2756 = vmatprep.mubr.f32.mxu0 %v2609
        %2757 = vmatmul.mubr.f32.gmra.mrb[0].mxu0 %v2608
        %v2758 = vpop.f32.mrb[0].mxu0
        %v2759 = vadd.f32 0.0, %v2758
        %v2760 = vpop.f32.mrb[0].mxu0
        %2761 = vmatprep.mubr.f32.mxu0 %v2612
        %2762 = vmatmul.mubr.f32.gmra.mrb[0].mxu0 %v2611
        %v2763 = vpop.f32.mrb[0].mxu0
        %v2764 = vadd.f32 0.0, %v2763
        %v2765 = vpop.f32.mrb[0].mxu0
        %2766 = vmatprep.mubr.f32.mxu0 %v2615
        %2767 = vmatmul.mubr.f32.gmra.mrb[0].mxu0 %v2614
        %v2768 = vpop.f32.mrb[0].mxu0
        %v2769 = vadd.f32 0.0, %v2768
        %v2770 = vpop.f32.mrb[0].mxu0
        %2771 = vmatprep.mubr.f32.mxu0 %v2618
        %2772 = vmatmul.mubr.f32.gmra.mrb[0].mxu0 %v2617
        %v2773 = vpop.f32.mrb[0].mxu0
        %v2774 = vadd.f32 0.0, %v2773
        %v2775 = vpop.f32.mrb[0].mxu0
        %2776 = vmatprep.mubr.f32.mxu0 %v2621
        %2777 = vmatmul.mubr.f32.gmra.mrb[0].mxu0 %v2620
        %v2778 = vpop.f32.mrb[0].mxu0
        %v2779 = vadd.f32 0.0, %v2778
        %v2780 = vpop.f32.mrb[0].mxu0
        %2781 = vmatprep.mubr.f32.mxu0 %v2624
        %2782 = vmatmul.mubr.f32.gmra.mrb[0].mxu0 %v2623
        %v2783 = vpop.f32.mrb[0].mxu0
        %v2784 = vadd.f32 0.0, %v2783
        %v2785 = vpop.f32.mrb[0].mxu0
        %2786 = vmatprep.mubr.f32.mxu0 %v2627
        %2787 = vmatmul.mubr.f32.gmra.mrb[0].mxu0 %v2626
        %v2788 = vpop.f32.mrb[0].mxu0
        %v2789 = vadd.f32 0.0, %v2788
        %v2790 = vpop.f32.mrb[0].mxu0
        %2791 = vmatprep.mubr.f32.mxu0 %v2630
        %2792 = vmatmul.mubr.f32.gmra.mrb[0].mxu0 %v2629
        %v2793 = vpop.f32.mrb[0].mxu0
        %v2794 = vadd.f32 0.0, %v2793
        %v2795 = vpop.f32.mrb[0].mxu0
        %2796 = vmatprep.mubr.f32.mxu0 %v2633
        %2797 = vmatmul.mubr.f32.gmra.mrb[0].mxu0 %v2632
        %v2798 = vpop.f32.mrb[0].mxu0
        %v2799 = vadd.f32 0.0, %v2798
        %v2800 = vpop.f32.mrb[0].mxu0
        %2801 = vmatprep.mubr.f32.mxu0 %v2636
        %2802 = vmatmul.mubr.f32.gmra.mrb[0].mxu0 %v2635
        %v2803 = vpop.f32.mrb[0].mxu0
        %v2804 = vadd.f32 0.0, %v2803
        %v2805 = vpop.f32.mrb[0].mxu0
        %2806 = vmatprep.mubr.f32.mxu0 %v2639
        %2807 = vmatmul.mubr.f32.gmra.mrb[0].mxu0 %v2638
        %v2808 = vpop.f32.mrb[0].mxu0
        %v2809 = vadd.f32 0.0, %v2808
        %v2810 = vpop.f32.mrb[0].mxu0
        %2811 = vmatprep.mubr.f32.mxu0 %v2642
        %2812 = vmatmul.mubr.f32.gmra.mrb[0].mxu0 %v2641
        %v2813 = vpop.f32.mrb[0].mxu0
        %v2814 = vadd.f32 0.0, %v2813
        %v2815 = vpop.f32.mrb[0].mxu0
        %2816 = vdwg.mxu0
        %2817 = vmatprep.subr.mxu0 0.0
        %2818 = vmatpush1.msra.mxu0 %v2582
        %2819 = vmatprep.subr.mxu0 0.0
        %2820 = vmatpush1.msra.mxu0 %v2587
        %2821 = vmatprep.subr.mxu0 0.0
        %2822 = vmatpush1.msra.mxu0 %v2592
        %2823 = vmatprep.subr.mxu0 0.0
        %2824 = vmatpush1.msra.mxu0 %v2597
        %2825 = vmatprep.subr.mxu0 0.0
        %2826 = vmatpush1.msra.mxu0 %v2685
        %2827 = vmatprep.subr.mxu0 0.0
        %2828 = vmatpush1.msra.mxu0 0.0
        %2829 = vmatprep.subr.mxu0 0.0
        %2830 = vmatpush1.msra.mxu0 0.0
        %2831 = vmatprep.subr.mxu0 0.0
        %2832 = vmatpush1.msra.mxu0 0.0
        %2833 = vmatprep.subr.mxu0 0.0
        %2834 = vmatpush1.msra.mxu0 0.0
        %2835 = vmatprep.subr.mxu0 0.0
        %2836 = vmatpush1.msra.mxu0 0.0
        %2837 = vmatprep.subr.mxu0 0.0
        %2838 = vmatpush1.msra.mxu0 0.0
        %2839 = vmatprep.subr.mxu0 0.0
        %2840 = vmatpush1.msra.mxu0 0.0
        %2841 = vmatprep.subr.mxu0 0.0
        %2842 = vmatpush1.msra.mxu0 0.0
        %2843 = vmatprep.subr.mxu0 0.0
        %2844 = vmatpush1.msra.mxu0 0.0
        %2845 = vmatprep.subr.mxu0 0.0
        %2846 = vmatpush1.msra.mxu0 0.0
        %2847 = vmatprep.subr.mxu0 0.0
        %2848 = vmatpush1.msra.mxu0 0.0
        %2849 = vmatprep.subr.mxu0 0.0
        %2850 = vmatpush1.msra.mxu0 0.0
        %2851 = vmatprep.subr.mxu0 0.0
        %2852 = vmatpush1.msra.mxu0 0.0
        %2853 = vmatprep.subr.mxu0 0.0
        %2854 = vmatpush1.msra.mxu0 0.0
        %2855 = vmatprep.subr.mxu0 0.0
        %2856 = vmatpush1.msra.mxu0 0.0
        %2857 = vmatprep.subr.mxu0 0.0
        %2858 = vmatpush1.msra.mxu0 0.0
        %2859 = vmatprep.subr.mxu0 0.0
        %2860 = vmatpush1.msra.mxu0 0.0
        %2861 = vmatprep.subr.mxu0 0.0
        %2862 = vmatpush1.msra.mxu0 0.0
        %2863 = vmatprep.subr.mxu0 0.0
        %2864 = vmatpush1.msra.mxu0 0.0
        %2865 = vmatprep.subr.mxu0 0.0
        %2866 = vmatpush1.msra.mxu0 0.0
        %2867 = vmatprep.subr.mxu0 0.0
        %2868 = vmatpush1.msra.mxu0 0.0
        %2869 = vmatprep.subr.mxu0 0.0
        %2870 = vmatpush1.msra.mxu0 0.0
        %2871 = vmatprep.subr.mxu0 0.0
        %2872 = vmatpush1.msra.mxu0 0.0
        %2873 = vmatprep.subr.mxu0 0.0
        %2874 = vmatpush1.msra.mxu0 0.0
        %2875 = vmatprep.subr.mxu0 0.0
        %2876 = vmatpush1.msra.mxu0 0.0
        %2877 = vmatprep.subr.mxu0 0.0
        %2878 = vmatpush1.msra.mxu0 0.0
        %2879 = vmatprep.subr.mxu0 0.0
        %2880 = vmatpush1.msra.mxu0 0.0
        %2881 = vmatprep.mubr.f32.mxu0 0.0
        %2882 = vmatmul.mubr.f32.gmra.mrb[0].mxu0 %v2646
        %v2883 = vpop.f32.mrb[0].mxu0
        %v2884 = vadd.f32 %v2754, %v2883
        %v2885 = vpop.f32.mrb[0].mxu0
        %2886 = vmatprep.mubr.f32.mxu0 0.0
        %2887 = vmatmul.mubr.f32.gmra.mrb[0].mxu0 %v2649
        %v2888 = vpop.f32.mrb[0].mxu0
        %v2889 = vadd.f32 %v2759, %v2888
        %v2890 = vpop.f32.mrb[0].mxu0
        %2891 = vmatprep.mubr.f32.mxu0 0.0
        %2892 = vmatmul.mubr.f32.gmra.mrb[0].mxu0 %v2652
        %v2893 = vpop.f32.mrb[0].mxu0
        %v2894 = vadd.f32 %v2764, %v2893
        %v2895 = vpop.f32.mrb[0].mxu0
        %2896 = vmatprep.mubr.f32.mxu0 0.0
        %2897 = vmatmul.mubr.f32.gmra.mrb[0].mxu0 %v2655
        %v2898 = vpop.f32.mrb[0].mxu0
        %v2899 = vadd.f32 %v2769, %v2898
        %v2900 = vpop.f32.mrb[0].mxu0
        %2901 = vmatprep.mubr.f32.mxu0 0.0
        %2902 = vmatmul.mubr.f32.gmra.mrb[0].mxu0 %v2658
        %v2903 = vpop.f32.mrb[0].mxu0
        %v2904 = vadd.f32 %v2774, %v2903
        %v2905 = vpop.f32.mrb[0].mxu0
        %2906 = vmatprep.mubr.f32.mxu0 0.0
        %2907 = vmatmul.mubr.f32.gmra.mrb[0].mxu0 %v2661
        %v2908 = vpop.f32.mrb[0].mxu0
        %v2909 = vadd.f32 %v2779, %v2908
        %v2910 = vpop.f32.mrb[0].mxu0
        %2911 = vmatprep.mubr.f32.mxu0 0.0
        %2912 = vmatmul.mubr.f32.gmra.mrb[0].mxu0 %v2664
        %v2913 = vpop.f32.mrb[0].mxu0
        %v2914 = vadd.f32 %v2784, %v2913
        %v2915 = vpop.f32.mrb[0].mxu0
        %2916 = vmatprep.mubr.f32.mxu0 0.0
        %2917 = vmatmul.mubr.f32.gmra.mrb[0].mxu0 %v2667
        %v2918 = vpop.f32.mrb[0].mxu0
        %v2919 = vadd.f32 %v2789, %v2918
        %v2920 = vpop.f32.mrb[0].mxu0
        %2921 = vmatprep.mubr.f32.mxu0 0.0
        %2922 = vmatmul.mubr.f32.gmra.mrb[0].mxu0 %v2670
        %v2923 = vpop.f32.mrb[0].mxu0
        %v2924 = vadd.f32 %v2794, %v2923
        %v2925 = vpop.f32.mrb[0].mxu0
        %2926 = vmatprep.mubr.f32.mxu0 0.0
        %2927 = vmatmul.mubr.f32.gmra.mrb[0].mxu0 %v2673
        %v2928 = vpop.f32.mrb[0].mxu0
        %v2929 = vadd.f32 %v2799, %v2928
        %v2930 = vpop.f32.mrb[0].mxu0
        %2931 = vmatprep.mubr.f32.mxu0 0.0
        %2932 = vmatmul.mubr.f32.gmra.mrb[0].mxu0 %v2676
        %v2933 = vpop.f32.mrb[0].mxu0
        %v2934 = vadd.f32 %v2804, %v2933
        %v2935 = vpop.f32.mrb[0].mxu0
        %2936 = vmatprep.mubr.f32.mxu0 0.0
        %2937 = vmatmul.mubr.f32.gmra.mrb[0].mxu0 %v2679
        %v2938 = vpop.f32.mrb[0].mxu0
        %v2939 = vadd.f32 %v2809, %v2938
        %v2940 = vpop.f32.mrb[0].mxu0
        %2941 = vmatprep.mubr.f32.mxu0 0.0
        %2942 = vmatmul.mubr.f32.gmra.mrb[0].mxu0 %v2682
        %v2943 = vpop.f32.mrb[0].mxu0
        %v2944 = vadd.f32 %v2814, %v2943
        %v2945 = vpop.f32.mrb[0].mxu0
        %2946 = vdwg.mxu0
        %v2947 = vmax.f32 %v2884, 0.0
        %v2948 = vmax.f32 %v2889, 0.0
        %v2949 = vmax.f32 %v2894, 0.0
        %v2950 = vmax.f32 %v2899, 0.0
        %v2951 = vmax.f32 %v2904, 0.0
        %v2952 = vmax.f32 %v2909, 0.0
        %v2953 = vmax.f32 %v2914, 0.0
        %v2954 = vmax.f32 %v2919, 0.0
        %v2955 = vmax.f32 %v2924, 0.0
        %v2956 = vmax.f32 %v2929, 0.0
        %v2957 = vmax.f32 %v2934, 0.0
        %v2958 = vmax.f32 %v2939, 0.0
        %v2959 = vmax.f32 %v2944, 0.0
        %v2972 = vrot.slane %v2947, 1
        %v2973 = vrot.slane %v2948, 1
        %v2974 = vsel %vm510, %v2972, %v2973
        %v2975 = vrot.slane %v2949, 1
        %v2976 = vsel %vm510, %v2973, %v2975
        %v2977 = vrot.slane %v2950, 1
        %v2978 = vsel %vm510, %v2975, %v2977
        %v2979 = vrot.slane %v2951, 1
        %v2980 = vsel %vm510, %v2977, %v2979
        %v2981 = vrot.slane %v2952, 1
        %v2982 = vsel %vm510, %v2979, %v2981
        %v2983 = vrot.slane %v2953, 1
        %v2984 = vsel %vm510, %v2981, %v2983
        %v2985 = vrot.slane %v2954, 1
        %v2986 = vsel %vm510, %v2983, %v2985
        %v2987 = vrot.slane %v2955, 1
        %v2988 = vsel %vm510, %v2985, %v2987
        %v2989 = vrot.slane %v2956, 1
        %v2990 = vsel %vm510, %v2987, %v2989
        %v2991 = vrot.slane %v2957, 1
        %v2992 = vsel %vm510, %v2989, %v2991
        %v2993 = vrot.slane %v2958, 1
        %v2994 = vsel %vm510, %v2991, %v2993
        %2995 = vrot.lane.b32.xlu0 %v2974, 16
        %v2996 = vpop.permute.xlu0 %2995
        %2997 = vrot.lane.b32.xlu0 %v2976, 16
        %v2998 = vpop.permute.xlu0 %2997
        %2999 = vrot.lane.b32.xlu0 %v2978, 16
        %v3000 = vpop.permute.xlu0 %2999
        %3001 = vrot.lane.b32.xlu0 %v2980, 16
        %v3002 = vpop.permute.xlu0 %3001
        %3003 = vrot.lane.b32.xlu0 %v2982, 16
        %v3004 = vpop.permute.xlu0 %3003
        %3005 = vrot.lane.b32.xlu0 %v2984, 16
        %v3006 = vpop.permute.xlu0 %3005
        %3007 = vrot.lane.b32.xlu0 %v2986, 16
        %v3008 = vpop.permute.xlu0 %3007
        %3009 = vrot.lane.b32.xlu0 %v2988, 16
        %v3010 = vpop.permute.xlu0 %3009
        %3011 = vrot.lane.b32.xlu0 %v2990, 16
        %v3012 = vpop.permute.xlu0 %3011
        %3013 = vrot.lane.b32.xlu0 %v2992, 16
        %v3014 = vpop.permute.xlu0 %3013
        %3015 = vrot.lane.b32.xlu0 %v2994, 16
        %v3016 = vpop.permute.xlu0 %3015
        %3017 = vrot.lane.b32.xlu0 %v2993, 16
        %v3018 = vpop.permute.xlu0 %3017
        %v3031 = vrot.slane %v2947, 2
        %v3032 = vrot.slane %v2948, 2
        %v3033 = vsel %vm695, %v3031, %v3032
        %v3034 = vrot.slane %v2949, 2
        %v3035 = vsel %vm695, %v3032, %v3034
        %v3036 = vrot.slane %v2950, 2
        %v3037 = vsel %vm695, %v3034, %v3036
        %v3038 = vrot.slane %v2951, 2
        %v3039 = vsel %vm695, %v3036, %v3038
        %v3040 = vrot.slane %v2952, 2
        %v3041 = vsel %vm695, %v3038, %v3040
        %v3042 = vrot.slane %v2953, 2
        %v3043 = vsel %vm695, %v3040, %v3042
        %v3044 = vrot.slane %v2954, 2
        %v3045 = vsel %vm695, %v3042, %v3044
        %v3046 = vrot.slane %v2955, 2
        %v3047 = vsel %vm695, %v3044, %v3046
        %v3048 = vrot.slane %v2956, 2
        %v3049 = vsel %vm695, %v3046, %v3048
        %v3050 = vrot.slane %v2957, 2
        %v3051 = vsel %vm695, %v3048, %v3050
        %v3052 = vrot.slane %v2958, 2
        %v3053 = vsel %vm695, %v3050, %v3052
        %3054 = vrot.lane.b32.xlu0 %v3033, 32
        %v3055 = vpop.permute.xlu0 %3054
        %3056 = vrot.lane.b32.xlu0 %v3035, 32
        %v3057 = vpop.permute.xlu0 %3056
        %3058 = vrot.lane.b32.xlu0 %v3037, 32
        %v3059 = vpop.permute.xlu0 %3058
        %3060 = vrot.lane.b32.xlu0 %v3039, 32
        %v3061 = vpop.permute.xlu0 %3060
        %3062 = vrot.lane.b32.xlu0 %v3041, 32
        %v3063 = vpop.permute.xlu0 %3062
        %3064 = vrot.lane.b32.xlu0 %v3043, 32
        %v3065 = vpop.permute.xlu0 %3064
        %3066 = vrot.lane.b32.xlu0 %v3045, 32
        %v3067 = vpop.permute.xlu0 %3066
        %3068 = vrot.lane.b32.xlu0 %v3047, 32
        %v3069 = vpop.permute.xlu0 %3068
        %3070 = vrot.lane.b32.xlu0 %v3049, 32
        %v3071 = vpop.permute.xlu0 %3070
        %3072 = vrot.lane.b32.xlu0 %v3051, 32
        %v3073 = vpop.permute.xlu0 %3072
        %3074 = vrot.lane.b32.xlu0 %v3053, 32
        %v3075 = vpop.permute.xlu0 %3074
        %3076 = vrot.lane.b32.xlu0 %v3052, 32
        %v3077 = vpop.permute.xlu0 %3076
        %v3090 = vrot.slane %v2947, 3
        %v3091 = vrot.slane %v2948, 3
        %v3092 = vsel %vm880, %v3090, %v3091
        %v3093 = vrot.slane %v2949, 3
        %v3094 = vsel %vm880, %v3091, %v3093
        %v3095 = vrot.slane %v2950, 3
        %v3096 = vsel %vm880, %v3093, %v3095
        %v3097 = vrot.slane %v2951, 3
        %v3098 = vsel %vm880, %v3095, %v3097
        %v3099 = vrot.slane %v2952, 3
        %v3100 = vsel %vm880, %v3097, %v3099
        %v3101 = vrot.slane %v2953, 3
        %v3102 = vsel %vm880, %v3099, %v3101
        %v3103 = vrot.slane %v2954, 3
        %v3104 = vsel %vm880, %v3101, %v3103
        %v3105 = vrot.slane %v2955, 3
        %v3106 = vsel %vm880, %v3103, %v3105
        %v3107 = vrot.slane %v2956, 3
        %v3108 = vsel %vm880, %v3105, %v3107
        %v3109 = vrot.slane %v2957, 3
        %v3110 = vsel %vm880, %v3107, %v3109
        %v3111 = vrot.slane %v2958, 3
        %v3112 = vsel %vm880, %v3109, %v3111
        %3113 = vrot.lane.b32.xlu0 %v3092, 48
        %v3114 = vpop.permute.xlu0 %3113
        %3115 = vrot.lane.b32.xlu0 %v3094, 48
        %v3116 = vpop.permute.xlu0 %3115
        %3117 = vrot.lane.b32.xlu0 %v3096, 48
        %v3118 = vpop.permute.xlu0 %3117
        %3119 = vrot.lane.b32.xlu0 %v3098, 48
        %v3120 = vpop.permute.xlu0 %3119
        %3121 = vrot.lane.b32.xlu0 %v3100, 48
        %v3122 = vpop.permute.xlu0 %3121
        %3123 = vrot.lane.b32.xlu0 %v3102, 48
        %v3124 = vpop.permute.xlu0 %3123
        %3125 = vrot.lane.b32.xlu0 %v3104, 48
        %v3126 = vpop.permute.xlu0 %3125
        %3127 = vrot.lane.b32.xlu0 %v3106, 48
        %v3128 = vpop.permute.xlu0 %3127
        %3129 = vrot.lane.b32.xlu0 %v3108, 48
        %v3130 = vpop.permute.xlu0 %3129
        %3131 = vrot.lane.b32.xlu0 %v3110, 48
        %v3132 = vpop.permute.xlu0 %3131
        %3133 = vrot.lane.b32.xlu0 %v3112, 48
        %v3134 = vpop.permute.xlu0 %3133
        %3135 = vrot.lane.b32.xlu0 %v3111, 48
        %v3136 = vpop.permute.xlu0 %3135
        %v3149 = vrot.slane %v2947, 4
        %v3150 = vrot.slane %v2948, 4
        %v3151 = vsel %vm1065, %v3149, %v3150
        %v3152 = vrot.slane %v2949, 4
        %v3153 = vsel %vm1065, %v3150, %v3152
        %v3154 = vrot.slane %v2950, 4
        %v3155 = vsel %vm1065, %v3152, %v3154
        %v3156 = vrot.slane %v2951, 4
        %v3157 = vsel %vm1065, %v3154, %v3156
        %v3158 = vrot.slane %v2952, 4
        %v3159 = vsel %vm1065, %v3156, %v3158
        %v3160 = vrot.slane %v2953, 4
        %v3161 = vsel %vm1065, %v3158, %v3160
        %v3162 = vrot.slane %v2954, 4
        %v3163 = vsel %vm1065, %v3160, %v3162
        %v3164 = vrot.slane %v2955, 4
        %v3165 = vsel %vm1065, %v3162, %v3164
        %v3166 = vrot.slane %v2956, 4
        %v3167 = vsel %vm1065, %v3164, %v3166
        %v3168 = vrot.slane %v2957, 4
        %v3169 = vsel %vm1065, %v3166, %v3168
        %v3170 = vrot.slane %v2958, 4
        %v3171 = vsel %vm1065, %v3168, %v3170
        %3172 = vrot.lane.b32.xlu0 %v3151, 64
        %v3173 = vpop.permute.xlu0 %3172
        %3174 = vrot.lane.b32.xlu0 %v3153, 64
        %v3175 = vpop.permute.xlu0 %3174
        %3176 = vrot.lane.b32.xlu0 %v3155, 64
        %v3177 = vpop.permute.xlu0 %3176
        %3178 = vrot.lane.b32.xlu0 %v3157, 64
        %v3179 = vpop.permute.xlu0 %3178
        %3180 = vrot.lane.b32.xlu0 %v3159, 64
        %v3181 = vpop.permute.xlu0 %3180
        %3182 = vrot.lane.b32.xlu0 %v3161, 64
        %v3183 = vpop.permute.xlu0 %3182
        %3184 = vrot.lane.b32.xlu0 %v3163, 64
        %v3185 = vpop.permute.xlu0 %3184
        %3186 = vrot.lane.b32.xlu0 %v3165, 64
        %v3187 = vpop.permute.xlu0 %3186
        %3188 = vrot.lane.b32.xlu0 %v3167, 64
        %v3189 = vpop.permute.xlu0 %3188
        %3190 = vrot.lane.b32.xlu0 %v3169, 64
        %v3191 = vpop.permute.xlu0 %3190
        %3192 = vrot.lane.b32.xlu0 %v3171, 64
        %v3193 = vpop.permute.xlu0 %3192
        %3194 = vrot.lane.b32.xlu0 %v3170, 64
        %v3195 = vpop.permute.xlu0 %3194
        %v3208 = vrot.slane %v2947, 5
        %v3209 = vrot.slane %v2948, 5
        %v3210 = vsel %vm1251, %v3208, %v3209
        %v3211 = vrot.slane %v2949, 5
        %v3212 = vsel %vm1251, %v3209, %v3211
        %v3213 = vrot.slane %v2950, 5
        %v3214 = vsel %vm1251, %v3211, %v3213
        %v3215 = vrot.slane %v2951, 5
        %v3216 = vsel %vm1251, %v3213, %v3215
        %v3217 = vrot.slane %v2952, 5
        %v3218 = vsel %vm1251, %v3215, %v3217
        %v3219 = vrot.slane %v2953, 5
        %v3220 = vsel %vm1251, %v3217, %v3219
        %v3221 = vrot.slane %v2954, 5
        %v3222 = vsel %vm1251, %v3219, %v3221
        %v3223 = vrot.slane %v2955, 5
        %v3224 = vsel %vm1251, %v3221, %v3223
        %v3225 = vrot.slane %v2956, 5
        %v3226 = vsel %vm1251, %v3223, %v3225
        %v3227 = vrot.slane %v2957, 5
        %v3228 = vsel %vm1251, %v3225, %v3227
        %v3229 = vrot.slane %v2958, 5
        %v3230 = vsel %vm1251, %v3227, %v3229
        %3231 = vrot.lane.b32.xlu0 %v3210, 80
        %v3232 = vpop.permute.xlu0 %3231
        %3233 = vrot.lane.b32.xlu0 %v3212, 80
        %v3234 = vpop.permute.xlu0 %3233
        %3235 = vrot.lane.b32.xlu0 %v3214, 80
        %v3236 = vpop.permute.xlu0 %3235
        %3237 = vrot.lane.b32.xlu0 %v3216, 80
        %v3238 = vpop.permute.xlu0 %3237
        %3239 = vrot.lane.b32.xlu0 %v3218, 80
        %v3240 = vpop.permute.xlu0 %3239
        %3241 = vrot.lane.b32.xlu0 %v3220, 80
        %v3242 = vpop.permute.xlu0 %3241
        %3243 = vrot.lane.b32.xlu0 %v3222, 80
        %v3244 = vpop.permute.xlu0 %3243
        %3245 = vrot.lane.b32.xlu0 %v3224, 80
        %v3246 = vpop.permute.xlu0 %3245
        %3247 = vrot.lane.b32.xlu0 %v3226, 80
        %v3248 = vpop.permute.xlu0 %3247
        %3249 = vrot.lane.b32.xlu0 %v3228, 80
        %v3250 = vpop.permute.xlu0 %3249
        %3251 = vrot.lane.b32.xlu0 %v3230, 80
        %v3252 = vpop.permute.xlu0 %3251
        %3253 = vrot.lane.b32.xlu0 %v3229, 80
        %v3254 = vpop.permute.xlu0 %3253
        %v3268 = vrot.slane %v2947, 6
        %v3269 = vrot.slane %v2948, 6
        %v3270 = vsel %vm1438, %v3268, %v3269
        %v3271 = vrot.slane %v2949, 6
        %v3272 = vsel %vm1438, %v3269, %v3271
        %v3273 = vrot.slane %v2950, 6
        %v3274 = vsel %vm1438, %v3271, %v3273
        %v3275 = vrot.slane %v2951, 6
        %v3276 = vsel %vm1438, %v3273, %v3275
        %v3277 = vrot.slane %v2952, 6
        %v3278 = vsel %vm1438, %v3275, %v3277
        %v3279 = vrot.slane %v2953, 6
        %v3280 = vsel %vm1438, %v3277, %v3279
        %v3281 = vrot.slane %v2954, 6
        %v3282 = vsel %vm1438, %v3279, %v3281
        %v3283 = vrot.slane %v2955, 6
        %v3284 = vsel %vm1438, %v3281, %v3283
        %v3285 = vrot.slane %v2956, 6
        %v3286 = vsel %vm1438, %v3283, %v3285
        %v3287 = vrot.slane %v2957, 6
        %v3288 = vsel %vm1438, %v3285, %v3287
        %v3289 = vrot.slane %v2958, 6
        %v3290 = vsel %vm1438, %v3287, %v3289
        %v3291 = vrot.slane %v2959, 6
        %v3292 = vsel %vm1438, %v3289, %v3291
        %3293 = vrot.lane.b32.xlu0 %v3270, 96
        %v3294 = vpop.permute.xlu0 %3293
        %3295 = vrot.lane.b32.xlu0 %v3272, 96
        %v3296 = vpop.permute.xlu0 %3295
        %3297 = vrot.lane.b32.xlu0 %v3274, 96
        %v3298 = vpop.permute.xlu0 %3297
        %3299 = vrot.lane.b32.xlu0 %v3276, 96
        %v3300 = vpop.permute.xlu0 %3299
        %3301 = vrot.lane.b32.xlu0 %v3278, 96
        %v3302 = vpop.permute.xlu0 %3301
        %3303 = vrot.lane.b32.xlu0 %v3280, 96
        %v3304 = vpop.permute.xlu0 %3303
        %3305 = vrot.lane.b32.xlu0 %v3282, 96
        %v3306 = vpop.permute.xlu0 %3305
        %3307 = vrot.lane.b32.xlu0 %v3284, 96
        %v3308 = vpop.permute.xlu0 %3307
        %3309 = vrot.lane.b32.xlu0 %v3286, 96
        %v3310 = vpop.permute.xlu0 %3309
        %3311 = vrot.lane.b32.xlu0 %v3288, 96
        %v3312 = vpop.permute.xlu0 %3311
        %3313 = vrot.lane.b32.xlu0 %v3290, 96
        %v3314 = vpop.permute.xlu0 %3313
        %3315 = vrot.lane.b32.xlu0 %v3292, 96
        %v3316 = vpop.permute.xlu0 %3315
        %v3329 = vsel %vm1961, %v2947, %v2996
        %v3330 = vsel %vm1961, %v2948, %v2998
        %v3331 = vsel %vm1961, %v2949, %v3000
        %v3332 = vsel %vm1961, %v2950, %v3002
        %v3333 = vsel %vm1961, %v2951, %v3004
        %v3334 = vsel %vm1961, %v2952, %v3006
        %v3335 = vsel %vm1961, %v2953, %v3008
        %v3336 = vsel %vm1961, %v2954, %v3010
        %v3337 = vsel %vm1961, %v2955, %v3012
        %v3338 = vsel %vm1961, %v2956, %v3014
        %v3339 = vsel %vm1961, %v2957, %v3016
        %v3340 = vsel %vm1961, %v2958, %v3018
        %v3341 = vsel %vm2037, %v3329, %v3055
        %v3342 = vsel %vm2037, %v3330, %v3057
        %v3343 = vsel %vm2037, %v3331, %v3059
        %v3344 = vsel %vm2037, %v3332, %v3061
        %v3345 = vsel %vm2037, %v3333, %v3063
        %v3346 = vsel %vm2037, %v3334, %v3065
        %v3347 = vsel %vm2037, %v3335, %v3067
        %v3348 = vsel %vm2037, %v3336, %v3069
        %v3349 = vsel %vm2037, %v3337, %v3071
        %v3350 = vsel %vm2037, %v3338, %v3073
        %v3351 = vsel %vm2037, %v3339, %v3075
        %v3352 = vsel %vm2037, %v3340, %v3077
        %v3353 = vsel %vm2113, %v3341, %v3114
        %v3354 = vsel %vm2113, %v3342, %v3116
        %v3355 = vsel %vm2113, %v3343, %v3118
        %v3356 = vsel %vm2113, %v3344, %v3120
        %v3357 = vsel %vm2113, %v3345, %v3122
        %v3358 = vsel %vm2113, %v3346, %v3124
        %v3359 = vsel %vm2113, %v3347, %v3126
        %v3360 = vsel %vm2113, %v3348, %v3128
        %v3361 = vsel %vm2113, %v3349, %v3130
        %v3362 = vsel %vm2113, %v3350, %v3132
        %v3363 = vsel %vm2113, %v3351, %v3134
        %v3364 = vsel %vm2113, %v3352, %v3136
        %v3365 = vsel %vm2189, %v3353, %v3173
        %v3366 = vsel %vm2189, %v3354, %v3175
        %v3367 = vsel %vm2189, %v3355, %v3177
        %v3368 = vsel %vm2189, %v3356, %v3179
        %v3369 = vsel %vm2189, %v3357, %v3181
        %v3370 = vsel %vm2189, %v3358, %v3183
        %v3371 = vsel %vm2189, %v3359, %v3185
        %v3372 = vsel %vm2189, %v3360, %v3187
        %v3373 = vsel %vm2189, %v3361, %v3189
        %v3374 = vsel %vm2189, %v3362, %v3191
        %v3375 = vsel %vm2189, %v3363, %v3193
        %v3376 = vsel %vm2189, %v3364, %v3195
        %vm3377 = vcmask 654336
        %v3378 = vsel %vm3377, %v3365, %v3232
        %v3379 = vsel %vm3377, %v3366, %v3234
        %v3380 = vsel %vm3377, %v3367, %v3236
        %v3381 = vsel %vm3377, %v3368, %v3238
        %v3382 = vsel %vm3377, %v3369, %v3240
        %v3383 = vsel %vm3377, %v3370, %v3242
        %v3384 = vsel %vm3377, %v3371, %v3244
        %v3385 = vsel %vm3377, %v3372, %v3246
        %v3386 = vsel %vm3377, %v3373, %v3248
        %v3387 = vsel %vm3377, %v3374, %v3250
        %v3388 = vsel %vm3377, %v3375, %v3252
        %v3389 = vsel %vm3377, %v3376, %v3254
        %vm3390 = vcmask 785408
        %v3391 = vsel %vm3390, %v3378, %v3294
        %v3392 = vsel %vm3390, %v3379, %v3296
        %v3393 = vsel %vm3390, %v3380, %v3298
        %v3394 = vsel %vm3390, %v3381, %v3300
        %v3395 = vsel %vm3390, %v3382, %v3302
        %v3396 = vsel %vm3390, %v3383, %v3304
        %v3397 = vsel %vm3390, %v3384, %v3306
        %v3398 = vsel %vm3390, %v3385, %v3308
        %v3399 = vsel %vm3390, %v3386, %v3310
        %v3400 = vsel %vm3390, %v3387, %v3312
        %v3401 = vsel %vm3390, %v3388, %v3314
        %v3402 = vsel %vm3390, %v3389, %v3316
        %v3403 = vld [vmem:[%s4] sm:$0xff]
        %v3404 = vld [vmem:[%s4 + $0x8] sm:$0xff]
        %v3405 = vld [vmem:[%s4 + $0x10] sm:$0xff]
        %v3406 = vld [vmem:[%s4 + $0x18] sm:$0xff]
        %v3407 = vld [vmem:[%s4 + $0x20] sm:$0xff]
        %v3408 = vld [vmem:[%s4 + $0x28] sm:$0xff]
        %v3409 = vld [vmem:[%s4 + $0x30] sm:$0xff]
        %v3410 = vld [vmem:[%s4 + $0x38] sm:$0xff]
        %v3411 = vld [vmem:[%s4 + $0x40] sm:$0xff]
        %v3412 = vld [vmem:[%s4 + $0x48] sm:$0xff]
        %v3413 = vld [vmem:[%s4 + $0x50] sm:$0xff]
        %v3414 = vld [vmem:[%s4 + $0x58] sm:$0xff]
        %v3415 = vld [vmem:[%s4 + $0x60] sm:$0xff]
        %v3416 = vld [vmem:[%s4 + $0x68] sm:$0xff]
        %v3417 = vld [vmem:[%s5] sm:$0x1]
        %v3419 = vlaneseq
        %v3420 = vshrl.u32 %v3419, 7
        %v3421 = vsub.s32 0, %v3420
        %v3422 = vrot.slane %v3417, %v3421
        %vm3424 = vcmask 916480
        %v3426 = vsel %vm3424, %v3391, 0
        %v3429 = vsel %vm3424, %v3392, 0
        %v3432 = vsel %vm3424, %v3393, 0
        %v3435 = vsel %vm3424, %v3394, 0
        %v3438 = vsel %vm3424, %v3395, 0
        %v3441 = vsel %vm3424, %v3396, 0
        %v3444 = vsel %vm3424, %v3397, 0
        %v3447 = vsel %vm3424, %v3398, 0
        %v3450 = vsel %vm3424, %v3399, 0
        %v3453 = vsel %vm3424, %v3400, 0
        %v3456 = vsel %vm3424, %v3401, 0
        %v3459 = vsel %vm3424, %v3402, 0
        %3461 = vmatprep.subr.mxu0 0.0
        %3462 = vmatpush1.msra.mxu0 %v3403
        %3463 = vmatprep.subr.mxu0 0.0
        %3464 = vmatpush1.msra.mxu0 %v3404
        %3465 = vmatprep.subr.mxu0 0.0
        %3466 = vmatpush1.msra.mxu0 %v3405
        %3467 = vmatprep.subr.mxu0 0.0
        %3468 = vmatpush1.msra.mxu0 %v3406
        %3469 = vmatprep.subr.mxu0 0.0
        %3470 = vmatpush1.msra.mxu0 %v3407
        %3471 = vmatprep.subr.mxu0 0.0
        %3472 = vmatpush1.msra.mxu0 %v3408
        %3473 = vmatprep.subr.mxu0 0.0
        %3474 = vmatpush1.msra.mxu0 %v3409
        %3475 = vmatprep.subr.mxu0 0.0
        %3476 = vmatpush1.msra.mxu0 %v3410
        %3477 = vmatprep.subr.mxu0 0.0
        %3478 = vmatpush1.msra.mxu0 %v3411
        %3479 = vmatprep.subr.mxu0 0.0
        %3480 = vmatpush1.msra.mxu0 %v3412
        %3481 = vmatprep.subr.mxu0 0.0
        %3482 = vmatpush1.msra.mxu0 %v3413
        %3483 = vmatprep.subr.mxu0 0.0
        %3484 = vmatpush1.msra.mxu0 %v3414
        %3485 = vmatprep.subr.mxu0 0.0
        %3486 = vmatpush1.msra.mxu0 %v3415
        %3487 = vmatprep.subr.mxu0 0.0
        %3488 = vmatpush1.msra.mxu0 %v3416
        %3489 = vmatprep.subr.mxu0 0.0
        %3490 = vmatpush1.msra.mxu0 0.0
        %3491 = vmatprep.subr.mxu0 0.0
        %3492 = vmatpush1.msra.mxu0 0.0
        %3493 = vmatprep.subr.mxu0 0.0
        %3494 = vmatpush1.msra.mxu0 0.0
        %3495 = vmatprep.subr.mxu0 0.0
        %3496 = vmatpush1.msra.mxu0 0.0
        %3497 = vmatprep.subr.mxu0 0.0
        %3498 = vmatpush1.msra.mxu0 0.0
        %3499 = vmatprep.subr.mxu0 0.0
        %3500 = vmatpush1.msra.mxu0 0.0
        %3501 = vmatprep.subr.mxu0 0.0
        %3502 = vmatpush1.msra.mxu0 0.0
        %3503 = vmatprep.subr.mxu0 0.0
        %3504 = vmatpush1.msra.mxu0 0.0
        %3505 = vmatprep.subr.mxu0 0.0
        %3506 = vmatpush1.msra.mxu0 0.0
        %3507 = vmatprep.subr.mxu0 0.0
        %3508 = vmatpush1.msra.mxu0 0.0
        %3509 = vmatprep.subr.mxu0 0.0
        %3510 = vmatpush1.msra.mxu0 0.0
        %3511 = vmatprep.subr.mxu0 0.0
        %3512 = vmatpush1.msra.mxu0 0.0
        %3513 = vmatprep.subr.mxu0 0.0
        %3514 = vmatpush1.msra.mxu0 0.0
        %3515 = vmatprep.subr.mxu0 0.0
        %3516 = vmatpush1.msra.mxu0 0.0
        %3517 = vmatprep.subr.mxu0 0.0
        %3518 = vmatpush1.msra.mxu0 0.0
        %3519 = vmatprep.subr.mxu0 0.0
        %3520 = vmatpush1.msra.mxu0 0.0
        %3521 = vmatprep.subr.mxu0 0.0
        %3522 = vmatpush1.msra.mxu0 0.0
        %3523 = vmatprep.subr.mxu0 0.0
        %3524 = vmatpush1.msra.mxu0 0.0
        %3525 = vmatprep.mubr.f32.mxu0 0.0
        %3526 = vmatmul.mubr.f32.gmra.mrb[0].mxu0 %v3426
        %v3527 = vpop.f32.mrb[0].mxu0
        %v3528 = vadd.f32 %v3422, %v3527
        %v3529 = vpop.f32.mrb[0].mxu0
        %3530 = vmatprep.mubr.f32.mxu0 0.0
        %3531 = vmatmul.mubr.f32.gmra.mrb[0].mxu0 %v3429
        %v3532 = vpop.f32.mrb[0].mxu0
        %v3533 = vadd.f32 %v3422, %v3532
        %v3534 = vpop.f32.mrb[0].mxu0
        %3535 = vmatprep.mubr.f32.mxu0 0.0
        %3536 = vmatmul.mubr.f32.gmra.mrb[0].mxu0 %v3432
        %v3537 = vpop.f32.mrb[0].mxu0
        %v3538 = vadd.f32 %v3422, %v3537
        %v3539 = vpop.f32.mrb[0].mxu0
        %3540 = vmatprep.mubr.f32.mxu0 0.0
        %3541 = vmatmul.mubr.f32.gmra.mrb[0].mxu0 %v3435
        %v3542 = vpop.f32.mrb[0].mxu0
        %v3543 = vadd.f32 %v3422, %v3542
        %v3544 = vpop.f32.mrb[0].mxu0
        %3545 = vmatprep.mubr.f32.mxu0 0.0
        %3546 = vmatmul.mubr.f32.gmra.mrb[0].mxu0 %v3438
        %v3547 = vpop.f32.mrb[0].mxu0
        %v3548 = vadd.f32 %v3422, %v3547
        %v3549 = vpop.f32.mrb[0].mxu0
        %3550 = vmatprep.mubr.f32.mxu0 0.0
        %3551 = vmatmul.mubr.f32.gmra.mrb[0].mxu0 %v3441
        %v3552 = vpop.f32.mrb[0].mxu0
        %v3553 = vadd.f32 %v3422, %v3552
        %v3554 = vpop.f32.mrb[0].mxu0
        %3555 = vmatprep.mubr.f32.mxu0 0.0
        %3556 = vmatmul.mubr.f32.gmra.mrb[0].mxu0 %v3444
        %v3557 = vpop.f32.mrb[0].mxu0
        %v3558 = vadd.f32 %v3422, %v3557
        %v3559 = vpop.f32.mrb[0].mxu0
        %3560 = vmatprep.mubr.f32.mxu0 0.0
        %3561 = vmatmul.mubr.f32.gmra.mrb[0].mxu0 %v3447
        %v3562 = vpop.f32.mrb[0].mxu0
        %v3563 = vadd.f32 %v3422, %v3562
        %v3564 = vpop.f32.mrb[0].mxu0
        %3565 = vmatprep.mubr.f32.mxu0 0.0
        %3566 = vmatmul.mubr.f32.gmra.mrb[0].mxu0 %v3450
        %v3567 = vpop.f32.mrb[0].mxu0
        %v3568 = vadd.f32 %v3422, %v3567
        %v3569 = vpop.f32.mrb[0].mxu0
        %3570 = vmatprep.mubr.f32.mxu0 0.0
        %3571 = vmatmul.mubr.f32.gmra.mrb[0].mxu0 %v3453
        %v3572 = vpop.f32.mrb[0].mxu0
        %v3573 = vadd.f32 %v3422, %v3572
        %v3574 = vpop.f32.mrb[0].mxu0
        %3575 = vmatprep.mubr.f32.mxu0 0.0
        %3576 = vmatmul.mubr.f32.gmra.mrb[0].mxu0 %v3456
        %v3577 = vpop.f32.mrb[0].mxu0
        %v3578 = vadd.f32 %v3422, %v3577
        %v3579 = vpop.f32.mrb[0].mxu0
        %3580 = vmatprep.mubr.f32.mxu0 0.0
        %3581 = vmatmul.mubr.f32.gmra.mrb[0].mxu0 %v3459
        %v3582 = vpop.f32.mrb[0].mxu0
        %v3583 = vadd.f32 %v3422, %v3582
        %v3584 = vpop.f32.mrb[0].mxu0
        %3585 = vdwg.mxu0
        %v3586 = vld [vmem:[%s6] sm:$0xff]
        %v3587 = vld [vmem:[%s6 + $0x8] sm:$0xff]
        %v3588 = vld [vmem:[%s6 + $0x10] sm:$0xff]
        %v3589 = vld [vmem:[%s6 + $0x18] sm:$0x3f]
        %vm3590 = vcmask 744448
        %v3592 = vsel %vm3590, %v3586, 0
        %v3595 = vsel %vm3590, %v3587, 0
        %v3598 = vsel %vm3590, %v3588, 0
        %v3601 = vsel %vm3590, %v3589, 0
        %v3604 = vsel %vm1251, %v3583, 0
        %3606 = vmatprep.subr.mxu0 0.0
        %3607 = vmatpush1.msra.mxu0 %v3528
        %3608 = vmatprep.subr.mxu0 0.0
        %3609 = vmatpush1.msra.mxu0 %v3533
        %3610 = vmatprep.subr.mxu0 0.0
        %3611 = vmatpush1.msra.mxu0 %v3538
        %3612 = vmatprep.subr.mxu0 0.0
        %3613 = vmatpush1.msra.mxu0 %v3543
        %3614 = vmatprep.subr.mxu0 0.0
        %3615 = vmatpush1.msra.mxu0 %v3548
        %3616 = vmatprep.subr.mxu0 0.0
        %3617 = vmatpush1.msra.mxu0 %v3553
        %3618 = vmatprep.subr.mxu0 0.0
        %3619 = vmatpush1.msra.mxu0 %v3558
        %3620 = vmatprep.subr.mxu0 0.0
        %3621 = vmatpush1.msra.mxu0 %v3563
        %3622 = vmatprep.subr.mxu0 0.0
        %3623 = vmatpush1.msra.mxu0 %v3568
        %3624 = vmatprep.subr.mxu0 0.0
        %3625 = vmatpush1.msra.mxu0 %v3573
        %3626 = vmatprep.subr.mxu0 0.0
        %3627 = vmatpush1.msra.mxu0 %v3578
        %3628 = vmatprep.subr.mxu0 0.0
        %3629 = vmatpush1.msra.mxu0 %v3604
        %3630 = vmatprep.subr.mxu0 0.0
        %3631 = vmatpush1.msra.mxu0 0.0
        %3632 = vmatprep.subr.mxu0 0.0
        %3633 = vmatpush1.msra.mxu0 0.0
        %3634 = vmatprep.subr.mxu0 0.0
        %3635 = vmatpush1.msra.mxu0 0.0
        %3636 = vmatprep.subr.mxu0 0.0
        %3637 = vmatpush1.msra.mxu0 0.0
        %3638 = vmatprep.subr.mxu0 0.0
        %3639 = vmatpush1.msra.mxu0 0.0
        %3640 = vmatprep.subr.mxu0 0.0
        %3641 = vmatpush1.msra.mxu0 0.0
        %3642 = vmatprep.subr.mxu0 0.0
        %3643 = vmatpush1.msra.mxu0 0.0
        %3644 = vmatprep.subr.mxu0 0.0
        %3645 = vmatpush1.msra.mxu0 0.0
        %3646 = vmatprep.subr.mxu0 0.0
        %3647 = vmatpush1.msra.mxu0 0.0
        %3648 = vmatprep.subr.mxu0 0.0
        %3649 = vmatpush1.msra.mxu0 0.0
        %3650 = vmatprep.subr.mxu0 0.0
        %3651 = vmatpush1.msra.mxu0 0.0
        %3652 = vmatprep.subr.mxu0 0.0
        %3653 = vmatpush1.msra.mxu0 0.0
        %3654 = vmatprep.subr.mxu0 0.0
        %3655 = vmatpush1.msra.mxu0 0.0
        %3656 = vmatprep.subr.mxu0 0.0
        %3657 = vmatpush1.msra.mxu0 0.0
        %3658 = vmatprep.subr.mxu0 0.0
        %3659 = vmatpush1.msra.mxu0 0.0
        %3660 = vmatprep.subr.mxu0 0.0
        %3661 = vmatpush1.msra.mxu0 0.0
        %3662 = vmatprep.subr.mxu0 0.0
        %3663 = vmatpush1.msra.mxu0 0.0
        %3664 = vmatprep.subr.mxu0 0.0
        %3665 = vmatpush1.msra.mxu0 0.0
        %3666 = vmatprep.subr.mxu0 0.0
        %3667 = vmatpush1.msra.mxu0 0.0
        %3668 = vmatprep.subr.mxu0 0.0
        %3669 = vmatpush1.msra.mxu0 0.0
        %3670 = vmatprep.mubr.f32.mxu0 0.0
        %3671 = vmatmul.mubr.f32.gmra.mrb[0].mxu0 %v3592
        %v3672 = vpop.f32.mrb[0].mxu0
        %v3673 = vadd.f32 0.0, %v3672
        %v3674 = vpop.f32.mrb[0].mxu0
        %3675 = vmatprep.mubr.f32.mxu0 0.0
        %3676 = vmatmul.mubr.f32.gmra.mrb[0].mxu0 %v3595
        %v3677 = vpop.f32.mrb[0].mxu0
        %v3678 = vadd.f32 0.0, %v3677
        %v3679 = vpop.f32.mrb[0].mxu0
        %3680 = vmatprep.mubr.f32.mxu0 0.0
        %3681 = vmatmul.mubr.f32.gmra.mrb[0].mxu0 %v3598
        %v3682 = vpop.f32.mrb[0].mxu0
        %v3683 = vadd.f32 0.0, %v3682
        %v3684 = vpop.f32.mrb[0].mxu0
        %3685 = vmatprep.mubr.f32.mxu0 0.0
        %3686 = vmatmul.mubr.f32.gmra.mrb[0].mxu0 %v3601
        %v3687 = vpop.f32.mrb[0].mxu0
        %v3688 = vadd.f32 0.0, %v3687
        %v3689 = vpop.f32.mrb[0].mxu0
        %3690 = vdwg.mxu0
        %v3691 = vmax.f32 %v3673, 0.0
        %v3692 = vmax.f32 %v3678, 0.0
        %v3693 = vmax.f32 %v3683, 0.0
        %v3694 = vmax.f32 %v3688, 0.0
        %v3699 = vrot.slane %v3691, 1
        %v3700 = vrot.slane %v3692, 1
        %v3701 = vsel %vm510, %v3699, %v3700
        %v3702 = vrot.slane %v3693, 1
        %v3703 = vsel %vm510, %v3700, %v3702
        %v3704 = vrot.slane %v3694, 1
        %v3705 = vsel %vm510, %v3702, %v3704
        %3706 = vrot.lane.b32.xlu0 %v3701, 32
        %v3707 = vpop.permute.xlu0 %3706
        %3708 = vrot.lane.b32.xlu0 %v3703, 32
        %v3709 = vpop.permute.xlu0 %3708
        %3710 = vrot.lane.b32.xlu0 %v3705, 32
        %v3711 = vpop.permute.xlu0 %3710
        %3712 = vrot.lane.b32.xlu0 %v3704, 32
        %v3713 = vpop.permute.xlu0 %3712
        %v3718 = vrot.slane %v3691, 2
        %v3719 = vrot.slane %v3692, 2
        %v3720 = vsel %vm695, %v3718, %v3719
        %v3721 = vrot.slane %v3693, 2
        %v3722 = vsel %vm695, %v3719, %v3721
        %v3723 = vrot.slane %v3694, 2
        %v3724 = vsel %vm695, %v3721, %v3723
        %3725 = vrot.lane.b32.xlu0 %v3720, 64
        %v3726 = vpop.permute.xlu0 %3725
        %3727 = vrot.lane.b32.xlu0 %v3722, 64
        %v3728 = vpop.permute.xlu0 %3727
        %3729 = vrot.lane.b32.xlu0 %v3724, 64
        %v3730 = vpop.permute.xlu0 %3729
        %3731 = vrot.lane.b32.xlu0 %v3723, 64
        %v3732 = vpop.permute.xlu0 %3731
        %v3737 = vrot.slane %v3691, 3
        %v3738 = vrot.slane %v3692, 3
        %v3739 = vsel %vm880, %v3737, %v3738
        %v3740 = vrot.slane %v3693, 3
        %v3741 = vsel %vm880, %v3738, %v3740
        %v3742 = vrot.slane %v3694, 3
        %v3743 = vsel %vm880, %v3740, %v3742
        %3744 = vrot.lane.b32.xlu0 %v3739, 96
        %v3745 = vpop.permute.xlu0 %3744
        %3746 = vrot.lane.b32.xlu0 %v3741, 96
        %v3747 = vpop.permute.xlu0 %3746
        %3748 = vrot.lane.b32.xlu0 %v3743, 96
        %v3749 = vpop.permute.xlu0 %3748
        %3750 = vrot.lane.b32.xlu0 %v3742, 96
        %v3751 = vpop.permute.xlu0 %3750
        %v3756 = vrot.slane %v3691, 4
        %v3757 = vrot.slane %v3692, 4
        %v3758 = vsel %vm1065, %v3756, %v3757
        %v3759 = vrot.slane %v3693, 4
        %v3760 = vsel %vm1065, %v3757, %v3759
        %v3761 = vrot.slane %v3694, 4
        %v3762 = vsel %vm1065, %v3759, %v3761
        %v3763 = vsel %vm2037, %v3691, %v3707
        %v3764 = vsel %vm2037, %v3692, %v3709
        %v3765 = vsel %vm2037, %v3693, %v3711
        %v3766 = vsel %vm2037, %v3694, %v3713
        %v3767 = vsel %vm2189, %v3763, %v3726
        %v3768 = vsel %vm2189, %v3764, %v3728
        %v3769 = vsel %vm2189, %v3765, %v3730
        %v3770 = vsel %vm2189, %v3766, %v3732
        %v3771 = vsel %vm3390, %v3767, %v3745
        %v3772 = vsel %vm3390, %v3768, %v3747
        %v3773 = vsel %vm3390, %v3769, %v3749
        %v3774 = vsel %vm3390, %v3770, %v3751
        %v3775 = vld [vmem:[%s7] sm:$0xff]
        %v3776 = vld [vmem:[%s7 + $0x8] sm:$0xff]
        %v3777 = vld [vmem:[%s7 + $0x10] sm:$0xff]
        %v3778 = vld [vmem:[%s7 + $0x18] sm:$0xff]
        %v3779 = vld [vmem:[%s7 + $0x20] sm:$0xff]
        %v3780 = vld [vmem:[%s7 + $0x28] sm:$0xff]
        %v3781 = vld [vmem:[%s7 + $0x30] sm:$0xff]
        %v3782 = vld [vmem:[%s7 + $0x38] sm:$0xff]
        %v3783 = vld [vmem:[%s7 + $0x40] sm:$0xff]
        %v3784 = vld [vmem:[%s7 + $0x48] sm:$0xff]
        %v3785 = vld [vmem:[%s7 + $0x50] sm:$0xff]
        %v3786 = vld [vmem:[%s7 + $0x58] sm:$0xff]
        %v3787 = vld [vmem:[%s7 + $0x60] sm:$0xff]
        %v3788 = vld [vmem:[%s7 + $0x68] sm:$0xff]
        %v3789 = vld [vmem:[%s7 + $0x70] sm:$0xff]
        %v3790 = vld [vmem:[%s7 + $0x78] sm:$0xff]
        %v3791 = vld [vmem:[%s7 + $0x80] sm:$0xff]
        %v3792 = vld [vmem:[%s7 + $0x88] sm:$0xff]
        %v3793 = vld [vmem:[%s7 + $0x90] sm:$0xff]
        %v3794 = vld [vmem:[%s7 + $0x98] sm:$0xff]
        %v3795 = vld [vmem:[%s8] sm:$0x1]
        %v3797 = vlaneseq
        %v3798 = vshrl.u32 %v3797, 7
        %v3799 = vsub.s32 0, %v3798
        %v3800 = vrot.slane %v3795, %v3799
        %v3802 = vsel %vm2037, %v3758, 0
        %v3804 = vsel %vm2037, %v3760, 0
        %v3806 = vsel %vm2037, %v3762, 0
        %v3808 = vsel %vm2037, %v3761, 0
        %3810 = vmatprep.subr.mxu0 0.0
        %3811 = vmatpush1.msra.mxu0 %v3775
        %3812 = vmatprep.subr.mxu0 0.0
        %3813 = vmatpush1.msra.mxu0 %v3776
        %3814 = vmatprep.subr.mxu0 0.0
        %3815 = vmatpush1.msra.mxu0 %v3777
        %3816 = vmatprep.subr.mxu0 0.0
        %3817 = vmatpush1.msra.mxu0 %v3778
        %3818 = vmatprep.subr.mxu0 0.0
        %3819 = vmatpush1.msra.mxu0 %v3779
        %3820 = vmatprep.subr.mxu0 0.0
        %3821 = vmatpush1.msra.mxu0 %v3780
        %3822 = vmatprep.subr.mxu0 0.0
        %3823 = vmatpush1.msra.mxu0 %v3781
        %3824 = vmatprep.subr.mxu0 0.0
        %3825 = vmatpush1.msra.mxu0 %v3782
        %3826 = vmatprep.subr.mxu0 0.0
        %3827 = vmatpush1.msra.mxu0 %v3783
        %3828 = vmatprep.subr.mxu0 0.0
        %3829 = vmatpush1.msra.mxu0 %v3784
        %3830 = vmatprep.subr.mxu0 0.0
        %3831 = vmatpush1.msra.mxu0 %v3785
        %3832 = vmatprep.subr.mxu0 0.0
        %3833 = vmatpush1.msra.mxu0 %v3786
        %3834 = vmatprep.subr.mxu0 0.0
        %3835 = vmatpush1.msra.mxu0 %v3787
        %3836 = vmatprep.subr.mxu0 0.0
        %3837 = vmatpush1.msra.mxu0 %v3788
        %3838 = vmatprep.subr.mxu0 0.0
        %3839 = vmatpush1.msra.mxu0 %v3789
        %3840 = vmatprep.subr.mxu0 0.0
        %3841 = vmatpush1.msra.mxu0 %v3790
        %3842 = vmatprep.subr.mxu0 0.0
        %3843 = vmatpush1.msra.mxu0 %v3791
        %3844 = vmatprep.subr.mxu0 0.0
        %3845 = vmatpush1.msra.mxu0 %v3792
        %3846 = vmatprep.subr.mxu0 0.0
        %3847 = vmatpush1.msra.mxu0 %v3793
        %3848 = vmatprep.subr.mxu0 0.0
        %3849 = vmatpush1.msra.mxu0 %v3794
        %3850 = vmatprep.subr.mxu0 0.0
        %3851 = vmatpush1.msra.mxu0 0.0
        %3852 = vmatprep.subr.mxu0 0.0
        %3853 = vmatpush1.msra.mxu0 0.0
        %3854 = vmatprep.subr.mxu0 0.0
        %3855 = vmatpush1.msra.mxu0 0.0
        %3856 = vmatprep.subr.mxu0 0.0
        %3857 = vmatpush1.msra.mxu0 0.0
        %3858 = vmatprep.subr.mxu0 0.0
        %3859 = vmatpush1.msra.mxu0 0.0
        %3860 = vmatprep.subr.mxu0 0.0
        %3861 = vmatpush1.msra.mxu0 0.0
        %3862 = vmatprep.subr.mxu0 0.0
        %3863 = vmatpush1.msra.mxu0 0.0
        %3864 = vmatprep.subr.mxu0 0.0
        %3865 = vmatpush1.msra.mxu0 0.0
        %3866 = vmatprep.subr.mxu0 0.0
        %3867 = vmatpush1.msra.mxu0 0.0
        %3868 = vmatprep.subr.mxu0 0.0
        %3869 = vmatpush1.msra.mxu0 0.0
        %3870 = vmatprep.subr.mxu0 0.0
        %3871 = vmatpush1.msra.mxu0 0.0
        %3872 = vmatprep.subr.mxu0 0.0
        %3873 = vmatpush1.msra.mxu0 0.0
        %3874 = vmatprep.mubr.f32.mxu0 %v3802
        %3875 = vmatmul.mubr.f32.gmra.mrb[0].mxu0 %v3771
        %v3876 = vpop.f32.mrb[0].mxu0
        %v3877 = vadd.f32 %v3800, %v3876
        %v3878 = vpop.f32.mrb[0].mxu0
        %3879 = vmatprep.mubr.f32.mxu0 %v3804
        %3880 = vmatmul.mubr.f32.gmra.mrb[0].mxu0 %v3772
        %v3881 = vpop.f32.mrb[0].mxu0
        %v3882 = vadd.f32 %v3800, %v3881
        %v3883 = vpop.f32.mrb[0].mxu0
        %3884 = vmatprep.mubr.f32.mxu0 %v3806
        %3885 = vmatmul.mubr.f32.gmra.mrb[0].mxu0 %v3773
        %v3886 = vpop.f32.mrb[0].mxu0
        %v3887 = vadd.f32 %v3800, %v3886
        %v3888 = vpop.f32.mrb[0].mxu0
        %3889 = vmatprep.mubr.f32.mxu0 %v3808
        %3890 = vmatmul.mubr.f32.gmra.mrb[0].mxu0 %v3774
        %v3891 = vpop.f32.mrb[0].mxu0
        %v3892 = vadd.f32 %v3800, %v3891
        %v3893 = vpop.f32.mrb[0].mxu0
        %3894 = vdwg.mxu0
        %v3895 = vld [vmem:[%s9] sm:$0xff]
        %vm3896 = vcmask 211968
        %v3898 = vsel %vm3896, %v3895, 0
        %v3901 = vsel %vm1438, %v3892, 0
        %3903 = vmatprep.subr.mxu0 0.0
        %3904 = vmatpush1.msra.mxu0 %v3877
        %3905 = vmatprep.subr.mxu0 0.0
        %3906 = vmatpush1.msra.mxu0 %v3882
        %3907 = vmatprep.subr.mxu0 0.0
        %3908 = vmatpush1.msra.mxu0 %v3887
        %3909 = vmatprep.subr.mxu0 0.0
        %3910 = vmatpush1.msra.mxu0 %v3901
        %3911 = vmatprep.subr.mxu0 0.0
        %3912 = vmatpush1.msra.mxu0 0.0
        %3913 = vmatprep.subr.mxu0 0.0
        %3914 = vmatpush1.msra.mxu0 0.0
        %3915 = vmatprep.subr.mxu0 0.0
        %3916 = vmatpush1.msra.mxu0 0.0
        %3917 = vmatprep.subr.mxu0 0.0
        %3918 = vmatpush1.msra.mxu0 0.0
        %3919 = vmatprep.subr.mxu0 0.0
        %3920 = vmatpush1.msra.mxu0 0.0
        %3921 = vmatprep.subr.mxu0 0.0
        %3922 = vmatpush1.msra.mxu0 0.0
        %3923 = vmatprep.subr.mxu0 0.0
        %3924 = vmatpush1.msra.mxu0 0.0
        %3925 = vmatprep.subr.mxu0 0.0
        %3926 = vmatpush1.msra.mxu0 0.0
        %3927 = vmatprep.subr.mxu0 0.0
        %3928 = vmatpush1.msra.mxu0 0.0
        %3929 = vmatprep.subr.mxu0 0.0
        %3930 = vmatpush1.msra.mxu0 0.0
        %3931 = vmatprep.subr.mxu0 0.0
        %3932 = vmatpush1.msra.mxu0 0.0
        %3933 = vmatprep.subr.mxu0 0.0
        %3934 = vmatpush1.msra.mxu0 0.0
        %3935 = vmatprep.subr.mxu0 0.0
        %3936 = vmatpush1.msra.mxu0 0.0
        %3937 = vmatprep.subr.mxu0 0.0
        %3938 = vmatpush1.msra.mxu0 0.0
        %3939 = vmatprep.subr.mxu0 0.0
        %3940 = vmatpush1.msra.mxu0 0.0
        %3941 = vmatprep.subr.mxu0 0.0
        %3942 = vmatpush1.msra.mxu0 0.0
        %3943 = vmatprep.subr.mxu0 0.0
        %3944 = vmatpush1.msra.mxu0 0.0
        %3945 = vmatprep.subr.mxu0 0.0
        %3946 = vmatpush1.msra.mxu0 0.0
        %3947 = vmatprep.subr.mxu0 0.0
        %3948 = vmatpush1.msra.mxu0 0.0
        %3949 = vmatprep.subr.mxu0 0.0
        %3950 = vmatpush1.msra.mxu0 0.0
        %3951 = vmatprep.subr.mxu0 0.0
        %3952 = vmatpush1.msra.mxu0 0.0
        %3953 = vmatprep.subr.mxu0 0.0
        %3954 = vmatpush1.msra.mxu0 0.0
        %3955 = vmatprep.subr.mxu0 0.0
        %3956 = vmatpush1.msra.mxu0 0.0
        %3957 = vmatprep.subr.mxu0 0.0
        %3958 = vmatpush1.msra.mxu0 0.0
        %3959 = vmatprep.subr.mxu0 0.0
        %3960 = vmatpush1.msra.mxu0 0.0
        %3961 = vmatprep.subr.mxu0 0.0
        %3962 = vmatpush1.msra.mxu0 0.0
        %3963 = vmatprep.subr.mxu0 0.0
        %3964 = vmatpush1.msra.mxu0 0.0
        %3965 = vmatprep.subr.mxu0 0.0
        %3966 = vmatpush1.msra.mxu0 0.0
        %3967 = vmatprep.mubr.f32.mxu0 0.0
        %3968 = vmatmul.mubr.f32.gmra.mrb[0].mxu0 %v3898
        %v3969 = vpop.f32.mrb[0].mxu0
        %v3970 = vadd.f32 0.0, %v3969
        %v3971 = vpop.f32.mrb[0].mxu0
        %3972 = vdwg.mxu0
        %v3973 = vmax.f32 %v3970, 0.0
        %v3975 = vrot.slane %v3973, 1
        %3976 = vrot.lane.b32.xlu0 %v3975, 64
        %v3977 = vpop.permute.xlu0 %3976
        %v3979 = vrot.slane %v3973, 2
        %v3980 = vsel %vm2189, %v3973, %v3977
        %v3981 = vld [vmem:[%s10] sm:$0xff]
        %v3982 = vld [vmem:[%s10 + $0x8] sm:$0xff]
        %v3983 = vld [vmem:[%s10 + $0x10] sm:$0xff]
        %v3984 = vld [vmem:[%s10 + $0x18] sm:$0xff]
        %v3985 = vld [vmem:[%s10 + $0x20] sm:$0xff]
        %v3986 = vld [vmem:[%s10 + $0x28] sm:$0xff]
        %v3987 = vld [vmem:[%s10 + $0x30] sm:$0xff]
        %v3988 = vld [vmem:[%s10 + $0x38] sm:$0xff]
        %v3989 = vld [vmem:[%s10 + $0x40] sm:$0xff]
        %v3990 = vld [vmem:[%s10 + $0x48] sm:$0xff]
        %v3991 = vld [vmem:[%s10 + $0x50] sm:$0xff]
        %v3992 = vld [vmem:[%s10 + $0x58] sm:$0xff]
        %v3993 = vld [vmem:[%s10 + $0x60] sm:$0xff]
        %v3994 = vld [vmem:[%s10 + $0x68] sm:$0xff]
        %v3995 = vld [vmem:[%s10 + $0x70] sm:$0xff]
        %v3996 = vld [vmem:[%s10 + $0x78] sm:$0xff]
        %v3997 = vld [vmem:[%s10 + $0x80] sm:$0xff]
        %v3998 = vld [vmem:[%s10 + $0x88] sm:$0xff]
        %v3999 = vld [vmem:[%s10 + $0x90] sm:$0xff]
        %v4000 = vld [vmem:[%s10 + $0x98] sm:$0xff]
        %v4001 = vld [vmem:[%s10 + $0xa0] sm:$0xff]
        %v4002 = vld [vmem:[%s10 + $0xa8] sm:$0xff]
        %v4003 = vld [vmem:[%s10 + $0xb0] sm:$0xff]
        %v4004 = vld [vmem:[%s10 + $0xb8] sm:$0xff]
        %v4005 = vld [vmem:[%s11] sm:$0x1]
        %v4007 = vlaneseq
        %v4008 = vshrl.u32 %v4007, 7
        %v4009 = vsub.s32 0, %v4008
        %v4010 = vrot.slane %v4005, %v4009
        %v4012 = vsel %vm2189, %v3979, 0
        %4014 = vmatprep.subr.mxu0 0.0
        %4015 = vmatpush1.msra.mxu0 %v3981
        %4016 = vmatprep.subr.mxu0 0.0
        %4017 = vmatpush1.msra.mxu0 %v3982
        %4018 = vmatprep.subr.mxu0 0.0
        %4019 = vmatpush1.msra.mxu0 %v3983
        %4020 = vmatprep.subr.mxu0 0.0
        %4021 = vmatpush1.msra.mxu0 %v3984
        %4022 = vmatprep.subr.mxu0 0.0
        %4023 = vmatpush1.msra.mxu0 %v3985
        %4024 = vmatprep.subr.mxu0 0.0
        %4025 = vmatpush1.msra.mxu0 %v3986
        %4026 = vmatprep.subr.mxu0 0.0
        %4027 = vmatpush1.msra.mxu0 %v3987
        %4028 = vmatprep.subr.mxu0 0.0
        %4029 = vmatpush1.msra.mxu0 %v3988
        %4030 = vmatprep.subr.mxu0 0.0
        %4031 = vmatpush1.msra.mxu0 %v3989
        %4032 = vmatprep.subr.mxu0 0.0
        %4033 = vmatpush1.msra.mxu0 %v3990
        %4034 = vmatprep.subr.mxu0 0.0
        %4035 = vmatpush1.msra.mxu0 %v3991
        %4036 = vmatprep.subr.mxu0 0.0
        %4037 = vmatpush1.msra.mxu0 %v3992
        %4038 = vmatprep.subr.mxu0 0.0
        %4039 = vmatpush1.msra.mxu0 %v3993
        %4040 = vmatprep.subr.mxu0 0.0
        %4041 = vmatpush1.msra.mxu0 %v3994
        %4042 = vmatprep.subr.mxu0 0.0
        %4043 = vmatpush1.msra.mxu0 %v3995
        %4044 = vmatprep.subr.mxu0 0.0
        %4045 = vmatpush1.msra.mxu0 %v3996
        %4046 = vmatprep.subr.mxu0 0.0
        %4047 = vmatpush1.msra.mxu0 %v3997
        %4048 = vmatprep.subr.mxu0 0.0
        %4049 = vmatpush1.msra.mxu0 %v3998
        %4050 = vmatprep.subr.mxu0 0.0
        %4051 = vmatpush1.msra.mxu0 %v3999
        %4052 = vmatprep.subr.mxu0 0.0
        %4053 = vmatpush1.msra.mxu0 %v4000
        %4054 = vmatprep.subr.mxu0 0.0
        %4055 = vmatpush1.msra.mxu0 %v4001
        %4056 = vmatprep.subr.mxu0 0.0
        %4057 = vmatpush1.msra.mxu0 %v4002
        %4058 = vmatprep.subr.mxu0 0.0
        %4059 = vmatpush1.msra.mxu0 %v4003
        %4060 = vmatprep.subr.mxu0 0.0
        %4061 = vmatpush1.msra.mxu0 %v4004
        %4062 = vmatprep.subr.mxu0 0.0
        %4063 = vmatpush1.msra.mxu0 0.0
        %4064 = vmatprep.subr.mxu0 0.0
        %4065 = vmatpush1.msra.mxu0 0.0
        %4066 = vmatprep.subr.mxu0 0.0
        %4067 = vmatpush1.msra.mxu0 0.0
        %4068 = vmatprep.subr.mxu0 0.0
        %4069 = vmatpush1.msra.mxu0 0.0
        %4070 = vmatprep.subr.mxu0 0.0
        %4071 = vmatpush1.msra.mxu0 0.0
        %4072 = vmatprep.subr.mxu0 0.0
        %4073 = vmatpush1.msra.mxu0 0.0
        %4074 = vmatprep.subr.mxu0 0.0
        %4075 = vmatpush1.msra.mxu0 0.0
        %4076 = vmatprep.subr.mxu0 0.0
        %4077 = vmatpush1.msra.mxu0 0.0
        %4078 = vmatprep.mubr.f32.mxu0 %v4012
        %4079 = vmatmul.mubr.f32.gmra.mrb[0].mxu0 %v3980
        %v4080 = vpop.f32.mrb[0].mxu0
        %v4081 = vadd.f32 %v4010, %v4080
        %v4082 = vpop.f32.mrb[0].mxu0
        %4083 = vdwg.mxu0
        %v4084 = vld [vmem:[%s12] sm:$0x3]
        %vm4085 = vcmask 48128
        %v4087 = vsel %vm4085, %v4084, 0
        %v4090 = vsel %vm695, %v4081, 0
        %4092 = vmatprep.subr.mxu0 0.0
        %4093 = vmatpush1.msra.mxu0 %v4090
        %4094 = vmatprep.subr.mxu0 0.0
        %4095 = vmatpush1.msra.mxu0 0.0
        %4096 = vmatprep.subr.mxu0 0.0
        %4097 = vmatpush1.msra.mxu0 0.0
        %4098 = vmatprep.subr.mxu0 0.0
        %4099 = vmatpush1.msra.mxu0 0.0
        %4100 = vmatprep.subr.mxu0 0.0
        %4101 = vmatpush1.msra.mxu0 0.0
        %4102 = vmatprep.subr.mxu0 0.0
        %4103 = vmatpush1.msra.mxu0 0.0
        %4104 = vmatprep.subr.mxu0 0.0
        %4105 = vmatpush1.msra.mxu0 0.0
        %4106 = vmatprep.subr.mxu0 0.0
        %4107 = vmatpush1.msra.mxu0 0.0
        %4108 = vmatprep.subr.mxu0 0.0
        %4109 = vmatpush1.msra.mxu0 0.0
        %4110 = vmatprep.subr.mxu0 0.0
        %4111 = vmatpush1.msra.mxu0 0.0
        %4112 = vmatprep.subr.mxu0 0.0
        %4113 = vmatpush1.msra.mxu0 0.0
        %4114 = vmatprep.subr.mxu0 0.0
        %4115 = vmatpush1.msra.mxu0 0.0
        %4116 = vmatprep.subr.mxu0 0.0
        %4117 = vmatpush1.msra.mxu0 0.0
        %4118 = vmatprep.subr.mxu0 0.0
        %4119 = vmatpush1.msra.mxu0 0.0
        %4120 = vmatprep.subr.mxu0 0.0
        %4121 = vmatpush1.msra.mxu0 0.0
        %4122 = vmatprep.subr.mxu0 0.0
        %4123 = vmatpush1.msra.mxu0 0.0
        %4124 = vmatprep.subr.mxu0 0.0
        %4125 = vmatpush1.msra.mxu0 0.0
        %4126 = vmatprep.subr.mxu0 0.0
        %4127 = vmatpush1.msra.mxu0 0.0
        %4128 = vmatprep.subr.mxu0 0.0
        %4129 = vmatpush1.msra.mxu0 0.0
        %4130 = vmatprep.subr.mxu0 0.0
        %4131 = vmatpush1.msra.mxu0 0.0
        %4132 = vmatprep.subr.mxu0 0.0
        %4133 = vmatpush1.msra.mxu0 0.0
        %4134 = vmatprep.subr.mxu0 0.0
        %4135 = vmatpush1.msra.mxu0 0.0
        %4136 = vmatprep.subr.mxu0 0.0
        %4137 = vmatpush1.msra.mxu0 0.0
        %4138 = vmatprep.subr.mxu0 0.0
        %4139 = vmatpush1.msra.mxu0 0.0
        %4140 = vmatprep.subr.mxu0 0.0
        %4141 = vmatpush1.msra.mxu0 0.0
        %4142 = vmatprep.subr.mxu0 0.0
        %4143 = vmatpush1.msra.mxu0 0.0
        %4144 = vmatprep.subr.mxu0 0.0
        %4145 = vmatpush1.msra.mxu0 0.0
        %4146 = vmatprep.subr.mxu0 0.0
        %4147 = vmatpush1.msra.mxu0 0.0
        %4148 = vmatprep.subr.mxu0 0.0
        %4149 = vmatpush1.msra.mxu0 0.0
        %4150 = vmatprep.subr.mxu0 0.0
        %4151 = vmatpush1.msra.mxu0 0.0
        %4152 = vmatprep.subr.mxu0 0.0
        %4153 = vmatpush1.msra.mxu0 0.0
        %4154 = vmatprep.subr.mxu0 0.0
        %4155 = vmatpush1.msra.mxu0 0.0
        %4156 = vmatprep.mubr.f32.mxu0 0.0
        %4157 = vmatmul.mubr.f32.gmra.mrb[0].mxu0 %v4087
        %v4158 = vpop.f32.mrb[0].mxu0
        %v4159 = vadd.f32 0.0, %v4158
        %v4160 = vpop.f32.mrb[0].mxu0
        %4161 = vdwg.mxu0
        %v4162 = vmax.f32 %v4159, 0.0
        %s4163 = scalar_lea.vmem %s434, 304
        %v4164 = vld [vmem:[%s4163] sm:$0xff]
        %v4165 = vld [vmem:[%s4163 + $0x8] sm:$0xff]
        %v4166 = vld [vmem:[%s4163 + $0x10] sm:$0xff]
        %v4167 = vld [vmem:[%s4163 + $0x18] sm:$0xff]
        %v4168 = vld [vmem:[%s4163 + $0x20] sm:$0xff]
        %v4169 = vld [vmem:[%s4163 + $0x28] sm:$0xff]
        %v4170 = vld [vmem:[%s4163 + $0x30] sm:$0xff]
        %v4171 = vld [vmem:[%s4163 + $0x38] sm:$0xff]
        %v4172 = vld [vmem:[%s4163 + $0x40] sm:$0xff]
        %v4173 = vld [vmem:[%s4163 + $0x48] sm:$0xff]
        %v4174 = vld [vmem:[%s4163 + $0x50] sm:$0xff]
        %v4175 = vld [vmem:[%s4163 + $0x58] sm:$0xff]
        %v4176 = vld [vmem:[%s4163 + $0x60] sm:$0xff]
        %v4177 = vld [vmem:[%s4163 + $0x68] sm:$0xff]
        %v4178 = vld [vmem:[%s4163 + $0x70] sm:$0xff]
        %v4179 = vld [vmem:[%s4163 + $0x78] sm:$0xff]
        %v4180 = vld [vmem:[%s4163 + $0x80] sm:$0xff]
        %v4181 = vld [vmem:[%s4163 + $0x88] sm:$0xff]
        %v4182 = vld [vmem:[%s4163 + $0x90] sm:$0xff]
        %v4183 = vld [vmem:[%s4163 + $0x98] sm:$0xff]
        %v4184 = vld [vmem:[%s4163 + $0xa0] sm:$0xff]
        %v4185 = vld [vmem:[%s4163 + $0xa8] sm:$0xff]
        %v4186 = vld [vmem:[%s4163 + $0xb0] sm:$0xff]
        %v4187 = vld [vmem:[%s4163 + $0xb8] sm:$0xff]
        %v4188 = vld [vmem:[%s4163 + $0xc0] sm:$0xff]
        %v4189 = vld [vmem:[%s4163 + $0xc8] sm:$0xff]
        %v4190 = vld [vmem:[%s4163 + $0xd0] sm:$0xff]
        %v4191 = vld [vmem:[%s4163 + $0xd8] sm:$0xff]
        %v4192 = vld [vmem:[%s4163 + $0xe0] sm:$0xff]
        %v4193 = vld [vmem:[%s4163 + $0xe8] sm:$0xff]
        %v4194 = vld [vmem:[%s4163 + $0xf0] sm:$0xff]
        %v4195 = vld [vmem:[%s4163 + $0xf8] sm:$0xff]
        %v4196 = vld [vmem:[%s4163 + $0x100] sm:$0xff]
        %v4197 = vld [vmem:[%s4163 + $0x108] sm:$0xff]
        %v4198 = vld [vmem:[%s4163 + $0x110] sm:$0xff]
        %v4199 = vld [vmem:[%s4163 + $0x118] sm:$0xff]
        %v4200 = vld [vmem:[%s4163 + $0x120] sm:$0xff]
        %v4201 = vld [vmem:[%s4163 + $0x128] sm:$0xf]
        %v4239 = vrot.slane %v4164, 1
        %v4240 = vrot.slane %v4165, 1
        %v4241 = vsel %vm510, %v4239, %v4240
        %v4242 = vrot.slane %v4166, 1
        %v4243 = vsel %vm510, %v4240, %v4242
        %v4244 = vrot.slane %v4167, 1
        %v4245 = vsel %vm510, %v4242, %v4244
        %v4246 = vrot.slane %v4168, 1
        %v4247 = vsel %vm510, %v4244, %v4246
        %v4248 = vrot.slane %v4169, 1
        %v4249 = vsel %vm510, %v4246, %v4248
        %v4250 = vrot.slane %v4170, 1
        %v4251 = vsel %vm510, %v4248, %v4250
        %v4252 = vrot.slane %v4171, 1
        %v4253 = vsel %vm510, %v4250, %v4252
        %v4254 = vrot.slane %v4172, 1
        %v4255 = vsel %vm510, %v4252, %v4254
        %v4256 = vrot.slane %v4173, 1
        %v4257 = vsel %vm510, %v4254, %v4256
        %v4258 = vrot.slane %v4174, 1
        %v4259 = vsel %vm510, %v4256, %v4258
        %v4260 = vrot.slane %v4175, 1
        %v4261 = vsel %vm510, %v4258, %v4260
        %v4262 = vrot.slane %v4176, 1
        %v4263 = vsel %vm510, %v4260, %v4262
        %v4264 = vrot.slane %v4177, 1
        %v4265 = vsel %vm510, %v4262, %v4264
        %v4266 = vrot.slane %v4178, 1
        %v4267 = vsel %vm510, %v4264, %v4266
        %v4268 = vrot.slane %v4179, 1
        %v4269 = vsel %vm510, %v4266, %v4268
        %v4270 = vrot.slane %v4180, 1
        %v4271 = vsel %vm510, %v4268, %v4270
        %v4272 = vrot.slane %v4181, 1
        %v4273 = vsel %vm510, %v4270, %v4272
        %v4274 = vrot.slane %v4182, 1
        %v4275 = vsel %vm510, %v4272, %v4274
        %v4276 = vrot.slane %v4183, 1
        %v4277 = vsel %vm510, %v4274, %v4276
        %v4278 = vrot.slane %v4184, 1
        %v4279 = vsel %vm510, %v4276, %v4278
        %v4280 = vrot.slane %v4185, 1
        %v4281 = vsel %vm510, %v4278, %v4280
        %v4282 = vrot.slane %v4186, 1
        %v4283 = vsel %vm510, %v4280, %v4282
        %v4284 = vrot.slane %v4187, 1
        %v4285 = vsel %vm510, %v4282, %v4284
        %v4286 = vrot.slane %v4188, 1
        %v4287 = vsel %vm510, %v4284, %v4286
        %v4288 = vrot.slane %v4189, 1
        %v4289 = vsel %vm510, %v4286, %v4288
        %v4290 = vrot.slane %v4190, 1
        %v4291 = vsel %vm510, %v4288, %v4290
        %v4292 = vrot.slane %v4191, 1
        %v4293 = vsel %vm510, %v4290, %v4292
        %v4294 = vrot.slane %v4192, 1
        %v4295 = vsel %vm510, %v4292, %v4294
        %v4296 = vrot.slane %v4193, 1
        %v4297 = vsel %vm510, %v4294, %v4296
        %v4298 = vrot.slane %v4194, 1
        %v4299 = vsel %vm510, %v4296, %v4298
        %v4300 = vrot.slane %v4195, 1
        %v4301 = vsel %vm510, %v4298, %v4300
        %v4302 = vrot.slane %v4196, 1
        %v4303 = vsel %vm510, %v4300, %v4302
        %v4304 = vrot.slane %v4197, 1
        %v4305 = vsel %vm510, %v4302, %v4304
        %v4306 = vrot.slane %v4198, 1
        %v4307 = vsel %vm510, %v4304, %v4306
        %v4308 = vrot.slane %v4199, 1
        %v4309 = vsel %vm510, %v4306, %v4308
        %v4310 = vrot.slane %v4200, 1
        %v4311 = vsel %vm510, %v4308, %v4310
        %4312 = vrot.lane.b32.xlu0 %v4241, 8
        %v4313 = vpop.permute.xlu0 %4312
        %4314 = vrot.lane.b32.xlu0 %v4243, 8
        %v4315 = vpop.permute.xlu0 %4314
        %4316 = vrot.lane.b32.xlu0 %v4245, 8
        %v4317 = vpop.permute.xlu0 %4316
        %4318 = vrot.lane.b32.xlu0 %v4247, 8
        %v4319 = vpop.permute.xlu0 %4318
        %4320 = vrot.lane.b32.xlu0 %v4249, 8
        %v4321 = vpop.permute.xlu0 %4320
        %4322 = vrot.lane.b32.xlu0 %v4251, 8
        %v4323 = vpop.permute.xlu0 %4322
        %4324 = vrot.lane.b32.xlu0 %v4253, 8
        %v4325 = vpop.permute.xlu0 %4324
        %4326 = vrot.lane.b32.xlu0 %v4255, 8
        %v4327 = vpop.permute.xlu0 %4326
        %4328 = vrot.lane.b32.xlu0 %v4257, 8
        %v4329 = vpop.permute.xlu0 %4328
        %4330 = vrot.lane.b32.xlu0 %v4259, 8
        %v4331 = vpop.permute.xlu0 %4330
        %4332 = vrot.lane.b32.xlu0 %v4261, 8
        %v4333 = vpop.permute.xlu0 %4332
        %4334 = vrot.lane.b32.xlu0 %v4263, 8
        %v4335 = vpop.permute.xlu0 %4334
        %4336 = vrot.lane.b32.xlu0 %v4265, 8
        %v4337 = vpop.permute.xlu0 %4336
        %4338 = vrot.lane.b32.xlu0 %v4267, 8
        %v4339 = vpop.permute.xlu0 %4338
        %4340 = vrot.lane.b32.xlu0 %v4269, 8
        %v4341 = vpop.permute.xlu0 %4340
        %4342 = vrot.lane.b32.xlu0 %v4271, 8
        %v4343 = vpop.permute.xlu0 %4342
        %4344 = vrot.lane.b32.xlu0 %v4273, 8
        %v4345 = vpop.permute.xlu0 %4344
        %4346 = vrot.lane.b32.xlu0 %v4275, 8
        %v4347 = vpop.permute.xlu0 %4346
        %4348 = vrot.lane.b32.xlu0 %v4277, 8
        %v4349 = vpop.permute.xlu0 %4348
        %4350 = vrot.lane.b32.xlu0 %v4279, 8
        %v4351 = vpop.permute.xlu0 %4350
        %4352 = vrot.lane.b32.xlu0 %v4281, 8
        %v4353 = vpop.permute.xlu0 %4352
        %4354 = vrot.lane.b32.xlu0 %v4283, 8
        %v4355 = vpop.permute.xlu0 %4354
        %4356 = vrot.lane.b32.xlu0 %v4285, 8
        %v4357 = vpop.permute.xlu0 %4356
        %4358 = vrot.lane.b32.xlu0 %v4287, 8
        %v4359 = vpop.permute.xlu0 %4358
        %4360 = vrot.lane.b32.xlu0 %v4289, 8
        %v4361 = vpop.permute.xlu0 %4360
        %4362 = vrot.lane.b32.xlu0 %v4291, 8
        %v4363 = vpop.permute.xlu0 %4362
        %4364 = vrot.lane.b32.xlu0 %v4293, 8
        %v4365 = vpop.permute.xlu0 %4364
        %4366 = vrot.lane.b32.xlu0 %v4295, 8
        %v4367 = vpop.permute.xlu0 %4366
        %4368 = vrot.lane.b32.xlu0 %v4297, 8
        %v4369 = vpop.permute.xlu0 %4368
        %4370 = vrot.lane.b32.xlu0 %v4299, 8
        %v4371 = vpop.permute.xlu0 %4370
        %4372 = vrot.lane.b32.xlu0 %v4301, 8
        %v4373 = vpop.permute.xlu0 %4372
        %4374 = vrot.lane.b32.xlu0 %v4303, 8
        %v4375 = vpop.permute.xlu0 %4374
        %4376 = vrot.lane.b32.xlu0 %v4305, 8
        %v4377 = vpop.permute.xlu0 %4376
        %4378 = vrot.lane.b32.xlu0 %v4307, 8
        %v4379 = vpop.permute.xlu0 %4378
        %4380 = vrot.lane.b32.xlu0 %v4309, 8
        %v4381 = vpop.permute.xlu0 %4380
        %4382 = vrot.lane.b32.xlu0 %v4311, 8
        %v4383 = vpop.permute.xlu0 %4382
        %4384 = vrot.lane.b32.xlu0 %v4310, 8
        %v4385 = vpop.permute.xlu0 %4384
        %v4423 = vrot.slane %v4164, 2
        %v4424 = vrot.slane %v4165, 2
        %v4425 = vsel %vm695, %v4423, %v4424
        %v4426 = vrot.slane %v4166, 2
        %v4427 = vsel %vm695, %v4424, %v4426
        %v4428 = vrot.slane %v4167, 2
        %v4429 = vsel %vm695, %v4426, %v4428
        %v4430 = vrot.slane %v4168, 2
        %v4431 = vsel %vm695, %v4428, %v4430
        %v4432 = vrot.slane %v4169, 2
        %v4433 = vsel %vm695, %v4430, %v4432
        %v4434 = vrot.slane %v4170, 2
        %v4435 = vsel %vm695, %v4432, %v4434
        %v4436 = vrot.slane %v4171, 2
        %v4437 = vsel %vm695, %v4434, %v4436
        %v4438 = vrot.slane %v4172, 2
        %v4439 = vsel %vm695, %v4436, %v4438
        %v4440 = vrot.slane %v4173, 2
        %v4441 = vsel %vm695, %v4438, %v4440
        %v4442 = vrot.slane %v4174, 2
        %v4443 = vsel %vm695, %v4440, %v4442
        %v4444 = vrot.slane %v4175, 2
        %v4445 = vsel %vm695, %v4442, %v4444
        %v4446 = vrot.slane %v4176, 2
        %v4447 = vsel %vm695, %v4444, %v4446
        %v4448 = vrot.slane %v4177, 2
        %v4449 = vsel %vm695, %v4446, %v4448
        %v4450 = vrot.slane %v4178, 2
        %v4451 = vsel %vm695, %v4448, %v4450
        %v4452 = vrot.slane %v4179, 2
        %v4453 = vsel %vm695, %v4450, %v4452
        %v4454 = vrot.slane %v4180, 2
        %v4455 = vsel %vm695, %v4452, %v4454
        %v4456 = vrot.slane %v4181, 2
        %v4457 = vsel %vm695, %v4454, %v4456
        %v4458 = vrot.slane %v4182, 2
        %v4459 = vsel %vm695, %v4456, %v4458
        %v4460 = vrot.slane %v4183, 2
        %v4461 = vsel %vm695, %v4458, %v4460
        %v4462 = vrot.slane %v4184, 2
        %v4463 = vsel %vm695, %v4460, %v4462
        %v4464 = vrot.slane %v4185, 2
        %v4465 = vsel %vm695, %v4462, %v4464
        %v4466 = vrot.slane %v4186, 2
        %v4467 = vsel %vm695, %v4464, %v4466
        %v4468 = vrot.slane %v4187, 2
        %v4469 = vsel %vm695, %v4466, %v4468
        %v4470 = vrot.slane %v4188, 2
        %v4471 = vsel %vm695, %v4468, %v4470
        %v4472 = vrot.slane %v4189, 2
        %v4473 = vsel %vm695, %v4470, %v4472
        %v4474 = vrot.slane %v4190, 2
        %v4475 = vsel %vm695, %v4472, %v4474
        %v4476 = vrot.slane %v4191, 2
        %v4477 = vsel %vm695, %v4474, %v4476
        %v4478 = vrot.slane %v4192, 2
        %v4479 = vsel %vm695, %v4476, %v4478
        %v4480 = vrot.slane %v4193, 2
        %v4481 = vsel %vm695, %v4478, %v4480
        %v4482 = vrot.slane %v4194, 2
        %v4483 = vsel %vm695, %v4480, %v4482
        %v4484 = vrot.slane %v4195, 2
        %v4485 = vsel %vm695, %v4482, %v4484
        %v4486 = vrot.slane %v4196, 2
        %v4487 = vsel %vm695, %v4484, %v4486
        %v4488 = vrot.slane %v4197, 2
        %v4489 = vsel %vm695, %v4486, %v4488
        %v4490 = vrot.slane %v4198, 2
        %v4491 = vsel %vm695, %v4488, %v4490
        %v4492 = vrot.slane %v4199, 2
        %v4493 = vsel %vm695, %v4490, %v4492
        %v4494 = vrot.slane %v4200, 2
        %v4495 = vsel %vm695, %v4492, %v4494
        %4496 = vrot.lane.b32.xlu0 %v4425, 16
        %v4497 = vpop.permute.xlu0 %4496
        %4498 = vrot.lane.b32.xlu0 %v4427, 16
        %v4499 = vpop.permute.xlu0 %4498
        %4500 = vrot.lane.b32.xlu0 %v4429, 16
        %v4501 = vpop.permute.xlu0 %4500
        %4502 = vrot.lane.b32.xlu0 %v4431, 16
        %v4503 = vpop.permute.xlu0 %4502
        %4504 = vrot.lane.b32.xlu0 %v4433, 16
        %v4505 = vpop.permute.xlu0 %4504
        %4506 = vrot.lane.b32.xlu0 %v4435, 16
        %v4507 = vpop.permute.xlu0 %4506
        %4508 = vrot.lane.b32.xlu0 %v4437, 16
        %v4509 = vpop.permute.xlu0 %4508
        %4510 = vrot.lane.b32.xlu0 %v4439, 16
        %v4511 = vpop.permute.xlu0 %4510
        %4512 = vrot.lane.b32.xlu0 %v4441, 16
        %v4513 = vpop.permute.xlu0 %4512
        %4514 = vrot.lane.b32.xlu0 %v4443, 16
        %v4515 = vpop.permute.xlu0 %4514
        %4516 = vrot.lane.b32.xlu0 %v4445, 16
        %v4517 = vpop.permute.xlu0 %4516
        %4518 = vrot.lane.b32.xlu0 %v4447, 16
        %v4519 = vpop.permute.xlu0 %4518
        %4520 = vrot.lane.b32.xlu0 %v4449, 16
        %v4521 = vpop.permute.xlu0 %4520
        %4522 = vrot.lane.b32.xlu0 %v4451, 16
        %v4523 = vpop.permute.xlu0 %4522
        %4524 = vrot.lane.b32.xlu0 %v4453, 16
        %v4525 = vpop.permute.xlu0 %4524
        %4526 = vrot.lane.b32.xlu0 %v4455, 16
        %v4527 = vpop.permute.xlu0 %4526
        %4528 = vrot.lane.b32.xlu0 %v4457, 16
        %v4529 = vpop.permute.xlu0 %4528
        %4530 = vrot.lane.b32.xlu0 %v4459, 16
        %v4531 = vpop.permute.xlu0 %4530
        %4532 = vrot.lane.b32.xlu0 %v4461, 16
        %v4533 = vpop.permute.xlu0 %4532
        %4534 = vrot.lane.b32.xlu0 %v4463, 16
        %v4535 = vpop.permute.xlu0 %4534
        %4536 = vrot.lane.b32.xlu0 %v4465, 16
        %v4537 = vpop.permute.xlu0 %4536
        %4538 = vrot.lane.b32.xlu0 %v4467, 16
        %v4539 = vpop.permute.xlu0 %4538
        %4540 = vrot.lane.b32.xlu0 %v4469, 16
        %v4541 = vpop.permute.xlu0 %4540
        %4542 = vrot.lane.b32.xlu0 %v4471, 16
        %v4543 = vpop.permute.xlu0 %4542
        %4544 = vrot.lane.b32.xlu0 %v4473, 16
        %v4545 = vpop.permute.xlu0 %4544
        %4546 = vrot.lane.b32.xlu0 %v4475, 16
        %v4547 = vpop.permute.xlu0 %4546
        %4548 = vrot.lane.b32.xlu0 %v4477, 16
        %v4549 = vpop.permute.xlu0 %4548
        %4550 = vrot.lane.b32.xlu0 %v4479, 16
        %v4551 = vpop.permute.xlu0 %4550
        %4552 = vrot.lane.b32.xlu0 %v4481, 16
        %v4553 = vpop.permute.xlu0 %4552
        %4554 = vrot.lane.b32.xlu0 %v4483, 16
        %v4555 = vpop.permute.xlu0 %4554
        %4556 = vrot.lane.b32.xlu0 %v4485, 16
        %v4557 = vpop.permute.xlu0 %4556
        %4558 = vrot.lane.b32.xlu0 %v4487, 16
        %v4559 = vpop.permute.xlu0 %4558
        %4560 = vrot.lane.b32.xlu0 %v4489, 16
        %v4561 = vpop.permute.xlu0 %4560
        %4562 = vrot.lane.b32.xlu0 %v4491, 16
        %v4563 = vpop.permute.xlu0 %4562
        %4564 = vrot.lane.b32.xlu0 %v4493, 16
        %v4565 = vpop.permute.xlu0 %4564
        %4566 = vrot.lane.b32.xlu0 %v4495, 16
        %v4567 = vpop.permute.xlu0 %4566
        %4568 = vrot.lane.b32.xlu0 %v4494, 16
        %v4569 = vpop.permute.xlu0 %4568
        %v4607 = vrot.slane %v4164, 3
        %v4608 = vrot.slane %v4165, 3
        %v4609 = vsel %vm880, %v4607, %v4608
        %v4610 = vrot.slane %v4166, 3
        %v4611 = vsel %vm880, %v4608, %v4610
        %v4612 = vrot.slane %v4167, 3
        %v4613 = vsel %vm880, %v4610, %v4612
        %v4614 = vrot.slane %v4168, 3
        %v4615 = vsel %vm880, %v4612, %v4614
        %v4616 = vrot.slane %v4169, 3
        %v4617 = vsel %vm880, %v4614, %v4616
        %v4618 = vrot.slane %v4170, 3
        %v4619 = vsel %vm880, %v4616, %v4618
        %v4620 = vrot.slane %v4171, 3
        %v4621 = vsel %vm880, %v4618, %v4620
        %v4622 = vrot.slane %v4172, 3
        %v4623 = vsel %vm880, %v4620, %v4622
        %v4624 = vrot.slane %v4173, 3
        %v4625 = vsel %vm880, %v4622, %v4624
        %v4626 = vrot.slane %v4174, 3
        %v4627 = vsel %vm880, %v4624, %v4626
        %v4628 = vrot.slane %v4175, 3
        %v4629 = vsel %vm880, %v4626, %v4628
        %v4630 = vrot.slane %v4176, 3
        %v4631 = vsel %vm880, %v4628, %v4630
        %v4632 = vrot.slane %v4177, 3
        %v4633 = vsel %vm880, %v4630, %v4632
        %v4634 = vrot.slane %v4178, 3
        %v4635 = vsel %vm880, %v4632, %v4634
        %v4636 = vrot.slane %v4179, 3
        %v4637 = vsel %vm880, %v4634, %v4636
        %v4638 = vrot.slane %v4180, 3
        %v4639 = vsel %vm880, %v4636, %v4638
        %v4640 = vrot.slane %v4181, 3
        %v4641 = vsel %vm880, %v4638, %v4640
        %v4642 = vrot.slane %v4182, 3
        %v4643 = vsel %vm880, %v4640, %v4642
        %v4644 = vrot.slane %v4183, 3
        %v4645 = vsel %vm880, %v4642, %v4644
        %v4646 = vrot.slane %v4184, 3
        %v4647 = vsel %vm880, %v4644, %v4646
        %v4648 = vrot.slane %v4185, 3
        %v4649 = vsel %vm880, %v4646, %v4648
        %v4650 = vrot.slane %v4186, 3
        %v4651 = vsel %vm880, %v4648, %v4650
        %v4652 = vrot.slane %v4187, 3
        %v4653 = vsel %vm880, %v4650, %v4652
        %v4654 = vrot.slane %v4188, 3
        %v4655 = vsel %vm880, %v4652, %v4654
        %v4656 = vrot.slane %v4189, 3
        %v4657 = vsel %vm880, %v4654, %v4656
        %v4658 = vrot.slane %v4190, 3
        %v4659 = vsel %vm880, %v4656, %v4658
        %v4660 = vrot.slane %v4191, 3
        %v4661 = vsel %vm880, %v4658, %v4660
        %v4662 = vrot.slane %v4192, 3
        %v4663 = vsel %vm880, %v4660, %v4662
        %v4664 = vrot.slane %v4193, 3
        %v4665 = vsel %vm880, %v4662, %v4664
        %v4666 = vrot.slane %v4194, 3
        %v4667 = vsel %vm880, %v4664, %v4666
        %v4668 = vrot.slane %v4195, 3
        %v4669 = vsel %vm880, %v4666, %v4668
        %v4670 = vrot.slane %v4196, 3
        %v4671 = vsel %vm880, %v4668, %v4670
        %v4672 = vrot.slane %v4197, 3
        %v4673 = vsel %vm880, %v4670, %v4672
        %v4674 = vrot.slane %v4198, 3
        %v4675 = vsel %vm880, %v4672, %v4674
        %v4676 = vrot.slane %v4199, 3
        %v4677 = vsel %vm880, %v4674, %v4676
        %v4678 = vrot.slane %v4200, 3
        %v4679 = vsel %vm880, %v4676, %v4678
        %4680 = vrot.lane.b32.xlu0 %v4609, 24
        %v4681 = vpop.permute.xlu0 %4680
        %4682 = vrot.lane.b32.xlu0 %v4611, 24
        %v4683 = vpop.permute.xlu0 %4682
        %4684 = vrot.lane.b32.xlu0 %v4613, 24
        %v4685 = vpop.permute.xlu0 %4684
        %4686 = vrot.lane.b32.xlu0 %v4615, 24
        %v4687 = vpop.permute.xlu0 %4686
        %4688 = vrot.lane.b32.xlu0 %v4617, 24
        %v4689 = vpop.permute.xlu0 %4688
        %4690 = vrot.lane.b32.xlu0 %v4619, 24
        %v4691 = vpop.permute.xlu0 %4690
        %4692 = vrot.lane.b32.xlu0 %v4621, 24
        %v4693 = vpop.permute.xlu0 %4692
        %4694 = vrot.lane.b32.xlu0 %v4623, 24
        %v4695 = vpop.permute.xlu0 %4694
        %4696 = vrot.lane.b32.xlu0 %v4625, 24
        %v4697 = vpop.permute.xlu0 %4696
        %4698 = vrot.lane.b32.xlu0 %v4627, 24
        %v4699 = vpop.permute.xlu0 %4698
        %4700 = vrot.lane.b32.xlu0 %v4629, 24
        %v4701 = vpop.permute.xlu0 %4700
        %4702 = vrot.lane.b32.xlu0 %v4631, 24
        %v4703 = vpop.permute.xlu0 %4702
        %4704 = vrot.lane.b32.xlu0 %v4633, 24
        %v4705 = vpop.permute.xlu0 %4704
        %4706 = vrot.lane.b32.xlu0 %v4635, 24
        %v4707 = vpop.permute.xlu0 %4706
        %4708 = vrot.lane.b32.xlu0 %v4637, 24
        %v4709 = vpop.permute.xlu0 %4708
        %4710 = vrot.lane.b32.xlu0 %v4639, 24
        %v4711 = vpop.permute.xlu0 %4710
        %4712 = vrot.lane.b32.xlu0 %v4641, 24
        %v4713 = vpop.permute.xlu0 %4712
        %4714 = vrot.lane.b32.xlu0 %v4643, 24
        %v4715 = vpop.permute.xlu0 %4714
        %4716 = vrot.lane.b32.xlu0 %v4645, 24
        %v4717 = vpop.permute.xlu0 %4716
        %4718 = vrot.lane.b32.xlu0 %v4647, 24
        %v4719 = vpop.permute.xlu0 %4718
        %4720 = vrot.lane.b32.xlu0 %v4649, 24
        %v4721 = vpop.permute.xlu0 %4720
        %4722 = vrot.lane.b32.xlu0 %v4651, 24
        %v4723 = vpop.permute.xlu0 %4722
        %4724 = vrot.lane.b32.xlu0 %v4653, 24
        %v4725 = vpop.permute.xlu0 %4724
        %4726 = vrot.lane.b32.xlu0 %v4655, 24
        %v4727 = vpop.permute.xlu0 %4726
        %4728 = vrot.lane.b32.xlu0 %v4657, 24
        %v4729 = vpop.permute.xlu0 %4728
        %4730 = vrot.lane.b32.xlu0 %v4659, 24
        %v4731 = vpop.permute.xlu0 %4730
        %4732 = vrot.lane.b32.xlu0 %v4661, 24
        %v4733 = vpop.permute.xlu0 %4732
        %4734 = vrot.lane.b32.xlu0 %v4663, 24
        %v4735 = vpop.permute.xlu0 %4734
        %4736 = vrot.lane.b32.xlu0 %v4665, 24
        %v4737 = vpop.permute.xlu0 %4736
        %4738 = vrot.lane.b32.xlu0 %v4667, 24
        %v4739 = vpop.permute.xlu0 %4738
        %4740 = vrot.lane.b32.xlu0 %v4669, 24
        %v4741 = vpop.permute.xlu0 %4740
        %4742 = vrot.lane.b32.xlu0 %v4671, 24
        %v4743 = vpop.permute.xlu0 %4742
        %4744 = vrot.lane.b32.xlu0 %v4673, 24
        %v4745 = vpop.permute.xlu0 %4744
        %4746 = vrot.lane.b32.xlu0 %v4675, 24
        %v4747 = vpop.permute.xlu0 %4746
        %4748 = vrot.lane.b32.xlu0 %v4677, 24
        %v4749 = vpop.permute.xlu0 %4748
        %4750 = vrot.lane.b32.xlu0 %v4679, 24
        %v4751 = vpop.permute.xlu0 %4750
        %4752 = vrot.lane.b32.xlu0 %v4678, 24
        %v4753 = vpop.permute.xlu0 %4752
        %v4791 = vrot.slane %v4164, 4
        %v4792 = vrot.slane %v4165, 4
        %v4793 = vsel %vm1065, %v4791, %v4792
        %v4794 = vrot.slane %v4166, 4
        %v4795 = vsel %vm1065, %v4792, %v4794
        %v4796 = vrot.slane %v4167, 4
        %v4797 = vsel %vm1065, %v4794, %v4796
        %v4798 = vrot.slane %v4168, 4
        %v4799 = vsel %vm1065, %v4796, %v4798
        %v4800 = vrot.slane %v4169, 4
        %v4801 = vsel %vm1065, %v4798, %v4800
        %v4802 = vrot.slane %v4170, 4
        %v4803 = vsel %vm1065, %v4800, %v4802
        %v4804 = vrot.slane %v4171, 4
        %v4805 = vsel %vm1065, %v4802, %v4804
        %v4806 = vrot.slane %v4172, 4
        %v4807 = vsel %vm1065, %v4804, %v4806
        %v4808 = vrot.slane %v4173, 4
        %v4809 = vsel %vm1065, %v4806, %v4808
        %v4810 = vrot.slane %v4174, 4
        %v4811 = vsel %vm1065, %v4808, %v4810
        %v4812 = vrot.slane %v4175, 4
        %v4813 = vsel %vm1065, %v4810, %v4812
        %v4814 = vrot.slane %v4176, 4
        %v4815 = vsel %vm1065, %v4812, %v4814
        %v4816 = vrot.slane %v4177, 4
        %v4817 = vsel %vm1065, %v4814, %v4816
        %v4818 = vrot.slane %v4178, 4
        %v4819 = vsel %vm1065, %v4816, %v4818
        %v4820 = vrot.slane %v4179, 4
        %v4821 = vsel %vm1065, %v4818, %v4820
        %v4822 = vrot.slane %v4180, 4
        %v4823 = vsel %vm1065, %v4820, %v4822
        %v4824 = vrot.slane %v4181, 4
        %v4825 = vsel %vm1065, %v4822, %v4824
        %v4826 = vrot.slane %v4182, 4
        %v4827 = vsel %vm1065, %v4824, %v4826
        %v4828 = vrot.slane %v4183, 4
        %v4829 = vsel %vm1065, %v4826, %v4828
        %v4830 = vrot.slane %v4184, 4
        %v4831 = vsel %vm1065, %v4828, %v4830
        %v4832 = vrot.slane %v4185, 4
        %v4833 = vsel %vm1065, %v4830, %v4832
        %v4834 = vrot.slane %v4186, 4
        %v4835 = vsel %vm1065, %v4832, %v4834
        %v4836 = vrot.slane %v4187, 4
        %v4837 = vsel %vm1065, %v4834, %v4836
        %v4838 = vrot.slane %v4188, 4
        %v4839 = vsel %vm1065, %v4836, %v4838
        %v4840 = vrot.slane %v4189, 4
        %v4841 = vsel %vm1065, %v4838, %v4840
        %v4842 = vrot.slane %v4190, 4
        %v4843 = vsel %vm1065, %v4840, %v4842
        %v4844 = vrot.slane %v4191, 4
        %v4845 = vsel %vm1065, %v4842, %v4844
        %v4846 = vrot.slane %v4192, 4
        %v4847 = vsel %vm1065, %v4844, %v4846
        %v4848 = vrot.slane %v4193, 4
        %v4849 = vsel %vm1065, %v4846, %v4848
        %v4850 = vrot.slane %v4194, 4
        %v4851 = vsel %vm1065, %v4848, %v4850
        %v4852 = vrot.slane %v4195, 4
        %v4853 = vsel %vm1065, %v4850, %v4852
        %v4854 = vrot.slane %v4196, 4
        %v4855 = vsel %vm1065, %v4852, %v4854
        %v4856 = vrot.slane %v4197, 4
        %v4857 = vsel %vm1065, %v4854, %v4856
        %v4858 = vrot.slane %v4198, 4
        %v4859 = vsel %vm1065, %v4856, %v4858
        %v4860 = vrot.slane %v4199, 4
        %v4861 = vsel %vm1065, %v4858, %v4860
        %v4862 = vrot.slane %v4200, 4
        %v4863 = vsel %vm1065, %v4860, %v4862
        %4864 = vrot.lane.b32.xlu0 %v4793, 32
        %v4865 = vpop.permute.xlu0 %4864
        %4866 = vrot.lane.b32.xlu0 %v4795, 32
        %v4867 = vpop.permute.xlu0 %4866
        %4868 = vrot.lane.b32.xlu0 %v4797, 32
        %v4869 = vpop.permute.xlu0 %4868
        %4870 = vrot.lane.b32.xlu0 %v4799, 32
        %v4871 = vpop.permute.xlu0 %4870
        %4872 = vrot.lane.b32.xlu0 %v4801, 32
        %v4873 = vpop.permute.xlu0 %4872
        %4874 = vrot.lane.b32.xlu0 %v4803, 32
        %v4875 = vpop.permute.xlu0 %4874
        %4876 = vrot.lane.b32.xlu0 %v4805, 32
        %v4877 = vpop.permute.xlu0 %4876
        %4878 = vrot.lane.b32.xlu0 %v4807, 32
        %v4879 = vpop.permute.xlu0 %4878
        %4880 = vrot.lane.b32.xlu0 %v4809, 32
        %v4881 = vpop.permute.xlu0 %4880
        %4882 = vrot.lane.b32.xlu0 %v4811, 32
        %v4883 = vpop.permute.xlu0 %4882
        %4884 = vrot.lane.b32.xlu0 %v4813, 32
        %v4885 = vpop.permute.xlu0 %4884
        %4886 = vrot.lane.b32.xlu0 %v4815, 32
        %v4887 = vpop.permute.xlu0 %4886
        %4888 = vrot.lane.b32.xlu0 %v4817, 32
        %v4889 = vpop.permute.xlu0 %4888
        %4890 = vrot.lane.b32.xlu0 %v4819, 32
        %v4891 = vpop.permute.xlu0 %4890
        %4892 = vrot.lane.b32.xlu0 %v4821, 32
        %v4893 = vpop.permute.xlu0 %4892
        %4894 = vrot.lane.b32.xlu0 %v4823, 32
        %v4895 = vpop.permute.xlu0 %4894
        %4896 = vrot.lane.b32.xlu0 %v4825, 32
        %v4897 = vpop.permute.xlu0 %4896
        %4898 = vrot.lane.b32.xlu0 %v4827, 32
        %v4899 = vpop.permute.xlu0 %4898
        %4900 = vrot.lane.b32.xlu0 %v4829, 32
        %v4901 = vpop.permute.xlu0 %4900
        %4902 = vrot.lane.b32.xlu0 %v4831, 32
        %v4903 = vpop.permute.xlu0 %4902
        %4904 = vrot.lane.b32.xlu0 %v4833, 32
        %v4905 = vpop.permute.xlu0 %4904
        %4906 = vrot.lane.b32.xlu0 %v4835, 32
        %v4907 = vpop.permute.xlu0 %4906
        %4908 = vrot.lane.b32.xlu0 %v4837, 32
        %v4909 = vpop.permute.xlu0 %4908
        %4910 = vrot.lane.b32.xlu0 %v4839, 32
        %v4911 = vpop.permute.xlu0 %4910
        %4912 = vrot.lane.b32.xlu0 %v4841, 32
        %v4913 = vpop.permute.xlu0 %4912
        %4914 = vrot.lane.b32.xlu0 %v4843, 32
        %v4915 = vpop.permute.xlu0 %4914
        %4916 = vrot.lane.b32.xlu0 %v4845, 32
        %v4917 = vpop.permute.xlu0 %4916
        %4918 = vrot.lane.b32.xlu0 %v4847, 32
        %v4919 = vpop.permute.xlu0 %4918
        %4920 = vrot.lane.b32.xlu0 %v4849, 32
        %v4921 = vpop.permute.xlu0 %4920
        %4922 = vrot.lane.b32.xlu0 %v4851, 32
        %v4923 = vpop.permute.xlu0 %4922
        %4924 = vrot.lane.b32.xlu0 %v4853, 32
        %v4925 = vpop.permute.xlu0 %4924
        %4926 = vrot.lane.b32.xlu0 %v4855, 32
        %v4927 = vpop.permute.xlu0 %4926
        %4928 = vrot.lane.b32.xlu0 %v4857, 32
        %v4929 = vpop.permute.xlu0 %4928
        %4930 = vrot.lane.b32.xlu0 %v4859, 32
        %v4931 = vpop.permute.xlu0 %4930
        %4932 = vrot.lane.b32.xlu0 %v4861, 32
        %v4933 = vpop.permute.xlu0 %4932
        %4934 = vrot.lane.b32.xlu0 %v4863, 32
        %v4935 = vpop.permute.xlu0 %4934
        %4936 = vrot.lane.b32.xlu0 %v4862, 32
        %v4937 = vpop.permute.xlu0 %4936
        %v4976 = vrot.slane %v4164, 5
        %v4977 = vrot.slane %v4165, 5
        %v4978 = vsel %vm1251, %v4976, %v4977
        %v4979 = vrot.slane %v4166, 5
        %v4980 = vsel %vm1251, %v4977, %v4979
        %v4981 = vrot.slane %v4167, 5
        %v4982 = vsel %vm1251, %v4979, %v4981
        %v4983 = vrot.slane %v4168, 5
        %v4984 = vsel %vm1251, %v4981, %v4983
        %v4985 = vrot.slane %v4169, 5
        %v4986 = vsel %vm1251, %v4983, %v4985
        %v4987 = vrot.slane %v4170, 5
        %v4988 = vsel %vm1251, %v4985, %v4987
        %v4989 = vrot.slane %v4171, 5
        %v4990 = vsel %vm1251, %v4987, %v4989
        %v4991 = vrot.slane %v4172, 5
        %v4992 = vsel %vm1251, %v4989, %v4991
        %v4993 = vrot.slane %v4173, 5
        %v4994 = vsel %vm1251, %v4991, %v4993
        %v4995 = vrot.slane %v4174, 5
        %v4996 = vsel %vm1251, %v4993, %v4995
        %v4997 = vrot.slane %v4175, 5
        %v4998 = vsel %vm1251, %v4995, %v4997
        %v4999 = vrot.slane %v4176, 5
        %v5000 = vsel %vm1251, %v4997, %v4999
        %v5001 = vrot.slane %v4177, 5
        %v5002 = vsel %vm1251, %v4999, %v5001
        %v5003 = vrot.slane %v4178, 5
        %v5004 = vsel %vm1251, %v5001, %v5003
        %v5005 = vrot.slane %v4179, 5
        %v5006 = vsel %vm1251, %v5003, %v5005
        %v5007 = vrot.slane %v4180, 5
        %v5008 = vsel %vm1251, %v5005, %v5007
        %v5009 = vrot.slane %v4181, 5
        %v5010 = vsel %vm1251, %v5007, %v5009
        %v5011 = vrot.slane %v4182, 5
        %v5012 = vsel %vm1251, %v5009, %v5011
        %v5013 = vrot.slane %v4183, 5
        %v5014 = vsel %vm1251, %v5011, %v5013
        %v5015 = vrot.slane %v4184, 5
        %v5016 = vsel %vm1251, %v5013, %v5015
        %v5017 = vrot.slane %v4185, 5
        %v5018 = vsel %vm1251, %v5015, %v5017
        %v5019 = vrot.slane %v4186, 5
        %v5020 = vsel %vm1251, %v5017, %v5019
        %v5021 = vrot.slane %v4187, 5
        %v5022 = vsel %vm1251, %v5019, %v5021
        %v5023 = vrot.slane %v4188, 5
        %v5024 = vsel %vm1251, %v5021, %v5023
        %v5025 = vrot.slane %v4189, 5
        %v5026 = vsel %vm1251, %v5023, %v5025
        %v5027 = vrot.slane %v4190, 5
        %v5028 = vsel %vm1251, %v5025, %v5027
        %v5029 = vrot.slane %v4191, 5
        %v5030 = vsel %vm1251, %v5027, %v5029
        %v5031 = vrot.slane %v4192, 5
        %v5032 = vsel %vm1251, %v5029, %v5031
        %v5033 = vrot.slane %v4193, 5
        %v5034 = vsel %vm1251, %v5031, %v5033
        %v5035 = vrot.slane %v4194, 5
        %v5036 = vsel %vm1251, %v5033, %v5035
        %v5037 = vrot.slane %v4195, 5
        %v5038 = vsel %vm1251, %v5035, %v5037
        %v5039 = vrot.slane %v4196, 5
        %v5040 = vsel %vm1251, %v5037, %v5039
        %v5041 = vrot.slane %v4197, 5
        %v5042 = vsel %vm1251, %v5039, %v5041
        %v5043 = vrot.slane %v4198, 5
        %v5044 = vsel %vm1251, %v5041, %v5043
        %v5045 = vrot.slane %v4199, 5
        %v5046 = vsel %vm1251, %v5043, %v5045
        %v5047 = vrot.slane %v4200, 5
        %v5048 = vsel %vm1251, %v5045, %v5047
        %v5049 = vrot.slane %v4201, 5
        %v5050 = vsel %vm1251, %v5047, %v5049
        %5051 = vrot.lane.b32.xlu0 %v4978, 40
        %v5052 = vpop.permute.xlu0 %5051
        %5053 = vrot.lane.b32.xlu0 %v4980, 40
        %v5054 = vpop.permute.xlu0 %5053
        %5055 = vrot.lane.b32.xlu0 %v4982, 40
        %v5056 = vpop.permute.xlu0 %5055
        %5057 = vrot.lane.b32.xlu0 %v4984, 40
        %v5058 = vpop.permute.xlu0 %5057
        %5059 = vrot.lane.b32.xlu0 %v4986, 40
        %v5060 = vpop.permute.xlu0 %5059
        %5061 = vrot.lane.b32.xlu0 %v4988, 40
        %v5062 = vpop.permute.xlu0 %5061
        %5063 = vrot.lane.b32.xlu0 %v4990, 40
        %v5064 = vpop.permute.xlu0 %5063
        %5065 = vrot.lane.b32.xlu0 %v4992, 40
        %v5066 = vpop.permute.xlu0 %5065
        %5067 = vrot.lane.b32.xlu0 %v4994, 40
        %v5068 = vpop.permute.xlu0 %5067
        %5069 = vrot.lane.b32.xlu0 %v4996, 40
        %v5070 = vpop.permute.xlu0 %5069
        %5071 = vrot.lane.b32.xlu0 %v4998, 40
        %v5072 = vpop.permute.xlu0 %5071
        %5073 = vrot.lane.b32.xlu0 %v5000, 40
        %v5074 = vpop.permute.xlu0 %5073
        %5075 = vrot.lane.b32.xlu0 %v5002, 40
        %v5076 = vpop.permute.xlu0 %5075
        %5077 = vrot.lane.b32.xlu0 %v5004, 40
        %v5078 = vpop.permute.xlu0 %5077
        %5079 = vrot.lane.b32.xlu0 %v5006, 40
        %v5080 = vpop.permute.xlu0 %5079
        %5081 = vrot.lane.b32.xlu0 %v5008, 40
        %v5082 = vpop.permute.xlu0 %5081
        %5083 = vrot.lane.b32.xlu0 %v5010, 40
        %v5084 = vpop.permute.xlu0 %5083
        %5085 = vrot.lane.b32.xlu0 %v5012, 40
        %v5086 = vpop.permute.xlu0 %5085
        %5087 = vrot.lane.b32.xlu0 %v5014, 40
        %v5088 = vpop.permute.xlu0 %5087
        %5089 = vrot.lane.b32.xlu0 %v5016, 40
        %v5090 = vpop.permute.xlu0 %5089
        %5091 = vrot.lane.b32.xlu0 %v5018, 40
        %v5092 = vpop.permute.xlu0 %5091
        %5093 = vrot.lane.b32.xlu0 %v5020, 40
        %v5094 = vpop.permute.xlu0 %5093
        %5095 = vrot.lane.b32.xlu0 %v5022, 40
        %v5096 = vpop.permute.xlu0 %5095
        %5097 = vrot.lane.b32.xlu0 %v5024, 40
        %v5098 = vpop.permute.xlu0 %5097
        %5099 = vrot.lane.b32.xlu0 %v5026, 40
        %v5100 = vpop.permute.xlu0 %5099
        %5101 = vrot.lane.b32.xlu0 %v5028, 40
        %v5102 = vpop.permute.xlu0 %5101
        %5103 = vrot.lane.b32.xlu0 %v5030, 40
        %v5104 = vpop.permute.xlu0 %5103
        %5105 = vrot.lane.b32.xlu0 %v5032, 40
        %v5106 = vpop.permute.xlu0 %5105
        %5107 = vrot.lane.b32.xlu0 %v5034, 40
        %v5108 = vpop.permute.xlu0 %5107
        %5109 = vrot.lane.b32.xlu0 %v5036, 40
        %v5110 = vpop.permute.xlu0 %5109
        %5111 = vrot.lane.b32.xlu0 %v5038, 40
        %v5112 = vpop.permute.xlu0 %5111
        %5113 = vrot.lane.b32.xlu0 %v5040, 40
        %v5114 = vpop.permute.xlu0 %5113
        %5115 = vrot.lane.b32.xlu0 %v5042, 40
        %v5116 = vpop.permute.xlu0 %5115
        %5117 = vrot.lane.b32.xlu0 %v5044, 40
        %v5118 = vpop.permute.xlu0 %5117
        %5119 = vrot.lane.b32.xlu0 %v5046, 40
        %v5120 = vpop.permute.xlu0 %5119
        %5121 = vrot.lane.b32.xlu0 %v5048, 40
        %v5122 = vpop.permute.xlu0 %5121
        %5123 = vrot.lane.b32.xlu0 %v5050, 40
        %v5124 = vpop.permute.xlu0 %5123
        %v5162 = vrot.slane %v4164, 6
        %v5163 = vrot.slane %v4165, 6
        %v5164 = vsel %vm1438, %v5162, %v5163
        %v5165 = vrot.slane %v4166, 6
        %v5166 = vsel %vm1438, %v5163, %v5165
        %v5167 = vrot.slane %v4167, 6
        %v5168 = vsel %vm1438, %v5165, %v5167
        %v5169 = vrot.slane %v4168, 6
        %v5170 = vsel %vm1438, %v5167, %v5169
        %v5171 = vrot.slane %v4169, 6
        %v5172 = vsel %vm1438, %v5169, %v5171
        %v5173 = vrot.slane %v4170, 6
        %v5174 = vsel %vm1438, %v5171, %v5173
        %v5175 = vrot.slane %v4171, 6
        %v5176 = vsel %vm1438, %v5173, %v5175
        %v5177 = vrot.slane %v4172, 6
        %v5178 = vsel %vm1438, %v5175, %v5177
        %v5179 = vrot.slane %v4173, 6
        %v5180 = vsel %vm1438, %v5177, %v5179
        %v5181 = vrot.slane %v4174, 6
        %v5182 = vsel %vm1438, %v5179, %v5181
        %v5183 = vrot.slane %v4175, 6
        %v5184 = vsel %vm1438, %v5181, %v5183
        %v5185 = vrot.slane %v4176, 6
        %v5186 = vsel %vm1438, %v5183, %v5185
        %v5187 = vrot.slane %v4177, 6
        %v5188 = vsel %vm1438, %v5185, %v5187
        %v5189 = vrot.slane %v4178, 6
        %v5190 = vsel %vm1438, %v5187, %v5189
        %v5191 = vrot.slane %v4179, 6
        %v5192 = vsel %vm1438, %v5189, %v5191
        %v5193 = vrot.slane %v4180, 6
        %v5194 = vsel %vm1438, %v5191, %v5193
        %v5195 = vrot.slane %v4181, 6
        %v5196 = vsel %vm1438, %v5193, %v5195
        %v5197 = vrot.slane %v4182, 6
        %v5198 = vsel %vm1438, %v5195, %v5197
        %v5199 = vrot.slane %v4183, 6
        %v5200 = vsel %vm1438, %v5197, %v5199
        %v5201 = vrot.slane %v4184, 6
        %v5202 = vsel %vm1438, %v5199, %v5201
        %v5203 = vrot.slane %v4185, 6
        %v5204 = vsel %vm1438, %v5201, %v5203
        %v5205 = vrot.slane %v4186, 6
        %v5206 = vsel %vm1438, %v5203, %v5205
        %v5207 = vrot.slane %v4187, 6
        %v5208 = vsel %vm1438, %v5205, %v5207
        %v5209 = vrot.slane %v4188, 6
        %v5210 = vsel %vm1438, %v5207, %v5209
        %v5211 = vrot.slane %v4189, 6
        %v5212 = vsel %vm1438, %v5209, %v5211
        %v5213 = vrot.slane %v4190, 6
        %v5214 = vsel %vm1438, %v5211, %v5213
        %v5215 = vrot.slane %v4191, 6
        %v5216 = vsel %vm1438, %v5213, %v5215
        %v5217 = vrot.slane %v4192, 6
        %v5218 = vsel %vm1438, %v5215, %v5217
        %v5219 = vrot.slane %v4193, 6
        %v5220 = vsel %vm1438, %v5217, %v5219
        %v5221 = vrot.slane %v4194, 6
        %v5222 = vsel %vm1438, %v5219, %v5221
        %v5223 = vrot.slane %v4195, 6
        %v5224 = vsel %vm1438, %v5221, %v5223
        %v5225 = vrot.slane %v4196, 6
        %v5226 = vsel %vm1438, %v5223, %v5225
        %v5227 = vrot.slane %v4197, 6
        %v5228 = vsel %vm1438, %v5225, %v5227
        %v5229 = vrot.slane %v4198, 6
        %v5230 = vsel %vm1438, %v5227, %v5229
        %v5231 = vrot.slane %v4199, 6
        %v5232 = vsel %vm1438, %v5229, %v5231
        %v5233 = vrot.slane %v4200, 6
        %v5234 = vsel %vm1438, %v5231, %v5233
        %v5235 = vrot.slane %v4201, 6
        %v5236 = vsel %vm1438, %v5233, %v5235
        %5237 = vrot.lane.b32.xlu0 %v5164, 48
        %v5238 = vpop.permute.xlu0 %5237
        %5239 = vrot.lane.b32.xlu0 %v5166, 48
        %v5240 = vpop.permute.xlu0 %5239
        %5241 = vrot.lane.b32.xlu0 %v5168, 48
        %v5242 = vpop.permute.xlu0 %5241
        %5243 = vrot.lane.b32.xlu0 %v5170, 48
        %v5244 = vpop.permute.xlu0 %5243
        %5245 = vrot.lane.b32.xlu0 %v5172, 48
        %v5246 = vpop.permute.xlu0 %5245
        %5247 = vrot.lane.b32.xlu0 %v5174, 48
        %v5248 = vpop.permute.xlu0 %5247
        %5249 = vrot.lane.b32.xlu0 %v5176, 48
        %v5250 = vpop.permute.xlu0 %5249
        %5251 = vrot.lane.b32.xlu0 %v5178, 48
        %v5252 = vpop.permute.xlu0 %5251
        %5253 = vrot.lane.b32.xlu0 %v5180, 48
        %v5254 = vpop.permute.xlu0 %5253
        %5255 = vrot.lane.b32.xlu0 %v5182, 48
        %v5256 = vpop.permute.xlu0 %5255
        %5257 = vrot.lane.b32.xlu0 %v5184, 48
        %v5258 = vpop.permute.xlu0 %5257
        %5259 = vrot.lane.b32.xlu0 %v5186, 48
        %v5260 = vpop.permute.xlu0 %5259
        %5261 = vrot.lane.b32.xlu0 %v5188, 48
        %v5262 = vpop.permute.xlu0 %5261
        %5263 = vrot.lane.b32.xlu0 %v5190, 48
        %v5264 = vpop.permute.xlu0 %5263
        %5265 = vrot.lane.b32.xlu0 %v5192, 48
        %v5266 = vpop.permute.xlu0 %5265
        %5267 = vrot.lane.b32.xlu0 %v5194, 48
        %v5268 = vpop.permute.xlu0 %5267
        %5269 = vrot.lane.b32.xlu0 %v5196, 48
        %v5270 = vpop.permute.xlu0 %5269
        %5271 = vrot.lane.b32.xlu0 %v5198, 48
        %v5272 = vpop.permute.xlu0 %5271
        %5273 = vrot.lane.b32.xlu0 %v5200, 48
        %v5274 = vpop.permute.xlu0 %5273
        %5275 = vrot.lane.b32.xlu0 %v5202, 48
        %v5276 = vpop.permute.xlu0 %5275
        %5277 = vrot.lane.b32.xlu0 %v5204, 48
        %v5278 = vpop.permute.xlu0 %5277
        %5279 = vrot.lane.b32.xlu0 %v5206, 48
        %v5280 = vpop.permute.xlu0 %5279
        %5281 = vrot.lane.b32.xlu0 %v5208, 48
        %v5282 = vpop.permute.xlu0 %5281
        %5283 = vrot.lane.b32.xlu0 %v5210, 48
        %v5284 = vpop.permute.xlu0 %5283
        %5285 = vrot.lane.b32.xlu0 %v5212, 48
        %v5286 = vpop.permute.xlu0 %5285
        %5287 = vrot.lane.b32.xlu0 %v5214, 48
        %v5288 = vpop.permute.xlu0 %5287
        %5289 = vrot.lane.b32.xlu0 %v5216, 48
        %v5290 = vpop.permute.xlu0 %5289
        %5291 = vrot.lane.b32.xlu0 %v5218, 48
        %v5292 = vpop.permute.xlu0 %5291
        %5293 = vrot.lane.b32.xlu0 %v5220, 48
        %v5294 = vpop.permute.xlu0 %5293
        %5295 = vrot.lane.b32.xlu0 %v5222, 48
        %v5296 = vpop.permute.xlu0 %5295
        %5297 = vrot.lane.b32.xlu0 %v5224, 48
        %v5298 = vpop.permute.xlu0 %5297
        %5299 = vrot.lane.b32.xlu0 %v5226, 48
        %v5300 = vpop.permute.xlu0 %5299
        %5301 = vrot.lane.b32.xlu0 %v5228, 48
        %v5302 = vpop.permute.xlu0 %5301
        %5303 = vrot.lane.b32.xlu0 %v5230, 48
        %v5304 = vpop.permute.xlu0 %5303
        %5305 = vrot.lane.b32.xlu0 %v5232, 48
        %v5306 = vpop.permute.xlu0 %5305
        %5307 = vrot.lane.b32.xlu0 %v5234, 48
        %v5308 = vpop.permute.xlu0 %5307
        %5309 = vrot.lane.b32.xlu0 %v5236, 48
        %v5310 = vpop.permute.xlu0 %5309
        %v5348 = vrot.slane %v4164, 7
        %v5349 = vrot.slane %v4165, 7
        %v5350 = vsel %vm1625, %v5348, %v5349
        %v5351 = vrot.slane %v4166, 7
        %v5352 = vsel %vm1625, %v5349, %v5351
        %v5353 = vrot.slane %v4167, 7
        %v5354 = vsel %vm1625, %v5351, %v5353
        %v5355 = vrot.slane %v4168, 7
        %v5356 = vsel %vm1625, %v5353, %v5355
        %v5357 = vrot.slane %v4169, 7
        %v5358 = vsel %vm1625, %v5355, %v5357
        %v5359 = vrot.slane %v4170, 7
        %v5360 = vsel %vm1625, %v5357, %v5359
        %v5361 = vrot.slane %v4171, 7
        %v5362 = vsel %vm1625, %v5359, %v5361
        %v5363 = vrot.slane %v4172, 7
        %v5364 = vsel %vm1625, %v5361, %v5363
        %v5365 = vrot.slane %v4173, 7
        %v5366 = vsel %vm1625, %v5363, %v5365
        %v5367 = vrot.slane %v4174, 7
        %v5368 = vsel %vm1625, %v5365, %v5367
        %v5369 = vrot.slane %v4175, 7
        %v5370 = vsel %vm1625, %v5367, %v5369
        %v5371 = vrot.slane %v4176, 7
        %v5372 = vsel %vm1625, %v5369, %v5371
        %v5373 = vrot.slane %v4177, 7
        %v5374 = vsel %vm1625, %v5371, %v5373
        %v5375 = vrot.slane %v4178, 7
        %v5376 = vsel %vm1625, %v5373, %v5375
        %v5377 = vrot.slane %v4179, 7
        %v5378 = vsel %vm1625, %v5375, %v5377
        %v5379 = vrot.slane %v4180, 7
        %v5380 = vsel %vm1625, %v5377, %v5379
        %v5381 = vrot.slane %v4181, 7
        %v5382 = vsel %vm1625, %v5379, %v5381
        %v5383 = vrot.slane %v4182, 7
        %v5384 = vsel %vm1625, %v5381, %v5383
        %v5385 = vrot.slane %v4183, 7
        %v5386 = vsel %vm1625, %v5383, %v5385
        %v5387 = vrot.slane %v4184, 7
        %v5388 = vsel %vm1625, %v5385, %v5387
        %v5389 = vrot.slane %v4185, 7
        %v5390 = vsel %vm1625, %v5387, %v5389
        %v5391 = vrot.slane %v4186, 7
        %v5392 = vsel %vm1625, %v5389, %v5391
        %v5393 = vrot.slane %v4187, 7
        %v5394 = vsel %vm1625, %v5391, %v5393
        %v5395 = vrot.slane %v4188, 7
        %v5396 = vsel %vm1625, %v5393, %v5395
        %v5397 = vrot.slane %v4189, 7
        %v5398 = vsel %vm1625, %v5395, %v5397
        %v5399 = vrot.slane %v4190, 7
        %v5400 = vsel %vm1625, %v5397, %v5399
        %v5401 = vrot.slane %v4191, 7
        %v5402 = vsel %vm1625, %v5399, %v5401
        %v5403 = vrot.slane %v4192, 7
        %v5404 = vsel %vm1625, %v5401, %v5403
        %v5405 = vrot.slane %v4193, 7
        %v5406 = vsel %vm1625, %v5403, %v5405
        %v5407 = vrot.slane %v4194, 7
        %v5408 = vsel %vm1625, %v5405, %v5407
        %v5409 = vrot.slane %v4195, 7
        %v5410 = vsel %vm1625, %v5407, %v5409
        %v5411 = vrot.slane %v4196, 7
        %v5412 = vsel %vm1625, %v5409, %v5411
        %v5413 = vrot.slane %v4197, 7
        %v5414 = vsel %vm1625, %v5411, %v5413
        %v5415 = vrot.slane %v4198, 7
        %v5416 = vsel %vm1625, %v5413, %v5415
        %v5417 = vrot.slane %v4199, 7
        %v5418 = vsel %vm1625, %v5415, %v5417
        %v5419 = vrot.slane %v4200, 7
        %v5420 = vsel %vm1625, %v5417, %v5419
        %v5421 = vrot.slane %v4201, 7
        %v5422 = vsel %vm1625, %v5419, %v5421
        %5423 = vrot.lane.b32.xlu0 %v5350, 56
        %v5424 = vpop.permute.xlu0 %5423
        %5425 = vrot.lane.b32.xlu0 %v5352, 56
        %v5426 = vpop.permute.xlu0 %5425
        %5427 = vrot.lane.b32.xlu0 %v5354, 56
        %v5428 = vpop.permute.xlu0 %5427
        %5429 = vrot.lane.b32.xlu0 %v5356, 56
        %v5430 = vpop.permute.xlu0 %5429
        %5431 = vrot.lane.b32.xlu0 %v5358, 56
        %v5432 = vpop.permute.xlu0 %5431
        %5433 = vrot.lane.b32.xlu0 %v5360, 56
        %v5434 = vpop.permute.xlu0 %5433
        %5435 = vrot.lane.b32.xlu0 %v5362, 56
        %v5436 = vpop.permute.xlu0 %5435
        %5437 = vrot.lane.b32.xlu0 %v5364, 56
        %v5438 = vpop.permute.xlu0 %5437
        %5439 = vrot.lane.b32.xlu0 %v5366, 56
        %v5440 = vpop.permute.xlu0 %5439
        %5441 = vrot.lane.b32.xlu0 %v5368, 56
        %v5442 = vpop.permute.xlu0 %5441
        %5443 = vrot.lane.b32.xlu0 %v5370, 56
        %v5444 = vpop.permute.xlu0 %5443
        %5445 = vrot.lane.b32.xlu0 %v5372, 56
        %v5446 = vpop.permute.xlu0 %5445
        %5447 = vrot.lane.b32.xlu0 %v5374, 56
        %v5448 = vpop.permute.xlu0 %5447
        %5449 = vrot.lane.b32.xlu0 %v5376, 56
        %v5450 = vpop.permute.xlu0 %5449
        %5451 = vrot.lane.b32.xlu0 %v5378, 56
        %v5452 = vpop.permute.xlu0 %5451
        %5453 = vrot.lane.b32.xlu0 %v5380, 56
        %v5454 = vpop.permute.xlu0 %5453
        %5455 = vrot.lane.b32.xlu0 %v5382, 56
        %v5456 = vpop.permute.xlu0 %5455
        %5457 = vrot.lane.b32.xlu0 %v5384, 56
        %v5458 = vpop.permute.xlu0 %5457
        %5459 = vrot.lane.b32.xlu0 %v5386, 56
        %v5460 = vpop.permute.xlu0 %5459
        %5461 = vrot.lane.b32.xlu0 %v5388, 56
        %v5462 = vpop.permute.xlu0 %5461
        %5463 = vrot.lane.b32.xlu0 %v5390, 56
        %v5464 = vpop.permute.xlu0 %5463
        %5465 = vrot.lane.b32.xlu0 %v5392, 56
        %v5466 = vpop.permute.xlu0 %5465
        %5467 = vrot.lane.b32.xlu0 %v5394, 56
        %v5468 = vpop.permute.xlu0 %5467
        %5469 = vrot.lane.b32.xlu0 %v5396, 56
        %v5470 = vpop.permute.xlu0 %5469
        %5471 = vrot.lane.b32.xlu0 %v5398, 56
        %v5472 = vpop.permute.xlu0 %5471
        %5473 = vrot.lane.b32.xlu0 %v5400, 56
        %v5474 = vpop.permute.xlu0 %5473
        %5475 = vrot.lane.b32.xlu0 %v5402, 56
        %v5476 = vpop.permute.xlu0 %5475
        %5477 = vrot.lane.b32.xlu0 %v5404, 56
        %v5478 = vpop.permute.xlu0 %5477
        %5479 = vrot.lane.b32.xlu0 %v5406, 56
        %v5480 = vpop.permute.xlu0 %5479
        %5481 = vrot.lane.b32.xlu0 %v5408, 56
        %v5482 = vpop.permute.xlu0 %5481
        %5483 = vrot.lane.b32.xlu0 %v5410, 56
        %v5484 = vpop.permute.xlu0 %5483
        %5485 = vrot.lane.b32.xlu0 %v5412, 56
        %v5486 = vpop.permute.xlu0 %5485
        %5487 = vrot.lane.b32.xlu0 %v5414, 56
        %v5488 = vpop.permute.xlu0 %5487
        %5489 = vrot.lane.b32.xlu0 %v5416, 56
        %v5490 = vpop.permute.xlu0 %5489
        %5491 = vrot.lane.b32.xlu0 %v5418, 56
        %v5492 = vpop.permute.xlu0 %5491
        %5493 = vrot.lane.b32.xlu0 %v5420, 56
        %v5494 = vpop.permute.xlu0 %5493
        %5495 = vrot.lane.b32.xlu0 %v5422, 56
        %v5496 = vpop.permute.xlu0 %5495
        %5534 = vrot.lane.b32.xlu0 %v4165, 64
        %v5535 = vpop.permute.xlu0 %5534
        %5536 = vrot.lane.b32.xlu0 %v4166, 64
        %v5537 = vpop.permute.xlu0 %5536
        %5538 = vrot.lane.b32.xlu0 %v4167, 64
        %v5539 = vpop.permute.xlu0 %5538
        %5540 = vrot.lane.b32.xlu0 %v4168, 64
        %v5541 = vpop.permute.xlu0 %5540
        %5542 = vrot.lane.b32.xlu0 %v4169, 64
        %v5543 = vpop.permute.xlu0 %5542
        %5544 = vrot.lane.b32.xlu0 %v4170, 64
        %v5545 = vpop.permute.xlu0 %5544
        %5546 = vrot.lane.b32.xlu0 %v4171, 64
        %v5547 = vpop.permute.xlu0 %5546
        %5548 = vrot.lane.b32.xlu0 %v4172, 64
        %v5549 = vpop.permute.xlu0 %5548
        %5550 = vrot.lane.b32.xlu0 %v4173, 64
        %v5551 = vpop.permute.xlu0 %5550
        %5552 = vrot.lane.b32.xlu0 %v4174, 64
        %v5553 = vpop.permute.xlu0 %5552
        %5554 = vrot.lane.b32.xlu0 %v4175, 64
        %v5555 = vpop.permute.xlu0 %5554
        %5556 = vrot.lane.b32.xlu0 %v4176, 64
        %v5557 = vpop.permute.xlu0 %5556
        %5558 = vrot.lane.b32.xlu0 %v4177, 64
        %v5559 = vpop.permute.xlu0 %5558
        %5560 = vrot.lane.b32.xlu0 %v4178, 64
        %v5561 = vpop.permute.xlu0 %5560
        %5562 = vrot.lane.b32.xlu0 %v4179, 64
        %v5563 = vpop.permute.xlu0 %5562
        %5564 = vrot.lane.b32.xlu0 %v4180, 64
        %v5565 = vpop.permute.xlu0 %5564
        %5566 = vrot.lane.b32.xlu0 %v4181, 64
        %v5567 = vpop.permute.xlu0 %5566
        %5568 = vrot.lane.b32.xlu0 %v4182, 64
        %v5569 = vpop.permute.xlu0 %5568
        %5570 = vrot.lane.b32.xlu0 %v4183, 64
        %v5571 = vpop.permute.xlu0 %5570
        %5572 = vrot.lane.b32.xlu0 %v4184, 64
        %v5573 = vpop.permute.xlu0 %5572
        %5574 = vrot.lane.b32.xlu0 %v4185, 64
        %v5575 = vpop.permute.xlu0 %5574
        %5576 = vrot.lane.b32.xlu0 %v4186, 64
        %v5577 = vpop.permute.xlu0 %5576
        %5578 = vrot.lane.b32.xlu0 %v4187, 64
        %v5579 = vpop.permute.xlu0 %5578
        %5580 = vrot.lane.b32.xlu0 %v4188, 64
        %v5581 = vpop.permute.xlu0 %5580
        %5582 = vrot.lane.b32.xlu0 %v4189, 64
        %v5583 = vpop.permute.xlu0 %5582
        %5584 = vrot.lane.b32.xlu0 %v4190, 64
        %v5585 = vpop.permute.xlu0 %5584
        %5586 = vrot.lane.b32.xlu0 %v4191, 64
        %v5587 = vpop.permute.xlu0 %5586
        %5588 = vrot.lane.b32.xlu0 %v4192, 64
        %v5589 = vpop.permute.xlu0 %5588
        %5590 = vrot.lane.b32.xlu0 %v4193, 64
        %v5591 = vpop.permute.xlu0 %5590
        %5592 = vrot.lane.b32.xlu0 %v4194, 64
        %v5593 = vpop.permute.xlu0 %5592
        %5594 = vrot.lane.b32.xlu0 %v4195, 64
        %v5595 = vpop.permute.xlu0 %5594
        %5596 = vrot.lane.b32.xlu0 %v4196, 64
        %v5597 = vpop.permute.xlu0 %5596
        %5598 = vrot.lane.b32.xlu0 %v4197, 64
        %v5599 = vpop.permute.xlu0 %5598
        %5600 = vrot.lane.b32.xlu0 %v4198, 64
        %v5601 = vpop.permute.xlu0 %5600
        %5602 = vrot.lane.b32.xlu0 %v4199, 64
        %v5603 = vpop.permute.xlu0 %5602
        %5604 = vrot.lane.b32.xlu0 %v4200, 64
        %v5605 = vpop.permute.xlu0 %5604
        %5606 = vrot.lane.b32.xlu0 %v4201, 64
        %v5607 = vpop.permute.xlu0 %5606
        %v5645 = vsel %vm1923, %v4164, %v4313
        %v5646 = vsel %vm1923, %v4165, %v4315
        %v5647 = vsel %vm1923, %v4166, %v4317
        %v5648 = vsel %vm1923, %v4167, %v4319
        %v5649 = vsel %vm1923, %v4168, %v4321
        %v5650 = vsel %vm1923, %v4169, %v4323
        %v5651 = vsel %vm1923, %v4170, %v4325
        %v5652 = vsel %vm1923, %v4171, %v4327
        %v5653 = vsel %vm1923, %v4172, %v4329
        %v5654 = vsel %vm1923, %v4173, %v4331
        %v5655 = vsel %vm1923, %v4174, %v4333
        %v5656 = vsel %vm1923, %v4175, %v4335
        %v5657 = vsel %vm1923, %v4176, %v4337
        %v5658 = vsel %vm1923, %v4177, %v4339
        %v5659 = vsel %vm1923, %v4178, %v4341
        %v5660 = vsel %vm1923, %v4179, %v4343
        %v5661 = vsel %vm1923, %v4180, %v4345
        %v5662 = vsel %vm1923, %v4181, %v4347
        %v5663 = vsel %vm1923, %v4182, %v4349
        %v5664 = vsel %vm1923, %v4183, %v4351
        %v5665 = vsel %vm1923, %v4184, %v4353
        %v5666 = vsel %vm1923, %v4185, %v4355
        %v5667 = vsel %vm1923, %v4186, %v4357
        %v5668 = vsel %vm1923, %v4187, %v4359
        %v5669 = vsel %vm1923, %v4188, %v4361
        %v5670 = vsel %vm1923, %v4189, %v4363
        %v5671 = vsel %vm1923, %v4190, %v4365
        %v5672 = vsel %vm1923, %v4191, %v4367
        %v5673 = vsel %vm1923, %v4192, %v4369
        %v5674 = vsel %vm1923, %v4193, %v4371
        %v5675 = vsel %vm1923, %v4194, %v4373
        %v5676 = vsel %vm1923, %v4195, %v4375
        %v5677 = vsel %vm1923, %v4196, %v4377
        %v5678 = vsel %vm1923, %v4197, %v4379
        %v5679 = vsel %vm1923, %v4198, %v4381
        %v5680 = vsel %vm1923, %v4199, %v4383
        %v5681 = vsel %vm1923, %v4200, %v4385
        %v5682 = vsel %vm1961, %v5645, %v4497
        %v5683 = vsel %vm1961, %v5646, %v4499
        %v5684 = vsel %vm1961, %v5647, %v4501
        %v5685 = vsel %vm1961, %v5648, %v4503
        %v5686 = vsel %vm1961, %v5649, %v4505
        %v5687 = vsel %vm1961, %v5650, %v4507
        %v5688 = vsel %vm1961, %v5651, %v4509
        %v5689 = vsel %vm1961, %v5652, %v4511
        %v5690 = vsel %vm1961, %v5653, %v4513
        %v5691 = vsel %vm1961, %v5654, %v4515
        %v5692 = vsel %vm1961, %v5655, %v4517
        %v5693 = vsel %vm1961, %v5656, %v4519
        %v5694 = vsel %vm1961, %v5657, %v4521
        %v5695 = vsel %vm1961, %v5658, %v4523
        %v5696 = vsel %vm1961, %v5659, %v4525
        %v5697 = vsel %vm1961, %v5660, %v4527
        %v5698 = vsel %vm1961, %v5661, %v4529
        %v5699 = vsel %vm1961, %v5662, %v4531
        %v5700 = vsel %vm1961, %v5663, %v4533
        %v5701 = vsel %vm1961, %v5664, %v4535
        %v5702 = vsel %vm1961, %v5665, %v4537
        %v5703 = vsel %vm1961, %v5666, %v4539
        %v5704 = vsel %vm1961, %v5667, %v4541
        %v5705 = vsel %vm1961, %v5668, %v4543
        %v5706 = vsel %vm1961, %v5669, %v4545
        %v5707 = vsel %vm1961, %v5670, %v4547
        %v5708 = vsel %vm1961, %v5671, %v4549
        %v5709 = vsel %vm1961, %v5672, %v4551
        %v5710 = vsel %vm1961, %v5673, %v4553
        %v5711 = vsel %vm1961, %v5674, %v4555
        %v5712 = vsel %vm1961, %v5675, %v4557
        %v5713 = vsel %vm1961, %v5676, %v4559
        %v5714 = vsel %vm1961, %v5677, %v4561
        %v5715 = vsel %vm1961, %v5678, %v4563
        %v5716 = vsel %vm1961, %v5679, %v4565
        %v5717 = vsel %vm1961, %v5680, %v4567
        %v5718 = vsel %vm1961, %v5681, %v4569
        %v5719 = vsel %vm1999, %v5682, %v4681
        %v5720 = vsel %vm1999, %v5683, %v4683
        %v5721 = vsel %vm1999, %v5684, %v4685
        %v5722 = vsel %vm1999, %v5685, %v4687
        %v5723 = vsel %vm1999, %v5686, %v4689
        %v5724 = vsel %vm1999, %v5687, %v4691
        %v5725 = vsel %vm1999, %v5688, %v4693
        %v5726 = vsel %vm1999, %v5689, %v4695
        %v5727 = vsel %vm1999, %v5690, %v4697
        %v5728 = vsel %vm1999, %v5691, %v4699
        %v5729 = vsel %vm1999, %v5692, %v4701
        %v5730 = vsel %vm1999, %v5693, %v4703
        %v5731 = vsel %vm1999, %v5694, %v4705
        %v5732 = vsel %vm1999, %v5695, %v4707
        %v5733 = vsel %vm1999, %v5696, %v4709
        %v5734 = vsel %vm1999, %v5697, %v4711
        %v5735 = vsel %vm1999, %v5698, %v4713
        %v5736 = vsel %vm1999, %v5699, %v4715
        %v5737 = vsel %vm1999, %v5700, %v4717
        %v5738 = vsel %vm1999, %v5701, %v4719
        %v5739 = vsel %vm1999, %v5702, %v4721
        %v5740 = vsel %vm1999, %v5703, %v4723
        %v5741 = vsel %vm1999, %v5704, %v4725
        %v5742 = vsel %vm1999, %v5705, %v4727
        %v5743 = vsel %vm1999, %v5706, %v4729
        %v5744 = vsel %vm1999, %v5707, %v4731
        %v5745 = vsel %vm1999, %v5708, %v4733
        %v5746 = vsel %vm1999, %v5709, %v4735
        %v5747 = vsel %vm1999, %v5710, %v4737
        %v5748 = vsel %vm1999, %v5711, %v4739
        %v5749 = vsel %vm1999, %v5712, %v4741
        %v5750 = vsel %vm1999, %v5713, %v4743
        %v5751 = vsel %vm1999, %v5714, %v4745
        %v5752 = vsel %vm1999, %v5715, %v4747
        %v5753 = vsel %vm1999, %v5716, %v4749
        %v5754 = vsel %vm1999, %v5717, %v4751
        %v5755 = vsel %vm1999, %v5718, %v4753
        %v5756 = vsel %vm2037, %v5719, %v4865
        %v5757 = vsel %vm2037, %v5720, %v4867
        %v5758 = vsel %vm2037, %v5721, %v4869
        %v5759 = vsel %vm2037, %v5722, %v4871
        %v5760 = vsel %vm2037, %v5723, %v4873
        %v5761 = vsel %vm2037, %v5724, %v4875
        %v5762 = vsel %vm2037, %v5725, %v4877
        %v5763 = vsel %vm2037, %v5726, %v4879
        %v5764 = vsel %vm2037, %v5727, %v4881
        %v5765 = vsel %vm2037, %v5728, %v4883
        %v5766 = vsel %vm2037, %v5729, %v4885
        %v5767 = vsel %vm2037, %v5730, %v4887
        %v5768 = vsel %vm2037, %v5731, %v4889
        %v5769 = vsel %vm2037, %v5732, %v4891
        %v5770 = vsel %vm2037, %v5733, %v4893
        %v5771 = vsel %vm2037, %v5734, %v4895
        %v5772 = vsel %vm2037, %v5735, %v4897
        %v5773 = vsel %vm2037, %v5736, %v4899
        %v5774 = vsel %vm2037, %v5737, %v4901
        %v5775 = vsel %vm2037, %v5738, %v4903
        %v5776 = vsel %vm2037, %v5739, %v4905
        %v5777 = vsel %vm2037, %v5740, %v4907
        %v5778 = vsel %vm2037, %v5741, %v4909
        %v5779 = vsel %vm2037, %v5742, %v4911
        %v5780 = vsel %vm2037, %v5743, %v4913
        %v5781 = vsel %vm2037, %v5744, %v4915
        %v5782 = vsel %vm2037, %v5745, %v4917
        %v5783 = vsel %vm2037, %v5746, %v4919
        %v5784 = vsel %vm2037, %v5747, %v4921
        %v5785 = vsel %vm2037, %v5748, %v4923
        %v5786 = vsel %vm2037, %v5749, %v4925
        %v5787 = vsel %vm2037, %v5750, %v4927
        %v5788 = vsel %vm2037, %v5751, %v4929
        %v5789 = vsel %vm2037, %v5752, %v4931
        %v5790 = vsel %vm2037, %v5753, %v4933
        %v5791 = vsel %vm2037, %v5754, %v4935
        %v5792 = vsel %vm2037, %v5755, %v4937
        %v5793 = vsel %vm2075, %v5756, %v5052
        %v5794 = vsel %vm2075, %v5757, %v5054
        %v5795 = vsel %vm2075, %v5758, %v5056
        %v5796 = vsel %vm2075, %v5759, %v5058
        %v5797 = vsel %vm2075, %v5760, %v5060
        %v5798 = vsel %vm2075, %v5761, %v5062
        %v5799 = vsel %vm2075, %v5762, %v5064
        %v5800 = vsel %vm2075, %v5763, %v5066
        %v5801 = vsel %vm2075, %v5764, %v5068
        %v5802 = vsel %vm2075, %v5765, %v5070
        %v5803 = vsel %vm2075, %v5766, %v5072
        %v5804 = vsel %vm2075, %v5767, %v5074
        %v5805 = vsel %vm2075, %v5768, %v5076
        %v5806 = vsel %vm2075, %v5769, %v5078
        %v5807 = vsel %vm2075, %v5770, %v5080
        %v5808 = vsel %vm2075, %v5771, %v5082
        %v5809 = vsel %vm2075, %v5772, %v5084
        %v5810 = vsel %vm2075, %v5773, %v5086
        %v5811 = vsel %vm2075, %v5774, %v5088
        %v5812 = vsel %vm2075, %v5775, %v5090
        %v5813 = vsel %vm2075, %v5776, %v5092
        %v5814 = vsel %vm2075, %v5777, %v5094
        %v5815 = vsel %vm2075, %v5778, %v5096
        %v5816 = vsel %vm2075, %v5779, %v5098
        %v5817 = vsel %vm2075, %v5780, %v5100
        %v5818 = vsel %vm2075, %v5781, %v5102
        %v5819 = vsel %vm2075, %v5782, %v5104
        %v5820 = vsel %vm2075, %v5783, %v5106
        %v5821 = vsel %vm2075, %v5784, %v5108
        %v5822 = vsel %vm2075, %v5785, %v5110
        %v5823 = vsel %vm2075, %v5786, %v5112
        %v5824 = vsel %vm2075, %v5787, %v5114
        %v5825 = vsel %vm2075, %v5788, %v5116
        %v5826 = vsel %vm2075, %v5789, %v5118
        %v5827 = vsel %vm2075, %v5790, %v5120
        %v5828 = vsel %vm2075, %v5791, %v5122
        %v5829 = vsel %vm2075, %v5792, %v5124
        %v5830 = vsel %vm2113, %v5793, %v5238
        %v5831 = vsel %vm2113, %v5794, %v5240
        %v5832 = vsel %vm2113, %v5795, %v5242
        %v5833 = vsel %vm2113, %v5796, %v5244
        %v5834 = vsel %vm2113, %v5797, %v5246
        %v5835 = vsel %vm2113, %v5798, %v5248
        %v5836 = vsel %vm2113, %v5799, %v5250
        %v5837 = vsel %vm2113, %v5800, %v5252
        %v5838 = vsel %vm2113, %v5801, %v5254
        %v5839 = vsel %vm2113, %v5802, %v5256
        %v5840 = vsel %vm2113, %v5803, %v5258
        %v5841 = vsel %vm2113, %v5804, %v5260
        %v5842 = vsel %vm2113, %v5805, %v5262
        %v5843 = vsel %vm2113, %v5806, %v5264
        %v5844 = vsel %vm2113, %v5807, %v5266
        %v5845 = vsel %vm2113, %v5808, %v5268
        %v5846 = vsel %vm2113, %v5809, %v5270
        %v5847 = vsel %vm2113, %v5810, %v5272
        %v5848 = vsel %vm2113, %v5811, %v5274
        %v5849 = vsel %vm2113, %v5812, %v5276
        %v5850 = vsel %vm2113, %v5813, %v5278
        %v5851 = vsel %vm2113, %v5814, %v5280
        %v5852 = vsel %vm2113, %v5815, %v5282
        %v5853 = vsel %vm2113, %v5816, %v5284
        %v5854 = vsel %vm2113, %v5817, %v5286
        %v5855 = vsel %vm2113, %v5818, %v5288
        %v5856 = vsel %vm2113, %v5819, %v5290
        %v5857 = vsel %vm2113, %v5820, %v5292
        %v5858 = vsel %vm2113, %v5821, %v5294
        %v5859 = vsel %vm2113, %v5822, %v5296
        %v5860 = vsel %vm2113, %v5823, %v5298
        %v5861 = vsel %vm2113, %v5824, %v5300
        %v5862 = vsel %vm2113, %v5825, %v5302
        %v5863 = vsel %vm2113, %v5826, %v5304
        %v5864 = vsel %vm2113, %v5827, %v5306
        %v5865 = vsel %vm2113, %v5828, %v5308
        %v5866 = vsel %vm2113, %v5829, %v5310
        %v5867 = vsel %vm2151, %v5830, %v5424
        %v5868 = vsel %vm2151, %v5831, %v5426
        %v5869 = vsel %vm2151, %v5832, %v5428
        %v5870 = vsel %vm2151, %v5833, %v5430
        %v5871 = vsel %vm2151, %v5834, %v5432
        %v5872 = vsel %vm2151, %v5835, %v5434
        %v5873 = vsel %vm2151, %v5836, %v5436
        %v5874 = vsel %vm2151, %v5837, %v5438
        %v5875 = vsel %vm2151, %v5838, %v5440
        %v5876 = vsel %vm2151, %v5839, %v5442
        %v5877 = vsel %vm2151, %v5840, %v5444
        %v5878 = vsel %vm2151, %v5841, %v5446
        %v5879 = vsel %vm2151, %v5842, %v5448
        %v5880 = vsel %vm2151, %v5843, %v5450
        %v5881 = vsel %vm2151, %v5844, %v5452
        %v5882 = vsel %vm2151, %v5845, %v5454
        %v5883 = vsel %vm2151, %v5846, %v5456
        %v5884 = vsel %vm2151, %v5847, %v5458
        %v5885 = vsel %vm2151, %v5848, %v5460
        %v5886 = vsel %vm2151, %v5849, %v5462
        %v5887 = vsel %vm2151, %v5850, %v5464
        %v5888 = vsel %vm2151, %v5851, %v5466
        %v5889 = vsel %vm2151, %v5852, %v5468
        %v5890 = vsel %vm2151, %v5853, %v5470
        %v5891 = vsel %vm2151, %v5854, %v5472
        %v5892 = vsel %vm2151, %v5855, %v5474
        %v5893 = vsel %vm2151, %v5856, %v5476
        %v5894 = vsel %vm2151, %v5857, %v5478
        %v5895 = vsel %vm2151, %v5858, %v5480
        %v5896 = vsel %vm2151, %v5859, %v5482
        %v5897 = vsel %vm2151, %v5860, %v5484
        %v5898 = vsel %vm2151, %v5861, %v5486
        %v5899 = vsel %vm2151, %v5862, %v5488
        %v5900 = vsel %vm2151, %v5863, %v5490
        %v5901 = vsel %vm2151, %v5864, %v5492
        %v5902 = vsel %vm2151, %v5865, %v5494
        %v5903 = vsel %vm2151, %v5866, %v5496
        %v5904 = vsel %vm2189, %v5867, %v5535
        %v5905 = vsel %vm2189, %v5868, %v5537
        %v5906 = vsel %vm2189, %v5869, %v5539
        %v5907 = vsel %vm2189, %v5870, %v5541
        %v5908 = vsel %vm2189, %v5871, %v5543
        %v5909 = vsel %vm2189, %v5872, %v5545
        %v5910 = vsel %vm2189, %v5873, %v5547
        %v5911 = vsel %vm2189, %v5874, %v5549
        %v5912 = vsel %vm2189, %v5875, %v5551
        %v5913 = vsel %vm2189, %v5876, %v5553
        %v5914 = vsel %vm2189, %v5877, %v5555
        %v5915 = vsel %vm2189, %v5878, %v5557
        %v5916 = vsel %vm2189, %v5879, %v5559
        %v5917 = vsel %vm2189, %v5880, %v5561
        %v5918 = vsel %vm2189, %v5881, %v5563
        %v5919 = vsel %vm2189, %v5882, %v5565
        %v5920 = vsel %vm2189, %v5883, %v5567
        %v5921 = vsel %vm2189, %v5884, %v5569
        %v5922 = vsel %vm2189, %v5885, %v5571
        %v5923 = vsel %vm2189, %v5886, %v5573
        %v5924 = vsel %vm2189, %v5887, %v5575
        %v5925 = vsel %vm2189, %v5888, %v5577
        %v5926 = vsel %vm2189, %v5889, %v5579
        %v5927 = vsel %vm2189, %v5890, %v5581
        %v5928 = vsel %vm2189, %v5891, %v5583
        %v5929 = vsel %vm2189, %v5892, %v5585
        %v5930 = vsel %vm2189, %v5893, %v5587
        %v5931 = vsel %vm2189, %v5894, %v5589
        %v5932 = vsel %vm2189, %v5895, %v5591
        %v5933 = vsel %vm2189, %v5896, %v5593
        %v5934 = vsel %vm2189, %v5897, %v5595
        %v5935 = vsel %vm2189, %v5898, %v5597
        %v5936 = vsel %vm2189, %v5899, %v5599
        %v5937 = vsel %vm2189, %v5900, %v5601
        %v5938 = vsel %vm2189, %v5901, %v5603
        %v5939 = vsel %vm2189, %v5902, %v5605
        %v5940 = vsel %vm2189, %v5903, %v5607
        %v5942 = vsel %vm2243, %v5904, 0
        %v5945 = vsel %vm2243, %v5905, 0
        %v5948 = vsel %vm2243, %v5906, 0
        %v5951 = vsel %vm2243, %v5907, 0
        %v5954 = vsel %vm2243, %v5908, 0
        %v5957 = vsel %vm2243, %v5909, 0
        %v5960 = vsel %vm2243, %v5910, 0
        %v5963 = vsel %vm2243, %v5911, 0
        %v5966 = vsel %vm2243, %v5912, 0
        %v5969 = vsel %vm2243, %v5913, 0
        %v5972 = vsel %vm2243, %v5914, 0
        %v5975 = vsel %vm2243, %v5915, 0
        %v5978 = vsel %vm2243, %v5916, 0
        %v5981 = vsel %vm2243, %v5917, 0
        %v5984 = vsel %vm2243, %v5918, 0
        %v5987 = vsel %vm2243, %v5919, 0
        %v5990 = vsel %vm2243, %v5920, 0
        %v5993 = vsel %vm2243, %v5921, 0
        %v5996 = vsel %vm2243, %v5922, 0
        %v5999 = vsel %vm2243, %v5923, 0
        %v6002 = vsel %vm2243, %v5924, 0
        %v6005 = vsel %vm2243, %v5925, 0
        %v6008 = vsel %vm2243, %v5926, 0
        %v6011 = vsel %vm2243, %v5927, 0
        %v6014 = vsel %vm2243, %v5928, 0
        %v6017 = vsel %vm2243, %v5929, 0
        %v6020 = vsel %vm2243, %v5930, 0
        %v6023 = vsel %vm2243, %v5931, 0
        %v6026 = vsel %vm2243, %v5932, 0
        %v6029 = vsel %vm2243, %v5933, 0
        %v6032 = vsel %vm2243, %v5934, 0
        %v6035 = vsel %vm2243, %v5935, 0
        %v6038 = vsel %vm2243, %v5936, 0
        %v6041 = vsel %vm2243, %v5937, 0
        %v6044 = vsel %vm2243, %v5938, 0
        %v6047 = vsel %vm2243, %v5939, 0
        %v6050 = vsel %vm2243, %v5940, 0
        %6052 = vmatprep.subr.mxu0 0.0
        %6053 = vmatpush1.msra.mxu0 %v2227
        %6054 = vmatprep.subr.mxu0 0.0
        %6055 = vmatpush1.msra.mxu0 %v2228
        %6056 = vmatprep.subr.mxu0 0.0
        %6057 = vmatpush1.msra.mxu0 %v2229
        %6058 = vmatprep.subr.mxu0 0.0
        %6059 = vmatpush1.msra.mxu0 %v2230
        %6060 = vmatprep.subr.mxu0 0.0
        %6061 = vmatpush1.msra.mxu0 %v2231
        %6062 = vmatprep.subr.mxu0 0.0
        %6063 = vmatpush1.msra.mxu0 %v2232
        %6064 = vmatprep.subr.mxu0 0.0
        %6065 = vmatpush1.msra.mxu0 %v2233
        %6066 = vmatprep.subr.mxu0 0.0
        %6067 = vmatpush1.msra.mxu0 %v2234
        %6068 = vmatprep.subr.mxu0 0.0
        %6069 = vmatpush1.msra.mxu0 %v2235
        %6070 = vmatprep.subr.mxu0 0.0
        %6071 = vmatpush1.msra.mxu0 0.0
        %6072 = vmatprep.subr.mxu0 0.0
        %6073 = vmatpush1.msra.mxu0 0.0
        %6074 = vmatprep.subr.mxu0 0.0
        %6075 = vmatpush1.msra.mxu0 0.0
        %6076 = vmatprep.subr.mxu0 0.0
        %6077 = vmatpush1.msra.mxu0 0.0
        %6078 = vmatprep.subr.mxu0 0.0
        %6079 = vmatpush1.msra.mxu0 0.0
        %6080 = vmatprep.subr.mxu0 0.0
        %6081 = vmatpush1.msra.mxu0 0.0
        %6082 = vmatprep.subr.mxu0 0.0
        %6083 = vmatpush1.msra.mxu0 0.0
        %6084 = vmatprep.subr.mxu0 0.0
        %6085 = vmatpush1.msra.mxu0 0.0
        %6086 = vmatprep.subr.mxu0 0.0
        %6087 = vmatpush1.msra.mxu0 0.0
        %6088 = vmatprep.subr.mxu0 0.0
        %6089 = vmatpush1.msra.mxu0 0.0
        %6090 = vmatprep.subr.mxu0 0.0
        %6091 = vmatpush1.msra.mxu0 0.0
        %6092 = vmatprep.subr.mxu0 0.0
        %6093 = vmatpush1.msra.mxu0 0.0
        %6094 = vmatprep.subr.mxu0 0.0
        %6095 = vmatpush1.msra.mxu0 0.0
        %6096 = vmatprep.subr.mxu0 0.0
        %6097 = vmatpush1.msra.mxu0 0.0
        %6098 = vmatprep.subr.mxu0 0.0
        %6099 = vmatpush1.msra.mxu0 0.0
        %6100 = vmatprep.subr.mxu0 0.0
        %6101 = vmatpush1.msra.mxu0 0.0
        %6102 = vmatprep.subr.mxu0 0.0
        %6103 = vmatpush1.msra.mxu0 0.0
        %6104 = vmatprep.subr.mxu0 0.0
        %6105 = vmatpush1.msra.mxu0 0.0
        %6106 = vmatprep.subr.mxu0 0.0
        %6107 = vmatpush1.msra.mxu0 0.0
        %6108 = vmatprep.subr.mxu0 0.0
        %6109 = vmatpush1.msra.mxu0 0.0
        %6110 = vmatprep.subr.mxu0 0.0
        %6111 = vmatpush1.msra.mxu0 0.0
        %6112 = vmatprep.subr.mxu0 0.0
        %6113 = vmatpush1.msra.mxu0 0.0
        %6114 = vmatprep.subr.mxu0 0.0
        %6115 = vmatpush1.msra.mxu0 0.0
        %6116 = vmatprep.mubr.f32.mxu0 0.0
        %6117 = vmatmul.mubr.f32.gmra.mrb[0].mxu0 %v5942
        %v6118 = vpop.f32.mrb[0].mxu0
        %v6119 = vadd.f32 %v2241, %v6118
        %v6120 = vpop.f32.mrb[0].mxu0
        %6121 = vmatprep.mubr.f32.mxu0 0.0
        %6122 = vmatmul.mubr.f32.gmra.mrb[0].mxu0 %v5945
        %v6123 = vpop.f32.mrb[0].mxu0
        %v6124 = vadd.f32 %v2241, %v6123
        %v6125 = vpop.f32.mrb[0].mxu0
        %6126 = vmatprep.mubr.f32.mxu0 0.0
        %6127 = vmatmul.mubr.f32.gmra.mrb[0].mxu0 %v5948
        %v6128 = vpop.f32.mrb[0].mxu0
        %v6129 = vadd.f32 %v2241, %v6128
        %v6130 = vpop.f32.mrb[0].mxu0
        %6131 = vmatprep.mubr.f32.mxu0 0.0
        %6132 = vmatmul.mubr.f32.gmra.mrb[0].mxu0 %v5951
        %v6133 = vpop.f32.mrb[0].mxu0
        %v6134 = vadd.f32 %v2241, %v6133
        %v6135 = vpop.f32.mrb[0].mxu0
        %6136 = vmatprep.mubr.f32.mxu0 0.0
        %6137 = vmatmul.mubr.f32.gmra.mrb[0].mxu0 %v5954
        %v6138 = vpop.f32.mrb[0].mxu0
        %v6139 = vadd.f32 %v2241, %v6138
        %v6140 = vpop.f32.mrb[0].mxu0
        %6141 = vmatprep.mubr.f32.mxu0 0.0
        %6142 = vmatmul.mubr.f32.gmra.mrb[0].mxu0 %v5957
        %v6143 = vpop.f32.mrb[0].mxu0
        %v6144 = vadd.f32 %v2241, %v6143
        %v6145 = vpop.f32.mrb[0].mxu0
        %6146 = vmatprep.mubr.f32.mxu0 0.0
        %6147 = vmatmul.mubr.f32.gmra.mrb[0].mxu0 %v5960
        %v6148 = vpop.f32.mrb[0].mxu0
        %v6149 = vadd.f32 %v2241, %v6148
        %v6150 = vpop.f32.mrb[0].mxu0
        %6151 = vmatprep.mubr.f32.mxu0 0.0
        %6152 = vmatmul.mubr.f32.gmra.mrb[0].mxu0 %v5963
        %v6153 = vpop.f32.mrb[0].mxu0
        %v6154 = vadd.f32 %v2241, %v6153
        %v6155 = vpop.f32.mrb[0].mxu0
        %6156 = vmatprep.mubr.f32.mxu0 0.0
        %6157 = vmatmul.mubr.f32.gmra.mrb[0].mxu0 %v5966
        %v6158 = vpop.f32.mrb[0].mxu0
        %v6159 = vadd.f32 %v2241, %v6158
        %v6160 = vpop.f32.mrb[0].mxu0
        %6161 = vmatprep.mubr.f32.mxu0 0.0
        %6162 = vmatmul.mubr.f32.gmra.mrb[0].mxu0 %v5969
        %v6163 = vpop.f32.mrb[0].mxu0
        %v6164 = vadd.f32 %v2241, %v6163
        %v6165 = vpop.f32.mrb[0].mxu0
        %6166 = vmatprep.mubr.f32.mxu0 0.0
        %6167 = vmatmul.mubr.f32.gmra.mrb[0].mxu0 %v5972
        %v6168 = vpop.f32.mrb[0].mxu0
        %v6169 = vadd.f32 %v2241, %v6168
        %v6170 = vpop.f32.mrb[0].mxu0
        %6171 = vmatprep.mubr.f32.mxu0 0.0
        %6172 = vmatmul.mubr.f32.gmra.mrb[0].mxu0 %v5975
        %v6173 = vpop.f32.mrb[0].mxu0
        %v6174 = vadd.f32 %v2241, %v6173
        %v6175 = vpop.f32.mrb[0].mxu0
        %6176 = vmatprep.mubr.f32.mxu0 0.0
        %6177 = vmatmul.mubr.f32.gmra.mrb[0].mxu0 %v5978
        %v6178 = vpop.f32.mrb[0].mxu0
        %v6179 = vadd.f32 %v2241, %v6178
        %v6180 = vpop.f32.mrb[0].mxu0
        %6181 = vmatprep.mubr.f32.mxu0 0.0
        %6182 = vmatmul.mubr.f32.gmra.mrb[0].mxu0 %v5981
        %v6183 = vpop.f32.mrb[0].mxu0
        %v6184 = vadd.f32 %v2241, %v6183
        %v6185 = vpop.f32.mrb[0].mxu0
        %6186 = vmatprep.mubr.f32.mxu0 0.0
        %6187 = vmatmul.mubr.f32.gmra.mrb[0].mxu0 %v5984
        %v6188 = vpop.f32.mrb[0].mxu0
        %v6189 = vadd.f32 %v2241, %v6188
        %v6190 = vpop.f32.mrb[0].mxu0
        %6191 = vmatprep.mubr.f32.mxu0 0.0
        %6192 = vmatmul.mubr.f32.gmra.mrb[0].mxu0 %v5987
        %v6193 = vpop.f32.mrb[0].mxu0
        %v6194 = vadd.f32 %v2241, %v6193
        %v6195 = vpop.f32.mrb[0].mxu0
        %6196 = vmatprep.mubr.f32.mxu0 0.0
        %6197 = vmatmul.mubr.f32.gmra.mrb[0].mxu0 %v5990
        %v6198 = vpop.f32.mrb[0].mxu0
        %v6199 = vadd.f32 %v2241, %v6198
        %v6200 = vpop.f32.mrb[0].mxu0
        %6201 = vmatprep.mubr.f32.mxu0 0.0
        %6202 = vmatmul.mubr.f32.gmra.mrb[0].mxu0 %v5993
        %v6203 = vpop.f32.mrb[0].mxu0
        %v6204 = vadd.f32 %v2241, %v6203
        %v6205 = vpop.f32.mrb[0].mxu0
        %6206 = vmatprep.mubr.f32.mxu0 0.0
        %6207 = vmatmul.mubr.f32.gmra.mrb[0].mxu0 %v5996
        %v6208 = vpop.f32.mrb[0].mxu0
        %v6209 = vadd.f32 %v2241, %v6208
        %v6210 = vpop.f32.mrb[0].mxu0
        %6211 = vmatprep.mubr.f32.mxu0 0.0
        %6212 = vmatmul.mubr.f32.gmra.mrb[0].mxu0 %v5999
        %v6213 = vpop.f32.mrb[0].mxu0
        %v6214 = vadd.f32 %v2241, %v6213
        %v6215 = vpop.f32.mrb[0].mxu0
        %6216 = vmatprep.mubr.f32.mxu0 0.0
        %6217 = vmatmul.mubr.f32.gmra.mrb[0].mxu0 %v6002
        %v6218 = vpop.f32.mrb[0].mxu0
        %v6219 = vadd.f32 %v2241, %v6218
        %v6220 = vpop.f32.mrb[0].mxu0
        %6221 = vmatprep.mubr.f32.mxu0 0.0
        %6222 = vmatmul.mubr.f32.gmra.mrb[0].mxu0 %v6005
        %v6223 = vpop.f32.mrb[0].mxu0
        %v6224 = vadd.f32 %v2241, %v6223
        %v6225 = vpop.f32.mrb[0].mxu0
        %6226 = vmatprep.mubr.f32.mxu0 0.0
        %6227 = vmatmul.mubr.f32.gmra.mrb[0].mxu0 %v6008
        %v6228 = vpop.f32.mrb[0].mxu0
        %v6229 = vadd.f32 %v2241, %v6228
        %v6230 = vpop.f32.mrb[0].mxu0
        %6231 = vmatprep.mubr.f32.mxu0 0.0
        %6232 = vmatmul.mubr.f32.gmra.mrb[0].mxu0 %v6011
        %v6233 = vpop.f32.mrb[0].mxu0
        %v6234 = vadd.f32 %v2241, %v6233
        %v6235 = vpop.f32.mrb[0].mxu0
        %6236 = vmatprep.mubr.f32.mxu0 0.0
        %6237 = vmatmul.mubr.f32.gmra.mrb[0].mxu0 %v6014
        %v6238 = vpop.f32.mrb[0].mxu0
        %v6239 = vadd.f32 %v2241, %v6238
        %v6240 = vpop.f32.mrb[0].mxu0
        %6241 = vmatprep.mubr.f32.mxu0 0.0
        %6242 = vmatmul.mubr.f32.gmra.mrb[0].mxu0 %v6017
        %v6243 = vpop.f32.mrb[0].mxu0
        %v6244 = vadd.f32 %v2241, %v6243
        %v6245 = vpop.f32.mrb[0].mxu0
        %6246 = vmatprep.mubr.f32.mxu0 0.0
        %6247 = vmatmul.mubr.f32.gmra.mrb[0].mxu0 %v6020
        %v6248 = vpop.f32.mrb[0].mxu0
        %v6249 = vadd.f32 %v2241, %v6248
        %v6250 = vpop.f32.mrb[0].mxu0
        %6251 = vmatprep.mubr.f32.mxu0 0.0
        %6252 = vmatmul.mubr.f32.gmra.mrb[0].mxu0 %v6023
        %v6253 = vpop.f32.mrb[0].mxu0
        %v6254 = vadd.f32 %v2241, %v6253
        %v6255 = vpop.f32.mrb[0].mxu0
        %6256 = vmatprep.mubr.f32.mxu0 0.0
        %6257 = vmatmul.mubr.f32.gmra.mrb[0].mxu0 %v6026
        %v6258 = vpop.f32.mrb[0].mxu0
        %v6259 = vadd.f32 %v2241, %v6258
        %v6260 = vpop.f32.mrb[0].mxu0
        %6261 = vmatprep.mubr.f32.mxu0 0.0
        %6262 = vmatmul.mubr.f32.gmra.mrb[0].mxu0 %v6029
        %v6263 = vpop.f32.mrb[0].mxu0
        %v6264 = vadd.f32 %v2241, %v6263
        %v6265 = vpop.f32.mrb[0].mxu0
        %6266 = vmatprep.mubr.f32.mxu0 0.0
        %6267 = vmatmul.mubr.f32.gmra.mrb[0].mxu0 %v6032
        %v6268 = vpop.f32.mrb[0].mxu0
        %v6269 = vadd.f32 %v2241, %v6268
        %v6270 = vpop.f32.mrb[0].mxu0
        %6271 = vmatprep.mubr.f32.mxu0 0.0
        %6272 = vmatmul.mubr.f32.gmra.mrb[0].mxu0 %v6035
        %v6273 = vpop.f32.mrb[0].mxu0
        %v6274 = vadd.f32 %v2241, %v6273
        %v6275 = vpop.f32.mrb[0].mxu0
        %6276 = vmatprep.mubr.f32.mxu0 0.0
        %6277 = vmatmul.mubr.f32.gmra.mrb[0].mxu0 %v6038
        %v6278 = vpop.f32.mrb[0].mxu0
        %v6279 = vadd.f32 %v2241, %v6278
        %v6280 = vpop.f32.mrb[0].mxu0
        %6281 = vmatprep.mubr.f32.mxu0 0.0
        %6282 = vmatmul.mubr.f32.gmra.mrb[0].mxu0 %v6041
        %v6283 = vpop.f32.mrb[0].mxu0
        %v6284 = vadd.f32 %v2241, %v6283
        %v6285 = vpop.f32.mrb[0].mxu0
        %6286 = vmatprep.mubr.f32.mxu0 0.0
        %6287 = vmatmul.mubr.f32.gmra.mrb[0].mxu0 %v6044
        %v6288 = vpop.f32.mrb[0].mxu0
        %v6289 = vadd.f32 %v2241, %v6288
        %v6290 = vpop.f32.mrb[0].mxu0
        %6291 = vmatprep.mubr.f32.mxu0 0.0
        %6292 = vmatmul.mubr.f32.gmra.mrb[0].mxu0 %v6047
        %v6293 = vpop.f32.mrb[0].mxu0
        %v6294 = vadd.f32 %v2241, %v6293
        %v6295 = vpop.f32.mrb[0].mxu0
        %6296 = vmatprep.mubr.f32.mxu0 0.0
        %6297 = vmatmul.mubr.f32.gmra.mrb[0].mxu0 %v6050
        %v6298 = vpop.f32.mrb[0].mxu0
        %v6299 = vadd.f32 %v2241, %v6298
        %v6300 = vpop.f32.mrb[0].mxu0
        %6301 = vdwg.mxu0
        %v6303 = vsel %vm1065, %v6299, 0
        %6305 = vmatprep.subr.mxu0 0.0
        %6306 = vmatpush1.msra.mxu0 %v6119
        %6307 = vmatprep.subr.mxu0 0.0
        %6308 = vmatpush1.msra.mxu0 %v6124
        %6309 = vmatprep.subr.mxu0 0.0
        %6310 = vmatpush1.msra.mxu0 %v6129
        %6311 = vmatprep.subr.mxu0 0.0
        %6312 = vmatpush1.msra.mxu0 %v6134
        %6313 = vmatprep.subr.mxu0 0.0
        %6314 = vmatpush1.msra.mxu0 %v6139
        %6315 = vmatprep.subr.mxu0 0.0
        %6316 = vmatpush1.msra.mxu0 %v6144
        %6317 = vmatprep.subr.mxu0 0.0
        %6318 = vmatpush1.msra.mxu0 %v6149
        %6319 = vmatprep.subr.mxu0 0.0
        %6320 = vmatpush1.msra.mxu0 %v6154
        %6321 = vmatprep.subr.mxu0 0.0
        %6322 = vmatpush1.msra.mxu0 %v6159
        %6323 = vmatprep.subr.mxu0 0.0
        %6324 = vmatpush1.msra.mxu0 %v6164
        %6325 = vmatprep.subr.mxu0 0.0
        %6326 = vmatpush1.msra.mxu0 %v6169
        %6327 = vmatprep.subr.mxu0 0.0
        %6328 = vmatpush1.msra.mxu0 %v6174
        %6329 = vmatprep.subr.mxu0 0.0
        %6330 = vmatpush1.msra.mxu0 %v6179
        %6331 = vmatprep.subr.mxu0 0.0
        %6332 = vmatpush1.msra.mxu0 %v6184
        %6333 = vmatprep.subr.mxu0 0.0
        %6334 = vmatpush1.msra.mxu0 %v6189
        %6335 = vmatprep.subr.mxu0 0.0
        %6336 = vmatpush1.msra.mxu0 %v6194
        %6337 = vmatprep.subr.mxu0 0.0
        %6338 = vmatpush1.msra.mxu0 %v6199
        %6339 = vmatprep.subr.mxu0 0.0
        %6340 = vmatpush1.msra.mxu0 %v6204
        %6341 = vmatprep.subr.mxu0 0.0
        %6342 = vmatpush1.msra.mxu0 %v6209
        %6343 = vmatprep.subr.mxu0 0.0
        %6344 = vmatpush1.msra.mxu0 %v6214
        %6345 = vmatprep.subr.mxu0 0.0
        %6346 = vmatpush1.msra.mxu0 %v6219
        %6347 = vmatprep.subr.mxu0 0.0
        %6348 = vmatpush1.msra.mxu0 %v6224
        %6349 = vmatprep.subr.mxu0 0.0
        %6350 = vmatpush1.msra.mxu0 %v6229
        %6351 = vmatprep.subr.mxu0 0.0
        %6352 = vmatpush1.msra.mxu0 %v6234
        %6353 = vmatprep.subr.mxu0 0.0
        %6354 = vmatpush1.msra.mxu0 %v6239
        %6355 = vmatprep.subr.mxu0 0.0
        %6356 = vmatpush1.msra.mxu0 %v6244
        %6357 = vmatprep.subr.mxu0 0.0
        %6358 = vmatpush1.msra.mxu0 %v6249
        %6359 = vmatprep.subr.mxu0 0.0
        %6360 = vmatpush1.msra.mxu0 %v6254
        %6361 = vmatprep.subr.mxu0 0.0
        %6362 = vmatpush1.msra.mxu0 %v6259
        %6363 = vmatprep.subr.mxu0 0.0
        %6364 = vmatpush1.msra.mxu0 %v6264
        %6365 = vmatprep.subr.mxu0 0.0
        %6366 = vmatpush1.msra.mxu0 %v6269
        %6367 = vmatprep.subr.mxu0 0.0
        %6368 = vmatpush1.msra.mxu0 %v6274
        %6369 = vmatprep.mubr.f32.mxu0 %v2606
        %6370 = vmatmul.mubr.f32.gmra.mrb[0].mxu0 %v2605
        %v6371 = vpop.f32.mrb[0].mxu0
        %v6372 = vadd.f32 0.0, %v6371
        %v6373 = vpop.f32.mrb[0].mxu0
        %6374 = vmatprep.mubr.f32.mxu0 %v2609
        %6375 = vmatmul.mubr.f32.gmra.mrb[0].mxu0 %v2608
        %v6376 = vpop.f32.mrb[0].mxu0
        %v6377 = vadd.f32 0.0, %v6376
        %v6378 = vpop.f32.mrb[0].mxu0
        %6379 = vmatprep.mubr.f32.mxu0 %v2612
        %6380 = vmatmul.mubr.f32.gmra.mrb[0].mxu0 %v2611
        %v6381 = vpop.f32.mrb[0].mxu0
        %v6382 = vadd.f32 0.0, %v6381
        %v6383 = vpop.f32.mrb[0].mxu0
        %6384 = vmatprep.mubr.f32.mxu0 %v2615
        %6385 = vmatmul.mubr.f32.gmra.mrb[0].mxu0 %v2614
        %v6386 = vpop.f32.mrb[0].mxu0
        %v6387 = vadd.f32 0.0, %v6386
        %v6388 = vpop.f32.mrb[0].mxu0
        %6389 = vmatprep.mubr.f32.mxu0 %v2618
        %6390 = vmatmul.mubr.f32.gmra.mrb[0].mxu0 %v2617
        %v6391 = vpop.f32.mrb[0].mxu0
        %v6392 = vadd.f32 0.0, %v6391
        %v6393 = vpop.f32.mrb[0].mxu0
        %6394 = vmatprep.mubr.f32.mxu0 %v2621
        %6395 = vmatmul.mubr.f32.gmra.mrb[0].mxu0 %v2620
        %v6396 = vpop.f32.mrb[0].mxu0
        %v6397 = vadd.f32 0.0, %v6396
        %v6398 = vpop.f32.mrb[0].mxu0
        %6399 = vmatprep.mubr.f32.mxu0 %v2624
        %6400 = vmatmul.mubr.f32.gmra.mrb[0].mxu0 %v2623
        %v6401 = vpop.f32.mrb[0].mxu0
        %v6402 = vadd.f32 0.0, %v6401
        %v6403 = vpop.f32.mrb[0].mxu0
        %6404 = vmatprep.mubr.f32.mxu0 %v2627
        %6405 = vmatmul.mubr.f32.gmra.mrb[0].mxu0 %v2626
        %v6406 = vpop.f32.mrb[0].mxu0
        %v6407 = vadd.f32 0.0, %v6406
        %v6408 = vpop.f32.mrb[0].mxu0
        %6409 = vmatprep.mubr.f32.mxu0 %v2630
        %6410 = vmatmul.mubr.f32.gmra.mrb[0].mxu0 %v2629
        %v6411 = vpop.f32.mrb[0].mxu0
        %v6412 = vadd.f32 0.0, %v6411
        %v6413 = vpop.f32.mrb[0].mxu0
        %6414 = vmatprep.mubr.f32.mxu0 %v2633
        %6415 = vmatmul.mubr.f32.gmra.mrb[0].mxu0 %v2632
        %v6416 = vpop.f32.mrb[0].mxu0
        %v6417 = vadd.f32 0.0, %v6416
        %v6418 = vpop.f32.mrb[0].mxu0
        %6419 = vmatprep.mubr.f32.mxu0 %v2636
        %6420 = vmatmul.mubr.f32.gmra.mrb[0].mxu0 %v2635
        %v6421 = vpop.f32.mrb[0].mxu0
        %v6422 = vadd.f32 0.0, %v6421
        %v6423 = vpop.f32.mrb[0].mxu0
        %6424 = vmatprep.mubr.f32.mxu0 %v2639
        %6425 = vmatmul.mubr.f32.gmra.mrb[0].mxu0 %v2638
        %v6426 = vpop.f32.mrb[0].mxu0
        %v6427 = vadd.f32 0.0, %v6426
        %v6428 = vpop.f32.mrb[0].mxu0
        %6429 = vmatprep.mubr.f32.mxu0 %v2642
        %6430 = vmatmul.mubr.f32.gmra.mrb[0].mxu0 %v2641
        %v6431 = vpop.f32.mrb[0].mxu0
        %v6432 = vadd.f32 0.0, %v6431
        %v6433 = vpop.f32.mrb[0].mxu0
        %6434 = vdwg.mxu0
        %6435 = vmatprep.subr.mxu0 0.0
        %6436 = vmatpush1.msra.mxu0 %v6279
        %6437 = vmatprep.subr.mxu0 0.0
        %6438 = vmatpush1.msra.mxu0 %v6284
        %6439 = vmatprep.subr.mxu0 0.0
        %6440 = vmatpush1.msra.mxu0 %v6289
        %6441 = vmatprep.subr.mxu0 0.0
        %6442 = vmatpush1.msra.mxu0 %v6294
        %6443 = vmatprep.subr.mxu0 0.0
        %6444 = vmatpush1.msra.mxu0 %v6303
        %6445 = vmatprep.subr.mxu0 0.0
        %6446 = vmatpush1.msra.mxu0 0.0
        %6447 = vmatprep.subr.mxu0 0.0
        %6448 = vmatpush1.msra.mxu0 0.0
        %6449 = vmatprep.subr.mxu0 0.0
        %6450 = vmatpush1.msra.mxu0 0.0
        %6451 = vmatprep.subr.mxu0 0.0
        %6452 = vmatpush1.msra.mxu0 0.0
        %6453 = vmatprep.subr.mxu0 0.0
        %6454 = vmatpush1.msra.mxu0 0.0
        %6455 = vmatprep.subr.mxu0 0.0
        %6456 = vmatpush1.msra.mxu0 0.0
        %6457 = vmatprep.subr.mxu0 0.0
        %6458 = vmatpush1.msra.mxu0 0.0
        %6459 = vmatprep.subr.mxu0 0.0
        %6460 = vmatpush1.msra.mxu0 0.0
        %6461 = vmatprep.subr.mxu0 0.0
        %6462 = vmatpush1.msra.mxu0 0.0
        %6463 = vmatprep.subr.mxu0 0.0
        %6464 = vmatpush1.msra.mxu0 0.0
        %6465 = vmatprep.subr.mxu0 0.0
        %6466 = vmatpush1.msra.mxu0 0.0
        %6467 = vmatprep.subr.mxu0 0.0
        %6468 = vmatpush1.msra.mxu0 0.0
        %6469 = vmatprep.subr.mxu0 0.0
        %6470 = vmatpush1.msra.mxu0 0.0
        %6471 = vmatprep.subr.mxu0 0.0
        %6472 = vmatpush1.msra.mxu0 0.0
        %6473 = vmatprep.subr.mxu0 0.0
        %6474 = vmatpush1.msra.mxu0 0.0
        %6475 = vmatprep.subr.mxu0 0.0
        %6476 = vmatpush1.msra.mxu0 0.0
        %6477 = vmatprep.subr.mxu0 0.0
        %6478 = vmatpush1.msra.mxu0 0.0
        %6479 = vmatprep.subr.mxu0 0.0
        %6480 = vmatpush1.msra.mxu0 0.0
        %6481 = vmatprep.subr.mxu0 0.0
        %6482 = vmatpush1.msra.mxu0 0.0
        %6483 = vmatprep.subr.mxu0 0.0
        %6484 = vmatpush1.msra.mxu0 0.0
        %6485 = vmatprep.subr.mxu0 0.0
        %6486 = vmatpush1.msra.mxu0 0.0
        %6487 = vmatprep.subr.mxu0 0.0
        %6488 = vmatpush1.msra.mxu0 0.0
        %6489 = vmatprep.subr.mxu0 0.0
        %6490 = vmatpush1.msra.mxu0 0.0
        %6491 = vmatprep.subr.mxu0 0.0
        %6492 = vmatpush1.msra.mxu0 0.0
        %6493 = vmatprep.subr.mxu0 0.0
        %6494 = vmatpush1.msra.mxu0 0.0
        %6495 = vmatprep.subr.mxu0 0.0
        %6496 = vmatpush1.msra.mxu0 0.0
        %6497 = vmatprep.subr.mxu0 0.0
        %6498 = vmatpush1.msra.mxu0 0.0
        %6499 = vmatprep.mubr.f32.mxu0 0.0
        %6500 = vmatmul.mubr.f32.gmra.mrb[0].mxu0 %v2646
        %v6501 = vpop.f32.mrb[0].mxu0
        %v6502 = vadd.f32 %v6372, %v6501
        %v6503 = vpop.f32.mrb[0].mxu0
        %6504 = vmatprep.mubr.f32.mxu0 0.0
        %6505 = vmatmul.mubr.f32.gmra.mrb[0].mxu0 %v2649
        %v6506 = vpop.f32.mrb[0].mxu0
        %v6507 = vadd.f32 %v6377, %v6506
        %v6508 = vpop.f32.mrb[0].mxu0
        %6509 = vmatprep.mubr.f32.mxu0 0.0
        %6510 = vmatmul.mubr.f32.gmra.mrb[0].mxu0 %v2652
        %v6511 = vpop.f32.mrb[0].mxu0
        %v6512 = vadd.f32 %v6382, %v6511
        %v6513 = vpop.f32.mrb[0].mxu0
        %6514 = vmatprep.mubr.f32.mxu0 0.0
        %6515 = vmatmul.mubr.f32.gmra.mrb[0].mxu0 %v2655
        %v6516 = vpop.f32.mrb[0].mxu0
        %v6517 = vadd.f32 %v6387, %v6516
        %v6518 = vpop.f32.mrb[0].mxu0
        %6519 = vmatprep.mubr.f32.mxu0 0.0
        %6520 = vmatmul.mubr.f32.gmra.mrb[0].mxu0 %v2658
        %v6521 = vpop.f32.mrb[0].mxu0
        %v6522 = vadd.f32 %v6392, %v6521
        %v6523 = vpop.f32.mrb[0].mxu0
        %6524 = vmatprep.mubr.f32.mxu0 0.0
        %6525 = vmatmul.mubr.f32.gmra.mrb[0].mxu0 %v2661
        %v6526 = vpop.f32.mrb[0].mxu0
        %v6527 = vadd.f32 %v6397, %v6526
        %v6528 = vpop.f32.mrb[0].mxu0
        %6529 = vmatprep.mubr.f32.mxu0 0.0
        %6530 = vmatmul.mubr.f32.gmra.mrb[0].mxu0 %v2664
        %v6531 = vpop.f32.mrb[0].mxu0
        %v6532 = vadd.f32 %v6402, %v6531
        %v6533 = vpop.f32.mrb[0].mxu0
        %6534 = vmatprep.mubr.f32.mxu0 0.0
        %6535 = vmatmul.mubr.f32.gmra.mrb[0].mxu0 %v2667
        %v6536 = vpop.f32.mrb[0].mxu0
        %v6537 = vadd.f32 %v6407, %v6536
        %v6538 = vpop.f32.mrb[0].mxu0
        %6539 = vmatprep.mubr.f32.mxu0 0.0
        %6540 = vmatmul.mubr.f32.gmra.mrb[0].mxu0 %v2670
        %v6541 = vpop.f32.mrb[0].mxu0
        %v6542 = vadd.f32 %v6412, %v6541
        %v6543 = vpop.f32.mrb[0].mxu0
        %6544 = vmatprep.mubr.f32.mxu0 0.0
        %6545 = vmatmul.mubr.f32.gmra.mrb[0].mxu0 %v2673
        %v6546 = vpop.f32.mrb[0].mxu0
        %v6547 = vadd.f32 %v6417, %v6546
        %v6548 = vpop.f32.mrb[0].mxu0
        %6549 = vmatprep.mubr.f32.mxu0 0.0
        %6550 = vmatmul.mubr.f32.gmra.mrb[0].mxu0 %v2676
        %v6551 = vpop.f32.mrb[0].mxu0
        %v6552 = vadd.f32 %v6422, %v6551
        %v6553 = vpop.f32.mrb[0].mxu0
        %6554 = vmatprep.mubr.f32.mxu0 0.0
        %6555 = vmatmul.mubr.f32.gmra.mrb[0].mxu0 %v2679
        %v6556 = vpop.f32.mrb[0].mxu0
        %v6557 = vadd.f32 %v6427, %v6556
        %v6558 = vpop.f32.mrb[0].mxu0
        %6559 = vmatprep.mubr.f32.mxu0 0.0
        %6560 = vmatmul.mubr.f32.gmra.mrb[0].mxu0 %v2682
        %v6561 = vpop.f32.mrb[0].mxu0
        %v6562 = vadd.f32 %v6432, %v6561
        %v6563 = vpop.f32.mrb[0].mxu0
        %6564 = vdwg.mxu0
        %v6565 = vmax.f32 %v6502, 0.0
        %v6566 = vmax.f32 %v6507, 0.0
        %v6567 = vmax.f32 %v6512, 0.0
        %v6568 = vmax.f32 %v6517, 0.0
        %v6569 = vmax.f32 %v6522, 0.0
        %v6570 = vmax.f32 %v6527, 0.0
        %v6571 = vmax.f32 %v6532, 0.0
        %v6572 = vmax.f32 %v6537, 0.0
        %v6573 = vmax.f32 %v6542, 0.0
        %v6574 = vmax.f32 %v6547, 0.0
        %v6575 = vmax.f32 %v6552, 0.0
        %v6576 = vmax.f32 %v6557, 0.0
        %v6577 = vmax.f32 %v6562, 0.0
        %v6590 = vrot.slane %v6565, 1
        %v6591 = vrot.slane %v6566, 1
        %v6592 = vsel %vm510, %v6590, %v6591
        %v6593 = vrot.slane %v6567, 1
        %v6594 = vsel %vm510, %v6591, %v6593
        %v6595 = vrot.slane %v6568, 1
        %v6596 = vsel %vm510, %v6593, %v6595
        %v6597 = vrot.slane %v6569, 1
        %v6598 = vsel %vm510, %v6595, %v6597
        %v6599 = vrot.slane %v6570, 1
        %v6600 = vsel %vm510, %v6597, %v6599
        %v6601 = vrot.slane %v6571, 1
        %v6602 = vsel %vm510, %v6599, %v6601
        %v6603 = vrot.slane %v6572, 1
        %v6604 = vsel %vm510, %v6601, %v6603
        %v6605 = vrot.slane %v6573, 1
        %v6606 = vsel %vm510, %v6603, %v6605
        %v6607 = vrot.slane %v6574, 1
        %v6608 = vsel %vm510, %v6605, %v6607
        %v6609 = vrot.slane %v6575, 1
        %v6610 = vsel %vm510, %v6607, %v6609
        %v6611 = vrot.slane %v6576, 1
        %v6612 = vsel %vm510, %v6609, %v6611
        %6613 = vrot.lane.b32.xlu0 %v6592, 16
        %v6614 = vpop.permute.xlu0 %6613
        %6615 = vrot.lane.b32.xlu0 %v6594, 16
        %v6616 = vpop.permute.xlu0 %6615
        %6617 = vrot.lane.b32.xlu0 %v6596, 16
        %v6618 = vpop.permute.xlu0 %6617
        %6619 = vrot.lane.b32.xlu0 %v6598, 16
        %v6620 = vpop.permute.xlu0 %6619
        %6621 = vrot.lane.b32.xlu0 %v6600, 16
        %v6622 = vpop.permute.xlu0 %6621
        %6623 = vrot.lane.b32.xlu0 %v6602, 16
        %v6624 = vpop.permute.xlu0 %6623
        %6625 = vrot.lane.b32.xlu0 %v6604, 16
        %v6626 = vpop.permute.xlu0 %6625
        %6627 = vrot.lane.b32.xlu0 %v6606, 16
        %v6628 = vpop.permute.xlu0 %6627
        %6629 = vrot.lane.b32.xlu0 %v6608, 16
        %v6630 = vpop.permute.xlu0 %6629
        %6631 = vrot.lane.b32.xlu0 %v6610, 16
        %v6632 = vpop.permute.xlu0 %6631
        %6633 = vrot.lane.b32.xlu0 %v6612, 16
        %v6634 = vpop.permute.xlu0 %6633
        %6635 = vrot.lane.b32.xlu0 %v6611, 16
        %v6636 = vpop.permute.xlu0 %6635
        %v6649 = vrot.slane %v6565, 2
        %v6650 = vrot.slane %v6566, 2
        %v6651 = vsel %vm695, %v6649, %v6650
        %v6652 = vrot.slane %v6567, 2
        %v6653 = vsel %vm695, %v6650, %v6652
        %v6654 = vrot.slane %v6568, 2
        %v6655 = vsel %vm695, %v6652, %v6654
        %v6656 = vrot.slane %v6569, 2
        %v6657 = vsel %vm695, %v6654, %v6656
        %v6658 = vrot.slane %v6570, 2
        %v6659 = vsel %vm695, %v6656, %v6658
        %v6660 = vrot.slane %v6571, 2
        %v6661 = vsel %vm695, %v6658, %v6660
        %v6662 = vrot.slane %v6572, 2
        %v6663 = vsel %vm695, %v6660, %v6662
        %v6664 = vrot.slane %v6573, 2
        %v6665 = vsel %vm695, %v6662, %v6664
        %v6666 = vrot.slane %v6574, 2
        %v6667 = vsel %vm695, %v6664, %v6666
        %v6668 = vrot.slane %v6575, 2
        %v6669 = vsel %vm695, %v6666, %v6668
        %v6670 = vrot.slane %v6576, 2
        %v6671 = vsel %vm695, %v6668, %v6670
        %6672 = vrot.lane.b32.xlu0 %v6651, 32
        %v6673 = vpop.permute.xlu0 %6672
        %6674 = vrot.lane.b32.xlu0 %v6653, 32
        %v6675 = vpop.permute.xlu0 %6674
        %6676 = vrot.lane.b32.xlu0 %v6655, 32
        %v6677 = vpop.permute.xlu0 %6676
        %6678 = vrot.lane.b32.xlu0 %v6657, 32
        %v6679 = vpop.permute.xlu0 %6678
        %6680 = vrot.lane.b32.xlu0 %v6659, 32
        %v6681 = vpop.permute.xlu0 %6680
        %6682 = vrot.lane.b32.xlu0 %v6661, 32
        %v6683 = vpop.permute.xlu0 %6682
        %6684 = vrot.lane.b32.xlu0 %v6663, 32
        %v6685 = vpop.permute.xlu0 %6684
        %6686 = vrot.lane.b32.xlu0 %v6665, 32
        %v6687 = vpop.permute.xlu0 %6686
        %6688 = vrot.lane.b32.xlu0 %v6667, 32
        %v6689 = vpop.permute.xlu0 %6688
        %6690 = vrot.lane.b32.xlu0 %v6669, 32
        %v6691 = vpop.permute.xlu0 %6690
        %6692 = vrot.lane.b32.xlu0 %v6671, 32
        %v6693 = vpop.permute.xlu0 %6692
        %6694 = vrot.lane.b32.xlu0 %v6670, 32
        %v6695 = vpop.permute.xlu0 %6694
        %v6708 = vrot.slane %v6565, 3
        %v6709 = vrot.slane %v6566, 3
        %v6710 = vsel %vm880, %v6708, %v6709
        %v6711 = vrot.slane %v6567, 3
        %v6712 = vsel %vm880, %v6709, %v6711
        %v6713 = vrot.slane %v6568, 3
        %v6714 = vsel %vm880, %v6711, %v6713
        %v6715 = vrot.slane %v6569, 3
        %v6716 = vsel %vm880, %v6713, %v6715
        %v6717 = vrot.slane %v6570, 3
        %v6718 = vsel %vm880, %v6715, %v6717
        %v6719 = vrot.slane %v6571, 3
        %v6720 = vsel %vm880, %v6717, %v6719
        %v6721 = vrot.slane %v6572, 3
        %v6722 = vsel %vm880, %v6719, %v6721
        %v6723 = vrot.slane %v6573, 3
        %v6724 = vsel %vm880, %v6721, %v6723
        %v6725 = vrot.slane %v6574, 3
        %v6726 = vsel %vm880, %v6723, %v6725
        %v6727 = vrot.slane %v6575, 3
        %v6728 = vsel %vm880, %v6725, %v6727
        %v6729 = vrot.slane %v6576, 3
        %v6730 = vsel %vm880, %v6727, %v6729
        %6731 = vrot.lane.b32.xlu0 %v6710, 48
        %v6732 = vpop.permute.xlu0 %6731
        %6733 = vrot.lane.b32.xlu0 %v6712, 48
        %v6734 = vpop.permute.xlu0 %6733
        %6735 = vrot.lane.b32.xlu0 %v6714, 48
        %v6736 = vpop.permute.xlu0 %6735
        %6737 = vrot.lane.b32.xlu0 %v6716, 48
        %v6738 = vpop.permute.xlu0 %6737
        %6739 = vrot.lane.b32.xlu0 %v6718, 48
        %v6740 = vpop.permute.xlu0 %6739
        %6741 = vrot.lane.b32.xlu0 %v6720, 48
        %v6742 = vpop.permute.xlu0 %6741
        %6743 = vrot.lane.b32.xlu0 %v6722, 48
        %v6744 = vpop.permute.xlu0 %6743
        %6745 = vrot.lane.b32.xlu0 %v6724, 48
        %v6746 = vpop.permute.xlu0 %6745
        %6747 = vrot.lane.b32.xlu0 %v6726, 48
        %v6748 = vpop.permute.xlu0 %6747
        %6749 = vrot.lane.b32.xlu0 %v6728, 48
        %v6750 = vpop.permute.xlu0 %6749
        %6751 = vrot.lane.b32.xlu0 %v6730, 48
        %v6752 = vpop.permute.xlu0 %6751
        %6753 = vrot.lane.b32.xlu0 %v6729, 48
        %v6754 = vpop.permute.xlu0 %6753
        %v6767 = vrot.slane %v6565, 4
        %v6768 = vrot.slane %v6566, 4
        %v6769 = vsel %vm1065, %v6767, %v6768
        %v6770 = vrot.slane %v6567, 4
        %v6771 = vsel %vm1065, %v6768, %v6770
        %v6772 = vrot.slane %v6568, 4
        %v6773 = vsel %vm1065, %v6770, %v6772
        %v6774 = vrot.slane %v6569, 4
        %v6775 = vsel %vm1065, %v6772, %v6774
        %v6776 = vrot.slane %v6570, 4
        %v6777 = vsel %vm1065, %v6774, %v6776
        %v6778 = vrot.slane %v6571, 4
        %v6779 = vsel %vm1065, %v6776, %v6778
        %v6780 = vrot.slane %v6572, 4
        %v6781 = vsel %vm1065, %v6778, %v6780
        %v6782 = vrot.slane %v6573, 4
        %v6783 = vsel %vm1065, %v6780, %v6782
        %v6784 = vrot.slane %v6574, 4
        %v6785 = vsel %vm1065, %v6782, %v6784
        %v6786 = vrot.slane %v6575, 4
        %v6787 = vsel %vm1065, %v6784, %v6786
        %v6788 = vrot.slane %v6576, 4
        %v6789 = vsel %vm1065, %v6786, %v6788
        %6790 = vrot.lane.b32.xlu0 %v6769, 64
        %v6791 = vpop.permute.xlu0 %6790
        %6792 = vrot.lane.b32.xlu0 %v6771, 64
        %v6793 = vpop.permute.xlu0 %6792
        %6794 = vrot.lane.b32.xlu0 %v6773, 64
        %v6795 = vpop.permute.xlu0 %6794
        %6796 = vrot.lane.b32.xlu0 %v6775, 64
        %v6797 = vpop.permute.xlu0 %6796
        %6798 = vrot.lane.b32.xlu0 %v6777, 64
        %v6799 = vpop.permute.xlu0 %6798
        %6800 = vrot.lane.b32.xlu0 %v6779, 64
        %v6801 = vpop.permute.xlu0 %6800
        %6802 = vrot.lane.b32.xlu0 %v6781, 64
        %v6803 = vpop.permute.xlu0 %6802
        %6804 = vrot.lane.b32.xlu0 %v6783, 64
        %v6805 = vpop.permute.xlu0 %6804
        %6806 = vrot.lane.b32.xlu0 %v6785, 64
        %v6807 = vpop.permute.xlu0 %6806
        %6808 = vrot.lane.b32.xlu0 %v6787, 64
        %v6809 = vpop.permute.xlu0 %6808
        %6810 = vrot.lane.b32.xlu0 %v6789, 64
        %v6811 = vpop.permute.xlu0 %6810
        %6812 = vrot.lane.b32.xlu0 %v6788, 64
        %v6813 = vpop.permute.xlu0 %6812
        %v6826 = vrot.slane %v6565, 5
        %v6827 = vrot.slane %v6566, 5
        %v6828 = vsel %vm1251, %v6826, %v6827
        %v6829 = vrot.slane %v6567, 5
        %v6830 = vsel %vm1251, %v6827, %v6829
        %v6831 = vrot.slane %v6568, 5
        %v6832 = vsel %vm1251, %v6829, %v6831
        %v6833 = vrot.slane %v6569, 5
        %v6834 = vsel %vm1251, %v6831, %v6833
        %v6835 = vrot.slane %v6570, 5
        %v6836 = vsel %vm1251, %v6833, %v6835
        %v6837 = vrot.slane %v6571, 5
        %v6838 = vsel %vm1251, %v6835, %v6837
        %v6839 = vrot.slane %v6572, 5
        %v6840 = vsel %vm1251, %v6837, %v6839
        %v6841 = vrot.slane %v6573, 5
        %v6842 = vsel %vm1251, %v6839, %v6841
        %v6843 = vrot.slane %v6574, 5
        %v6844 = vsel %vm1251, %v6841, %v6843
        %v6845 = vrot.slane %v6575, 5
        %v6846 = vsel %vm1251, %v6843, %v6845
        %v6847 = vrot.slane %v6576, 5
        %v6848 = vsel %vm1251, %v6845, %v6847
        %6849 = vrot.lane.b32.xlu0 %v6828, 80
        %v6850 = vpop.permute.xlu0 %6849
        %6851 = vrot.lane.b32.xlu0 %v6830, 80
        %v6852 = vpop.permute.xlu0 %6851
        %6853 = vrot.lane.b32.xlu0 %v6832, 80
        %v6854 = vpop.permute.xlu0 %6853
        %6855 = vrot.lane.b32.xlu0 %v6834, 80
        %v6856 = vpop.permute.xlu0 %6855
        %6857 = vrot.lane.b32.xlu0 %v6836, 80
        %v6858 = vpop.permute.xlu0 %6857
        %6859 = vrot.lane.b32.xlu0 %v6838, 80
        %v6860 = vpop.permute.xlu0 %6859
        %6861 = vrot.lane.b32.xlu0 %v6840, 80
        %v6862 = vpop.permute.xlu0 %6861
        %6863 = vrot.lane.b32.xlu0 %v6842, 80
        %v6864 = vpop.permute.xlu0 %6863
        %6865 = vrot.lane.b32.xlu0 %v6844, 80
        %v6866 = vpop.permute.xlu0 %6865
        %6867 = vrot.lane.b32.xlu0 %v6846, 80
        %v6868 = vpop.permute.xlu0 %6867
        %6869 = vrot.lane.b32.xlu0 %v6848, 80
        %v6870 = vpop.permute.xlu0 %6869
        %6871 = vrot.lane.b32.xlu0 %v6847, 80
        %v6872 = vpop.permute.xlu0 %6871
        %v6886 = vrot.slane %v6565, 6
        %v6887 = vrot.slane %v6566, 6
        %v6888 = vsel %vm1438, %v6886, %v6887
        %v6889 = vrot.slane %v6567, 6
        %v6890 = vsel %vm1438, %v6887, %v6889
        %v6891 = vrot.slane %v6568, 6
        %v6892 = vsel %vm1438, %v6889, %v6891
        %v6893 = vrot.slane %v6569, 6
        %v6894 = vsel %vm1438, %v6891, %v6893
        %v6895 = vrot.slane %v6570, 6
        %v6896 = vsel %vm1438, %v6893, %v6895
        %v6897 = vrot.slane %v6571, 6
        %v6898 = vsel %vm1438, %v6895, %v6897
        %v6899 = vrot.slane %v6572, 6
        %v6900 = vsel %vm1438, %v6897, %v6899
        %v6901 = vrot.slane %v6573, 6
        %v6902 = vsel %vm1438, %v6899, %v6901
        %v6903 = vrot.slane %v6574, 6
        %v6904 = vsel %vm1438, %v6901, %v6903
        %v6905 = vrot.slane %v6575, 6
        %v6906 = vsel %vm1438, %v6903, %v6905
        %v6907 = vrot.slane %v6576, 6
        %v6908 = vsel %vm1438, %v6905, %v6907
        %v6909 = vrot.slane %v6577, 6
        %v6910 = vsel %vm1438, %v6907, %v6909
        %6911 = vrot.lane.b32.xlu0 %v6888, 96
        %v6912 = vpop.permute.xlu0 %6911
        %6913 = vrot.lane.b32.xlu0 %v6890, 96
        %v6914 = vpop.permute.xlu0 %6913
        %6915 = vrot.lane.b32.xlu0 %v6892, 96
        %v6916 = vpop.permute.xlu0 %6915
        %6917 = vrot.lane.b32.xlu0 %v6894, 96
        %v6918 = vpop.permute.xlu0 %6917
        %6919 = vrot.lane.b32.xlu0 %v6896, 96
        %v6920 = vpop.permute.xlu0 %6919
        %6921 = vrot.lane.b32.xlu0 %v6898, 96
        %v6922 = vpop.permute.xlu0 %6921
        %6923 = vrot.lane.b32.xlu0 %v6900, 96
        %v6924 = vpop.permute.xlu0 %6923
        %6925 = vrot.lane.b32.xlu0 %v6902, 96
        %v6926 = vpop.permute.xlu0 %6925
        %6927 = vrot.lane.b32.xlu0 %v6904, 96
        %v6928 = vpop.permute.xlu0 %6927
        %6929 = vrot.lane.b32.xlu0 %v6906, 96
        %v6930 = vpop.permute.xlu0 %6929
        %6931 = vrot.lane.b32.xlu0 %v6908, 96
        %v6932 = vpop.permute.xlu0 %6931
        %6933 = vrot.lane.b32.xlu0 %v6910, 96
        %v6934 = vpop.permute.xlu0 %6933
        %v6947 = vsel %vm1961, %v6565, %v6614
        %v6948 = vsel %vm1961, %v6566, %v6616
        %v6949 = vsel %vm1961, %v6567, %v6618
        %v6950 = vsel %vm1961, %v6568, %v6620
        %v6951 = vsel %vm1961, %v6569, %v6622
        %v6952 = vsel %vm1961, %v6570, %v6624
        %v6953 = vsel %vm1961, %v6571, %v6626
        %v6954 = vsel %vm1961, %v6572, %v6628
        %v6955 = vsel %vm1961, %v6573, %v6630
        %v6956 = vsel %vm1961, %v6574, %v6632
        %v6957 = vsel %vm1961, %v6575, %v6634
        %v6958 = vsel %vm1961, %v6576, %v6636
        %v6959 = vsel %vm2037, %v6947, %v6673
        %v6960 = vsel %vm2037, %v6948, %v6675
        %v6961 = vsel %vm2037, %v6949, %v6677
        %v6962 = vsel %vm2037, %v6950, %v6679
        %v6963 = vsel %vm2037, %v6951, %v6681
        %v6964 = vsel %vm2037, %v6952, %v6683
        %v6965 = vsel %vm2037, %v6953, %v6685
        %v6966 = vsel %vm2037, %v6954, %v6687
        %v6967 = vsel %vm2037, %v6955, %v6689
        %v6968 = vsel %vm2037, %v6956, %v6691
        %v6969 = vsel %vm2037, %v6957, %v6693
        %v6970 = vsel %vm2037, %v6958, %v6695
        %v6971 = vsel %vm2113, %v6959, %v6732
        %v6972 = vsel %vm2113, %v6960, %v6734
        %v6973 = vsel %vm2113, %v6961, %v6736
        %v6974 = vsel %vm2113, %v6962, %v6738
        %v6975 = vsel %vm2113, %v6963, %v6740
        %v6976 = vsel %vm2113, %v6964, %v6742
        %v6977 = vsel %vm2113, %v6965, %v6744
        %v6978 = vsel %vm2113, %v6966, %v6746
        %v6979 = vsel %vm2113, %v6967, %v6748
        %v6980 = vsel %vm2113, %v6968, %v6750
        %v6981 = vsel %vm2113, %v6969, %v6752
        %v6982 = vsel %vm2113, %v6970, %v6754
        %v6983 = vsel %vm2189, %v6971, %v6791
        %v6984 = vsel %vm2189, %v6972, %v6793
        %v6985 = vsel %vm2189, %v6973, %v6795
        %v6986 = vsel %vm2189, %v6974, %v6797
        %v6987 = vsel %vm2189, %v6975, %v6799
        %v6988 = vsel %vm2189, %v6976, %v6801
        %v6989 = vsel %vm2189, %v6977, %v6803
        %v6990 = vsel %vm2189, %v6978, %v6805
        %v6991 = vsel %vm2189, %v6979, %v6807
        %v6992 = vsel %vm2189, %v6980, %v6809
        %v6993 = vsel %vm2189, %v6981, %v6811
        %v6994 = vsel %vm2189, %v6982, %v6813
        %v6995 = vsel %vm3377, %v6983, %v6850
        %v6996 = vsel %vm3377, %v6984, %v6852
        %v6997 = vsel %vm3377, %v6985, %v6854
        %v6998 = vsel %vm3377, %v6986, %v6856
        %v6999 = vsel %vm3377, %v6987, %v6858
        %v7000 = vsel %vm3377, %v6988, %v6860
        %v7001 = vsel %vm3377, %v6989, %v6862
        %v7002 = vsel %vm3377, %v6990, %v6864
        %v7003 = vsel %vm3377, %v6991, %v6866
        %v7004 = vsel %vm3377, %v6992, %v6868
        %v7005 = vsel %vm3377, %v6993, %v6870
        %v7006 = vsel %vm3377, %v6994, %v6872
        %v7007 = vsel %vm3390, %v6995, %v6912
        %v7008 = vsel %vm3390, %v6996, %v6914
        %v7009 = vsel %vm3390, %v6997, %v6916
        %v7010 = vsel %vm3390, %v6998, %v6918
        %v7011 = vsel %vm3390, %v6999, %v6920
        %v7012 = vsel %vm3390, %v7000, %v6922
        %v7013 = vsel %vm3390, %v7001, %v6924
        %v7014 = vsel %vm3390, %v7002, %v6926
        %v7015 = vsel %vm3390, %v7003, %v6928
        %v7016 = vsel %vm3390, %v7004, %v6930
        %v7017 = vsel %vm3390, %v7005, %v6932
        %v7018 = vsel %vm3390, %v7006, %v6934
        %v7020 = vsel %vm3424, %v7007, 0
        %v7023 = vsel %vm3424, %v7008, 0
        %v7026 = vsel %vm3424, %v7009, 0
        %v7029 = vsel %vm3424, %v7010, 0
        %v7032 = vsel %vm3424, %v7011, 0
        %v7035 = vsel %vm3424, %v7012, 0
        %v7038 = vsel %vm3424, %v7013, 0
        %v7041 = vsel %vm3424, %v7014, 0
        %v7044 = vsel %vm3424, %v7015, 0
        %v7047 = vsel %vm3424, %v7016, 0
        %v7050 = vsel %vm3424, %v7017, 0
        %v7053 = vsel %vm3424, %v7018, 0
        %7055 = vmatprep.subr.mxu0 0.0
        %7056 = vmatpush1.msra.mxu0 %v3403
        %7057 = vmatprep.subr.mxu0 0.0
        %7058 = vmatpush1.msra.mxu0 %v3404
        %7059 = vmatprep.subr.mxu0 0.0
        %7060 = vmatpush1.msra.mxu0 %v3405
        %7061 = vmatprep.subr.mxu0 0.0
        %7062 = vmatpush1.msra.mxu0 %v3406
        %7063 = vmatprep.subr.mxu0 0.0
        %7064 = vmatpush1.msra.mxu0 %v3407
        %7065 = vmatprep.subr.mxu0 0.0
        %7066 = vmatpush1.msra.mxu0 %v3408
        %7067 = vmatprep.subr.mxu0 0.0
        %7068 = vmatpush1.msra.mxu0 %v3409
        %7069 = vmatprep.subr.mxu0 0.0
        %7070 = vmatpush1.msra.mxu0 %v3410
        %7071 = vmatprep.subr.mxu0 0.0
        %7072 = vmatpush1.msra.mxu0 %v3411
        %7073 = vmatprep.subr.mxu0 0.0
        %7074 = vmatpush1.msra.mxu0 %v3412
        %7075 = vmatprep.subr.mxu0 0.0
        %7076 = vmatpush1.msra.mxu0 %v3413
        %7077 = vmatprep.subr.mxu0 0.0
        %7078 = vmatpush1.msra.mxu0 %v3414
        %7079 = vmatprep.subr.mxu0 0.0
        %7080 = vmatpush1.msra.mxu0 %v3415
        %7081 = vmatprep.subr.mxu0 0.0
        %7082 = vmatpush1.msra.mxu0 %v3416
        %7083 = vmatprep.subr.mxu0 0.0
        %7084 = vmatpush1.msra.mxu0 0.0
        %7085 = vmatprep.subr.mxu0 0.0
        %7086 = vmatpush1.msra.mxu0 0.0
        %7087 = vmatprep.subr.mxu0 0.0
        %7088 = vmatpush1.msra.mxu0 0.0
        %7089 = vmatprep.subr.mxu0 0.0
        %7090 = vmatpush1.msra.mxu0 0.0
        %7091 = vmatprep.subr.mxu0 0.0
        %7092 = vmatpush1.msra.mxu0 0.0
        %7093 = vmatprep.subr.mxu0 0.0
        %7094 = vmatpush1.msra.mxu0 0.0
        %7095 = vmatprep.subr.mxu0 0.0
        %7096 = vmatpush1.msra.mxu0 0.0
        %7097 = vmatprep.subr.mxu0 0.0
        %7098 = vmatpush1.msra.mxu0 0.0
        %7099 = vmatprep.subr.mxu0 0.0
        %7100 = vmatpush1.msra.mxu0 0.0
        %7101 = vmatprep.subr.mxu0 0.0
        %7102 = vmatpush1.msra.mxu0 0.0
        %7103 = vmatprep.subr.mxu0 0.0
        %7104 = vmatpush1.msra.mxu0 0.0
        %7105 = vmatprep.subr.mxu0 0.0
        %7106 = vmatpush1.msra.mxu0 0.0
        %7107 = vmatprep.subr.mxu0 0.0
        %7108 = vmatpush1.msra.mxu0 0.0
        %7109 = vmatprep.subr.mxu0 0.0
        %7110 = vmatpush1.msra.mxu0 0.0
        %7111 = vmatprep.subr.mxu0 0.0
        %7112 = vmatpush1.msra.mxu0 0.0
        %7113 = vmatprep.subr.mxu0 0.0
        %7114 = vmatpush1.msra.mxu0 0.0
        %7115 = vmatprep.subr.mxu0 0.0
        %7116 = vmatpush1.msra.mxu0 0.0
        %7117 = vmatprep.subr.mxu0 0.0
        %7118 = vmatpush1.msra.mxu0 0.0
        %7119 = vmatprep.mubr.f32.mxu0 0.0
        %7120 = vmatmul.mubr.f32.gmra.mrb[0].mxu0 %v7020
        %v7121 = vpop.f32.mrb[0].mxu0
        %v7122 = vadd.f32 %v3422, %v7121
        %v7123 = vpop.f32.mrb[0].mxu0
        %7124 = vmatprep.mubr.f32.mxu0 0.0
        %7125 = vmatmul.mubr.f32.gmra.mrb[0].mxu0 %v7023
        %v7126 = vpop.f32.mrb[0].mxu0
        %v7127 = vadd.f32 %v3422, %v7126
        %v7128 = vpop.f32.mrb[0].mxu0
        %7129 = vmatprep.mubr.f32.mxu0 0.0
        %7130 = vmatmul.mubr.f32.gmra.mrb[0].mxu0 %v7026
        %v7131 = vpop.f32.mrb[0].mxu0
        %v7132 = vadd.f32 %v3422, %v7131
        %v7133 = vpop.f32.mrb[0].mxu0
        %7134 = vmatprep.mubr.f32.mxu0 0.0
        %7135 = vmatmul.mubr.f32.gmra.mrb[0].mxu0 %v7029
        %v7136 = vpop.f32.mrb[0].mxu0
        %v7137 = vadd.f32 %v3422, %v7136
        %v7138 = vpop.f32.mrb[0].mxu0
        %7139 = vmatprep.mubr.f32.mxu0 0.0
        %7140 = vmatmul.mubr.f32.gmra.mrb[0].mxu0 %v7032
        %v7141 = vpop.f32.mrb[0].mxu0
        %v7142 = vadd.f32 %v3422, %v7141
        %v7143 = vpop.f32.mrb[0].mxu0
        %7144 = vmatprep.mubr.f32.mxu0 0.0
        %7145 = vmatmul.mubr.f32.gmra.mrb[0].mxu0 %v7035
        %v7146 = vpop.f32.mrb[0].mxu0
        %v7147 = vadd.f32 %v3422, %v7146
        %v7148 = vpop.f32.mrb[0].mxu0
        %7149 = vmatprep.mubr.f32.mxu0 0.0
        %7150 = vmatmul.mubr.f32.gmra.mrb[0].mxu0 %v7038
        %v7151 = vpop.f32.mrb[0].mxu0
        %v7152 = vadd.f32 %v3422, %v7151
        %v7153 = vpop.f32.mrb[0].mxu0
        %7154 = vmatprep.mubr.f32.mxu0 0.0
        %7155 = vmatmul.mubr.f32.gmra.mrb[0].mxu0 %v7041
        %v7156 = vpop.f32.mrb[0].mxu0
        %v7157 = vadd.f32 %v3422, %v7156
        %v7158 = vpop.f32.mrb[0].mxu0
        %7159 = vmatprep.mubr.f32.mxu0 0.0
        %7160 = vmatmul.mubr.f32.gmra.mrb[0].mxu0 %v7044
        %v7161 = vpop.f32.mrb[0].mxu0
        %v7162 = vadd.f32 %v3422, %v7161
        %v7163 = vpop.f32.mrb[0].mxu0
        %7164 = vmatprep.mubr.f32.mxu0 0.0
        %7165 = vmatmul.mubr.f32.gmra.mrb[0].mxu0 %v7047
        %v7166 = vpop.f32.mrb[0].mxu0
        %v7167 = vadd.f32 %v3422, %v7166
        %v7168 = vpop.f32.mrb[0].mxu0
        %7169 = vmatprep.mubr.f32.mxu0 0.0
        %7170 = vmatmul.mubr.f32.gmra.mrb[0].mxu0 %v7050
        %v7171 = vpop.f32.mrb[0].mxu0
        %v7172 = vadd.f32 %v3422, %v7171
        %v7173 = vpop.f32.mrb[0].mxu0
        %7174 = vmatprep.mubr.f32.mxu0 0.0
        %7175 = vmatmul.mubr.f32.gmra.mrb[0].mxu0 %v7053
        %v7176 = vpop.f32.mrb[0].mxu0
        %v7177 = vadd.f32 %v3422, %v7176
        %v7178 = vpop.f32.mrb[0].mxu0
        %7179 = vdwg.mxu0
        %v7181 = vsel %vm1251, %v7177, 0
        %7183 = vmatprep.subr.mxu0 0.0
        %7184 = vmatpush1.msra.mxu0 %v7122
        %7185 = vmatprep.subr.mxu0 0.0
        %7186 = vmatpush1.msra.mxu0 %v7127
        %7187 = vmatprep.subr.mxu0 0.0
        %7188 = vmatpush1.msra.mxu0 %v7132
        %7189 = vmatprep.subr.mxu0 0.0
        %7190 = vmatpush1.msra.mxu0 %v7137
        %7191 = vmatprep.subr.mxu0 0.0
        %7192 = vmatpush1.msra.mxu0 %v7142
        %7193 = vmatprep.subr.mxu0 0.0
        %7194 = vmatpush1.msra.mxu0 %v7147
        %7195 = vmatprep.subr.mxu0 0.0
        %7196 = vmatpush1.msra.mxu0 %v7152
        %7197 = vmatprep.subr.mxu0 0.0
        %7198 = vmatpush1.msra.mxu0 %v7157
        %7199 = vmatprep.subr.mxu0 0.0
        %7200 = vmatpush1.msra.mxu0 %v7162
        %7201 = vmatprep.subr.mxu0 0.0
        %7202 = vmatpush1.msra.mxu0 %v7167
        %7203 = vmatprep.subr.mxu0 0.0
        %7204 = vmatpush1.msra.mxu0 %v7172
        %7205 = vmatprep.subr.mxu0 0.0
        %7206 = vmatpush1.msra.mxu0 %v7181
        %7207 = vmatprep.subr.mxu0 0.0
        %7208 = vmatpush1.msra.mxu0 0.0
        %7209 = vmatprep.subr.mxu0 0.0
        %7210 = vmatpush1.msra.mxu0 0.0
        %7211 = vmatprep.subr.mxu0 0.0
        %7212 = vmatpush1.msra.mxu0 0.0
        %7213 = vmatprep.subr.mxu0 0.0
        %7214 = vmatpush1.msra.mxu0 0.0
        %7215 = vmatprep.subr.mxu0 0.0
        %7216 = vmatpush1.msra.mxu0 0.0
        %7217 = vmatprep.subr.mxu0 0.0
        %7218 = vmatpush1.msra.mxu0 0.0
        %7219 = vmatprep.subr.mxu0 0.0
        %7220 = vmatpush1.msra.mxu0 0.0
        %7221 = vmatprep.subr.mxu0 0.0
        %7222 = vmatpush1.msra.mxu0 0.0
        %7223 = vmatprep.subr.mxu0 0.0
        %7224 = vmatpush1.msra.mxu0 0.0
        %7225 = vmatprep.subr.mxu0 0.0
        %7226 = vmatpush1.msra.mxu0 0.0
        %7227 = vmatprep.subr.mxu0 0.0
        %7228 = vmatpush1.msra.mxu0 0.0
        %7229 = vmatprep.subr.mxu0 0.0
        %7230 = vmatpush1.msra.mxu0 0.0
        %7231 = vmatprep.subr.mxu0 0.0
        %7232 = vmatpush1.msra.mxu0 0.0
        %7233 = vmatprep.subr.mxu0 0.0
        %7234 = vmatpush1.msra.mxu0 0.0
        %7235 = vmatprep.subr.mxu0 0.0
        %7236 = vmatpush1.msra.mxu0 0.0
        %7237 = vmatprep.subr.mxu0 0.0
        %7238 = vmatpush1.msra.mxu0 0.0
        %7239 = vmatprep.subr.mxu0 0.0
        %7240 = vmatpush1.msra.mxu0 0.0
        %7241 = vmatprep.subr.mxu0 0.0
        %7242 = vmatpush1.msra.mxu0 0.0
        %7243 = vmatprep.subr.mxu0 0.0
        %7244 = vmatpush1.msra.mxu0 0.0
        %7245 = vmatprep.subr.mxu0 0.0
        %7246 = vmatpush1.msra.mxu0 0.0
        %7247 = vmatprep.mubr.f32.mxu0 0.0
        %7248 = vmatmul.mubr.f32.gmra.mrb[0].mxu0 %v3592
        %v7249 = vpop.f32.mrb[0].mxu0
        %v7250 = vadd.f32 0.0, %v7249
        %v7251 = vpop.f32.mrb[0].mxu0
        %7252 = vmatprep.mubr.f32.mxu0 0.0
        %7253 = vmatmul.mubr.f32.gmra.mrb[0].mxu0 %v3595
        %v7254 = vpop.f32.mrb[0].mxu0
        %v7255 = vadd.f32 0.0, %v7254
        %v7256 = vpop.f32.mrb[0].mxu0
        %7257 = vmatprep.mubr.f32.mxu0 0.0
        %7258 = vmatmul.mubr.f32.gmra.mrb[0].mxu0 %v3598
        %v7259 = vpop.f32.mrb[0].mxu0
        %v7260 = vadd.f32 0.0, %v7259
        %v7261 = vpop.f32.mrb[0].mxu0
        %7262 = vmatprep.mubr.f32.mxu0 0.0
        %7263 = vmatmul.mubr.f32.gmra.mrb[0].mxu0 %v3601
        %v7264 = vpop.f32.mrb[0].mxu0
        %v7265 = vadd.f32 0.0, %v7264
        %v7266 = vpop.f32.mrb[0].mxu0
        %7267 = vdwg.mxu0
        %v7268 = vmax.f32 %v7250, 0.0
        %v7269 = vmax.f32 %v7255, 0.0
        %v7270 = vmax.f32 %v7260, 0.0
        %v7271 = vmax.f32 %v7265, 0.0
        %v7276 = vrot.slane %v7268, 1
        %v7277 = vrot.slane %v7269, 1
        %v7278 = vsel %vm510, %v7276, %v7277
        %v7279 = vrot.slane %v7270, 1
        %v7280 = vsel %vm510, %v7277, %v7279
        %v7281 = vrot.slane %v7271, 1
        %v7282 = vsel %vm510, %v7279, %v7281
        %7283 = vrot.lane.b32.xlu0 %v7278, 32
        %v7284 = vpop.permute.xlu0 %7283
        %7285 = vrot.lane.b32.xlu0 %v7280, 32
        %v7286 = vpop.permute.xlu0 %7285
        %7287 = vrot.lane.b32.xlu0 %v7282, 32
        %v7288 = vpop.permute.xlu0 %7287
        %7289 = vrot.lane.b32.xlu0 %v7281, 32
        %v7290 = vpop.permute.xlu0 %7289
        %v7295 = vrot.slane %v7268, 2
        %v7296 = vrot.slane %v7269, 2
        %v7297 = vsel %vm695, %v7295, %v7296
        %v7298 = vrot.slane %v7270, 2
        %v7299 = vsel %vm695, %v7296, %v7298
        %v7300 = vrot.slane %v7271, 2
        %v7301 = vsel %vm695, %v7298, %v7300
        %7302 = vrot.lane.b32.xlu0 %v7297, 64
        %v7303 = vpop.permute.xlu0 %7302
        %7304 = vrot.lane.b32.xlu0 %v7299, 64
        %v7305 = vpop.permute.xlu0 %7304
        %7306 = vrot.lane.b32.xlu0 %v7301, 64
        %v7307 = vpop.permute.xlu0 %7306
        %7308 = vrot.lane.b32.xlu0 %v7300, 64
        %v7309 = vpop.permute.xlu0 %7308
        %v7314 = vrot.slane %v7268, 3
        %v7315 = vrot.slane %v7269, 3
        %v7316 = vsel %vm880, %v7314, %v7315
        %v7317 = vrot.slane %v7270, 3
        %v7318 = vsel %vm880, %v7315, %v7317
        %v7319 = vrot.slane %v7271, 3
        %v7320 = vsel %vm880, %v7317, %v7319
        %7321 = vrot.lane.b32.xlu0 %v7316, 96
        %v7322 = vpop.permute.xlu0 %7321
        %7323 = vrot.lane.b32.xlu0 %v7318, 96
        %v7324 = vpop.permute.xlu0 %7323
        %7325 = vrot.lane.b32.xlu0 %v7320, 96
        %v7326 = vpop.permute.xlu0 %7325
        %7327 = vrot.lane.b32.xlu0 %v7319, 96
        %v7328 = vpop.permute.xlu0 %7327
        %v7333 = vrot.slane %v7268, 4
        %v7334 = vrot.slane %v7269, 4
        %v7335 = vsel %vm1065, %v7333, %v7334
        %v7336 = vrot.slane %v7270, 4
        %v7337 = vsel %vm1065, %v7334, %v7336
        %v7338 = vrot.slane %v7271, 4
        %v7339 = vsel %vm1065, %v7336, %v7338
        %v7340 = vsel %vm2037, %v7268, %v7284
        %v7341 = vsel %vm2037, %v7269, %v7286
        %v7342 = vsel %vm2037, %v7270, %v7288
        %v7343 = vsel %vm2037, %v7271, %v7290
        %v7344 = vsel %vm2189, %v7340, %v7303
        %v7345 = vsel %vm2189, %v7341, %v7305
        %v7346 = vsel %vm2189, %v7342, %v7307
        %v7347 = vsel %vm2189, %v7343, %v7309
        %v7348 = vsel %vm3390, %v7344, %v7322
        %v7349 = vsel %vm3390, %v7345, %v7324
        %v7350 = vsel %vm3390, %v7346, %v7326
        %v7351 = vsel %vm3390, %v7347, %v7328
        %v7352 = vsel %vm2037, %v7335, 0
        %v7354 = vsel %vm2037, %v7337, 0
        %v7356 = vsel %vm2037, %v7339, 0
        %v7358 = vsel %vm2037, %v7338, 0
        %7360 = vmatprep.subr.mxu0 0.0
        %7361 = vmatpush1.msra.mxu0 %v3775
        %7362 = vmatprep.subr.mxu0 0.0
        %7363 = vmatpush1.msra.mxu0 %v3776
        %7364 = vmatprep.subr.mxu0 0.0
        %7365 = vmatpush1.msra.mxu0 %v3777
        %7366 = vmatprep.subr.mxu0 0.0
        %7367 = vmatpush1.msra.mxu0 %v3778
        %7368 = vmatprep.subr.mxu0 0.0
        %7369 = vmatpush1.msra.mxu0 %v3779
        %7370 = vmatprep.subr.mxu0 0.0
        %7371 = vmatpush1.msra.mxu0 %v3780
        %7372 = vmatprep.subr.mxu0 0.0
        %7373 = vmatpush1.msra.mxu0 %v3781
        %7374 = vmatprep.subr.mxu0 0.0
        %7375 = vmatpush1.msra.mxu0 %v3782
        %7376 = vmatprep.subr.mxu0 0.0
        %7377 = vmatpush1.msra.mxu0 %v3783
        %7378 = vmatprep.subr.mxu0 0.0
        %7379 = vmatpush1.msra.mxu0 %v3784
        %7380 = vmatprep.subr.mxu0 0.0
        %7381 = vmatpush1.msra.mxu0 %v3785
        %7382 = vmatprep.subr.mxu0 0.0
        %7383 = vmatpush1.msra.mxu0 %v3786
        %7384 = vmatprep.subr.mxu0 0.0
        %7385 = vmatpush1.msra.mxu0 %v3787
        %7386 = vmatprep.subr.mxu0 0.0
        %7387 = vmatpush1.msra.mxu0 %v3788
        %7388 = vmatprep.subr.mxu0 0.0
        %7389 = vmatpush1.msra.mxu0 %v3789
        %7390 = vmatprep.subr.mxu0 0.0
        %7391 = vmatpush1.msra.mxu0 %v3790
        %7392 = vmatprep.subr.mxu0 0.0
        %7393 = vmatpush1.msra.mxu0 %v3791
        %7394 = vmatprep.subr.mxu0 0.0
        %7395 = vmatpush1.msra.mxu0 %v3792
        %7396 = vmatprep.subr.mxu0 0.0
        %7397 = vmatpush1.msra.mxu0 %v3793
        %7398 = vmatprep.subr.mxu0 0.0
        %7399 = vmatpush1.msra.mxu0 %v3794
        %7400 = vmatprep.subr.mxu0 0.0
        %7401 = vmatpush1.msra.mxu0 0.0
        %7402 = vmatprep.subr.mxu0 0.0
        %7403 = vmatpush1.msra.mxu0 0.0
        %7404 = vmatprep.subr.mxu0 0.0
        %7405 = vmatpush1.msra.mxu0 0.0
        %7406 = vmatprep.subr.mxu0 0.0
        %7407 = vmatpush1.msra.mxu0 0.0
        %7408 = vmatprep.subr.mxu0 0.0
        %7409 = vmatpush1.msra.mxu0 0.0
        %7410 = vmatprep.subr.mxu0 0.0
        %7411 = vmatpush1.msra.mxu0 0.0
        %7412 = vmatprep.subr.mxu0 0.0
        %7413 = vmatpush1.msra.mxu0 0.0
        %7414 = vmatprep.subr.mxu0 0.0
        %7415 = vmatpush1.msra.mxu0 0.0
        %7416 = vmatprep.subr.mxu0 0.0
        %7417 = vmatpush1.msra.mxu0 0.0
        %7418 = vmatprep.subr.mxu0 0.0
        %7419 = vmatpush1.msra.mxu0 0.0
        %7420 = vmatprep.subr.mxu0 0.0
        %7421 = vmatpush1.msra.mxu0 0.0
        %7422 = vmatprep.subr.mxu0 0.0
        %7423 = vmatpush1.msra.mxu0 0.0
        %7424 = vmatprep.mubr.f32.mxu0 %v7352
        %7425 = vmatmul.mubr.f32.gmra.mrb[0].mxu0 %v7348
        %v7426 = vpop.f32.mrb[0].mxu0
        %v7427 = vadd.f32 %v3800, %v7426
        %v7428 = vpop.f32.mrb[0].mxu0
        %7429 = vmatprep.mubr.f32.mxu0 %v7354
        %7430 = vmatmul.mubr.f32.gmra.mrb[0].mxu0 %v7349
        %v7431 = vpop.f32.mrb[0].mxu0
        %v7432 = vadd.f32 %v3800, %v7431
        %v7433 = vpop.f32.mrb[0].mxu0
        %7434 = vmatprep.mubr.f32.mxu0 %v7356
        %7435 = vmatmul.mubr.f32.gmra.mrb[0].mxu0 %v7350
        %v7436 = vpop.f32.mrb[0].mxu0
        %v7437 = vadd.f32 %v3800, %v7436
        %v7438 = vpop.f32.mrb[0].mxu0
        %7439 = vmatprep.mubr.f32.mxu0 %v7358
        %7440 = vmatmul.mubr.f32.gmra.mrb[0].mxu0 %v7351
        %v7441 = vpop.f32.mrb[0].mxu0
        %v7442 = vadd.f32 %v3800, %v7441
        %v7443 = vpop.f32.mrb[0].mxu0
        %7444 = vdwg.mxu0
        %v7446 = vsel %vm1438, %v7442, 0
        %7448 = vmatprep.subr.mxu0 0.0
        %7449 = vmatpush1.msra.mxu0 %v7427
        %7450 = vmatprep.subr.mxu0 0.0
        %7451 = vmatpush1.msra.mxu0 %v7432
        %7452 = vmatprep.subr.mxu0 0.0
        %7453 = vmatpush1.msra.mxu0 %v7437
        %7454 = vmatprep.subr.mxu0 0.0
        %7455 = vmatpush1.msra.mxu0 %v7446
        %7456 = vmatprep.subr.mxu0 0.0
        %7457 = vmatpush1.msra.mxu0 0.0
        %7458 = vmatprep.subr.mxu0 0.0
        %7459 = vmatpush1.msra.mxu0 0.0
        %7460 = vmatprep.subr.mxu0 0.0
        %7461 = vmatpush1.msra.mxu0 0.0
        %7462 = vmatprep.subr.mxu0 0.0
        %7463 = vmatpush1.msra.mxu0 0.0
        %7464 = vmatprep.subr.mxu0 0.0
        %7465 = vmatpush1.msra.mxu0 0.0
        %7466 = vmatprep.subr.mxu0 0.0
        %7467 = vmatpush1.msra.mxu0 0.0
        %7468 = vmatprep.subr.mxu0 0.0
        %7469 = vmatpush1.msra.mxu0 0.0
        %7470 = vmatprep.subr.mxu0 0.0
        %7471 = vmatpush1.msra.mxu0 0.0
        %7472 = vmatprep.subr.mxu0 0.0
        %7473 = vmatpush1.msra.mxu0 0.0
        %7474 = vmatprep.subr.mxu0 0.0
        %7475 = vmatpush1.msra.mxu0 0.0
        %7476 = vmatprep.subr.mxu0 0.0
        %7477 = vmatpush1.msra.mxu0 0.0
        %7478 = vmatprep.subr.mxu0 0.0
        %7479 = vmatpush1.msra.mxu0 0.0
        %7480 = vmatprep.subr.mxu0 0.0
        %7481 = vmatpush1.msra.mxu0 0.0
        %7482 = vmatprep.subr.mxu0 0.0
        %7483 = vmatpush1.msra.mxu0 0.0
        %7484 = vmatprep.subr.mxu0 0.0
        %7485 = vmatpush1.msra.mxu0 0.0
        %7486 = vmatprep.subr.mxu0 0.0
        %7487 = vmatpush1.msra.mxu0 0.0
        %7488 = vmatprep.subr.mxu0 0.0
        %7489 = vmatpush1.msra.mxu0 0.0
        %7490 = vmatprep.subr.mxu0 0.0
        %7491 = vmatpush1.msra.mxu0 0.0
        %7492 = vmatprep.subr.mxu0 0.0
        %7493 = vmatpush1.msra.mxu0 0.0
        %7494 = vmatprep.subr.mxu0 0.0
        %7495 = vmatpush1.msra.mxu0 0.0
        %7496 = vmatprep.subr.mxu0 0.0
        %7497 = vmatpush1.msra.mxu0 0.0
        %7498 = vmatprep.subr.mxu0 0.0
        %7499 = vmatpush1.msra.mxu0 0.0
        %7500 = vmatprep.subr.mxu0 0.0
        %7501 = vmatpush1.msra.mxu0 0.0
        %7502 = vmatprep.subr.mxu0 0.0
        %7503 = vmatpush1.msra.mxu0 0.0
        %7504 = vmatprep.subr.mxu0 0.0
        %7505 = vmatpush1.msra.mxu0 0.0
        %7506 = vmatprep.subr.mxu0 0.0
        %7507 = vmatpush1.msra.mxu0 0.0
        %7508 = vmatprep.subr.mxu0 0.0
        %7509 = vmatpush1.msra.mxu0 0.0
        %7510 = vmatprep.subr.mxu0 0.0
        %7511 = vmatpush1.msra.mxu0 0.0
        %7512 = vmatprep.mubr.f32.mxu0 0.0
        %7513 = vmatmul.mubr.f32.gmra.mrb[0].mxu0 %v3898
        %v7514 = vpop.f32.mrb[0].mxu0
        %v7515 = vadd.f32 0.0, %v7514
        %v7516 = vpop.f32.mrb[0].mxu0
        %7517 = vdwg.mxu0
        %v7518 = vmax.f32 %v7515, 0.0
        %v7520 = vrot.slane %v7518, 1
        %7521 = vrot.lane.b32.xlu0 %v7520, 64
        %v7522 = vpop.permute.xlu0 %7521
        %v7524 = vrot.slane %v7518, 2
        %v7525 = vsel %vm2189, %v7518, %v7522
        %v7526 = vsel %vm2189, %v7524, 0
        %7528 = vmatprep.subr.mxu0 0.0
        %7529 = vmatpush1.msra.mxu0 %v3981
        %7530 = vmatprep.subr.mxu0 0.0
        %7531 = vmatpush1.msra.mxu0 %v3982
        %7532 = vmatprep.subr.mxu0 0.0
        %7533 = vmatpush1.msra.mxu0 %v3983
        %7534 = vmatprep.subr.mxu0 0.0
        %7535 = vmatpush1.msra.mxu0 %v3984
        %7536 = vmatprep.subr.mxu0 0.0
        %7537 = vmatpush1.msra.mxu0 %v3985
        %7538 = vmatprep.subr.mxu0 0.0
        %7539 = vmatpush1.msra.mxu0 %v3986
        %7540 = vmatprep.subr.mxu0 0.0
        %7541 = vmatpush1.msra.mxu0 %v3987
        %7542 = vmatprep.subr.mxu0 0.0
        %7543 = vmatpush1.msra.mxu0 %v3988
        %7544 = vmatprep.subr.mxu0 0.0
        %7545 = vmatpush1.msra.mxu0 %v3989
        %7546 = vmatprep.subr.mxu0 0.0
        %7547 = vmatpush1.msra.mxu0 %v3990
        %7548 = vmatprep.subr.mxu0 0.0
        %7549 = vmatpush1.msra.mxu0 %v3991
        %7550 = vmatprep.subr.mxu0 0.0
        %7551 = vmatpush1.msra.mxu0 %v3992
        %7552 = vmatprep.subr.mxu0 0.0
        %7553 = vmatpush1.msra.mxu0 %v3993
        %7554 = vmatprep.subr.mxu0 0.0
        %7555 = vmatpush1.msra.mxu0 %v3994
        %7556 = vmatprep.subr.mxu0 0.0
        %7557 = vmatpush1.msra.mxu0 %v3995
        %7558 = vmatprep.subr.mxu0 0.0
        %7559 = vmatpush1.msra.mxu0 %v3996
        %7560 = vmatprep.subr.mxu0 0.0
        %7561 = vmatpush1.msra.mxu0 %v3997
        %7562 = vmatprep.subr.mxu0 0.0
        %7563 = vmatpush1.msra.mxu0 %v3998
        %7564 = vmatprep.subr.mxu0 0.0
        %7565 = vmatpush1.msra.mxu0 %v3999
        %7566 = vmatprep.subr.mxu0 0.0
        %7567 = vmatpush1.msra.mxu0 %v4000
        %7568 = vmatprep.subr.mxu0 0.0
        %7569 = vmatpush1.msra.mxu0 %v4001
        %7570 = vmatprep.subr.mxu0 0.0
        %7571 = vmatpush1.msra.mxu0 %v4002
        %7572 = vmatprep.subr.mxu0 0.0
        %7573 = vmatpush1.msra.mxu0 %v4003
        %7574 = vmatprep.subr.mxu0 0.0
        %7575 = vmatpush1.msra.mxu0 %v4004
        %7576 = vmatprep.subr.mxu0 0.0
        %7577 = vmatpush1.msra.mxu0 0.0
        %7578 = vmatprep.subr.mxu0 0.0
        %7579 = vmatpush1.msra.mxu0 0.0
        %7580 = vmatprep.subr.mxu0 0.0
        %7581 = vmatpush1.msra.mxu0 0.0
        %7582 = vmatprep.subr.mxu0 0.0
        %7583 = vmatpush1.msra.mxu0 0.0
        %7584 = vmatprep.subr.mxu0 0.0
        %7585 = vmatpush1.msra.mxu0 0.0
        %7586 = vmatprep.subr.mxu0 0.0
        %7587 = vmatpush1.msra.mxu0 0.0
        %7588 = vmatprep.subr.mxu0 0.0
        %7589 = vmatpush1.msra.mxu0 0.0
        %7590 = vmatprep.subr.mxu0 0.0
        %7591 = vmatpush1.msra.mxu0 0.0
        %7592 = vmatprep.mubr.f32.mxu0 %v7526
        %7593 = vmatmul.mubr.f32.gmra.mrb[0].mxu0 %v7525
        %v7594 = vpop.f32.mrb[0].mxu0
        %v7595 = vadd.f32 %v4010, %v7594
        %v7596 = vpop.f32.mrb[0].mxu0
        %7597 = vdwg.mxu0
        %v7599 = vsel %vm695, %v7595, 0
        %7601 = vmatprep.subr.mxu0 0.0
        %7602 = vmatpush1.msra.mxu0 %v7599
        %7603 = vmatprep.subr.mxu0 0.0
        %7604 = vmatpush1.msra.mxu0 0.0
        %7605 = vmatprep.subr.mxu0 0.0
        %7606 = vmatpush1.msra.mxu0 0.0
        %7607 = vmatprep.subr.mxu0 0.0
        %7608 = vmatpush1.msra.mxu0 0.0
        %7609 = vmatprep.subr.mxu0 0.0
        %7610 = vmatpush1.msra.mxu0 0.0
        %7611 = vmatprep.subr.mxu0 0.0
        %7612 = vmatpush1.msra.mxu0 0.0
        %7613 = vmatprep.subr.mxu0 0.0
        %7614 = vmatpush1.msra.mxu0 0.0
        %7615 = vmatprep.subr.mxu0 0.0
        %7616 = vmatpush1.msra.mxu0 0.0
        %7617 = vmatprep.subr.mxu0 0.0
        %7618 = vmatpush1.msra.mxu0 0.0
        %7619 = vmatprep.subr.mxu0 0.0
        %7620 = vmatpush1.msra.mxu0 0.0
        %7621 = vmatprep.subr.mxu0 0.0
        %7622 = vmatpush1.msra.mxu0 0.0
        %7623 = vmatprep.subr.mxu0 0.0
        %7624 = vmatpush1.msra.mxu0 0.0
        %7625 = vmatprep.subr.mxu0 0.0
        %7626 = vmatpush1.msra.mxu0 0.0
        %7627 = vmatprep.subr.mxu0 0.0
        %7628 = vmatpush1.msra.mxu0 0.0
        %7629 = vmatprep.subr.mxu0 0.0
        %7630 = vmatpush1.msra.mxu0 0.0
        %7631 = vmatprep.subr.mxu0 0.0
        %7632 = vmatpush1.msra.mxu0 0.0
        %7633 = vmatprep.subr.mxu0 0.0
        %7634 = vmatpush1.msra.mxu0 0.0
        %7635 = vmatprep.subr.mxu0 0.0
        %7636 = vmatpush1.msra.mxu0 0.0
        %7637 = vmatprep.subr.mxu0 0.0
        %7638 = vmatpush1.msra.mxu0 0.0
        %7639 = vmatprep.subr.mxu0 0.0
        %7640 = vmatpush1.msra.mxu0 0.0
        %7641 = vmatprep.subr.mxu0 0.0
        %7642 = vmatpush1.msra.mxu0 0.0
        %7643 = vmatprep.subr.mxu0 0.0
        %7644 = vmatpush1.msra.mxu0 0.0
        %7645 = vmatprep.subr.mxu0 0.0
        %7646 = vmatpush1.msra.mxu0 0.0
        %7647 = vmatprep.subr.mxu0 0.0
        %7648 = vmatpush1.msra.mxu0 0.0
        %7649 = vmatprep.subr.mxu0 0.0
        %7650 = vmatpush1.msra.mxu0 0.0
        %7651 = vmatprep.subr.mxu0 0.0
        %7652 = vmatpush1.msra.mxu0 0.0
        %7653 = vmatprep.subr.mxu0 0.0
        %7654 = vmatpush1.msra.mxu0 0.0
        %7655 = vmatprep.subr.mxu0 0.0
        %7656 = vmatpush1.msra.mxu0 0.0
        %7657 = vmatprep.subr.mxu0 0.0
        %7658 = vmatpush1.msra.mxu0 0.0
        %7659 = vmatprep.subr.mxu0 0.0
        %7660 = vmatpush1.msra.mxu0 0.0
        %7661 = vmatprep.subr.mxu0 0.0
        %7662 = vmatpush1.msra.mxu0 0.0
        %7663 = vmatprep.subr.mxu0 0.0
        %7664 = vmatpush1.msra.mxu0 0.0
        %7665 = vmatprep.mubr.f32.mxu0 0.0
        %7666 = vmatmul.mubr.f32.gmra.mrb[0].mxu0 %v4087
        %v7667 = vpop.f32.mrb[0].mxu0
        %v7668 = vadd.f32 0.0, %v7667
        %v7669 = vpop.f32.mrb[0].mxu0
        %7670 = vdwg.mxu0
        %v7671 = vmax.f32 %v7668, 0.0
        %v7674 = vunpack.c.l.s4 1966171168
        %v7675 = vunpack.c.0.s8 %v7674
        %v7676 = vlaneseq
        %v7677 = vshrl.u32 %v7676, 7
        %v7678 = vsub.s32 %v7675, %v7677
        %v7679 = vrot.slane %v4162, %v7678
        %v7680 = vcombine.high %v7679, %v7679
        %v7682 = vunpack.c.l.s4 1966171168
        %v7683 = vunpack.c.0.s8 %v7682
        %v7684 = vlaneseq
        %v7685 = vshrl.u32 %v7684, 7
        %v7686 = vsub.s32 %v7683, %v7685
        %v7687 = vrot.slane %v7679, %v7686
        %v7689 = vunpack.c.l.s4 1966171168
        %v7690 = vunpack.c.0.s8 %v7689
        %v7691 = vlaneseq
        %v7692 = vshrl.u32 %v7691, 7
        %v7693 = vsub.s32 %v7690, %v7692
        %v7694 = vrot.slane %v7680, %v7693
        %v7699 = vunpack.c.l.s4 1966171168
        %v7700 = vunpack.c.0.s8 %v7699
        %v7701 = vlaneseq
        %v7702 = vshrl.u32 %v7701, 7
        %v7703 = vsub.s32 %v7700, %v7702
        %v7704 = vrot.slane %v7671, %v7703
        %v7705 = vcombine.high %v7704, %v7704
        %v7707 = vunpack.c.l.s4 1966171168
        %v7708 = vunpack.c.0.s8 %v7707
        %v7709 = vlaneseq
        %v7710 = vshrl.u32 %v7709, 7
        %v7711 = vsub.s32 %v7708, %v7710
        %v7712 = vrot.slane %v7704, %v7711
        %v7714 = vunpack.c.l.s4 1966171168
        %v7715 = vunpack.c.0.s8 %v7714
        %v7716 = vlaneseq
        %v7717 = vshrl.u32 %v7716, 7
        %v7718 = vsub.s32 %v7715, %v7717
        %v7719 = vrot.slane %v7705, %v7718
        %v7720 = vlaneseq
        %v7721 = vshrl.u32 %v7720, 7
        %v7722 = vsub.s32 0, %v7721
        %v7723 = vrot.slane %v7712, %v7722
        %v7724 = vlaneseq
        %v7725 = vshrl.u32 %v7724, 7
        %v7726 = vsub.s32 0, %v7725
        %v7727 = vrot.slane %v7719, %v7726
        %v7730 = vsel %vm1625, %v7687, %v7723
        %v7731 = vsel %vm1625, %v7694, %v7727
        %7732 = vst [vmem:[%s429] sm:$0x3] %v7730
        %7733 = vst [vmem:[%s429 + $0x2] sm:$0x3] %v7731
        %s7734 = sand.u32 %s310, 1
        %s7735 = sand.u32 %s310, 1
        %s7736 = smul.addr %s7735, 4
        %s7737 = scalar_lea.vmem [#allocation2], %s7736
        // Predicated region
        $region73: #{silence_predictor_forward.2} parent=71 // pred_check
          %p7738 = pneg %p320
        $region74: #{silence_predictor_forward.2} parent=71 // pred_check_branch
          %7740 = sbr.rel (%p7738) target = $region76
        $region75: #{silence_predictor_forward.2} parent=71 // pred_region
          %s7741 = smul.addr %s24, 2
          %s7742 = scalar_lea.vmem %s13, %s7741
          // Predicated region
          $region77: #{silence_predictor_forward.2} parent=75 // pred_check
            _
          $region78: #{silence_predictor_forward.2} parent=75 // pred_check_branch
            %7744 = sbr.rel (0) target = $region80
          $region79: #{silence_predictor_forward.2} parent=75 // pred_region
            // Predicated region
            $region81: #{silence_predictor_forward.2} parent=79 // pred_check
              _
            $region82: #{silence_predictor_forward.2} parent=79 // pred_check_branch
              %7746 = sbr.rel target = $region84
            $region83: #{silence_predictor_forward.2} parent=79 // pred_region
              // Predicated region
              $region96: #{silence_predictor_forward.2} parent=83 // pred_check
                _
              $region97: #{silence_predictor_forward.2} parent=83 // pred_check_branch
                %7763 = sbr.rel (0) target = $region99
              $region98: #{silence_predictor_forward.2} parent=83 // pred_region
                loop: start=0, step=1, limit=1
                $region100: #{silence_predictor_forward.2} parent=98 // loop_pre_header
                  _
                $region101: #{silence_predictor_forward.2} parent=98 // loop_header
                  %s7766 = sphi 0, %s7770
                  %p7767 = scmp.ge.s32.totalorder %s7766, 1
                  %s7771 = sphi %s7737, %s7737
                  %s7772 = sphi %s7742, %s7742
                $region102: #{silence_predictor_forward.2} parent=98 // loop_header_branch
                  %7769 = sbr.rel (%p7767) target = $region106
                $region103: #{silence_predictor_forward.2} parent=98 // loop_body
                  %v7773 = vld [vmem:[%s7771] sm:$0x3]
                  %7774 = vst [vmem:[%s7772] sm:$0x3] %v7773
                  %v7775 = vld [vmem:[%s7771 + $0x2] sm:$0x3]
                  %7776 = vst [vmem:[%s7772 + $0x4] sm:$0x3] %v7775
                $region104: #{silence_predictor_forward.2} parent=98 // loop_footer
                  %s7770 = sadd.s32 1, %s7766
                $region105: #{silence_predictor_forward.2} parent=98 // loop_footer_branch
                  %7765 = sbr.rel target = $region101
                $region106: #{silence_predictor_forward.2} parent=98 // loop_exit
                  _
              $region99: #{silence_predictor_forward.2} parent=83 // pred_fallthru
                _
            $region84: #{silence_predictor_forward.2} parent=79 // pred_fallthru
              _
            // Predicated region
            $region85: #{silence_predictor_forward.2} parent=79 // pred_check
              _
            $region86: #{silence_predictor_forward.2} parent=79 // pred_check_branch
              %7748 = sbr.rel (0) target = $region88
            $region87: #{silence_predictor_forward.2} parent=79 // pred_region
              loop: start=0, step=1, limit=1
              $region89: #{silence_predictor_forward.2} parent=87 // loop_pre_header
                _
              $region90: #{silence_predictor_forward.2} parent=87 // loop_header
                %s7751 = sphi 0, %s7755
                %p7752 = scmp.ge.s32.totalorder %s7751, 1
                %s7756 = sphi %s7737, %s7737
                %s7757 = sphi %s7742, %s7742
              $region91: #{silence_predictor_forward.2} parent=87 // loop_header_branch
                %7754 = sbr.rel (%p7752) target = $region95
              $region92: #{silence_predictor_forward.2} parent=87 // loop_body
                %v7758 = vld [vmem:[%s7756] sm:$0x3]
                %7759 = vst [vmem:[%s7757] sm:$0x3] %v7758
                %v7760 = vld [vmem:[%s7756 + $0x2] sm:$0x3]
                %7761 = vst [vmem:[%s7757 + $0x4] sm:$0x3] %v7760
              $region93: #{silence_predictor_forward.2} parent=87 // loop_footer
                %s7755 = sadd.s32 1, %s7751
              $region94: #{silence_predictor_forward.2} parent=87 // loop_footer_branch
                %7750 = sbr.rel target = $region90
              $region95: #{silence_predictor_forward.2} parent=87 // loop_exit
                _
            $region88: #{silence_predictor_forward.2} parent=79 // pred_fallthru
              _
          $region80: #{silence_predictor_forward.2} parent=75 // pred_fallthru
            _
          %7777 = vnop
        $region76: #{silence_predictor_forward.2} parent=71 // pred_fallthru
          _
      $region72: #{silence_predictor_forward.2} parent=5 // pred_fallthru
        _
      %p7778 = scmp.le.s32.totalorder 2, %s19
      // Predicated region
      $region107: #{silence_predictor_forward.2} parent=5 // pred_check
        %p7779 = pneg %p7778
      $region108: #{silence_predictor_forward.2} parent=5 // pred_check_branch
        %7781 = sbr.rel (%p7779) target = $region110
      $region109: #{silence_predictor_forward.2} parent=5 // pred_region
        %s7782 = ssub.s32 %s19, 2
        // Predicated region
        $region111: #{silence_predictor_forward.2} parent=109 // pred_check
          %p7783 = pneg %p326
        $region112: #{silence_predictor_forward.2} parent=109 // pred_check_branch
          %7785 = sbr.rel (%p7783) target = $region114
        $region113: #{silence_predictor_forward.2} parent=109 // pred_region
          %s7786 = sand.u32 %s311, 1
          %s7787 = sand.u32 %s311, 1
          %s7788 = smul.addr %s7787, 4
          %s7789 = scalar_lea.vmem [#allocation2], %s7788
        $region114: #{silence_predictor_forward.2} parent=109 // pred_fallthru
          _
      $region110: #{silence_predictor_forward.2} parent=5 // pred_fallthru
        _
    $region6: #{silence_predictor_forward.2} parent=1 // loop_footer
      %s23 = sadd.s32 1, %s19
    $region7: #{silence_predictor_forward.2} parent=1 // loop_footer_branch
      %18 = sbr.rel target = $region3
    $region8: #{silence_predictor_forward.2} parent=1 // loop_exit
      _

</llo_original>
